<compile_context>
chip_gen: v7x
topology: tpu7x:2x2x1
jax: 0.10.0
libtpu: 0.0.40
codegen_flags: <defaults>
</compile_context>

<pallas_src>
import functools

import jax
import jax.numpy as jnp
import numpy as np
from jax.experimental import pallas as pl
from jax.experimental.pallas import tpu as pltpu


N_ANCHOR = 9
N_CLASS = 3
FEAT_STRIDE = 2
N_PROPOSALS = 32
POOL = 7
C_FEAT = 16                      # "real" extractor channels
C_PAD = 128                      # extractor channels stored lane-dense
K_EXT = 32                       # extractor im2col K: 27 padded to 32
LANE = 128
LOC_CLAMP = float(np.log(1000.0 / 16.0))   # reference decoders clamp dh/dw


def _round_up(x, m):
    return ((x + m - 1) // m) * m


def _cdiv(a, b):
    return -(-a // b)


def _default_vmem_limit():
    # Derive the scoped-VMEM budget from the chip (v7x: 64 MiB physical,
    # v5e/v6e: 128 MiB); fall back conservatively if the query is unavailable.
    try:
        cap = int(pltpu.get_tpu_info().vmem_capacity_bytes)
    except Exception:
        cap = 64 * 1024 * 1024
    return max(16 * 1024 * 1024, min((cap * 3) // 4, 96 * 1024 * 1024))


VMEM_LIMIT = _default_vmem_limit()


# ----------------------------------------------------------------------------
# Fused matmul-chain kernel (extractor conv-as-matmul, RoI head)
# ----------------------------------------------------------------------------
def _mlp_kernel(*refs, activations):
    """Fused matmul chain on one row-tile.

    refs = (x_ref, w1_ref, b1_ref, ..., wL_ref, bL_ref, o_ref).
    Dot operands are bf16 (native MXU dtype); accumulation + bias + ReLU stay
    f32 (VPU slack under the matmul), intermediates never leave VMEM.
    """
    x_ref, o_ref = refs[0], refs[-1]
    h = x_ref[...]
    for l, act in enumerate(activations):
        w_ref = refs[1 + 2 * l]
        b_ref = refs[2 + 2 * l]
        h = jnp.dot(h.astype(w_ref.dtype), w_ref[...],
                    preferred_element_type=jnp.float32) + b_ref[...]
        if act == "relu":
            h = jnp.maximum(h, 0.0)
    o_ref[...] = h.astype(o_ref.dtype)


def _pick_tm(M, K, n_out):
    """Row-tile: scale with M, keep >=2 grid steps (megacore), clamp by VMEM."""
    if M <= 8:
        tm = 8
    elif M >= 2048:
        tm = 512
    elif M >= 256:
        tm = 128
    else:
        tm = _round_up(max(M // 2, 8), 8)
    # double-buffered bf16 x-tile + f32 out-tile must leave generous headroom
    while tm > 8 and 2 * tm * (2 * K + 4 * n_out) > VMEM_LIMIT // 4:
        tm = max(8, _round_up(tm // 2, 8))
    return tm


def fused_mlp(x, layers, *, out_dtype=jnp.float32):
    """act_L(...act_1(x @ w1 + b1)... @ wL + bL) in ONE pallas_call.

    layers: list of (w_bf16, b_f32, activation).  Rows (M) are tiled with a
    'parallel' grid axis; small K/N dims are full-extent blocks (no padding
    copies); the last layer's N is lane-padded to 128 at init time by callers.
    """
    M, K = x.shape
    n_out = layers[-1][0].shape[1]
    tm = _pick_tm(M, K, n_out)
    Mp = _round_up(M, tm)
    x = x.astype(jnp.bfloat16)
    if Mp != M:
        x = jnp.pad(x, ((0, Mp - M), (0, 0)))

    in_specs = [pl.BlockSpec((tm, K), lambda i: (i, 0))]
    args = [x]
    flops = 0
    bytes_accessed = Mp * K * 2 + Mp * n_out * np.dtype(out_dtype).itemsize
    for w, b, _ in layers:
        kl, nl = w.shape
        # Resident weights/bias (constant index_map).
        # TODO(synk): mark these pipeline_mode=pl.Buffered(1) once
        # single-buffered constant operands are universally supported; the
        # weights here are tiny so default double-buffering costs ~nothing.
        in_specs.append(pl.BlockSpec((kl, nl), lambda i: (0, 0)))
        in_specs.append(pl.BlockSpec((1, nl), lambda i: (0, 0)))
        args += [w, b.reshape(1, nl)]
        flops += 2 * Mp * kl * nl
        bytes_accessed += kl * nl * 2 + nl * 4

    out = pl.pallas_call(
        functools.partial(_mlp_kernel,
                          activations=tuple(a for _, _, a in layers)),
        out_shape=jax.ShapeDtypeStruct((Mp, n_out), out_dtype),
        grid=(Mp // tm,),
        in_specs=in_specs,
        out_specs=pl.BlockSpec((tm, n_out), lambda i: (i, 0)),
        compiler_params=pltpu.CompilerParams(
            dimension_semantics=("parallel",),
            vmem_limit_bytes=VMEM_LIMIT),
        cost_estimate=pl.CostEstimate(flops=int(flops), transcendentals=0,
                                      bytes_accessed=int(bytes_accessed)),
    )(*args)
    return out if Mp == M else out[:M]


# ----------------------------------------------------------------------------
# Fused RPN kernel: in-kernel 3x3 conv + heads + softmax-fg + decode + clip
# ----------------------------------------------------------------------------
def _rpn_fused_kernel(xflat_ref, wconv_ref, bconv_ref, whead_ref, bhead_ref,
                      anchors_ref, o_ref, *, halo, row_pitch, win,
                      img_h, img_w):
    tm = o_ref.shape[0]
    c = xflat_ref.shape[1]
    n_mid = wconv_ref.shape[1]
    row0 = pl.multiple_of(pl.program_id(0) * tm, 8)

    # One aligned dynamic load of the halo'd window; the 9 conv taps are
    # static shifted slices of it (no im2col, no 9x HBM blow-up).
    local = xflat_ref[pl.ds(row0, win), :]                      # (win, C) f32

    acc = jnp.zeros((tm, n_mid), jnp.float32)
    for t in range(9):
        dy, dx = t // 3 - 1, t % 3 - 1
        ofs = halo + dy * row_pitch + dx                        # static, >= 0
        x_slab = local[ofs:ofs + tm, :].astype(jnp.bfloat16)
        acc = acc + jnp.dot(x_slab, wconv_ref[t * c:(t + 1) * c, :],
                            preferred_element_type=jnp.float32)
    h1 = jnp.maximum(acc + bconv_ref[...], 0.0)                 # (tm, 32) f32

    # Packed 1x1 heads: columns [dy|dx|dh|dw|bg|fg]x9 then zero pad to 128.
    h2 = jnp.dot(h1.astype(jnp.bfloat16), whead_ref[...],
                 preferred_element_type=jnp.float32) + bhead_ref[...]

    # Decode + clip on (tm, 18) slabs (full sublane occupancy); anchors are in
    # blocked-by-coordinate layout [y1|x1|y2|x2]x9.
    a = anchors_ref[...]
    size = a[:, 18:36] - a[:, 0:18]                             # [h  | w ]
    ctr = a[:, 0:18] + 0.5 * size                               # [cy | cx]
    nctr = h2[:, 0:18] * size + ctr                             # dy,dx applied
    dsz = jnp.minimum(h2[:, 18:36], LOC_CLAMP)                  # clamp dh,dw
    nsz = jnp.exp(dsz) * size
    lo = nctr - 0.5 * nsz                                       # [y1 | x1]
    hi = nctr + 0.5 * nsz                                       # [y2 | x2]
    bound = jnp.where(
        jax.lax.broadcasted_iota(jnp.int32, (1, 18), 1) < N_ANCHOR,
        img_h, img_w).astype(jnp.float32)
    lo = jnp.clip(lo, 0.0, bound)
    hi = jnp.clip(hi, 0.0, bound)

    # Foreground prob = softmax([bg, fg])[1] = 1 / (1 + exp(bg - fg))  (EUP).
    fg = pl.reciprocal(1.0 + jnp.exp(h2[:, 36:45] - h2[:, 45:54]), approx=True)

    pad = jnp.zeros((tm, LANE - 45), jnp.float32)
    # Single lane-dense 128-wide store: [y1|x1|y2|x2|fg|pad].
    o_ref[...] = jnp.concatenate([lo, hi, fg, pad], axis=1)


def _build_anchor_table(feat_h, feat_w, feat_stride, rows_padded, base_size=8,
                        ratios=(0.5, 1.0, 2.0), scales=(1.0, 2.0, 4.0)):
    """Numpy (trace-time) anchor table, blocked layout [y1|x1|y2|x2]x9 per
    padded-grid row; boundary / padding rows are zero (discarded later)."""
    py = px = base_size / 2.0
    base = []
    for r in ratios:
        for s in scales:
            h = base_size * s * np.sqrt(r)
            w = base_size * s * np.sqrt(1.0 / r)
            base.append([py - h / 2.0, px - w / 2.0, py + h / 2.0, px + w / 2.0])
    base = np.asarray(base, np.float32)                          # (9, 4)
    ys = np.arange(feat_h, dtype=np.float32) * feat_stride
    xs = np.arange(feat_w, dtype=np.float32) * feat_stride
    shift = np.zeros((feat_h, feat_w, 4), np.float32)
    shift[..., 0] = ys[:, None]
    shift[..., 2] = ys[:, None]
    shift[..., 1] = xs[None, :]
    shift[..., 3] = xs[None, :]
    per_pos = shift[..., :, None] + base.T[None, None, :, :]     # (H, W, 4, 9)
    tbl = np.zeros((feat_h + 2, feat_w + 2, 4, N_ANCHOR), np.float32)
    tbl[1:1 + feat_h, 1:1 + feat_w] = per_pos
    tbl = tbl.reshape((feat_h + 2) * (feat_w + 2), 4 * N_ANCHOR)
    out = np.zeros((rows_padded, 4 * N_ANCHOR), np.float32)
    out[:tbl.shape[0]] = tbl
    return jnp.asarray(out)


def rpn_fused(feat_hwc, params, img_h, img_w, *, feat_stride=FEAT_STRIDE):
    """RPN conv3x3+ReLU, packed 1x1 heads, fg softmax, anchor decode + clip in
    ONE pallas_call.  Returns (boxes (A,4), fg_scores (A,))."""
    Hf, Wf, C = feat_hwc.shape
    Hp, Wp = Hf + 2, Wf + 2
    R = Hp * Wp                                   # padded-grid rows
    halo = Wf + 3                                 # max |shift| of the 9 taps
    n_steps = max(2, _cdiv(R, 512))               # >= 2 grid steps (megacore)
    tm = _round_up(_cdiv(R, n_steps), 8)
    Rpad = tm * n_steps
    win = _round_up(tm + 2 * halo, 8)             # halo'd window per row tile
    Rext = Rpad - tm + win

    # Spatially zero-pad, flatten to rows, add halo rows of zeros.
    xp = jnp.pad(feat_hwc.astype(jnp.float32),
                 ((1, 1), (1, 1), (0, 0))).reshape(R, C)
    xflat = jnp.pad(xp, ((halo, Rext - R - halo), (0, 0)))

    anchors = _build_anchor_table(Hf, Wf, feat_stride, Rpad)     # constant

    flops = Rpad * (2 * 9 * C * 32 + 2 * 32 * LANE) + 60 * Rpad
    bytes_accessed = (Rext * C * 4 + Rpad * 36 * 4 + Rpad * LANE * 4
                      + 9 * C * 32 * 2 + 32 * LANE * 2)
    out = pl.pallas_call(
        functools.partial(_rpn_fused_kernel, halo=halo, row_pitch=Wp, win=win,
                          img_h=float(img_h), img_w=float(img_w)),
        out_shape=jax.ShapeDtypeStruct((Rpad, LANE), jnp.float32),
        grid=(n_steps,),
        in_specs=[
            pl.BlockSpec((Rext, C), lambda i: (0, 0)),       # resident feature map
            pl.BlockSpec((9 * C, 32), lambda i: (0, 0)),     # resident conv weights
            pl.BlockSpec((1, 32), lambda i: (0, 0)),
            pl.BlockSpec((32, LANE), lambda i: (0, 0)),      # packed loc|score head
            pl.BlockSpec((1, LANE), lambda i: (0, 0)),
            pl.BlockSpec((tm, 36), lambda i: (i, 0)),        # per-row anchors
        ],
        out_specs=pl.BlockSpec((tm, LANE), lambda i: (i, 0)),
        compiler_params=pltpu.CompilerParams(
            dimension_semantics=("parallel",),
            vmem_limit_bytes=VMEM_LIMIT),
        cost_estimate=pl.CostEstimate(flops=int(flops),
                                      transcendentals=int(27 * Rpad),
                                      bytes_accessed=int(bytes_accessed)),
    )(xflat, params["rpn_conv_w"], params["rpn_conv_b"].reshape(1, 32),
      params["rpn_head_w"], params["rpn_head_b"].reshape(1, LANE), anchors)

    valid = out[:R].reshape(Hp, Wp, LANE)[1:1 + Hf, 1:1 + Wf, :]
    valid = valid.reshape(Hf * Wf, LANE)
    boxes = valid[:, :36].reshape(Hf * Wf, 4, N_ANCHOR)
    boxes = jnp.transpose(boxes, (0, 2, 1)).reshape(Hf * Wf * N_ANCHOR, 4)
    fg = valid[:, 36:45].reshape(Hf * Wf * N_ANCHOR)
    return boxes, fg


# ----------------------------------------------------------------------------
# Glue (extractor im2col, RoI pooling) — plain JAX
# ----------------------------------------------------------------------------
def im2col(x, k, stride, pad):
    """x: NHWC -> patches (N*Ho*Wo, k*k*C), Ho, Wo.  Only used for the
    3-channel input image (the RPN conv is done in-kernel)."""
    N, H, W, C = x.shape
    xp = jnp.pad(x, ((0, 0), (pad, pad), (pad, pad), (0, 0)))
    Ho = (H + 2 * pad - k) // stride + 1
    Wo = (W + 2 * pad - k) // stride + 1
    cols = []
    for i in range(k):
        for j in range(k):
            cols.append(xp[:, i:i + stride * Ho:stride, j:j + stride * Wo:stride, :])
    patches = jnp.concatenate(cols, axis=-1)
    return patches.reshape(N * Ho * Wo, k * k * C), Ho, Wo


def roi_pool(feat, rois, roi_indices, pool=7, spatial_scale=0.5):
    # TODO(synk): nearest bin-center sampling, not torchvision RoIPool's
    # max-over-bin; and the data-dependent gather stays in JAX — convert to a
    # PrefetchScalarGridSpec DMA-gather kernel when R / feature maps grow.
    R = rois.shape[0]
    H, W = feat.shape[1], feat.shape[2]
    y1, x1, y2, x2 = (rois[:, i] * spatial_scale for i in range(4))
    grid = (jnp.arange(pool, dtype=jnp.float32) + 0.5) / pool        # (P,)
    ys = y1[:, None] + grid[None, :] * (y2 - y1)[:, None]            # (R, P)
    xs = x1[:, None] + grid[None, :] * (x2 - x1)[:, None]
    yi = jnp.clip(jnp.floor(ys), 0, H - 1).astype(jnp.int32)
    xi = jnp.clip(jnp.floor(xs), 0, W - 1).astype(jnp.int32)
    pooled = feat[roi_indices[:, None, None], yi[:, :, None], xi[:, None, :], :]
    return pooled.reshape(R, -1)                                     # (R, P*P*C)


# ----------------------------------------------------------------------------
# Params: one-time packing, lane padding and bf16 cast of all MXU weights
# ----------------------------------------------------------------------------
def init_params(key):
    def w(k, shape):
        return 0.05 * jax.random.normal(k, shape, dtype=jnp.float32)

    ks = jax.random.split(key, 8)

    # extractor conv3x3 s2: K 27 -> 32 (zero rows), out 16 -> 128 lanes (zero cols)
    ext_w = jnp.zeros((K_EXT, C_PAD), jnp.float32)
    ext_w = ext_w.at[:27, :C_FEAT].set(w(ks[0], (27, C_FEAT)))

    # RPN conv3x3 over the 128-lane feature map (only first 16 rows/tap real)
    rc = w(ks[1], (9, C_FEAT, 32))
    rpn_conv_w = jnp.zeros((9, C_PAD, 32), jnp.float32)
    rpn_conv_w = rpn_conv_w.at[:, :C_FEAT, :].set(rc).reshape(9 * C_PAD, 32)

    # Packed RPN 1x1 heads: columns [dy|dx|dh|dw|bg|fg]x9 (54) zero-padded to 128
    rh = w(ks[2], (32, N_ANCHOR * 6))
    rpn_head_w = jnp.zeros((32, LANE), jnp.float32).at[:, :N_ANCHOR * 6].set(rh)

    # RoI head: fc1 over pooled (7,7,C_PAD) (only first 16 channels real)
    f1 = w(ks[4], (POOL * POOL, C_FEAT, 64))
    fc1_w = jnp.zeros((POOL * POOL, C_PAD, 64), jnp.float32)
    fc1_w = fc1_w.at[:, :C_FEAT, :].set(f1).reshape(POOL * POOL * C_PAD, 64)
    fc2_w = w(ks[5], (64, 64))

    # Packed output heads: [cls_loc(12) | score(3)] zero-padded to 128 lanes
    ho = w(ks[6], (64, N_CLASS * 5))
    head_out_w = jnp.zeros((64, LANE), jnp.float32).at[:, :N_CLASS * 5].set(ho)

    bf = jnp.bfloat16
    return {
        "ext_w": ext_w.astype(bf),
        "ext_b": jnp.zeros((C_PAD,), jnp.float32),
        "rpn_conv_w": rpn_conv_w.astype(bf),
        "rpn_conv_b": jnp.zeros((32,), jnp.float32),
        "rpn_head_w": rpn_head_w.astype(bf),
        "rpn_head_b": jnp.zeros((LANE,), jnp.float32),
        "fc1_w": fc1_w.astype(bf),
        "fc1_b": jnp.zeros((64,), jnp.float32),
        "fc2_w": fc2_w.astype(bf),
        "fc2_b": jnp.zeros((64,), jnp.float32),
        "head_out_w": head_out_w.astype(bf),
        "head_out_b": jnp.zeros((LANE,), jnp.float32),
    }


# ----------------------------------------------------------------------------
# FasterRCNN forward
# ----------------------------------------------------------------------------
def faster_rcnn_forward(x_nchw, params, scale=1.0):
    # layout: NCHW -> NHWC for the whole pipeline.
    x = jnp.transpose(x_nchw, (0, 2, 3, 1)).astype(jnp.float32)
    N, H, W, _ = x.shape

    # ---- extractor: conv3x3 s2 (3 -> 16, lane-padded to 128) + ReLU ----
    # (im2col kept only for the 3-channel image; patches are tiny here.)
    patches, Hf, Wf = im2col(x, 3, 2, 1)                         # (N*Hf*Wf, 27)
    patches = jnp.pad(patches, ((0, 0), (0, K_EXT - patches.shape[1])))
    feat2d = fused_mlp(patches, [(params["ext_w"], params["ext_b"], "relu")],
                       out_dtype=jnp.bfloat16)                   # (N*Hf*Wf, 128)
    feat = feat2d.reshape(N, Hf, Wf, C_PAD)

    # ---- RPN: conv3x3+ReLU + loc|score heads + fg softmax + decode + clip,
    #      all in ONE pallas_call (in-kernel 3x3, no im2col) ----
    boxes, fg_scores = rpn_fused(feat[0], params, H, W)          # (A,4), (A,)

    # TODO(synk): NMS (ProposalCreator / _suppress) is host-side cupy/numpy in
    # the reference; proposals here are the top-k foreground-score boxes.
    _, order = jax.lax.top_k(fg_scores, N_PROPOSALS)
    rois = boxes[order]                                          # (R, 4)
    roi_indices = jnp.zeros((N_PROPOSALS,), jnp.int32)           # batch idx (N=1)

    # ---- head: RoI pool -> fc1 -> fc2 -> (cls_loc | score) fused in ONE call ----
    pooled = roi_pool(feat, rois, roi_indices, POOL, 1.0 / FEAT_STRIDE)
    head_out = fused_mlp(pooled, [
        (params["fc1_w"], params["fc1_b"], "relu"),
        (params["fc2_w"], params["fc2_b"], "relu"),
        (params["head_out_w"], params["head_out_b"], None),
    ])                                                           # (R, 128)
    roi_cls_locs = head_out[:, :N_CLASS * 4]                     # (R, n_class*4)
    roi_scores = head_out[:, N_CLASS * 4:N_CLASS * 5]            # (R, n_class)

    return roi_cls_locs, roi_scores, rois, roi_indices


if __name__ == "__main__":
    key = jax.random.PRNGKey(0)
    k_params, k_x = jax.random.split(key)
    params = init_params(k_params)
    x = jax.random.normal(k_x, (1, 3, 32, 32), dtype=jnp.float32)   # NCHW like PyTorch

    fwd = jax.jit(faster_rcnn_forward)
    roi_cls_locs, roi_scores, rois, roi_indices = fwd(x, params)
    jax.block_until_ready((roi_cls_locs, roi_scores, rois, roi_indices))

    assert roi_cls_locs.shape == (N_PROPOSALS, N_CLASS * 4)
    assert roi_scores.shape == (N_PROPOSALS, N_CLASS)
    assert rois.shape == (N_PROPOSALS, 4)
    assert roi_indices.shape == (N_PROPOSALS,)
    assert bool(jnp.all(jnp.isfinite(rois)))
    print("KERNEL_OK")
</pallas_src>

<mosaic_0001>
module attributes {stable_mosaic.version = 11 : i64} {
  func.func @_mlp_kernel(%arg0: i32, %arg1: memref<128x32xbf16, #tpu.memory_space<vmem>>, %arg2: memref<32x128xbf16, #tpu.memory_space<vmem>>, %arg3: memref<1x128xf32, #tpu.memory_space<vmem>>, %arg4: memref<128x128xbf16, #tpu.memory_space<vmem>>) attributes {dimension_semantics = [#tpu.dimension_semantics<parallel>], iteration_bounds = array<i64: 2>, scalar_prefetch = 0 : i64, scratch_operands = 0 : i64, tpu.core_type = #tpu.core_type<tc>, window_params = [{transform_indices = @transform_0, window_bounds = array<i64: 128, 32>}, {pipeline_mode = #tpu.pipeline_mode<synchronous>, transform_indices = @transform_1, window_bounds = array<i64: 32, 128>}, {pipeline_mode = #tpu.pipeline_mode<synchronous>, transform_indices = @transform_2, window_bounds = array<i64: 1, 128>}, {transform_indices = @transform_3, window_bounds = array<i64: 128, 128>}]} {
    %c0 = arith.constant 0 : index
    %c0_0 = arith.constant 0 : index
    %0 = vector.load %arg1[%c0, %c0_0] : memref<128x32xbf16, #tpu.memory_space<vmem>>, vector<128x32xbf16>
    %c0_1 = arith.constant 0 : index
    %c0_2 = arith.constant 0 : index
    %1 = vector.load %arg2[%c0_1, %c0_2] : memref<32x128xbf16, #tpu.memory_space<vmem>>, vector<32x128xbf16>
    %cst = arith.constant dense<0.000000e+00> : vector<128x128xf32>
    %2 = tpu.matmul %0, %1, %cst {dimension_numbers = #tpu.dot_dimension_numbers<[1], [0], [0], [1], [0, 0, 1, 1], [], []>} : vector<128x32xbf16>, vector<32x128xbf16>, vector<128x128xf32> -> vector<128x128xf32>
    %c0_3 = arith.constant 0 : index
    %c0_4 = arith.constant 0 : index
    %3 = vector.load %arg3[%c0_3, %c0_4] : memref<1x128xf32, #tpu.memory_space<vmem>>, vector<1x128xf32>
    %4 = vector.broadcast %3 : vector<1x128xf32> to vector<128x128xf32>
    %5 = arith.addf %2, %4 : vector<128x128xf32>
    %cst_5 = arith.constant 0.000000e+00 : f32
    %6 = vector.broadcast %cst_5 : f32 to vector<128x128xf32>
    %7 = arith.maximumf %5, %6 : vector<128x128xf32>
    %8 = arith.truncf %7 : vector<128x128xf32> to vector<128x128xbf16>
    %c0_6 = arith.constant 0 : index
    %c0_7 = arith.constant 0 : index
    %9 = vector.load %arg4[%c0_6, %c0_7] : memref<128x128xbf16, #tpu.memory_space<vmem>>, vector<128x128xbf16>
    tpu.vector_store %arg4[%c0_6, %c0_7], %8 {strides = array<i32>} : memref<128x128xbf16, #tpu.memory_space<vmem>>, vector<128x128xbf16>,
    return
  }
  func.func @transform_0(%arg0: i32) -> (i32, i32) {
    %c0_i32 = arith.constant 0 : i32
    %c0_i32_0 = arith.constant 0 : i32
    return %arg0, %c0_i32 : i32, i32
  }
  func.func @transform_1(%arg0: i32) -> (i32, i32) {
    %c0_i32 = arith.constant 0 : i32
    %c0_i32_0 = arith.constant 0 : i32
    %c0_i32_1 = arith.constant 0 : i32
    return %c0_i32, %c0_i32_0 : i32, i32
  }
  func.func @transform_2(%arg0: i32) -> (i32, i32) {
    %c0_i32 = arith.constant 0 : i32
    %c0_i32_0 = arith.constant 0 : i32
    %c0_i32_1 = arith.constant 0 : i32
    return %c0_i32, %c0_i32_0 : i32, i32
  }
  func.func @transform_3(%arg0: i32) -> (i32, i32) {
    %c0_i32 = arith.constant 0 : i32
    %c0_i32_0 = arith.constant 0 : i32
    return %arg0, %c0_i32 : i32, i32
  }
}

module attributes {stable_mosaic.version = 11 : i64} {
  func.func @_rpn_fused_kernel(%arg0: i32, %arg1: memref<376x128xf32, #tpu.memory_space<vmem>>, %arg2: memref<1152x32xbf16, #tpu.memory_space<vmem>>, %arg3: memref<1x32xf32, #tpu.memory_space<vmem>>, %arg4: memref<32x128xbf16, #tpu.memory_space<vmem>>, %arg5: memref<1x128xf32, #tpu.memory_space<vmem>>, %arg6: memref<168x36xf32, #tpu.memory_space<vmem>>, %arg7: memref<168x128xf32, #tpu.memory_space<vmem>>) attributes {dimension_semantics = [#tpu.dimension_semantics<parallel>], iteration_bounds = array<i64: 2>, scalar_prefetch = 0 : i64, scratch_operands = 0 : i64, tpu.core_type = #tpu.core_type<tc>, window_params = [{pipeline_mode = #tpu.pipeline_mode<synchronous>, transform_indices = @transform_0, window_bounds = array<i64: 376, 128>}, {pipeline_mode = #tpu.pipeline_mode<synchronous>, transform_indices = @transform_1, window_bounds = array<i64: 1152, 32>}, {pipeline_mode = #tpu.pipeline_mode<synchronous>, transform_indices = @transform_2, window_bounds = array<i64: 1, 32>}, {pipeline_mode = #tpu.pipeline_mode<synchronous>, transform_indices = @transform_3, window_bounds = array<i64: 32, 128>}, {pipeline_mode = #tpu.pipeline_mode<synchronous>, transform_indices = @transform_4, window_bounds = array<i64: 1, 128>}, {transform_indices = @transform_5, window_bounds = array<i64: 168, 36>}, {transform_indices = @transform_6, window_bounds = array<i64: 168, 128>}]} {
    %c168_i32 = arith.constant 168 : i32
    %0 = arith.muli %arg0, %c168_i32 : i32
    %1 = tpu.assume_multiple %0, 8 : i32
    %2 = arith.index_cast %1 : i32 to index
    %c0 = arith.constant 0 : index
    %3 = vector.load %arg1[%2, %c0] : memref<376x128xf32, #tpu.memory_space<vmem>>, vector<208x128xf32>
    %cst = arith.constant 0.000000e+00 : f32
    %4 = vector.broadcast %cst : f32 to vector<168x32xf32>
    %5 = vector.extract_strided_slice %3 {offsets = [0, 0], sizes = [168, 128], strides = [1, 1]} : vector<208x128xf32> to vector<168x128xf32>
    %6 = arith.truncf %5 : vector<168x128xf32> to vector<168x128xbf16>
    %c0_0 = arith.constant 0 : index
    %c0_1 = arith.constant 0 : index
    %7 = vector.load %arg2[%c0_0, %c0_1] : memref<1152x32xbf16, #tpu.memory_space<vmem>>, vector<128x32xbf16>
    %cst_2 = arith.constant dense<0.000000e+00> : vector<168x32xf32>
    %8 = tpu.matmul %6, %7, %cst_2 {dimension_numbers = #tpu.dot_dimension_numbers<[1], [0], [0], [1], [0, 0, 1, 1], [], []>} : vector<168x128xbf16>, vector<128x32xbf16>, vector<168x32xf32> -> vector<168x32xf32>
    %9 = arith.addf %4, %8 : vector<168x32xf32>
    %10 = vector.extract_strided_slice %3 {offsets = [1, 0], sizes = [168, 128], strides = [1, 1]} : vector<208x128xf32> to vector<168x128xf32>
    %11 = arith.truncf %10 : vector<168x128xf32> to vector<168x128xbf16>
    %c128 = arith.constant 128 : index
    %c0_3 = arith.constant 0 : index
    %12 = vector.load %arg2[%c128, %c0_3] : memref<1152x32xbf16, #tpu.memory_space<vmem>>, vector<128x32xbf16>
    %cst_4 = arith.constant dense<0.000000e+00> : vector<168x32xf32>
    %13 = tpu.matmul %11, %12, %cst_4 {dimension_numbers = #tpu.dot_dimension_numbers<[1], [0], [0], [1], [0, 0, 1, 1], [], []>} : vector<168x128xbf16>, vector<128x32xbf16>, vector<168x32xf32> -> vector<168x32xf32>
    %14 = arith.addf %9, %13 : vector<168x32xf32>
    %15 = vector.extract_strided_slice %3 {offsets = [2, 0], sizes = [168, 128], strides = [1, 1]} : vector<208x128xf32> to vector<168x128xf32>
    %16 = arith.truncf %15 : vector<168x128xf32> to vector<168x128xbf16>
    %c256 = arith.constant 256 : index
    %c0_5 = arith.constant 0 : index
    %17 = vector.load %arg2[%c256, %c0_5] : memref<1152x32xbf16, #tpu.memory_space<vmem>>, vector<128x32xbf16>
    %cst_6 = arith.constant dense<0.000000e+00> : vector<168x32xf32>
    %18 = tpu.matmul %16, %17, %cst_6 {dimension_numbers = #tpu.dot_dimension_numbers<[1], [0], [0], [1], [0, 0, 1, 1], [], []>} : vector<168x128xbf16>, vector<128x32xbf16>, vector<168x32xf32> -> vector<168x32xf32>
    %19 = arith.addf %14, %18 : vector<168x32xf32>
    %20 = vector.extract_strided_slice %3 {offsets = [18, 0], sizes = [168, 128], strides = [1, 1]} : vector<208x128xf32> to vector<168x128xf32>
    %21 = arith.truncf %20 : vector<168x128xf32> to vector<168x128xbf16>
    %c384 = arith.constant 384 : index
    %c0_7 = arith.constant 0 : index
    %22 = vector.load %arg2[%c384, %c0_7] : memref<1152x32xbf16, #tpu.memory_space<vmem>>, vector<128x32xbf16>
    %cst_8 = arith.constant dense<0.000000e+00> : vector<168x32xf32>
    %23 = tpu.matmul %21, %22, %cst_8 {dimension_numbers = #tpu.dot_dimension_numbers<[1], [0], [0], [1], [0, 0, 1, 1], [], []>} : vector<168x128xbf16>, vector<128x32xbf16>, vector<168x32xf32> -> vector<168x32xf32>
    %24 = arith.addf %19, %23 : vector<168x32xf32>
    %25 = vector.extract_strided_slice %3 {offsets = [19, 0], sizes = [168, 128], strides = [1, 1]} : vector<208x128xf32> to vector<168x128xf32>
    %26 = arith.truncf %25 : vector<168x128xf32> to vector<168x128xbf16>
    %c512 = arith.constant 512 : index
    %c0_9 = arith.constant 0 : index
    %27 = vector.load %arg2[%c512, %c0_9] : memref<1152x32xbf16, #tpu.memory_space<vmem>>, vector<128x32xbf16>
    %cst_10 = arith.constant dense<0.000000e+00> : vector<168x32xf32>
    %28 = tpu.matmul %26, %27, %cst_10 {dimension_numbers = #tpu.dot_dimension_numbers<[1], [0], [0], [1], [0, 0, 1, 1], [], []>} : vector<168x128xbf16>, vector<128x32xbf16>, vector<168x32xf32> -> vector<168x32xf32>
    %29 = arith.addf %24, %28 : vector<168x32xf32>
    %30 = vector.extract_strided_slice %3 {offsets = [20, 0], sizes = [168, 128], strides = [1, 1]} : vector<208x128xf32> to vector<168x128xf32>
    %31 = arith.truncf %30 : vector<168x128xf32> to vector<168x128xbf16>
    %c640 = arith.constant 640 : index
    %c0_11 = arith.constant 0 : index
    %32 = vector.load %arg2[%c640, %c0_11] : memref<1152x32xbf16, #tpu.memory_space<vmem>>, vector<128x32xbf16>
    %cst_12 = arith.constant dense<0.000000e+00> : vector<168x32xf32>
    %33 = tpu.matmul %31, %32, %cst_12 {dimension_numbers = #tpu.dot_dimension_numbers<[1], [0], [0], [1], [0, 0, 1, 1], [], []>} : vector<168x128xbf16>, vector<128x32xbf16>, vector<168x32xf32> -> vector<168x32xf32>
    %34 = arith.addf %29, %33 : vector<168x32xf32>
    %35 = vector.extract_strided_slice %3 {offsets = [36, 0], sizes = [168, 128], strides = [1, 1]} : vector<208x128xf32> to vector<168x128xf32>
    %36 = arith.truncf %35 : vector<168x128xf32> to vector<168x128xbf16>
    %c768 = arith.constant 768 : index
    %c0_13 = arith.constant 0 : index
    %37 = vector.load %arg2[%c768, %c0_13] : memref<1152x32xbf16, #tpu.memory_space<vmem>>, vector<128x32xbf16>
    %cst_14 = arith.constant dense<0.000000e+00> : vector<168x32xf32>
    %38 = tpu.matmul %36, %37, %cst_14 {dimension_numbers = #tpu.dot_dimension_numbers<[1], [0], [0], [1], [0, 0, 1, 1], [], []>} : vector<168x128xbf16>, vector<128x32xbf16>, vector<168x32xf32> -> vector<168x32xf32>
    %39 = arith.addf %34, %38 : vector<168x32xf32>
    %40 = vector.extract_strided_slice %3 {offsets = [37, 0], sizes = [168, 128], strides = [1, 1]} : vector<208x128xf32> to vector<168x128xf32>
    %41 = arith.truncf %40 : vector<168x128xf32> to vector<168x128xbf16>
    %c896 = arith.constant 896 : index
    %c0_15 = arith.constant 0 : index
    %42 = vector.load %arg2[%c896, %c0_15] : memref<1152x32xbf16, #tpu.memory_space<vmem>>, vector<128x32xbf16>
    %cst_16 = arith.constant dense<0.000000e+00> : vector<168x32xf32>
    %43 = tpu.matmul %41, %42, %cst_16 {dimension_numbers = #tpu.dot_dimension_numbers<[1], [0], [0], [1], [0, 0, 1, 1], [], []>} : vector<168x128xbf16>, vector<128x32xbf16>, vector<168x32xf32> -> vector<168x32xf32>
    %44 = arith.addf %39, %43 : vector<168x32xf32>
    %45 = vector.extract_strided_slice %3 {offsets = [38, 0], sizes = [168, 128], strides = [1, 1]} : vector<208x128xf32> to vector<168x128xf32>
    %46 = arith.truncf %45 : vector<168x128xf32> to vector<168x128xbf16>
    %c1024 = arith.constant 1024 : index
    %c0_17 = arith.constant 0 : index
    %47 = vector.load %arg2[%c1024, %c0_17] : memref<1152x32xbf16, #tpu.memory_space<vmem>>, vector<128x32xbf16>
    %cst_18 = arith.constant dense<0.000000e+00> : vector<168x32xf32>
    %48 = tpu.matmul %46, %47, %cst_18 {dimension_numbers = #tpu.dot_dimension_numbers<[1], [0], [0], [1], [0, 0, 1, 1], [], []>} : vector<168x128xbf16>, vector<128x32xbf16>, vector<168x32xf32> -> vector<168x32xf32>
    %49 = arith.addf %44, %48 : vector<168x32xf32>
    %c0_19 = arith.constant 0 : index
    %c0_20 = arith.constant 0 : index
    %50 = vector.load %arg3[%c0_19, %c0_20] : memref<1x32xf32, #tpu.memory_space<vmem>>, vector<1x32xf32>
    %51 = vector.broadcast %50 : vector<1x32xf32> to vector<168x32xf32>
    %52 = arith.addf %49, %51 : vector<168x32xf32>
    %cst_21 = arith.constant 0.000000e+00 : f32
    %53 = vector.broadcast %cst_21 : f32 to vector<168x32xf32>
    %54 = arith.maximumf %52, %53 : vector<168x32xf32>
    %55 = arith.truncf %54 : vector<168x32xf32> to vector<168x32xbf16>
    %c0_22 = arith.constant 0 : index
    %c0_23 = arith.constant 0 : index
    %56 = vector.load %arg4[%c0_22, %c0_23] : memref<32x128xbf16, #tpu.memory_space<vmem>>, vector<32x128xbf16>
    %cst_24 = arith.constant dense<0.000000e+00> : vector<168x128xf32>
    %57 = tpu.matmul %55, %56, %cst_24 {dimension_numbers = #tpu.dot_dimension_numbers<[1], [0], [0], [1], [0, 0, 1, 1], [], []>} : vector<168x32xbf16>, vector<32x128xbf16>, vector<168x128xf32> -> vector<168x128xf32>
    %c0_25 = arith.constant 0 : index
    %c0_26 = arith.constant 0 : index
    %58 = vector.load %arg5[%c0_25, %c0_26] : memref<1x128xf32, #tpu.memory_space<vmem>>, vector<1x128xf32>
    %59 = vector.broadcast %58 : vector<1x128xf32> to vector<168x128xf32>
    %60 = arith.addf %57, %59 : vector<168x128xf32>
    %c0_27 = arith.constant 0 : index
    %c0_28 = arith.constant 0 : index
    %61 = vector.load %arg6[%c0_27, %c0_28] : memref<168x36xf32, #tpu.memory_space<vmem>>, vector<168x36xf32>
    %62 = vector.extract_strided_slice %61 {offsets = [0, 18], sizes = [168, 18], strides = [1, 1]} : vector<168x36xf32> to vector<168x18xf32>
    %63 = vector.extract_strided_slice %61 {offsets = [0, 0], sizes = [168, 18], strides = [1, 1]} : vector<168x36xf32> to vector<168x18xf32>
    %64 = arith.subf %62, %63 : vector<168x18xf32>
    %65 = vector.extract_strided_slice %61 {offsets = [0, 0], sizes = [168, 18], strides = [1, 1]} : vector<168x36xf32> to vector<168x18xf32>
    %cst_29 = arith.constant 5.000000e-01 : f32
    %66 = vector.broadcast %cst_29 : f32 to vector<168x18xf32>
    %67 = arith.mulf %66, %64 : vector<168x18xf32>
    %68 = arith.addf %65, %67 : vector<168x18xf32>
    %69 = vector.extract_strided_slice %60 {offsets = [0, 0], sizes = [168, 18], strides = [1, 1]} : vector<168x128xf32> to vector<168x18xf32>
    %70 = arith.mulf %69, %64 : vector<168x18xf32>
    %71 = arith.addf %70, %68 : vector<168x18xf32>
    %72 = vector.extract_strided_slice %60 {offsets = [0, 18], sizes = [168, 18], strides = [1, 1]} : vector<168x128xf32> to vector<168x18xf32>
    %cst_30 = arith.constant 4.13516665 : f32
    %73 = vector.broadcast %cst_30 : f32 to vector<168x18xf32>
    %74 = arith.minimumf %72, %73 : vector<168x18xf32>
    %75 = math.exp %74 : vector<168x18xf32>
    %76 = arith.mulf %75, %64 : vector<168x18xf32>
    %cst_31 = arith.constant 5.000000e-01 : f32
    %77 = vector.broadcast %cst_31 : f32 to vector<168x18xf32>
    %78 = arith.mulf %77, %76 : vector<168x18xf32>
    %79 = arith.subf %71, %78 : vector<168x18xf32>
    %cst_32 = arith.constant 5.000000e-01 : f32
    %80 = vector.broadcast %cst_32 : f32 to vector<168x18xf32>
    %81 = arith.mulf %80, %76 : vector<168x18xf32>
    %82 = arith.addf %71, %81 : vector<168x18xf32>
    %83 = tpu.iota {dimensions = array<i32: 1>} : vector<1x18xi32>
    %c9_i32 = arith.constant 9 : i32
    %84 = vector.broadcast %c9_i32 : i32 to vector<1x18xi32>
    %85 = arith.cmpi slt, %83, %84 : vector<1x18xi32>
    %cst_33 = arith.constant 3.200000e+01 : f32
    %cst_34 = arith.constant 3.200000e+01 : f32
    %86 = vector.broadcast %cst_33 : f32 to vector<1x18xf32>
    %87 = vector.broadcast %cst_34 : f32 to vector<1x18xf32>
    %88 = arith.select %85, %86, %87 : vector<1x18xi1>, vector<1x18xf32>
    %cst_35 = arith.constant 0.000000e+00 : f32
    %89 = vector.broadcast %cst_35 : f32 to vector<168x18xf32>
    %90 = arith.maximumf %89, %79 : vector<168x18xf32>
    %91 = vector.broadcast %88 : vector<1x18xf32> to vector<168x18xf32>
    %92 = arith.minimumf %91, %90 : vector<168x18xf32>
    %cst_36 = arith.constant 0.000000e+00 : f32
    %93 = vector.broadcast %cst_36 : f32 to vector<168x18xf32>
    %94 = arith.maximumf %93, %82 : vector<168x18xf32>
    %95 = vector.broadcast %88 : vector<1x18xf32> to vector<168x18xf32>
    %96 = arith.minimumf %95, %94 : vector<168x18xf32>
    %97 = vector.extract_strided_slice %60 {offsets = [0, 36], sizes = [168, 9], strides = [1, 1]} : vector<168x128xf32> to vector<168x9xf32>
    %98 = vector.extract_strided_slice %60 {offsets = [0, 45], sizes = [168, 9], strides = [1, 1]} : vector<168x128xf32> to vector<168x9xf32>
    %99 = arith.subf %97, %98 : vector<168x9xf32>
    %100 = math.exp %99 : vector<168x9xf32>
    %cst_37 = arith.constant 1.000000e+00 : f32
    %101 = vector.broadcast %cst_37 : f32 to vector<168x9xf32>
    %102 = arith.addf %101, %100 : vector<168x9xf32>
    %103 = tpu.reciprocal %102 {approx = true} : vector<168x9xf32> -> vector<168x9xf32>
    %cst_38 = arith.constant 0.000000e+00 : f32
    %104 = vector.broadcast %cst_38 : f32 to vector<168x83xf32>
    %105 = tpu.concatenate %92, %96, %103, %104 in 1 : vector<168x18xf32>, vector<168x18xf32>, vector<168x9xf32>, vector<168x83xf32> -> vector<168x128xf32>
    %c0_39 = arith.constant 0 : index
    %c0_40 = arith.constant 0 : index
    %106 = vector.load %arg7[%c0_39, %c0_40] : memref<168x128xf32, #tpu.memory_space<vmem>>, vector<168x128xf32>
    tpu.vector_store %arg7[%c0_39, %c0_40], %105 {strides = array<i32>} : memref<168x128xf32, #tpu.memory_space<vmem>>, vector<168x128xf32>,
    return
  }
  func.func @transform_0(%arg0: i32) -> (i32, i32) {
    %c0_i32 = arith.constant 0 : i32
    %c0_i32_0 = arith.constant 0 : i32
    %c0_i32_1 = arith.constant 0 : i32
    return %c0_i32, %c0_i32_0 : i32, i32
  }
  func.func @transform_1(%arg0: i32) -> (i32, i32) {
    %c0_i32 = arith.constant 0 : i32
    %c0_i32_0 = arith.constant 0 : i32
    %c0_i32_1 = arith.constant 0 : i32
    return %c0_i32, %c0_i32_0 : i32, i32
  }
  func.func @transform_2(%arg0: i32) -> (i32, i32) {
    %c0_i32 = arith.constant 0 : i32
    %c0_i32_0 = arith.constant 0 : i32
    %c0_i32_1 = arith.constant 0 : i32
    return %c0_i32, %c0_i32_0 : i32, i32
  }
  func.func @transform_3(%arg0: i32) -> (i32, i32) {
    %c0_i32 = arith.constant 0 : i32
    %c0_i32_0 = arith.constant 0 : i32
    %c0_i32_1 = arith.constant 0 : i32
    return %c0_i32, %c0_i32_0 : i32, i32
  }
  func.func @transform_4(%arg0: i32) -> (i32, i32) {
    %c0_i32 = arith.constant 0 : i32
    %c0_i32_0 = arith.constant 0 : i32
    %c0_i32_1 = arith.constant 0 : i32
    return %c0_i32, %c0_i32_0 : i32, i32
  }
  func.func @transform_5(%arg0: i32) -> (i32, i32) {
    %c0_i32 = arith.constant 0 : i32
    %c0_i32_0 = arith.constant 0 : i32
    return %arg0, %c0_i32 : i32, i32
  }
  func.func @transform_6(%arg0: i32) -> (i32, i32) {
    %c0_i32 = arith.constant 0 : i32
    %c0_i32_0 = arith.constant 0 : i32
    return %arg0, %c0_i32 : i32, i32
  }
}

module attributes {stable_mosaic.version = 11 : i64} {
  func.func @_mlp_kernel(%arg0: i32, %arg1: memref<16x6272xbf16, #tpu.memory_space<vmem>>, %arg2: memref<6272x64xbf16, #tpu.memory_space<vmem>>, %arg3: memref<1x64xf32, #tpu.memory_space<vmem>>, %arg4: memref<64x64xbf16, #tpu.memory_space<vmem>>, %arg5: memref<1x64xf32, #tpu.memory_space<vmem>>, %arg6: memref<64x128xbf16, #tpu.memory_space<vmem>>, %arg7: memref<1x128xf32, #tpu.memory_space<vmem>>, %arg8: memref<16x128xf32, #tpu.memory_space<vmem>>) attributes {dimension_semantics = [#tpu.dimension_semantics<parallel>], iteration_bounds = array<i64: 2>, scalar_prefetch = 0 : i64, scratch_operands = 0 : i64, tpu.core_type = #tpu.core_type<tc>, window_params = [{transform_indices = @transform_0, window_bounds = array<i64: 16, 6272>}, {pipeline_mode = #tpu.pipeline_mode<synchronous>, transform_indices = @transform_1, window_bounds = array<i64: 6272, 64>}, {pipeline_mode = #tpu.pipeline_mode<synchronous>, transform_indices = @transform_2, window_bounds = array<i64: 1, 64>}, {pipeline_mode = #tpu.pipeline_mode<synchronous>, transform_indices = @transform_3, window_bounds = array<i64: 64, 64>}, {pipeline_mode = #tpu.pipeline_mode<synchronous>, transform_indices = @transform_4, window_bounds = array<i64: 1, 64>}, {pipeline_mode = #tpu.pipeline_mode<synchronous>, transform_indices = @transform_5, window_bounds = array<i64: 64, 128>}, {pipeline_mode = #tpu.pipeline_mode<synchronous>, transform_indices = @transform_6, window_bounds = array<i64: 1, 128>}, {transform_indices = @transform_7, window_bounds = array<i64: 16, 128>}]} {
    %c0 = arith.constant 0 : index
    %c0_0 = arith.constant 0 : index
    %0 = vector.load %arg1[%c0, %c0_0] : memref<16x6272xbf16, #tpu.memory_space<vmem>>, vector<16x6272xbf16>
    %c0_1 = arith.constant 0 : index
    %c0_2 = arith.constant 0 : index
    %1 = vector.load %arg2[%c0_1, %c0_2] : memref<6272x64xbf16, #tpu.memory_space<vmem>>, vector<6272x64xbf16>
    %cst = arith.constant dense<0.000000e+00> : vector<16x64xf32>
    %2 = tpu.matmul %0, %1, %cst {dimension_numbers = #tpu.dot_dimension_numbers<[1], [0], [0], [1], [0, 0, 1, 1], [], []>} : vector<16x6272xbf16>, vector<6272x64xbf16>, vector<16x64xf32> -> vector<16x64xf32>
    %c0_3 = arith.constant 0 : index
    %c0_4 = arith.constant 0 : index
    %3 = vector.load %arg3[%c0_3, %c0_4] : memref<1x64xf32, #tpu.memory_space<vmem>>, vector<1x64xf32>
    %4 = vector.broadcast %3 : vector<1x64xf32> to vector<16x64xf32>
    %5 = arith.addf %2, %4 : vector<16x64xf32>
    %cst_5 = arith.constant 0.000000e+00 : f32
    %6 = vector.broadcast %cst_5 : f32 to vector<16x64xf32>
    %7 = arith.maximumf %5, %6 : vector<16x64xf32>
    %8 = arith.truncf %7 : vector<16x64xf32> to vector<16x64xbf16>
    %c0_6 = arith.constant 0 : index
    %c0_7 = arith.constant 0 : index
    %9 = vector.load %arg4[%c0_6, %c0_7] : memref<64x64xbf16, #tpu.memory_space<vmem>>, vector<64x64xbf16>
    %cst_8 = arith.constant dense<0.000000e+00> : vector<16x64xf32>
    %10 = tpu.matmul %8, %9, %cst_8 {dimension_numbers = #tpu.dot_dimension_numbers<[1], [0], [0], [1], [0, 0, 1, 1], [], []>} : vector<16x64xbf16>, vector<64x64xbf16>, vector<16x64xf32> -> vector<16x64xf32>
    %c0_9 = arith.constant 0 : index
    %c0_10 = arith.constant 0 : index
    %11 = vector.load %arg5[%c0_9, %c0_10] : memref<1x64xf32, #tpu.memory_space<vmem>>, vector<1x64xf32>
    %12 = vector.broadcast %11 : vector<1x64xf32> to vector<16x64xf32>
    %13 = arith.addf %10, %12 : vector<16x64xf32>
    %cst_11 = arith.constant 0.000000e+00 : f32
    %14 = vector.broadcast %cst_11 : f32 to vector<16x64xf32>
    %15 = arith.maximumf %13, %14 : vector<16x64xf32>
    %16 = arith.truncf %15 : vector<16x64xf32> to vector<16x64xbf16>
    %c0_12 = arith.constant 0 : index
    %c0_13 = arith.constant 0 : index
    %17 = vector.load %arg6[%c0_12, %c0_13] : memref<64x128xbf16, #tpu.memory_space<vmem>>, vector<64x128xbf16>
    %cst_14 = arith.constant dense<0.000000e+00> : vector<16x128xf32>
    %18 = tpu.matmul %16, %17, %cst_14 {dimension_numbers = #tpu.dot_dimension_numbers<[1], [0], [0], [1], [0, 0, 1, 1], [], []>} : vector<16x64xbf16>, vector<64x128xbf16>, vector<16x128xf32> -> vector<16x128xf32>
    %c0_15 = arith.constant 0 : index
    %c0_16 = arith.constant 0 : index
    %19 = vector.load %arg7[%c0_15, %c0_16] : memref<1x128xf32, #tpu.memory_space<vmem>>, vector<1x128xf32>
    %20 = vector.broadcast %19 : vector<1x128xf32> to vector<16x128xf32>
    %21 = arith.addf %18, %20 : vector<16x128xf32>
    %c0_17 = arith.constant 0 : index
    %c0_18 = arith.constant 0 : index
    %22 = vector.load %arg8[%c0_17, %c0_18] : memref<16x128xf32, #tpu.memory_space<vmem>>, vector<16x128xf32>
    tpu.vector_store %arg8[%c0_17, %c0_18], %21 {strides = array<i32>} : memref<16x128xf32, #tpu.memory_space<vmem>>, vector<16x128xf32>,
    return
  }
  func.func @transform_0(%arg0: i32) -> (i32, i32) {
    %c0_i32 = arith.constant 0 : i32
    %c0_i32_0 = arith.constant 0 : i32
    return %arg0, %c0_i32 : i32, i32
  }
  func.func @transform_1(%arg0: i32) -> (i32, i32) {
    %c0_i32 = arith.constant 0 : i32
    %c0_i32_0 = arith.constant 0 : i32
    %c0_i32_1 = arith.constant 0 : i32
    return %c0_i32, %c0_i32_0 : i32, i32
  }
  func.func @transform_2(%arg0: i32) -> (i32, i32) {
    %c0_i32 = arith.constant 0 : i32
    %c0_i32_0 = arith.constant 0 : i32
    %c0_i32_1 = arith.constant 0 : i32
    return %c0_i32, %c0_i32_0 : i32, i32
  }
  func.func @transform_3(%arg0: i32) -> (i32, i32) {
    %c0_i32 = arith.constant 0 : i32
    %c0_i32_0 = arith.constant 0 : i32
    %c0_i32_1 = arith.constant 0 : i32
    return %c0_i32, %c0_i32_0 : i32, i32
  }
  func.func @transform_4(%arg0: i32) -> (i32, i32) {
    %c0_i32 = arith.constant 0 : i32
    %c0_i32_0 = arith.constant 0 : i32
    %c0_i32_1 = arith.constant 0 : i32
    return %c0_i32, %c0_i32_0 : i32, i32
  }
  func.func @transform_5(%arg0: i32) -> (i32, i32) {
    %c0_i32 = arith.constant 0 : i32
    %c0_i32_0 = arith.constant 0 : i32
    %c0_i32_1 = arith.constant 0 : i32
    return %c0_i32, %c0_i32_0 : i32, i32
  }
  func.func @transform_6(%arg0: i32) -> (i32, i32) {
    %c0_i32 = arith.constant 0 : i32
    %c0_i32_0 = arith.constant 0 : i32
    %c0_i32_1 = arith.constant 0 : i32
    return %c0_i32, %c0_i32_0 : i32, i32
  }
  func.func @transform_7(%arg0: i32) -> (i32, i32) {
    %c0_i32 = arith.constant 0 : i32
    %c0_i32_0 = arith.constant 0 : i32
    return %arg0, %c0_i32 : i32, i32
  }
}

</mosaic_0001>

<llo_original>
// kernel: faster_rcnn_forward.3
$region0: #{faster_rcnn_forward.3}
  #allocation0 [shape = 'u32[]', space=smem, size = 0x4, offset = 0x4, fixed_abs, tag = 'smem constant byte address 0x4 - core index']
  #allocation1 [shape = 'u32[144,128]{1,0:T(1,128)}', space=vmem, size = 0x12000, scoped, tag = 'internal scratch']
  %s0 = inlined_call_operand.vmem [shape: bf16[256,32], index: 0, kind: input, shape index: {}]
  %s1 = inlined_call_operand.hbm [shape: bf16[32,128], index: 1, kind: input, shape index: {}]
  %s2 = inlined_call_operand.hbm [shape: f32[1,128], index: 2, kind: input, shape index: {}]
  %s3 = inlined_call_operand.vmem [shape: bf16[256,128], index: 3, kind: output, shape index: {}]
  %s4 = sld [smem:[#allocation0]]
  $region53: #{faster_rcnn_forward.3} parent=0
    _
  %s6 = ssub.s32 1, %s4
  %s7 = scalar_select 0, %s6, %s4
  $region1: #{faster_rcnn_forward.3} parent=0
    #allocation2 [shape = 'u8[8192]{0}', space=vmem, size = 0x2000, scoped, tag = 'input window, operand 1, single buffered']
    #allocation3 [shape = 's32[2]{0}', space=sflag, size = 0x8, scoped, tag = 'scoped memory for faster_rcnn_forward.3']
    #allocation4 [shape = 'u8[512]{0}', space=vmem, size = 0x400, scoped, tag = 'input window, operand 2, single buffered']
    #allocation5 [shape = 's32[1]{0}', space=sflag, size = 0x4, scoped, tag = 'scoped memory for faster_rcnn_forward.3']
    %8 = vsyncpa [#allocation3], 0
    %9 = vsyncpa [#allocation5], 0
    loop: start=0, step=1, limit=4
    $region2: #{faster_rcnn_forward.3} parent=1 // loop_pre_header
      _
    $region3: #{faster_rcnn_forward.3} parent=1 // loop_header
      %s11 = sphi 0, %s15
      %p12 = scmp.ge.s32.totalorder %s11, 4
      %s21 = sphi 0, %s23
      %s24 = sphi 0, %s21
      %s25 = sphi 0, %s24
      %s41 = sphi 0, %s25
      %s45 = sphi 0, %s45
      %s47 = sphi 0, %s45
      %s48 = sphi 0, %s47
      %s62 = sphi 0, %s48
      %s66 = sphi 0, %s66
      %s68 = sphi 0, %s66
      %s69 = sphi 0, %s68
      %s83 = sphi 0, %s69
      %s89 = sphi 0, %s91
      %s92 = sphi 0, %s89
      %s93 = sphi 0, %s92
      %s109 = sphi 0, %s93
    $region4: #{faster_rcnn_forward.3} parent=1 // loop_header_branch
      %14 = sbr.rel (%p12) target = $region8
    $region5: #{faster_rcnn_forward.3} parent=1 // loop_body
      %s16 = ssub.s32 %s11, 1
      %s17 = ssub.s32 %s11, 2
      %s18 = sadd.s32 %s11, 1
      %s19 = ssub.s32 %s11, %s18
      %p20 = scmp.eq.s32.totalorder %s19, 0
      %s22 = sadd.s32 %s21, 1
      %s23 = scalar_select %p20, %s21, %s22
      %p26 = pneg %p20
      %p27 = scmp.eq.s32.totalorder %s11, 1
      %p28 = por %p26, %p27
      %p29 = scmp.ne.s32.totalorder %s21, %s24
      %p30 = scmp.eq.s32.totalorder %s11, 0
      %p31 = por %p29, %p30
      %p32 = scmp.ne.s32.totalorder %s21, %s24
      %p33 = scmp.eq.s32.totalorder %s16, 1
      %p34 = por %p32, %p33
      %p35 = scmp.ne.s32.totalorder %s24, %s25
      %p36 = scmp.eq.s32.totalorder %s16, 0
      %p37 = por %p35, %p36
      %p38 = scmp.ne.s32.totalorder %s24, %s25
      %p39 = scmp.eq.s32.totalorder %s17, 1
      %p40 = por %p38, %p39
      %p42 = scmp.ne.s32.totalorder %s25, %s41
      %p43 = scmp.eq.s32.totalorder %s17, 0
      %p44 = por %p42, %p43
      %s46 = sadd.s32 %s45, 1
      %p49 = scmp.eq.s32.totalorder %s11, 1
      %p50 = scmp.ne.s32.totalorder %s45, %s47
      %p51 = scmp.eq.s32.totalorder %s11, 0
      %p52 = por %p50, %p51
      %p53 = scmp.ne.s32.totalorder %s45, %s47
      %p54 = scmp.eq.s32.totalorder %s16, 1
      %p55 = por %p53, %p54
      %p56 = scmp.ne.s32.totalorder %s47, %s48
      %p57 = scmp.eq.s32.totalorder %s16, 0
      %p58 = por %p56, %p57
      %p59 = scmp.ne.s32.totalorder %s47, %s48
      %p60 = scmp.eq.s32.totalorder %s17, 1
      %p61 = por %p59, %p60
      %p63 = scmp.ne.s32.totalorder %s48, %s62
      %p64 = scmp.eq.s32.totalorder %s17, 0
      %p65 = por %p63, %p64
      %s67 = sadd.s32 %s66, 1
      %p70 = scmp.eq.s32.totalorder %s11, 1
      %p71 = scmp.ne.s32.totalorder %s66, %s68
      %p72 = scmp.eq.s32.totalorder %s11, 0
      %p73 = por %p71, %p72
      %p74 = scmp.ne.s32.totalorder %s66, %s68
      %p75 = scmp.eq.s32.totalorder %s16, 1
      %p76 = por %p74, %p75
      %p77 = scmp.ne.s32.totalorder %s68, %s69
      %p78 = scmp.eq.s32.totalorder %s16, 0
      %p79 = por %p77, %p78
      %p80 = scmp.ne.s32.totalorder %s68, %s69
      %p81 = scmp.eq.s32.totalorder %s17, 1
      %p82 = por %p80, %p81
      %p84 = scmp.ne.s32.totalorder %s69, %s83
      %p85 = scmp.eq.s32.totalorder %s17, 0
      %p86 = por %p84, %p85
      %s87 = ssub.s32 %s11, %s18
      %p88 = scmp.eq.s32.totalorder %s87, 0
      %s90 = sadd.s32 %s89, 1
      %s91 = scalar_select %p88, %s89, %s90
      %p94 = pneg %p88
      %p95 = scmp.eq.s32.totalorder %s11, 1
      %p96 = por %p94, %p95
      %p97 = scmp.ne.s32.totalorder %s89, %s92
      %p98 = scmp.eq.s32.totalorder %s11, 0
      %p99 = por %p97, %p98
      %p100 = scmp.ne.s32.totalorder %s89, %s92
      %p101 = scmp.eq.s32.totalorder %s16, 1
      %p102 = por %p100, %p101
      %p103 = scmp.ne.s32.totalorder %s92, %s93
      %p104 = scmp.eq.s32.totalorder %s16, 0
      %p105 = por %p103, %p104
      %p106 = scmp.ne.s32.totalorder %s92, %s93
      %p107 = scmp.eq.s32.totalorder %s17, 1
      %p108 = por %p106, %p107
      %p110 = scmp.ne.s32.totalorder %s93, %s109
      %p111 = scmp.eq.s32.totalorder %s17, 0
      %p112 = por %p110, %p111
      %p113 = scmp.le.s32.totalorder 1, %s11
      %p114 = scmp.lt.s32.totalorder %s11, 3
      %p115 = pnand %p113, %p114
      %p116 = pneg %p115
      // Predicated region
      $region9: #{faster_rcnn_forward.3} parent=5 // pred_check
        _
      $region10: #{faster_rcnn_forward.3} parent=5 // pred_check_branch
        %118 = sbr.rel (%p115) target = $region12
      $region11: #{faster_rcnn_forward.3} parent=5 // pred_region
        %s119 = ssub.s32 %s11, 1
        // Predicated region
        $region13: #{faster_rcnn_forward.3} parent=11 // pred_check
          %p120 = pneg %p58
        $region14: #{faster_rcnn_forward.3} parent=11 // pred_check_branch
          %122 = sbr.rel (%p120) target = $region16
        $region15: #{faster_rcnn_forward.3} parent=11 // pred_region
          %s124 = ssub.s32 256, 256
          %125 = vsyncadd [#allocation3], %s124
          %s126 = sshll.u32 [#allocation2], 4
          %s127 = int_to_ptr.vmem [resolvable:$true] %s126
          %132 = dma.hbm_to_vmem [thread:$0]  %s1, 256, %s127, [#allocation3], 64, 64, 4
        $region16: #{faster_rcnn_forward.3} parent=11 // pred_fallthru
          _
        // Predicated region
        $region17: #{faster_rcnn_forward.3} parent=11 // pred_check
          %p133 = pneg %p79
        $region18: #{faster_rcnn_forward.3} parent=11 // pred_check_branch
          %135 = sbr.rel (%p133) target = $region20
        $region19: #{faster_rcnn_forward.3} parent=11 // pred_region
          %s137 = ssub.s32 16, 16
          %138 = vsyncadd [#allocation5], %s137
          %s140 = sshll.u32 [#allocation4], 4
          %s141 = int_to_ptr.vmem [resolvable:$true] %s140
          %143 = dma.hbm_to_vmem [thread:$0]  %s2, 16, %s141, [#allocation5]
        $region20: #{faster_rcnn_forward.3} parent=11 // pred_fallthru
          _
      $region12: #{faster_rcnn_forward.3} parent=5 // pred_fallthru
        _
      %p144 = scmp.lt.s32.totalorder %s11, 2
      // Predicated region
      $region21: #{faster_rcnn_forward.3} parent=5 // pred_check
        %p145 = pneg %p144
      $region22: #{faster_rcnn_forward.3} parent=5 // pred_check_branch
        %147 = sbr.rel (%p145) target = $region24
      $region23: #{faster_rcnn_forward.3} parent=5 // pred_region
        // Predicated region
        $region25: #{faster_rcnn_forward.3} parent=23 // pred_check
          %p148 = pneg %p31
        $region26: #{faster_rcnn_forward.3} parent=23 // pred_check_branch
          %150 = sbr.rel (%p148) target = $region28
        $region27: #{faster_rcnn_forward.3} parent=23 // pred_region
          %s151 = smul.u32 16, %s11
          %p152 = scmp.lt.s32.totalorder %s151, 31
          %s153 = scalar_select %p152, %s151, 31
          %s154 = smul.addr %s153, 4
          %s155 = scalar_lea.vmem %s0, %s154
          %s156 = smul.u32 16, %s11
        $region28: #{faster_rcnn_forward.3} parent=23 // pred_fallthru
          _
      $region24: #{faster_rcnn_forward.3} parent=5 // pred_fallthru
        _
      %p157 = scmp.le.s32.totalorder 1, %s11
      %p158 = scmp.lt.s32.totalorder %s11, 3
      %p159 = pnand %p157, %p158
      %p160 = pneg %p159
      // Predicated region
      $region29: #{faster_rcnn_forward.3} parent=5 // pred_check
        _
      $region30: #{faster_rcnn_forward.3} parent=5 // pred_check_branch
        %162 = sbr.rel (%p159) target = $region32
      $region31: #{faster_rcnn_forward.3} parent=5 // pred_region
        %s163 = ssub.s32 %s11, 1
        // Predicated region
        $region33: #{faster_rcnn_forward.3} parent=31 // pred_check
          %p164 = pneg %p58
        $region34: #{faster_rcnn_forward.3} parent=31 // pred_check_branch
          %166 = sbr.rel (%p164) target = $region36
        $region35: #{faster_rcnn_forward.3} parent=31 // pred_region
          %167 = dma.done [#allocation3], 256
        $region36: #{faster_rcnn_forward.3} parent=31 // pred_fallthru
          _
        // Predicated region
        $region37: #{faster_rcnn_forward.3} parent=31 // pred_check
          %p168 = pneg %p79
        $region38: #{faster_rcnn_forward.3} parent=31 // pred_check_branch
          %170 = sbr.rel (%p168) target = $region40
        $region39: #{faster_rcnn_forward.3} parent=31 // pred_region
          %171 = dma.done [#allocation5], 16
        $region40: #{faster_rcnn_forward.3} parent=31 // pred_fallthru
          _
        %s172 = smul.u32 16, %s16
        %p173 = scmp.lt.s32.totalorder %s172, 31
        %s174 = scalar_select %p173, %s172, 31
        %s175 = smul.addr %s174, 4
        %s176 = scalar_lea.vmem %s0, %s175
        %p177 = pneg %p37
        %p178 = pneg %p34
        %p179 = pneg %p58
        %p180 = pneg %p55
        %p181 = pneg %p79
        %p182 = pneg %p76
        %p183 = pneg %p105
        %p184 = pneg %p102
        %s185 = smul.u32 16, %s16
        %p186 = scmp.lt.s32.totalorder %s185, 31
        %s187 = scalar_select %p186, %s185, 31
        %s188 = smul.addr %s187, 4
        %s189 = scalar_lea.vmem %s3, %s188
        %s190 = smul.u32 16, %s16
        %p191 = scmp.lt.s32.totalorder %s190, 31
        %s192 = scalar_select %p191, %s190, 31
        %s193 = smul.addr %s192, 4
        %s194 = scalar_lea.vmem %s0, %s193
        %s195 = smul.u32 16, %s16
        %s196 = smul.u32 16, %s16
        %p197 = scmp.lt.s32.totalorder %s196, 31
        %s198 = scalar_select %p197, %s196, 31
        %s199 = smul.addr %s198, 4
        %s200 = scalar_lea.vmem %s3, %s199
        %s201 = smul.u32 16, %s16
        %v203 = vld [vmem:[%s194] sm:$0xf]
        %v204 = vld [vmem:[%s194 + $0x4] sm:$0xf]
        %v205 = vld [vmem:[%s194 + $0x8] sm:$0xf]
        %v206 = vld [vmem:[%s194 + $0xc] sm:$0xf]
        %v207 = vld [vmem:[%s194 + $0x10] sm:$0xf]
        %v208 = vld [vmem:[%s194 + $0x14] sm:$0xf]
        %v209 = vld [vmem:[%s194 + $0x18] sm:$0xf]
        %v210 = vld [vmem:[%s194 + $0x1c] sm:$0xf]
        %v211 = vld [vmem:[%s194 + $0x20] sm:$0xf]
        %v212 = vld [vmem:[%s194 + $0x24] sm:$0xf]
        %v213 = vld [vmem:[%s194 + $0x28] sm:$0xf]
        %v214 = vld [vmem:[%s194 + $0x2c] sm:$0xf]
        %v215 = vld [vmem:[%s194 + $0x30] sm:$0xf]
        %v216 = vld [vmem:[%s194 + $0x34] sm:$0xf]
        %v217 = vld [vmem:[%s194 + $0x38] sm:$0xf]
        %v218 = vld [vmem:[%s194 + $0x3c] sm:$0xf]
        %v219 = vld [vmem:[#allocation2] sm:$0xf]
        %v220 = vld [vmem:[#allocation2 + $0x4] sm:$0xf]
        %v221 = vld [vmem:[#allocation2 + $0x8] sm:$0xf]
        %v222 = vld [vmem:[#allocation2 + $0xc] sm:$0xf]
        %v223 = vld [vmem:[#allocation4] sm:$0x1]
        %v225 = vlaneseq
        %v226 = vshrl.u32 %v225, 7
        %v227 = vsub.s32 0, %v226
        %v228 = vrot.slane %v223, %v227
        %v246 = vunpack.c.l.b16 %v203
        %v247 = vunpack.c.l.b16 %v204
        %v248 = vunpack.c.l.b16 %v205
        %v249 = vunpack.c.l.b16 %v206
        %v250 = vunpack.c.l.b16 %v207
        %v251 = vunpack.c.l.b16 %v208
        %v252 = vunpack.c.l.b16 %v209
        %v253 = vunpack.c.l.b16 %v210
        %v254 = vunpack.c.l.b16 %v211
        %v255 = vunpack.c.l.b16 %v212
        %v256 = vunpack.c.l.b16 %v213
        %v257 = vunpack.c.l.b16 %v214
        %v258 = vunpack.c.l.b16 %v215
        %v259 = vunpack.c.l.b16 %v216
        %v260 = vunpack.c.l.b16 %v217
        %v261 = vunpack.c.l.b16 %v218
        %v262 = vpack.c.b16 %v247, %v246
        %v263 = vpack.c.b16 %v249, %v248
        %v264 = vpack.c.b16 %v251, %v250
        %v265 = vpack.c.b16 %v253, %v252
        %v266 = vpack.c.b16 %v255, %v254
        %v267 = vpack.c.b16 %v257, %v256
        %v268 = vpack.c.b16 %v259, %v258
        %v269 = vpack.c.b16 %v261, %v260
        %v274 = vunpack.c.l.b16 %v219
        %v275 = vunpack.c.l.b16 %v220
        %v276 = vunpack.c.l.b16 %v221
        %v277 = vunpack.c.l.b16 %v222
        %v278 = vpack.c.b16 %v275, %v274
        %v279 = vpack.c.b16 %v277, %v276
        %vm282 = vcmask 261120
        %v284 = vsel %vm282, %v262, 0
        %v287 = vsel %vm282, %v263, 0
        %v290 = vsel %vm282, %v264, 0
        %v293 = vsel %vm282, %v265, 0
        %v296 = vsel %vm282, %v266, 0
        %v299 = vsel %vm282, %v267, 0
        %v302 = vsel %vm282, %v268, 0
        %v305 = vsel %vm282, %v269, 0
        %307 = vmatprep.subr.bf16.mxu0 0
        %308 = vmatpush1.bf16.msra.mxu0 %v278
        %309 = vmatprep.subr.bf16.mxu0 0
        %310 = vmatpush1.bf16.msra.mxu0 %v279
        %311 = vmatprep.subr.bf16.mxu0 0
        %312 = vmatpush1.bf16.msra.mxu0 0
        %313 = vmatprep.subr.bf16.mxu0 0
        %314 = vmatpush1.bf16.msra.mxu0 0
        %315 = vmatprep.subr.bf16.mxu0 0
        %316 = vmatpush1.bf16.msra.mxu0 0
        %317 = vmatprep.subr.bf16.mxu0 0
        %318 = vmatpush1.bf16.msra.mxu0 0
        %319 = vmatprep.subr.bf16.mxu0 0
        %320 = vmatpush1.bf16.msra.mxu0 0
        %321 = vmatprep.subr.bf16.mxu0 0
        %322 = vmatpush1.bf16.msra.mxu0 0
        %323 = vmatprep.subr.bf16.mxu0 0
        %324 = vmatpush1.bf16.msra.mxu0 0
        %325 = vmatprep.subr.bf16.mxu0 0
        %326 = vmatpush1.bf16.msra.mxu0 0
        %327 = vmatprep.subr.bf16.mxu0 0
        %328 = vmatpush1.bf16.msra.mxu0 0
        %329 = vmatprep.subr.bf16.mxu0 0
        %330 = vmatpush1.bf16.msra.mxu0 0
        %331 = vmatprep.subr.bf16.mxu0 0
        %332 = vmatpush1.bf16.msra.mxu0 0
        %333 = vmatprep.subr.bf16.mxu0 0
        %334 = vmatpush1.bf16.msra.mxu0 0
        %335 = vmatprep.subr.bf16.mxu0 0
        %336 = vmatpush1.bf16.msra.mxu0 0
        %337 = vmatprep.subr.bf16.mxu0 0
        %338 = vmatpush1.bf16.msra.mxu0 0
        %339 = vmatprep.mubr.bf16.mxu0 0
        %340 = vmatmul.mubr.bf16.gmra.mrb[0].mxu0 %v284
        %v341 = vpop.f32.mrb[0].mxu0
        %v342 = vadd.f32 %v228, %v341
        %v343 = vpop.f32.mrb[0].mxu0
        %v344 = vpop.f32.mrb[0].mxu0
        %v345 = vadd.f32 %v228, %v344
        %v346 = vpop.f32.mrb[0].mxu0
        %347 = vmatprep.mubr.bf16.mxu0 0
        %348 = vmatmul.mubr.bf16.gmra.mrb[0].mxu0 %v287
        %v349 = vpop.f32.mrb[0].mxu0
        %v350 = vadd.f32 %v228, %v349
        %v351 = vpop.f32.mrb[0].mxu0
        %v352 = vpop.f32.mrb[0].mxu0
        %v353 = vadd.f32 %v228, %v352
        %v354 = vpop.f32.mrb[0].mxu0
        %355 = vmatprep.mubr.bf16.mxu0 0
        %356 = vmatmul.mubr.bf16.gmra.mrb[0].mxu0 %v290
        %v357 = vpop.f32.mrb[0].mxu0
        %v358 = vadd.f32 %v228, %v357
        %v359 = vpop.f32.mrb[0].mxu0
        %v360 = vpop.f32.mrb[0].mxu0
        %v361 = vadd.f32 %v228, %v360
        %v362 = vpop.f32.mrb[0].mxu0
        %363 = vmatprep.mubr.bf16.mxu0 0
        %364 = vmatmul.mubr.bf16.gmra.mrb[0].mxu0 %v293
        %v365 = vpop.f32.mrb[0].mxu0
        %v366 = vadd.f32 %v228, %v365
        %v367 = vpop.f32.mrb[0].mxu0
        %v368 = vpop.f32.mrb[0].mxu0
        %v369 = vadd.f32 %v228, %v368
        %v370 = vpop.f32.mrb[0].mxu0
        %371 = vmatprep.mubr.bf16.mxu0 0
        %372 = vmatmul.mubr.bf16.gmra.mrb[0].mxu0 %v296
        %v373 = vpop.f32.mrb[0].mxu0
        %v374 = vadd.f32 %v228, %v373
        %v375 = vpop.f32.mrb[0].mxu0
        %v376 = vpop.f32.mrb[0].mxu0
        %v377 = vadd.f32 %v228, %v376
        %v378 = vpop.f32.mrb[0].mxu0
        %379 = vmatprep.mubr.bf16.mxu0 0
        %380 = vmatmul.mubr.bf16.gmra.mrb[0].mxu0 %v299
        %v381 = vpop.f32.mrb[0].mxu0
        %v382 = vadd.f32 %v228, %v381
        %v383 = vpop.f32.mrb[0].mxu0
        %v384 = vpop.f32.mrb[0].mxu0
        %v385 = vadd.f32 %v228, %v384
        %v386 = vpop.f32.mrb[0].mxu0
        %387 = vmatprep.mubr.bf16.mxu0 0
        %388 = vmatmul.mubr.bf16.gmra.mrb[0].mxu0 %v302
        %v389 = vpop.f32.mrb[0].mxu0
        %v390 = vadd.f32 %v228, %v389
        %v391 = vpop.f32.mrb[0].mxu0
        %v392 = vpop.f32.mrb[0].mxu0
        %v393 = vadd.f32 %v228, %v392
        %v394 = vpop.f32.mrb[0].mxu0
        %395 = vmatprep.mubr.bf16.mxu0 0
        %396 = vmatmul.mubr.bf16.gmra.mrb[0].mxu0 %v305
        %v397 = vpop.f32.mrb[0].mxu0
        %v398 = vadd.f32 %v228, %v397
        %v399 = vpop.f32.mrb[0].mxu0
        %v400 = vpop.f32.mrb[0].mxu0
        %v401 = vadd.f32 %v228, %v400
        %v402 = vpop.f32.mrb[0].mxu0
        %403 = vdwg.mxu0
        %v404 = vmax.f32 %v342, 0.0
        %v405 = vmax.f32 %v345, 0.0
        %v406 = vmax.f32 %v350, 0.0
        %v407 = vmax.f32 %v353, 0.0
        %v408 = vmax.f32 %v358, 0.0
        %v409 = vmax.f32 %v361, 0.0
        %v410 = vmax.f32 %v366, 0.0
        %v411 = vmax.f32 %v369, 0.0
        %v412 = vmax.f32 %v374, 0.0
        %v413 = vmax.f32 %v377, 0.0
        %v414 = vmax.f32 %v382, 0.0
        %v415 = vmax.f32 %v385, 0.0
        %v416 = vmax.f32 %v390, 0.0
        %v417 = vmax.f32 %v393, 0.0
        %v418 = vmax.f32 %v398, 0.0
        %v419 = vmax.f32 %v401, 0.0
        %v420 = vpack.c.bf16 %v405, %v404
        %v421 = vpack.c.bf16 %v407, %v406
        %v422 = vpack.c.bf16 %v409, %v408
        %v423 = vpack.c.bf16 %v411, %v410
        %v424 = vpack.c.bf16 %v413, %v412
        %v425 = vpack.c.bf16 %v415, %v414
        %v426 = vpack.c.bf16 %v417, %v416
        %v427 = vpack.c.bf16 %v419, %v418
        %v436 = vunpack.c.l.b16 %v420
        %v437 = vunpack.c.h.b16 %v420
        %v438 = vunpack.c.l.b16 %v421
        %v439 = vunpack.c.h.b16 %v421
        %v440 = vunpack.c.l.b16 %v422
        %v441 = vunpack.c.h.b16 %v422
        %v442 = vunpack.c.l.b16 %v423
        %v443 = vunpack.c.h.b16 %v423
        %v444 = vunpack.c.l.b16 %v424
        %v445 = vunpack.c.h.b16 %v424
        %v446 = vunpack.c.l.b16 %v425
        %v447 = vunpack.c.h.b16 %v425
        %v448 = vunpack.c.l.b16 %v426
        %v449 = vunpack.c.h.b16 %v426
        %v450 = vunpack.c.l.b16 %v427
        %v451 = vunpack.c.h.b16 %v427
        %v452 = vpack.c.b16 %v436, %v436
        %v453 = vpack.c.b16 %v437, %v437
        %v454 = vpack.c.b16 %v438, %v438
        %v455 = vpack.c.b16 %v439, %v439
        %v456 = vpack.c.b16 %v440, %v440
        %v457 = vpack.c.b16 %v441, %v441
        %v458 = vpack.c.b16 %v442, %v442
        %v459 = vpack.c.b16 %v443, %v443
        %v460 = vpack.c.b16 %v444, %v444
        %v461 = vpack.c.b16 %v445, %v445
        %v462 = vpack.c.b16 %v446, %v446
        %v463 = vpack.c.b16 %v447, %v447
        %v464 = vpack.c.b16 %v448, %v448
        %v465 = vpack.c.b16 %v449, %v449
        %v466 = vpack.c.b16 %v450, %v450
        %v467 = vpack.c.b16 %v451, %v451
        %484 = vst [vmem:[%s200] sm:$0xf] %v452
        %485 = vst [vmem:[%s200 + $0x4] sm:$0xf] %v453
        %486 = vst [vmem:[%s200 + $0x8] sm:$0xf] %v454
        %487 = vst [vmem:[%s200 + $0xc] sm:$0xf] %v455
        %488 = vst [vmem:[%s200 + $0x10] sm:$0xf] %v456
        %489 = vst [vmem:[%s200 + $0x14] sm:$0xf] %v457
        %490 = vst [vmem:[%s200 + $0x18] sm:$0xf] %v458
        %491 = vst [vmem:[%s200 + $0x1c] sm:$0xf] %v459
        %492 = vst [vmem:[%s200 + $0x20] sm:$0xf] %v460
        %493 = vst [vmem:[%s200 + $0x24] sm:$0xf] %v461
        %494 = vst [vmem:[%s200 + $0x28] sm:$0xf] %v462
        %495 = vst [vmem:[%s200 + $0x2c] sm:$0xf] %v463
        %496 = vst [vmem:[%s200 + $0x30] sm:$0xf] %v464
        %497 = vst [vmem:[%s200 + $0x34] sm:$0xf] %v465
        %498 = vst [vmem:[%s200 + $0x38] sm:$0xf] %v466
        %499 = vst [vmem:[%s200 + $0x3c] sm:$0xf] %v467
        %s500 = smul.u32 16, %s16
        %p501 = scmp.lt.s32.totalorder %s500, 31
        %s502 = scalar_select %p501, %s500, 31
        %s503 = smul.addr %s502, 4
        %s504 = scalar_lea.vmem %s3, %s503
        // Predicated region
        $region41: #{faster_rcnn_forward.3} parent=31 // pred_check
          %p505 = pneg %p102
        $region42: #{faster_rcnn_forward.3} parent=31 // pred_check_branch
          %507 = sbr.rel (%p505) target = $region44
        $region43: #{faster_rcnn_forward.3} parent=31 // pred_region
          %s508 = smul.u32 16, %s16
        $region44: #{faster_rcnn_forward.3} parent=31 // pred_fallthru
          _
      $region32: #{faster_rcnn_forward.3} parent=5 // pred_fallthru
        _
      %p509 = scmp.le.s32.totalorder 2, %s11
      // Predicated region
      $region45: #{faster_rcnn_forward.3} parent=5 // pred_check
        %p510 = pneg %p509
      $region46: #{faster_rcnn_forward.3} parent=5 // pred_check_branch
        %512 = sbr.rel (%p510) target = $region48
      $region47: #{faster_rcnn_forward.3} parent=5 // pred_region
        %s513 = ssub.s32 %s11, 2
        // Predicated region
        $region49: #{faster_rcnn_forward.3} parent=47 // pred_check
          %p514 = pneg %p108
        $region50: #{faster_rcnn_forward.3} parent=47 // pred_check_branch
          %516 = sbr.rel (%p514) target = $region52
        $region51: #{faster_rcnn_forward.3} parent=47 // pred_region
          %s517 = smul.u32 16, %s17
          %p518 = scmp.lt.s32.totalorder %s517, 31
          %s519 = scalar_select %p518, %s517, 31
          %s520 = smul.addr %s519, 4
          %s521 = scalar_lea.vmem %s3, %s520
        $region52: #{faster_rcnn_forward.3} parent=47 // pred_fallthru
          _
      $region48: #{faster_rcnn_forward.3} parent=5 // pred_fallthru
        _
    $region6: #{faster_rcnn_forward.3} parent=1 // loop_footer
      %s15 = sadd.s32 1, %s11
    $region7: #{faster_rcnn_forward.3} parent=1 // loop_footer_branch
      %10 = sbr.rel target = $region3
    $region8: #{faster_rcnn_forward.3} parent=1 // loop_exit
      _
    %522 = vsyncpa [#allocation3], 1
    %s523 = scalar_lea.sflag [#allocation3], 1
    %524 = vsyncpa %s523, 1
    %525 = vsyncpa [#allocation5], 1

// kernel: faster_rcnn_forward.4
$region0: #{faster_rcnn_forward.4}
  #allocation0 [shape = 'u32[]', space=smem, size = 0x4, offset = 0x4, fixed_abs, tag = 'smem constant byte address 0x4 - core index']
  #allocation1 [shape = 'u32[144,128]{1,0:T(1,128)}', space=vmem, size = 0x12000, scoped, tag = 'internal scratch']
  %s0 = inlined_call_operand.vmem [shape: f32[376,128], index: 0, kind: input, shape index: {}]
  %s1 = inlined_call_operand.vmem [shape: bf16[1152,32], index: 1, kind: input, shape index: {}]
  %s2 = inlined_call_operand.vmem [shape: f32[1,32], index: 2, kind: input, shape index: {}]
  %s3 = inlined_call_operand.vmem [shape: bf16[32,128], index: 3, kind: input, shape index: {}]
  %s4 = inlined_call_operand.vmem [shape: f32[1,128], index: 4, kind: input, shape index: {}]
  %s5 = inlined_call_operand.vmem [shape: f32[336,36], index: 5, kind: input, shape index: {}]
  %s6 = inlined_call_operand.vmem [shape: f32[336,128], index: 6, kind: output, shape index: {}]
  %s7 = sld [smem:[#allocation0]]
  $region57: #{faster_rcnn_forward.4} parent=0
    _
  %s9 = ssub.s32 1, %s7
  %s10 = scalar_select 0, %s9, %s7
  loop: start=0, step=1, limit=4
  $region2: #{faster_rcnn_forward.4} parent=0 // loop_pre_header
    _
  $region3: #{faster_rcnn_forward.4} parent=0 // loop_header
    %s12 = sphi 0, %s16
    %p13 = scmp.ge.s32.totalorder %s12, 4
    %s20 = sphi 0, %s20
    %s22 = sphi 0, %s20
    %s23 = sphi 0, %s22
    %s37 = sphi 0, %s23
    %s41 = sphi 0, %s41
    %s43 = sphi 0, %s41
    %s44 = sphi 0, %s43
    %s58 = sphi 0, %s44
    %s62 = sphi 0, %s62
    %s64 = sphi 0, %s62
    %s65 = sphi 0, %s64
    %s79 = sphi 0, %s65
    %s83 = sphi 0, %s83
    %s85 = sphi 0, %s83
    %s86 = sphi 0, %s85
    %s100 = sphi 0, %s86
    %s104 = sphi 0, %s104
    %s106 = sphi 0, %s104
    %s107 = sphi 0, %s106
    %s121 = sphi 0, %s107
    %s127 = sphi 0, %s129
    %s130 = sphi 0, %s127
    %s131 = sphi 0, %s130
    %s147 = sphi 0, %s131
    %s153 = sphi 0, %s155
    %s156 = sphi 0, %s153
    %s157 = sphi 0, %s156
    %s173 = sphi 0, %s157
  $region4: #{faster_rcnn_forward.4} parent=0 // loop_header_branch
    %15 = sbr.rel (%p13) target = $region8
  $region5: #{faster_rcnn_forward.4} parent=0 // loop_body
    %s17 = ssub.s32 %s12, 1
    %s18 = ssub.s32 %s12, 2
    %s19 = sadd.s32 %s12, 1
    %s21 = sadd.s32 %s20, 1
    %p24 = scmp.eq.s32.totalorder %s12, 1
    %p25 = scmp.ne.s32.totalorder %s20, %s22
    %p26 = scmp.eq.s32.totalorder %s12, 0
    %p27 = por %p25, %p26
    %p28 = scmp.ne.s32.totalorder %s20, %s22
    %p29 = scmp.eq.s32.totalorder %s17, 1
    %p30 = por %p28, %p29
    %p31 = scmp.ne.s32.totalorder %s22, %s23
    %p32 = scmp.eq.s32.totalorder %s17, 0
    %p33 = por %p31, %p32
    %p34 = scmp.ne.s32.totalorder %s22, %s23
    %p35 = scmp.eq.s32.totalorder %s18, 1
    %p36 = por %p34, %p35
    %p38 = scmp.ne.s32.totalorder %s23, %s37
    %p39 = scmp.eq.s32.totalorder %s18, 0
    %p40 = por %p38, %p39
    %s42 = sadd.s32 %s41, 1
    %p45 = scmp.eq.s32.totalorder %s12, 1
    %p46 = scmp.ne.s32.totalorder %s41, %s43
    %p47 = scmp.eq.s32.totalorder %s12, 0
    %p48 = por %p46, %p47
    %p49 = scmp.ne.s32.totalorder %s41, %s43
    %p50 = scmp.eq.s32.totalorder %s17, 1
    %p51 = por %p49, %p50
    %p52 = scmp.ne.s32.totalorder %s43, %s44
    %p53 = scmp.eq.s32.totalorder %s17, 0
    %p54 = por %p52, %p53
    %p55 = scmp.ne.s32.totalorder %s43, %s44
    %p56 = scmp.eq.s32.totalorder %s18, 1
    %p57 = por %p55, %p56
    %p59 = scmp.ne.s32.totalorder %s44, %s58
    %p60 = scmp.eq.s32.totalorder %s18, 0
    %p61 = por %p59, %p60
    %s63 = sadd.s32 %s62, 1
    %p66 = scmp.eq.s32.totalorder %s12, 1
    %p67 = scmp.ne.s32.totalorder %s62, %s64
    %p68 = scmp.eq.s32.totalorder %s12, 0
    %p69 = por %p67, %p68
    %p70 = scmp.ne.s32.totalorder %s62, %s64
    %p71 = scmp.eq.s32.totalorder %s17, 1
    %p72 = por %p70, %p71
    %p73 = scmp.ne.s32.totalorder %s64, %s65
    %p74 = scmp.eq.s32.totalorder %s17, 0
    %p75 = por %p73, %p74
    %p76 = scmp.ne.s32.totalorder %s64, %s65
    %p77 = scmp.eq.s32.totalorder %s18, 1
    %p78 = por %p76, %p77
    %p80 = scmp.ne.s32.totalorder %s65, %s79
    %p81 = scmp.eq.s32.totalorder %s18, 0
    %p82 = por %p80, %p81
    %s84 = sadd.s32 %s83, 1
    %p87 = scmp.eq.s32.totalorder %s12, 1
    %p88 = scmp.ne.s32.totalorder %s83, %s85
    %p89 = scmp.eq.s32.totalorder %s12, 0
    %p90 = por %p88, %p89
    %p91 = scmp.ne.s32.totalorder %s83, %s85
    %p92 = scmp.eq.s32.totalorder %s17, 1
    %p93 = por %p91, %p92
    %p94 = scmp.ne.s32.totalorder %s85, %s86
    %p95 = scmp.eq.s32.totalorder %s17, 0
    %p96 = por %p94, %p95
    %p97 = scmp.ne.s32.totalorder %s85, %s86
    %p98 = scmp.eq.s32.totalorder %s18, 1
    %p99 = por %p97, %p98
    %p101 = scmp.ne.s32.totalorder %s86, %s100
    %p102 = scmp.eq.s32.totalorder %s18, 0
    %p103 = por %p101, %p102
    %s105 = sadd.s32 %s104, 1
    %p108 = scmp.eq.s32.totalorder %s12, 1
    %p109 = scmp.ne.s32.totalorder %s104, %s106
    %p110 = scmp.eq.s32.totalorder %s12, 0
    %p111 = por %p109, %p110
    %p112 = scmp.ne.s32.totalorder %s104, %s106
    %p113 = scmp.eq.s32.totalorder %s17, 1
    %p114 = por %p112, %p113
    %p115 = scmp.ne.s32.totalorder %s106, %s107
    %p116 = scmp.eq.s32.totalorder %s17, 0
    %p117 = por %p115, %p116
    %p118 = scmp.ne.s32.totalorder %s106, %s107
    %p119 = scmp.eq.s32.totalorder %s18, 1
    %p120 = por %p118, %p119
    %p122 = scmp.ne.s32.totalorder %s107, %s121
    %p123 = scmp.eq.s32.totalorder %s18, 0
    %p124 = por %p122, %p123
    %s125 = ssub.s32 %s12, %s19
    %p126 = scmp.eq.s32.totalorder %s125, 0
    %s128 = sadd.s32 %s127, 1
    %s129 = scalar_select %p126, %s127, %s128
    %p132 = pneg %p126
    %p133 = scmp.eq.s32.totalorder %s12, 1
    %p134 = por %p132, %p133
    %p135 = scmp.ne.s32.totalorder %s127, %s130
    %p136 = scmp.eq.s32.totalorder %s12, 0
    %p137 = por %p135, %p136
    %p138 = scmp.ne.s32.totalorder %s127, %s130
    %p139 = scmp.eq.s32.totalorder %s17, 1
    %p140 = por %p138, %p139
    %p141 = scmp.ne.s32.totalorder %s130, %s131
    %p142 = scmp.eq.s32.totalorder %s17, 0
    %p143 = por %p141, %p142
    %p144 = scmp.ne.s32.totalorder %s130, %s131
    %p145 = scmp.eq.s32.totalorder %s18, 1
    %p146 = por %p144, %p145
    %p148 = scmp.ne.s32.totalorder %s131, %s147
    %p149 = scmp.eq.s32.totalorder %s18, 0
    %p150 = por %p148, %p149
    %s151 = ssub.s32 %s12, %s19
    %p152 = scmp.eq.s32.totalorder %s151, 0
    %s154 = sadd.s32 %s153, 1
    %s155 = scalar_select %p152, %s153, %s154
    %p158 = pneg %p152
    %p159 = scmp.eq.s32.totalorder %s12, 1
    %p160 = por %p158, %p159
    %p161 = scmp.ne.s32.totalorder %s153, %s156
    %p162 = scmp.eq.s32.totalorder %s12, 0
    %p163 = por %p161, %p162
    %p164 = scmp.ne.s32.totalorder %s153, %s156
    %p165 = scmp.eq.s32.totalorder %s17, 1
    %p166 = por %p164, %p165
    %p167 = scmp.ne.s32.totalorder %s156, %s157
    %p168 = scmp.eq.s32.totalorder %s17, 0
    %p169 = por %p167, %p168
    %p170 = scmp.ne.s32.totalorder %s156, %s157
    %p171 = scmp.eq.s32.totalorder %s18, 1
    %p172 = por %p170, %p171
    %p174 = scmp.ne.s32.totalorder %s157, %s173
    %p175 = scmp.eq.s32.totalorder %s18, 0
    %p176 = por %p174, %p175
    %p177 = scmp.le.s32.totalorder 1, %s12
    %p178 = scmp.lt.s32.totalorder %s12, 3
    %p179 = pnand %p177, %p178
    %p180 = pneg %p179
    // Predicated region
    $region9: #{faster_rcnn_forward.4} parent=5 // pred_check
      _
    $region10: #{faster_rcnn_forward.4} parent=5 // pred_check_branch
      %182 = sbr.rel (%p179) target = $region12
    $region11: #{faster_rcnn_forward.4} parent=5 // pred_region
      %s183 = ssub.s32 %s12, 1
      // Predicated region
      $region13: #{faster_rcnn_forward.4} parent=11 // pred_check
        %p184 = pneg %p33
      $region14: #{faster_rcnn_forward.4} parent=11 // pred_check_branch
        %186 = sbr.rel (%p184) target = $region16
      $region15: #{faster_rcnn_forward.4} parent=11 // pred_region
        _
      $region16: #{faster_rcnn_forward.4} parent=11 // pred_fallthru
        _
      // Predicated region
      $region17: #{faster_rcnn_forward.4} parent=11 // pred_check
        %p187 = pneg %p54
      $region18: #{faster_rcnn_forward.4} parent=11 // pred_check_branch
        %189 = sbr.rel (%p187) target = $region20
      $region19: #{faster_rcnn_forward.4} parent=11 // pred_region
        _
      $region20: #{faster_rcnn_forward.4} parent=11 // pred_fallthru
        _
      // Predicated region
      $region21: #{faster_rcnn_forward.4} parent=11 // pred_check
        %p190 = pneg %p75
      $region22: #{faster_rcnn_forward.4} parent=11 // pred_check_branch
        %192 = sbr.rel (%p190) target = $region24
      $region23: #{faster_rcnn_forward.4} parent=11 // pred_region
        _
      $region24: #{faster_rcnn_forward.4} parent=11 // pred_fallthru
        _
      // Predicated region
      $region25: #{faster_rcnn_forward.4} parent=11 // pred_check
        %p193 = pneg %p96
      $region26: #{faster_rcnn_forward.4} parent=11 // pred_check_branch
        %195 = sbr.rel (%p193) target = $region28
      $region27: #{faster_rcnn_forward.4} parent=11 // pred_region
        _
      $region28: #{faster_rcnn_forward.4} parent=11 // pred_fallthru
        _
      // Predicated region
      $region29: #{faster_rcnn_forward.4} parent=11 // pred_check
        %p196 = pneg %p117
      $region30: #{faster_rcnn_forward.4} parent=11 // pred_check_branch
        %198 = sbr.rel (%p196) target = $region32
      $region31: #{faster_rcnn_forward.4} parent=11 // pred_region
        _
      $region32: #{faster_rcnn_forward.4} parent=11 // pred_fallthru
        _
    $region12: #{faster_rcnn_forward.4} parent=5 // pred_fallthru
      _
    %p199 = scmp.lt.s32.totalorder %s12, 2
    // Predicated region
    $region33: #{faster_rcnn_forward.4} parent=5 // pred_check
      %p200 = pneg %p199
    $region34: #{faster_rcnn_forward.4} parent=5 // pred_check_branch
      %202 = sbr.rel (%p200) target = $region36
    $region35: #{faster_rcnn_forward.4} parent=5 // pred_region
      // Predicated region
      $region37: #{faster_rcnn_forward.4} parent=35 // pred_check
        %p203 = pneg %p137
      $region38: #{faster_rcnn_forward.4} parent=35 // pred_check_branch
        %205 = sbr.rel (%p203) target = $region40
      $region39: #{faster_rcnn_forward.4} parent=35 // pred_region
        %s206 = smul.u32 21, %s12
        %p207 = scmp.lt.s32.totalorder %s206, 41
        %s208 = scalar_select %p207, %s206, 41
        %s209 = smul.addr %s208, 8
        %s210 = scalar_lea.vmem %s5, %s209
        %s211 = smul.u32 21, %s12
      $region40: #{faster_rcnn_forward.4} parent=35 // pred_fallthru
        _
    $region36: #{faster_rcnn_forward.4} parent=5 // pred_fallthru
      _
    %p212 = scmp.le.s32.totalorder 1, %s12
    %p213 = scmp.lt.s32.totalorder %s12, 3
    %p214 = pnand %p212, %p213
    %p215 = pneg %p214
    // Predicated region
    $region41: #{faster_rcnn_forward.4} parent=5 // pred_check
      _
    $region42: #{faster_rcnn_forward.4} parent=5 // pred_check_branch
      %217 = sbr.rel (%p214) target = $region44
    $region43: #{faster_rcnn_forward.4} parent=5 // pred_region
      %s218 = ssub.s32 %s12, 1
      %p219 = pneg %p33
      %p220 = pneg %p30
      %p221 = pneg %p54
      %p222 = pneg %p51
      %p223 = pneg %p75
      %p224 = pneg %p72
      %p225 = pneg %p96
      %p226 = pneg %p93
      %p227 = pneg %p117
      %p228 = pneg %p114
      %s229 = smul.u32 21, %s17
      %p230 = scmp.lt.s32.totalorder %s229, 41
      %s231 = scalar_select %p230, %s229, 41
      %s232 = smul.addr %s231, 8
      %s233 = scalar_lea.vmem %s5, %s232
      %p234 = pneg %p143
      %p235 = pneg %p140
      %p236 = pneg %p169
      %p237 = pneg %p166
      %s238 = smul.u32 21, %s17
      %p239 = scmp.lt.s32.totalorder %s238, 41
      %s240 = scalar_select %p239, %s238, 41
      %s241 = smul.addr %s240, 8
      %s242 = scalar_lea.vmem %s6, %s241
      %s243 = smul.u32 21, %s17
      %p244 = scmp.lt.s32.totalorder %s243, 41
      %s245 = scalar_select %p244, %s243, 41
      %s246 = smul.addr %s245, 8
      %s247 = scalar_lea.vmem %s5, %s246
      %s248 = smul.u32 21, %s17
      %s249 = smul.u32 21, %s17
      %p250 = scmp.lt.s32.totalorder %s249, 41
      %s251 = scalar_select %p250, %s249, 41
      %s252 = smul.addr %s251, 8
      %s253 = scalar_lea.vmem %s6, %s252
      %s254 = smul.u32 21, %s17
      %s256 = smul.u32 %s17, 168
      %s257 = scalar_lea.vmem %s0, %s256
      %v258 = vld [vmem:[%s257] sm:$0xff]
      %v259 = vld [vmem:[%s257 + $0x8] sm:$0xff]
      %v260 = vld [vmem:[%s257 + $0x10] sm:$0xff]
      %v261 = vld [vmem:[%s257 + $0x18] sm:$0xff]
      %v262 = vld [vmem:[%s257 + $0x20] sm:$0xff]
      %v263 = vld [vmem:[%s257 + $0x28] sm:$0xff]
      %v264 = vld [vmem:[%s257 + $0x30] sm:$0xff]
      %v265 = vld [vmem:[%s257 + $0x38] sm:$0xff]
      %v266 = vld [vmem:[%s257 + $0x40] sm:$0xff]
      %v267 = vld [vmem:[%s257 + $0x48] sm:$0xff]
      %v268 = vld [vmem:[%s257 + $0x50] sm:$0xff]
      %v269 = vld [vmem:[%s257 + $0x58] sm:$0xff]
      %v270 = vld [vmem:[%s257 + $0x60] sm:$0xff]
      %v271 = vld [vmem:[%s257 + $0x68] sm:$0xff]
      %v272 = vld [vmem:[%s257 + $0x70] sm:$0xff]
      %v273 = vld [vmem:[%s257 + $0x78] sm:$0xff]
      %v274 = vld [vmem:[%s257 + $0x80] sm:$0xff]
      %v275 = vld [vmem:[%s257 + $0x88] sm:$0xff]
      %v276 = vld [vmem:[%s257 + $0x90] sm:$0xff]
      %v277 = vld [vmem:[%s257 + $0x98] sm:$0xff]
      %v278 = vld [vmem:[%s257 + $0xa0] sm:$0xff]
      %v279 = vld [vmem:[%s257 + $0xa8] sm:$0xff]
      %v280 = vld [vmem:[%s257 + $0xb0] sm:$0xff]
      %v281 = vld [vmem:[%s257 + $0xb8] sm:$0xff]
      %v282 = vld [vmem:[%s257 + $0xc0] sm:$0xff]
      %v283 = vld [vmem:[%s257 + $0xc8] sm:$0xff]
      %v284 = vpack.c.bf16 %v259, %v258
      %v285 = vpack.c.bf16 %v261, %v260
      %v286 = vpack.c.bf16 %v263, %v262
      %v287 = vpack.c.bf16 %v265, %v264
      %v288 = vpack.c.bf16 %v267, %v266
      %v289 = vpack.c.bf16 %v269, %v268
      %v290 = vpack.c.bf16 %v271, %v270
      %v291 = vpack.c.bf16 %v273, %v272
      %v292 = vpack.c.bf16 %v275, %v274
      %v293 = vpack.c.bf16 %v277, %v276
      %v294 = vpack.c.bf16 %v278, %v278
      %v295 = vld [vmem:[%s1] sm:$0xf]
      %v296 = vld [vmem:[%s1 + $0x4] sm:$0xf]
      %v297 = vld [vmem:[%s1 + $0x8] sm:$0xf]
      %v298 = vld [vmem:[%s1 + $0xc] sm:$0xf]
      %v299 = vld [vmem:[%s1 + $0x10] sm:$0xf]
      %v300 = vld [vmem:[%s1 + $0x14] sm:$0xf]
      %v301 = vld [vmem:[%s1 + $0x18] sm:$0xf]
      %v302 = vld [vmem:[%s1 + $0x1c] sm:$0xf]
      %v303 = vld [vmem:[%s1 + $0x20] sm:$0xf]
      %v304 = vld [vmem:[%s1 + $0x24] sm:$0xf]
      %v305 = vld [vmem:[%s1 + $0x28] sm:$0xf]
      %v306 = vld [vmem:[%s1 + $0x2c] sm:$0xf]
      %v307 = vld [vmem:[%s1 + $0x30] sm:$0xf]
      %v308 = vld [vmem:[%s1 + $0x34] sm:$0xf]
      %v309 = vld [vmem:[%s1 + $0x38] sm:$0xf]
      %v310 = vld [vmem:[%s1 + $0x3c] sm:$0xf]
      %v311 = vpack.c.bf16 %v279, %v278
      %v312 = vld [vmem:[%s1 + $0x40] sm:$0xf]
      %v313 = vld [vmem:[%s1 + $0x44] sm:$0xf]
      %v314 = vld [vmem:[%s1 + $0x48] sm:$0xf]
      %v315 = vld [vmem:[%s1 + $0x4c] sm:$0xf]
      %v316 = vld [vmem:[%s1 + $0x50] sm:$0xf]
      %v317 = vld [vmem:[%s1 + $0x54] sm:$0xf]
      %v318 = vld [vmem:[%s1 + $0x58] sm:$0xf]
      %v319 = vld [vmem:[%s1 + $0x5c] sm:$0xf]
      %v320 = vld [vmem:[%s1 + $0x60] sm:$0xf]
      %v321 = vld [vmem:[%s1 + $0x64] sm:$0xf]
      %v322 = vld [vmem:[%s1 + $0x68] sm:$0xf]
      %v323 = vld [vmem:[%s1 + $0x6c] sm:$0xf]
      %v324 = vld [vmem:[%s1 + $0x70] sm:$0xf]
      %v325 = vld [vmem:[%s1 + $0x74] sm:$0xf]
      %v326 = vld [vmem:[%s1 + $0x78] sm:$0xf]
      %v327 = vld [vmem:[%s1 + $0x7c] sm:$0xf]
      %vm328 = vsmask.f32 7424
      %v330 = vshrl.u32 %v284, 16
      %v332 = vshll.u32 %v284, 16
      %v334 = vrot.slane %v332, 1
      %v335 = vor.u32 %v330, %v334
      %v337 = vshll.u32 %v285, 16
      %v339 = vrot.slane %v337, 1
      %v340 = vsel %vm328, %v335, %v339
      %v341 = vshrl.u32 %v285, 16
      %v343 = vor.u32 %v341, %v339
      %v345 = vshll.u32 %v286, 16
      %v347 = vrot.slane %v345, 1
      %v348 = vsel %vm328, %v343, %v347
      %v349 = vshrl.u32 %v286, 16
      %v351 = vor.u32 %v349, %v347
      %v353 = vshll.u32 %v287, 16
      %v355 = vrot.slane %v353, 1
      %v356 = vsel %vm328, %v351, %v355
      %v357 = vshrl.u32 %v287, 16
      %v359 = vor.u32 %v357, %v355
      %v361 = vshll.u32 %v288, 16
      %v363 = vrot.slane %v361, 1
      %v364 = vsel %vm328, %v359, %v363
      %v365 = vshrl.u32 %v288, 16
      %v367 = vor.u32 %v365, %v363
      %v369 = vshll.u32 %v289, 16
      %v371 = vrot.slane %v369, 1
      %v372 = vsel %vm328, %v367, %v371
      %v373 = vshrl.u32 %v289, 16
      %v375 = vor.u32 %v373, %v371
      %v377 = vshll.u32 %v290, 16
      %v379 = vrot.slane %v377, 1
      %v380 = vsel %vm328, %v375, %v379
      %v381 = vshrl.u32 %v290, 16
      %v383 = vor.u32 %v381, %v379
      %v385 = vshll.u32 %v291, 16
      %v387 = vrot.slane %v385, 1
      %v388 = vsel %vm328, %v383, %v387
      %v389 = vshrl.u32 %v291, 16
      %v391 = vor.u32 %v389, %v387
      %v393 = vshll.u32 %v292, 16
      %v395 = vrot.slane %v393, 1
      %v396 = vsel %vm328, %v391, %v395
      %v397 = vshrl.u32 %v292, 16
      %v399 = vor.u32 %v397, %v395
      %v401 = vshll.u32 %v293, 16
      %v403 = vrot.slane %v401, 1
      %v404 = vsel %vm328, %v399, %v403
      %v405 = vshrl.u32 %v293, 16
      %v407 = vor.u32 %v405, %v403
      %v409 = vshll.u32 %v311, 16
      %v411 = vrot.slane %v409, 1
      %v412 = vsel %vm328, %v407, %v411
      %v413 = vshrl.u32 %v311, 16
      %v415 = vor.u32 %v413, %v411
      %v443 = vunpack.c.l.b16 %v312
      %v444 = vunpack.c.l.b16 %v313
      %v445 = vunpack.c.l.b16 %v314
      %v446 = vunpack.c.l.b16 %v315
      %v447 = vunpack.c.l.b16 %v316
      %v448 = vunpack.c.l.b16 %v317
      %v449 = vunpack.c.l.b16 %v318
      %v450 = vunpack.c.l.b16 %v319
      %v451 = vunpack.c.l.b16 %v320
      %v452 = vunpack.c.l.b16 %v321
      %v453 = vunpack.c.l.b16 %v322
      %v454 = vunpack.c.l.b16 %v323
      %v455 = vunpack.c.l.b16 %v324
      %v456 = vunpack.c.l.b16 %v325
      %v457 = vunpack.c.l.b16 %v326
      %v458 = vunpack.c.l.b16 %v327
      %v459 = vpack.c.b16 %v444, %v443
      %v460 = vpack.c.b16 %v446, %v445
      %v461 = vpack.c.b16 %v448, %v447
      %v462 = vpack.c.b16 %v450, %v449
      %v463 = vpack.c.b16 %v452, %v451
      %v464 = vpack.c.b16 %v454, %v453
      %v465 = vpack.c.b16 %v456, %v455
      %v466 = vpack.c.b16 %v458, %v457
      %475 = vmatprep.subr.bf16.mxu0 0
      %476 = vmatpush1.bf16.msra.mxu0 %v459
      %477 = vmatprep.subr.bf16.mxu0 0
      %478 = vmatpush1.bf16.msra.mxu0 %v460
      %479 = vmatprep.subr.bf16.mxu0 0
      %480 = vmatpush1.bf16.msra.mxu0 %v461
      %481 = vmatprep.subr.bf16.mxu0 0
      %482 = vmatpush1.bf16.msra.mxu0 %v462
      %483 = vmatprep.subr.bf16.mxu0 0
      %484 = vmatpush1.bf16.msra.mxu0 %v463
      %485 = vmatprep.subr.bf16.mxu0 0
      %486 = vmatpush1.bf16.msra.mxu0 %v464
      %487 = vmatprep.subr.bf16.mxu0 0
      %488 = vmatpush1.bf16.msra.mxu0 %v465
      %489 = vmatprep.subr.bf16.mxu0 0
      %490 = vmatpush1.bf16.msra.mxu0 %v466
      %491 = vmatprep.subr.bf16.mxu0 0
      %492 = vmatpush1.bf16.msra.mxu0 0
      %493 = vmatprep.subr.bf16.mxu0 0
      %494 = vmatpush1.bf16.msra.mxu0 0
      %495 = vmatprep.subr.bf16.mxu0 0
      %496 = vmatpush1.bf16.msra.mxu0 0
      %497 = vmatprep.subr.bf16.mxu0 0
      %498 = vmatpush1.bf16.msra.mxu0 0
      %499 = vmatprep.subr.bf16.mxu0 0
      %500 = vmatpush1.bf16.msra.mxu0 0
      %501 = vmatprep.subr.bf16.mxu0 0
      %502 = vmatpush1.bf16.msra.mxu0 0
      %503 = vmatprep.subr.bf16.mxu0 0
      %504 = vmatpush1.bf16.msra.mxu0 0
      %505 = vmatprep.subr.bf16.mxu0 0
      %506 = vmatpush1.bf16.msra.mxu0 0
      %507 = vmatprep.mubr.bf16.mxu0 0
      %508 = vmatmul.mubr.bf16.gmra.mrb[0].mxu0 %v340
      %v509 = vpop.f32.mrb[0].mxu0
      %v510 = vadd.f32 0.0, %v509
      %v511 = vpop.f32.mrb[0].mxu0
      %v512 = vpop.f32.mrb[0].mxu0
      %v513 = vadd.f32 0.0, %v512
      %v514 = vpop.f32.mrb[0].mxu0
      %515 = vmatprep.mubr.bf16.mxu0 0
      %516 = vmatmul.mubr.bf16.gmra.mrb[0].mxu0 %v348
      %v517 = vpop.f32.mrb[0].mxu0
      %v518 = vadd.f32 0.0, %v517
      %v519 = vpop.f32.mrb[0].mxu0
      %v520 = vpop.f32.mrb[0].mxu0
      %v521 = vadd.f32 0.0, %v520
      %v522 = vpop.f32.mrb[0].mxu0
      %523 = vmatprep.mubr.bf16.mxu0 0
      %524 = vmatmul.mubr.bf16.gmra.mrb[0].mxu0 %v356
      %v525 = vpop.f32.mrb[0].mxu0
      %v526 = vadd.f32 0.0, %v525
      %v527 = vpop.f32.mrb[0].mxu0
      %v528 = vpop.f32.mrb[0].mxu0
      %v529 = vadd.f32 0.0, %v528
      %v530 = vpop.f32.mrb[0].mxu0
      %531 = vmatprep.mubr.bf16.mxu0 0
      %532 = vmatmul.mubr.bf16.gmra.mrb[0].mxu0 %v364
      %v533 = vpop.f32.mrb[0].mxu0
      %v534 = vadd.f32 0.0, %v533
      %v535 = vpop.f32.mrb[0].mxu0
      %v536 = vpop.f32.mrb[0].mxu0
      %v537 = vadd.f32 0.0, %v536
      %v538 = vpop.f32.mrb[0].mxu0
      %539 = vmatprep.mubr.bf16.mxu0 0
      %540 = vmatmul.mubr.bf16.gmra.mrb[0].mxu0 %v372
      %v541 = vpop.f32.mrb[0].mxu0
      %v542 = vadd.f32 0.0, %v541
      %v543 = vpop.f32.mrb[0].mxu0
      %v544 = vpop.f32.mrb[0].mxu0
      %v545 = vadd.f32 0.0, %v544
      %v546 = vpop.f32.mrb[0].mxu0
      %547 = vmatprep.mubr.bf16.mxu0 0
      %548 = vmatmul.mubr.bf16.gmra.mrb[0].mxu0 %v380
      %v549 = vpop.f32.mrb[0].mxu0
      %v550 = vadd.f32 0.0, %v549
      %v551 = vpop.f32.mrb[0].mxu0
      %v552 = vpop.f32.mrb[0].mxu0
      %v553 = vadd.f32 0.0, %v552
      %v554 = vpop.f32.mrb[0].mxu0
      %555 = vmatprep.mubr.bf16.mxu0 0
      %556 = vmatmul.mubr.bf16.gmra.mrb[0].mxu0 %v388
      %v557 = vpop.f32.mrb[0].mxu0
      %v558 = vadd.f32 0.0, %v557
      %v559 = vpop.f32.mrb[0].mxu0
      %v560 = vpop.f32.mrb[0].mxu0
      %v561 = vadd.f32 0.0, %v560
      %v562 = vpop.f32.mrb[0].mxu0
      %563 = vmatprep.mubr.bf16.mxu0 0
      %564 = vmatmul.mubr.bf16.gmra.mrb[0].mxu0 %v396
      %v565 = vpop.f32.mrb[0].mxu0
      %v566 = vadd.f32 0.0, %v565
      %v567 = vpop.f32.mrb[0].mxu0
      %v568 = vpop.f32.mrb[0].mxu0
      %v569 = vadd.f32 0.0, %v568
      %v570 = vpop.f32.mrb[0].mxu0
      %571 = vmatprep.mubr.bf16.mxu0 0
      %572 = vmatmul.mubr.bf16.gmra.mrb[0].mxu0 %v404
      %v573 = vpop.f32.mrb[0].mxu0
      %v574 = vadd.f32 0.0, %v573
      %v575 = vpop.f32.mrb[0].mxu0
      %v576 = vpop.f32.mrb[0].mxu0
      %v577 = vadd.f32 0.0, %v576
      %v578 = vpop.f32.mrb[0].mxu0
      %579 = vmatprep.mubr.bf16.mxu0 0
      %580 = vmatmul.mubr.bf16.gmra.mrb[0].mxu0 %v412
      %v581 = vpop.f32.mrb[0].mxu0
      %v582 = vadd.f32 0.0, %v581
      %v583 = vpop.f32.mrb[0].mxu0
      %v584 = vpop.f32.mrb[0].mxu0
      %v585 = vadd.f32 0.0, %v584
      %v586 = vpop.f32.mrb[0].mxu0
      %587 = vmatprep.mubr.bf16.mxu0 0
      %588 = vmatmul.mubr.bf16.gmra.mrb[0].mxu0 %v415
      %v589 = vpop.f32.mrb[0].mxu0
      %v590 = vadd.f32 0.0, %v589
      %v591 = vpop.f32.mrb[0].mxu0
      %v592 = vpop.f32.mrb[0].mxu0
      %v593 = vpop.f32.mrb[0].mxu0
      %594 = vdwg.mxu0
      %v611 = vunpack.c.l.b16 %v295
      %v612 = vunpack.c.l.b16 %v296
      %v613 = vunpack.c.l.b16 %v297
      %v614 = vunpack.c.l.b16 %v298
      %v615 = vunpack.c.l.b16 %v299
      %v616 = vunpack.c.l.b16 %v300
      %v617 = vunpack.c.l.b16 %v301
      %v618 = vunpack.c.l.b16 %v302
      %v619 = vunpack.c.l.b16 %v303
      %v620 = vunpack.c.l.b16 %v304
      %v621 = vunpack.c.l.b16 %v305
      %v622 = vunpack.c.l.b16 %v306
      %v623 = vunpack.c.l.b16 %v307
      %v624 = vunpack.c.l.b16 %v308
      %v625 = vunpack.c.l.b16 %v309
      %v626 = vunpack.c.l.b16 %v310
      %v627 = vpack.c.b16 %v612, %v611
      %v628 = vpack.c.b16 %v614, %v613
      %v629 = vpack.c.b16 %v616, %v615
      %v630 = vpack.c.b16 %v618, %v617
      %v631 = vpack.c.b16 %v620, %v619
      %v632 = vpack.c.b16 %v622, %v621
      %v633 = vpack.c.b16 %v624, %v623
      %v634 = vpack.c.b16 %v626, %v625
      %643 = vmatprep.subr.bf16.mxu0 0
      %644 = vmatpush1.bf16.msra.mxu0 %v627
      %645 = vmatprep.subr.bf16.mxu0 0
      %646 = vmatpush1.bf16.msra.mxu0 %v628
      %647 = vmatprep.subr.bf16.mxu0 0
      %648 = vmatpush1.bf16.msra.mxu0 %v629
      %649 = vmatprep.subr.bf16.mxu0 0
      %650 = vmatpush1.bf16.msra.mxu0 %v630
      %651 = vmatprep.subr.bf16.mxu0 0
      %652 = vmatpush1.bf16.msra.mxu0 %v631
      %653 = vmatprep.subr.bf16.mxu0 0
      %654 = vmatpush1.bf16.msra.mxu0 %v632
      %655 = vmatprep.subr.bf16.mxu0 0
      %656 = vmatpush1.bf16.msra.mxu0 %v633
      %657 = vmatprep.subr.bf16.mxu0 0
      %658 = vmatpush1.bf16.msra.mxu0 %v634
      %659 = vmatprep.subr.bf16.mxu0 0
      %660 = vmatpush1.bf16.msra.mxu0 0
      %661 = vmatprep.subr.bf16.mxu0 0
      %662 = vmatpush1.bf16.msra.mxu0 0
      %663 = vmatprep.subr.bf16.mxu0 0
      %664 = vmatpush1.bf16.msra.mxu0 0
      %665 = vmatprep.subr.bf16.mxu0 0
      %666 = vmatpush1.bf16.msra.mxu0 0
      %667 = vmatprep.subr.bf16.mxu0 0
      %668 = vmatpush1.bf16.msra.mxu0 0
      %669 = vmatprep.subr.bf16.mxu0 0
      %670 = vmatpush1.bf16.msra.mxu0 0
      %671 = vmatprep.subr.bf16.mxu0 0
      %672 = vmatpush1.bf16.msra.mxu0 0
      %673 = vmatprep.subr.bf16.mxu0 0
      %674 = vmatpush1.bf16.msra.mxu0 0
      %675 = vmatprep.mubr.bf16.mxu0 0
      %676 = vmatmul.mubr.bf16.gmra.mrb[0].mxu0 %v284
      %v677 = vpop.f32.mrb[0].mxu0
      %v678 = vadd.f32 %v510, %v677
      %v679 = vpop.f32.mrb[0].mxu0
      %v680 = vpop.f32.mrb[0].mxu0
      %v681 = vadd.f32 %v513, %v680
      %v682 = vpop.f32.mrb[0].mxu0
      %683 = vmatprep.mubr.bf16.mxu0 0
      %684 = vmatmul.mubr.bf16.gmra.mrb[0].mxu0 %v285
      %v685 = vpop.f32.mrb[0].mxu0
      %v686 = vadd.f32 %v518, %v685
      %v687 = vpop.f32.mrb[0].mxu0
      %v688 = vpop.f32.mrb[0].mxu0
      %v689 = vadd.f32 %v521, %v688
      %v690 = vpop.f32.mrb[0].mxu0
      %691 = vmatprep.mubr.bf16.mxu0 0
      %692 = vmatmul.mubr.bf16.gmra.mrb[0].mxu0 %v286
      %v693 = vpop.f32.mrb[0].mxu0
      %v694 = vadd.f32 %v526, %v693
      %v695 = vpop.f32.mrb[0].mxu0
      %v696 = vpop.f32.mrb[0].mxu0
      %v697 = vadd.f32 %v529, %v696
      %v698 = vpop.f32.mrb[0].mxu0
      %699 = vmatprep.mubr.bf16.mxu0 0
      %700 = vmatmul.mubr.bf16.gmra.mrb[0].mxu0 %v287
      %v701 = vpop.f32.mrb[0].mxu0
      %v702 = vadd.f32 %v534, %v701
      %v703 = vpop.f32.mrb[0].mxu0
      %v704 = vpop.f32.mrb[0].mxu0
      %v705 = vadd.f32 %v537, %v704
      %v706 = vpop.f32.mrb[0].mxu0
      %707 = vmatprep.mubr.bf16.mxu0 0
      %708 = vmatmul.mubr.bf16.gmra.mrb[0].mxu0 %v288
      %v709 = vpop.f32.mrb[0].mxu0
      %v710 = vadd.f32 %v542, %v709
      %v711 = vpop.f32.mrb[0].mxu0
      %v712 = vpop.f32.mrb[0].mxu0
      %v713 = vadd.f32 %v545, %v712
      %v714 = vpop.f32.mrb[0].mxu0
      %715 = vmatprep.mubr.bf16.mxu0 0
      %716 = vmatmul.mubr.bf16.gmra.mrb[0].mxu0 %v289
      %v717 = vpop.f32.mrb[0].mxu0
      %v718 = vadd.f32 %v550, %v717
      %v719 = vpop.f32.mrb[0].mxu0
      %v720 = vpop.f32.mrb[0].mxu0
      %v721 = vadd.f32 %v553, %v720
      %v722 = vpop.f32.mrb[0].mxu0
      %723 = vmatprep.mubr.bf16.mxu0 0
      %724 = vmatmul.mubr.bf16.gmra.mrb[0].mxu0 %v290
      %v725 = vpop.f32.mrb[0].mxu0
      %v726 = vadd.f32 %v558, %v725
      %v727 = vpop.f32.mrb[0].mxu0
      %v728 = vpop.f32.mrb[0].mxu0
      %v729 = vadd.f32 %v561, %v728
      %v730 = vpop.f32.mrb[0].mxu0
      %731 = vmatprep.mubr.bf16.mxu0 0
      %732 = vmatmul.mubr.bf16.gmra.mrb[0].mxu0 %v291
      %v733 = vpop.f32.mrb[0].mxu0
      %v734 = vadd.f32 %v566, %v733
      %v735 = vpop.f32.mrb[0].mxu0
      %v736 = vpop.f32.mrb[0].mxu0
      %v737 = vadd.f32 %v569, %v736
      %v738 = vpop.f32.mrb[0].mxu0
      %739 = vmatprep.mubr.bf16.mxu0 0
      %740 = vmatmul.mubr.bf16.gmra.mrb[0].mxu0 %v292
      %v741 = vpop.f32.mrb[0].mxu0
      %v742 = vadd.f32 %v574, %v741
      %v743 = vpop.f32.mrb[0].mxu0
      %v744 = vpop.f32.mrb[0].mxu0
      %v745 = vadd.f32 %v577, %v744
      %v746 = vpop.f32.mrb[0].mxu0
      %747 = vmatprep.mubr.bf16.mxu0 0
      %748 = vmatmul.mubr.bf16.gmra.mrb[0].mxu0 %v293
      %v749 = vpop.f32.mrb[0].mxu0
      %v750 = vadd.f32 %v582, %v749
      %v751 = vpop.f32.mrb[0].mxu0
      %v752 = vpop.f32.mrb[0].mxu0
      %v753 = vadd.f32 %v585, %v752
      %v754 = vpop.f32.mrb[0].mxu0
      %755 = vmatprep.mubr.bf16.mxu0 0
      %756 = vmatmul.mubr.bf16.gmra.mrb[0].mxu0 %v294
      %v757 = vpop.f32.mrb[0].mxu0
      %v758 = vadd.f32 %v590, %v757
      %v759 = vpop.f32.mrb[0].mxu0
      %v760 = vpop.f32.mrb[0].mxu0
      %v761 = vpop.f32.mrb[0].mxu0
      %762 = vdwg.mxu0
      %v763 = vld [vmem:[%s1 + $0x80] sm:$0xf]
      %v764 = vld [vmem:[%s1 + $0x84] sm:$0xf]
      %v765 = vld [vmem:[%s1 + $0x88] sm:$0xf]
      %v766 = vld [vmem:[%s1 + $0x8c] sm:$0xf]
      %v767 = vld [vmem:[%s1 + $0x90] sm:$0xf]
      %v768 = vld [vmem:[%s1 + $0x94] sm:$0xf]
      %v769 = vld [vmem:[%s1 + $0x98] sm:$0xf]
      %v770 = vld [vmem:[%s1 + $0x9c] sm:$0xf]
      %v771 = vld [vmem:[%s1 + $0xa0] sm:$0xf]
      %v772 = vld [vmem:[%s1 + $0xa4] sm:$0xf]
      %v773 = vld [vmem:[%s1 + $0xa8] sm:$0xf]
      %v774 = vld [vmem:[%s1 + $0xac] sm:$0xf]
      %v775 = vld [vmem:[%s1 + $0xb0] sm:$0xf]
      %v776 = vld [vmem:[%s1 + $0xb4] sm:$0xf]
      %v777 = vld [vmem:[%s1 + $0xb8] sm:$0xf]
      %v778 = vld [vmem:[%s1 + $0xbc] sm:$0xf]
      %vm790 = vcmask 1046528
      %v791 = vrot.slane %v284, 1
      %v792 = vrot.slane %v285, 1
      %v793 = vsel %vm790, %v791, %v792
      %v794 = vrot.slane %v286, 1
      %v795 = vsel %vm790, %v792, %v794
      %v796 = vrot.slane %v287, 1
      %v797 = vsel %vm790, %v794, %v796
      %v798 = vrot.slane %v288, 1
      %v799 = vsel %vm790, %v796, %v798
      %v800 = vrot.slane %v289, 1
      %v801 = vsel %vm790, %v798, %v800
      %v802 = vrot.slane %v290, 1
      %v803 = vsel %vm790, %v800, %v802
      %v804 = vrot.slane %v291, 1
      %v805 = vsel %vm790, %v802, %v804
      %v806 = vrot.slane %v292, 1
      %v807 = vsel %vm790, %v804, %v806
      %v808 = vrot.slane %v293, 1
      %v809 = vsel %vm790, %v806, %v808
      %v810 = vrot.slane %v311, 1
      %v811 = vsel %vm790, %v808, %v810
      %v839 = vunpack.c.l.b16 %v763
      %v840 = vunpack.c.l.b16 %v764
      %v841 = vunpack.c.l.b16 %v765
      %v842 = vunpack.c.l.b16 %v766
      %v843 = vunpack.c.l.b16 %v767
      %v844 = vunpack.c.l.b16 %v768
      %v845 = vunpack.c.l.b16 %v769
      %v846 = vunpack.c.l.b16 %v770
      %v847 = vunpack.c.l.b16 %v771
      %v848 = vunpack.c.l.b16 %v772
      %v849 = vunpack.c.l.b16 %v773
      %v850 = vunpack.c.l.b16 %v774
      %v851 = vunpack.c.l.b16 %v775
      %v852 = vunpack.c.l.b16 %v776
      %v853 = vunpack.c.l.b16 %v777
      %v854 = vunpack.c.l.b16 %v778
      %v855 = vpack.c.b16 %v840, %v839
      %v856 = vpack.c.b16 %v842, %v841
      %v857 = vpack.c.b16 %v844, %v843
      %v858 = vpack.c.b16 %v846, %v845
      %v859 = vpack.c.b16 %v848, %v847
      %v860 = vpack.c.b16 %v850, %v849
      %v861 = vpack.c.b16 %v852, %v851
      %v862 = vpack.c.b16 %v854, %v853
      %871 = vmatprep.subr.bf16.mxu0 0
      %872 = vmatpush1.bf16.msra.mxu0 %v855
      %873 = vmatprep.subr.bf16.mxu0 0
      %874 = vmatpush1.bf16.msra.mxu0 %v856
      %875 = vmatprep.subr.bf16.mxu0 0
      %876 = vmatpush1.bf16.msra.mxu0 %v857
      %877 = vmatprep.subr.bf16.mxu0 0
      %878 = vmatpush1.bf16.msra.mxu0 %v858
      %879 = vmatprep.subr.bf16.mxu0 0
      %880 = vmatpush1.bf16.msra.mxu0 %v859
      %881 = vmatprep.subr.bf16.mxu0 0
      %882 = vmatpush1.bf16.msra.mxu0 %v860
      %883 = vmatprep.subr.bf16.mxu0 0
      %884 = vmatpush1.bf16.msra.mxu0 %v861
      %885 = vmatprep.subr.bf16.mxu0 0
      %886 = vmatpush1.bf16.msra.mxu0 %v862
      %887 = vmatprep.subr.bf16.mxu0 0
      %888 = vmatpush1.bf16.msra.mxu0 0
      %889 = vmatprep.subr.bf16.mxu0 0
      %890 = vmatpush1.bf16.msra.mxu0 0
      %891 = vmatprep.subr.bf16.mxu0 0
      %892 = vmatpush1.bf16.msra.mxu0 0
      %893 = vmatprep.subr.bf16.mxu0 0
      %894 = vmatpush1.bf16.msra.mxu0 0
      %895 = vmatprep.subr.bf16.mxu0 0
      %896 = vmatpush1.bf16.msra.mxu0 0
      %897 = vmatprep.subr.bf16.mxu0 0
      %898 = vmatpush1.bf16.msra.mxu0 0
      %899 = vmatprep.subr.bf16.mxu0 0
      %900 = vmatpush1.bf16.msra.mxu0 0
      %901 = vmatprep.subr.bf16.mxu0 0
      %902 = vmatpush1.bf16.msra.mxu0 0
      %903 = vmatprep.mubr.bf16.mxu0 0
      %904 = vmatmul.mubr.bf16.gmra.mrb[0].mxu0 %v793
      %v905 = vpop.f32.mrb[0].mxu0
      %v906 = vadd.f32 0.0, %v905
      %v907 = vpop.f32.mrb[0].mxu0
      %v908 = vpop.f32.mrb[0].mxu0
      %v909 = vadd.f32 0.0, %v908
      %v910 = vpop.f32.mrb[0].mxu0
      %911 = vmatprep.mubr.bf16.mxu0 0
      %912 = vmatmul.mubr.bf16.gmra.mrb[0].mxu0 %v795
      %v913 = vpop.f32.mrb[0].mxu0
      %v914 = vadd.f32 0.0, %v913
      %v915 = vpop.f32.mrb[0].mxu0
      %v916 = vpop.f32.mrb[0].mxu0
      %v917 = vadd.f32 0.0, %v916
      %v918 = vpop.f32.mrb[0].mxu0
      %919 = vmatprep.mubr.bf16.mxu0 0
      %920 = vmatmul.mubr.bf16.gmra.mrb[0].mxu0 %v797
      %v921 = vpop.f32.mrb[0].mxu0
      %v922 = vadd.f32 0.0, %v921
      %v923 = vpop.f32.mrb[0].mxu0
      %v924 = vpop.f32.mrb[0].mxu0
      %v925 = vadd.f32 0.0, %v924
      %v926 = vpop.f32.mrb[0].mxu0
      %927 = vmatprep.mubr.bf16.mxu0 0
      %928 = vmatmul.mubr.bf16.gmra.mrb[0].mxu0 %v799
      %v929 = vpop.f32.mrb[0].mxu0
      %v930 = vadd.f32 0.0, %v929
      %v931 = vpop.f32.mrb[0].mxu0
      %v932 = vpop.f32.mrb[0].mxu0
      %v933 = vadd.f32 0.0, %v932
      %v934 = vpop.f32.mrb[0].mxu0
      %935 = vmatprep.mubr.bf16.mxu0 0
      %936 = vmatmul.mubr.bf16.gmra.mrb[0].mxu0 %v801
      %v937 = vpop.f32.mrb[0].mxu0
      %v938 = vadd.f32 0.0, %v937
      %v939 = vpop.f32.mrb[0].mxu0
      %v940 = vpop.f32.mrb[0].mxu0
      %v941 = vadd.f32 0.0, %v940
      %v942 = vpop.f32.mrb[0].mxu0
      %943 = vmatprep.mubr.bf16.mxu0 0
      %944 = vmatmul.mubr.bf16.gmra.mrb[0].mxu0 %v803
      %v945 = vpop.f32.mrb[0].mxu0
      %v946 = vadd.f32 0.0, %v945
      %v947 = vpop.f32.mrb[0].mxu0
      %v948 = vpop.f32.mrb[0].mxu0
      %v949 = vadd.f32 0.0, %v948
      %v950 = vpop.f32.mrb[0].mxu0
      %951 = vmatprep.mubr.bf16.mxu0 0
      %952 = vmatmul.mubr.bf16.gmra.mrb[0].mxu0 %v805
      %v953 = vpop.f32.mrb[0].mxu0
      %v954 = vadd.f32 0.0, %v953
      %v955 = vpop.f32.mrb[0].mxu0
      %v956 = vpop.f32.mrb[0].mxu0
      %v957 = vadd.f32 0.0, %v956
      %v958 = vpop.f32.mrb[0].mxu0
      %959 = vmatprep.mubr.bf16.mxu0 0
      %960 = vmatmul.mubr.bf16.gmra.mrb[0].mxu0 %v807
      %v961 = vpop.f32.mrb[0].mxu0
      %v962 = vadd.f32 0.0, %v961
      %v963 = vpop.f32.mrb[0].mxu0
      %v964 = vpop.f32.mrb[0].mxu0
      %v965 = vadd.f32 0.0, %v964
      %v966 = vpop.f32.mrb[0].mxu0
      %967 = vmatprep.mubr.bf16.mxu0 0
      %968 = vmatmul.mubr.bf16.gmra.mrb[0].mxu0 %v809
      %v969 = vpop.f32.mrb[0].mxu0
      %v970 = vadd.f32 0.0, %v969
      %v971 = vpop.f32.mrb[0].mxu0
      %v972 = vpop.f32.mrb[0].mxu0
      %v973 = vadd.f32 0.0, %v972
      %v974 = vpop.f32.mrb[0].mxu0
      %975 = vmatprep.mubr.bf16.mxu0 0
      %976 = vmatmul.mubr.bf16.gmra.mrb[0].mxu0 %v811
      %v977 = vpop.f32.mrb[0].mxu0
      %v978 = vadd.f32 0.0, %v977
      %v979 = vpop.f32.mrb[0].mxu0
      %v980 = vpop.f32.mrb[0].mxu0
      %v981 = vadd.f32 0.0, %v980
      %v982 = vpop.f32.mrb[0].mxu0
      %983 = vmatprep.mubr.bf16.mxu0 0
      %984 = vmatmul.mubr.bf16.gmra.mrb[0].mxu0 %v810
      %v985 = vpop.f32.mrb[0].mxu0
      %v986 = vadd.f32 0.0, %v985
      %v987 = vpop.f32.mrb[0].mxu0
      %v988 = vpop.f32.mrb[0].mxu0
      %v989 = vpop.f32.mrb[0].mxu0
      %990 = vdwg.mxu0
      %v991 = vadd.f32 %v678, %v906
      %v992 = vadd.f32 %v681, %v909
      %v993 = vadd.f32 %v686, %v914
      %v994 = vadd.f32 %v689, %v917
      %v995 = vadd.f32 %v694, %v922
      %v996 = vadd.f32 %v697, %v925
      %v997 = vadd.f32 %v702, %v930
      %v998 = vadd.f32 %v705, %v933
      %v999 = vadd.f32 %v710, %v938
      %v1000 = vadd.f32 %v713, %v941
      %v1001 = vadd.f32 %v718, %v946
      %v1002 = vadd.f32 %v721, %v949
      %v1003 = vadd.f32 %v726, %v954
      %v1004 = vadd.f32 %v729, %v957
      %v1005 = vadd.f32 %v734, %v962
      %v1006 = vadd.f32 %v737, %v965
      %v1007 = vadd.f32 %v742, %v970
      %v1008 = vadd.f32 %v745, %v973
      %v1009 = vadd.f32 %v750, %v978
      %v1010 = vadd.f32 %v753, %v981
      %v1011 = vadd.f32 %v758, %v986
      %v1012 = vpack.c.bf16 %v281, %v280
      %v1013 = vld [vmem:[%s1 + $0xc0] sm:$0xf]
      %v1014 = vld [vmem:[%s1 + $0xc4] sm:$0xf]
      %v1015 = vld [vmem:[%s1 + $0xc8] sm:$0xf]
      %v1016 = vld [vmem:[%s1 + $0xcc] sm:$0xf]
      %v1017 = vld [vmem:[%s1 + $0xd0] sm:$0xf]
      %v1018 = vld [vmem:[%s1 + $0xd4] sm:$0xf]
      %v1019 = vld [vmem:[%s1 + $0xd8] sm:$0xf]
      %v1020 = vld [vmem:[%s1 + $0xdc] sm:$0xf]
      %v1021 = vld [vmem:[%s1 + $0xe0] sm:$0xf]
      %v1022 = vld [vmem:[%s1 + $0xe4] sm:$0xf]
      %v1023 = vld [vmem:[%s1 + $0xe8] sm:$0xf]
      %v1024 = vld [vmem:[%s1 + $0xec] sm:$0xf]
      %v1025 = vld [vmem:[%s1 + $0xf0] sm:$0xf]
      %v1026 = vld [vmem:[%s1 + $0xf4] sm:$0xf]
      %v1027 = vld [vmem:[%s1 + $0xf8] sm:$0xf]
      %v1028 = vld [vmem:[%s1 + $0xfc] sm:$0xf]
      %v1030 = vrot.slane %v1012, 1
      %v1031 = vsel %vm790, %v810, %v1030
      %v1050 = vunpack.c.l.b16 %v1013
      %v1051 = vunpack.c.l.b16 %v1014
      %v1052 = vunpack.c.l.b16 %v1015
      %v1053 = vunpack.c.l.b16 %v1016
      %v1054 = vunpack.c.l.b16 %v1017
      %v1055 = vunpack.c.l.b16 %v1018
      %v1056 = vunpack.c.l.b16 %v1019
      %v1057 = vunpack.c.l.b16 %v1020
      %v1058 = vunpack.c.l.b16 %v1021
      %v1059 = vunpack.c.l.b16 %v1022
      %v1060 = vunpack.c.l.b16 %v1023
      %v1061 = vunpack.c.l.b16 %v1024
      %v1062 = vunpack.c.l.b16 %v1025
      %v1063 = vunpack.c.l.b16 %v1026
      %v1064 = vunpack.c.l.b16 %v1027
      %v1065 = vunpack.c.l.b16 %v1028
      %v1066 = vpack.c.b16 %v1051, %v1050
      %v1067 = vpack.c.b16 %v1053, %v1052
      %v1068 = vpack.c.b16 %v1055, %v1054
      %v1069 = vpack.c.b16 %v1057, %v1056
      %v1070 = vpack.c.b16 %v1059, %v1058
      %v1071 = vpack.c.b16 %v1061, %v1060
      %v1072 = vpack.c.b16 %v1063, %v1062
      %v1073 = vpack.c.b16 %v1065, %v1064
      %1082 = vmatprep.subr.bf16.mxu0 0
      %1083 = vmatpush1.bf16.msra.mxu0 %v1066
      %1084 = vmatprep.subr.bf16.mxu0 0
      %1085 = vmatpush1.bf16.msra.mxu0 %v1067
      %1086 = vmatprep.subr.bf16.mxu0 0
      %1087 = vmatpush1.bf16.msra.mxu0 %v1068
      %1088 = vmatprep.subr.bf16.mxu0 0
      %1089 = vmatpush1.bf16.msra.mxu0 %v1069
      %1090 = vmatprep.subr.bf16.mxu0 0
      %1091 = vmatpush1.bf16.msra.mxu0 %v1070
      %1092 = vmatprep.subr.bf16.mxu0 0
      %1093 = vmatpush1.bf16.msra.mxu0 %v1071
      %1094 = vmatprep.subr.bf16.mxu0 0
      %1095 = vmatpush1.bf16.msra.mxu0 %v1072
      %1096 = vmatprep.subr.bf16.mxu0 0
      %1097 = vmatpush1.bf16.msra.mxu0 %v1073
      %1098 = vmatprep.subr.bf16.mxu0 0
      %1099 = vmatpush1.bf16.msra.mxu0 0
      %1100 = vmatprep.subr.bf16.mxu0 0
      %1101 = vmatpush1.bf16.msra.mxu0 0
      %1102 = vmatprep.subr.bf16.mxu0 0
      %1103 = vmatpush1.bf16.msra.mxu0 0
      %1104 = vmatprep.subr.bf16.mxu0 0
      %1105 = vmatpush1.bf16.msra.mxu0 0
      %1106 = vmatprep.subr.bf16.mxu0 0
      %1107 = vmatpush1.bf16.msra.mxu0 0
      %1108 = vmatprep.subr.bf16.mxu0 0
      %1109 = vmatpush1.bf16.msra.mxu0 0
      %1110 = vmatprep.subr.bf16.mxu0 0
      %1111 = vmatpush1.bf16.msra.mxu0 0
      %1112 = vmatprep.subr.bf16.mxu0 0
      %1113 = vmatpush1.bf16.msra.mxu0 0
      %1114 = vmatprep.mubr.bf16.mxu0 0
      %1115 = vmatmul.mubr.bf16.gmra.mrb[0].mxu0 %v795
      %v1116 = vpop.f32.mrb[0].mxu0
      %v1117 = vadd.f32 0.0, %v1116
      %v1118 = vpop.f32.mrb[0].mxu0
      %v1119 = vpop.f32.mrb[0].mxu0
      %v1120 = vadd.f32 0.0, %v1119
      %v1121 = vpop.f32.mrb[0].mxu0
      %1122 = vmatprep.mubr.bf16.mxu0 0
      %1123 = vmatmul.mubr.bf16.gmra.mrb[0].mxu0 %v797
      %v1124 = vpop.f32.mrb[0].mxu0
      %v1125 = vadd.f32 0.0, %v1124
      %v1126 = vpop.f32.mrb[0].mxu0
      %v1127 = vpop.f32.mrb[0].mxu0
      %v1128 = vadd.f32 0.0, %v1127
      %v1129 = vpop.f32.mrb[0].mxu0
      %1130 = vmatprep.mubr.bf16.mxu0 0
      %1131 = vmatmul.mubr.bf16.gmra.mrb[0].mxu0 %v799
      %v1132 = vpop.f32.mrb[0].mxu0
      %v1133 = vadd.f32 0.0, %v1132
      %v1134 = vpop.f32.mrb[0].mxu0
      %v1135 = vpop.f32.mrb[0].mxu0
      %v1136 = vadd.f32 0.0, %v1135
      %v1137 = vpop.f32.mrb[0].mxu0
      %1138 = vmatprep.mubr.bf16.mxu0 0
      %1139 = vmatmul.mubr.bf16.gmra.mrb[0].mxu0 %v801
      %v1140 = vpop.f32.mrb[0].mxu0
      %v1141 = vadd.f32 0.0, %v1140
      %v1142 = vpop.f32.mrb[0].mxu0
      %v1143 = vpop.f32.mrb[0].mxu0
      %v1144 = vadd.f32 0.0, %v1143
      %v1145 = vpop.f32.mrb[0].mxu0
      %1146 = vmatprep.mubr.bf16.mxu0 0
      %1147 = vmatmul.mubr.bf16.gmra.mrb[0].mxu0 %v803
      %v1148 = vpop.f32.mrb[0].mxu0
      %v1149 = vadd.f32 0.0, %v1148
      %v1150 = vpop.f32.mrb[0].mxu0
      %v1151 = vpop.f32.mrb[0].mxu0
      %v1152 = vadd.f32 0.0, %v1151
      %v1153 = vpop.f32.mrb[0].mxu0
      %1154 = vmatprep.mubr.bf16.mxu0 0
      %1155 = vmatmul.mubr.bf16.gmra.mrb[0].mxu0 %v805
      %v1156 = vpop.f32.mrb[0].mxu0
      %v1157 = vadd.f32 0.0, %v1156
      %v1158 = vpop.f32.mrb[0].mxu0
      %v1159 = vpop.f32.mrb[0].mxu0
      %v1160 = vadd.f32 0.0, %v1159
      %v1161 = vpop.f32.mrb[0].mxu0
      %1162 = vmatprep.mubr.bf16.mxu0 0
      %1163 = vmatmul.mubr.bf16.gmra.mrb[0].mxu0 %v807
      %v1164 = vpop.f32.mrb[0].mxu0
      %v1165 = vadd.f32 0.0, %v1164
      %v1166 = vpop.f32.mrb[0].mxu0
      %v1167 = vpop.f32.mrb[0].mxu0
      %v1168 = vadd.f32 0.0, %v1167
      %v1169 = vpop.f32.mrb[0].mxu0
      %1170 = vmatprep.mubr.bf16.mxu0 0
      %1171 = vmatmul.mubr.bf16.gmra.mrb[0].mxu0 %v809
      %v1172 = vpop.f32.mrb[0].mxu0
      %v1173 = vadd.f32 0.0, %v1172
      %v1174 = vpop.f32.mrb[0].mxu0
      %v1175 = vpop.f32.mrb[0].mxu0
      %v1176 = vadd.f32 0.0, %v1175
      %v1177 = vpop.f32.mrb[0].mxu0
      %1178 = vmatprep.mubr.bf16.mxu0 0
      %1179 = vmatmul.mubr.bf16.gmra.mrb[0].mxu0 %v811
      %v1180 = vpop.f32.mrb[0].mxu0
      %v1181 = vadd.f32 0.0, %v1180
      %v1182 = vpop.f32.mrb[0].mxu0
      %v1183 = vpop.f32.mrb[0].mxu0
      %v1184 = vadd.f32 0.0, %v1183
      %v1185 = vpop.f32.mrb[0].mxu0
      %1186 = vmatprep.mubr.bf16.mxu0 0
      %1187 = vmatmul.mubr.bf16.gmra.mrb[0].mxu0 %v1031
      %v1188 = vpop.f32.mrb[0].mxu0
      %v1189 = vadd.f32 0.0, %v1188
      %v1190 = vpop.f32.mrb[0].mxu0
      %v1191 = vpop.f32.mrb[0].mxu0
      %v1192 = vadd.f32 0.0, %v1191
      %v1193 = vpop.f32.mrb[0].mxu0
      %1194 = vmatprep.mubr.bf16.mxu0 0
      %1195 = vmatmul.mubr.bf16.gmra.mrb[0].mxu0 %v1030
      %v1196 = vpop.f32.mrb[0].mxu0
      %v1197 = vadd.f32 0.0, %v1196
      %v1198 = vpop.f32.mrb[0].mxu0
      %v1199 = vpop.f32.mrb[0].mxu0
      %v1200 = vpop.f32.mrb[0].mxu0
      %1201 = vdwg.mxu0
      %v1202 = vadd.f32 %v991, %v1117
      %v1203 = vadd.f32 %v992, %v1120
      %v1204 = vadd.f32 %v993, %v1125
      %v1205 = vadd.f32 %v994, %v1128
      %v1206 = vadd.f32 %v995, %v1133
      %v1207 = vadd.f32 %v996, %v1136
      %v1208 = vadd.f32 %v997, %v1141
      %v1209 = vadd.f32 %v998, %v1144
      %v1210 = vadd.f32 %v999, %v1149
      %v1211 = vadd.f32 %v1000, %v1152
      %v1212 = vadd.f32 %v1001, %v1157
      %v1213 = vadd.f32 %v1002, %v1160
      %v1214 = vadd.f32 %v1003, %v1165
      %v1215 = vadd.f32 %v1004, %v1168
      %v1216 = vadd.f32 %v1005, %v1173
      %v1217 = vadd.f32 %v1006, %v1176
      %v1218 = vadd.f32 %v1007, %v1181
      %v1219 = vadd.f32 %v1008, %v1184
      %v1220 = vadd.f32 %v1009, %v1189
      %v1221 = vadd.f32 %v1010, %v1192
      %v1222 = vadd.f32 %v1011, %v1197
      %v1223 = vld [vmem:[%s1 + $0x100] sm:$0xf]
      %v1224 = vld [vmem:[%s1 + $0x104] sm:$0xf]
      %v1225 = vld [vmem:[%s1 + $0x108] sm:$0xf]
      %v1226 = vld [vmem:[%s1 + $0x10c] sm:$0xf]
      %v1227 = vld [vmem:[%s1 + $0x110] sm:$0xf]
      %v1228 = vld [vmem:[%s1 + $0x114] sm:$0xf]
      %v1229 = vld [vmem:[%s1 + $0x118] sm:$0xf]
      %v1230 = vld [vmem:[%s1 + $0x11c] sm:$0xf]
      %v1231 = vld [vmem:[%s1 + $0x120] sm:$0xf]
      %v1232 = vld [vmem:[%s1 + $0x124] sm:$0xf]
      %v1233 = vld [vmem:[%s1 + $0x128] sm:$0xf]
      %v1234 = vld [vmem:[%s1 + $0x12c] sm:$0xf]
      %v1235 = vld [vmem:[%s1 + $0x130] sm:$0xf]
      %v1236 = vld [vmem:[%s1 + $0x134] sm:$0xf]
      %v1237 = vld [vmem:[%s1 + $0x138] sm:$0xf]
      %v1238 = vld [vmem:[%s1 + $0x13c] sm:$0xf]
      %vm1239 = vsmask.f32 6400
      %v1240 = vrot.slane %v341, 1
      %v1241 = vrot.slane %v337, 2
      %v1242 = vor.u32 %v1240, %v1241
      %v1243 = vrot.slane %v349, 1
      %v1244 = vrot.slane %v345, 2
      %v1245 = vor.u32 %v1243, %v1244
      %v1246 = vsel %vm1239, %v1242, %v1245
      %v1247 = vrot.slane %v357, 1
      %v1248 = vrot.slane %v353, 2
      %v1249 = vor.u32 %v1247, %v1248
      %v1250 = vsel %vm1239, %v1245, %v1249
      %v1251 = vrot.slane %v365, 1
      %v1252 = vrot.slane %v361, 2
      %v1253 = vor.u32 %v1251, %v1252
      %v1254 = vsel %vm1239, %v1249, %v1253
      %v1255 = vrot.slane %v373, 1
      %v1256 = vrot.slane %v369, 2
      %v1257 = vor.u32 %v1255, %v1256
      %v1258 = vsel %vm1239, %v1253, %v1257
      %v1259 = vrot.slane %v381, 1
      %v1260 = vrot.slane %v377, 2
      %v1261 = vor.u32 %v1259, %v1260
      %v1262 = vsel %vm1239, %v1257, %v1261
      %v1263 = vrot.slane %v389, 1
      %v1264 = vrot.slane %v385, 2
      %v1265 = vor.u32 %v1263, %v1264
      %v1266 = vsel %vm1239, %v1261, %v1265
      %v1267 = vrot.slane %v397, 1
      %v1268 = vrot.slane %v393, 2
      %v1269 = vor.u32 %v1267, %v1268
      %v1270 = vsel %vm1239, %v1265, %v1269
      %v1271 = vrot.slane %v405, 1
      %v1272 = vrot.slane %v401, 2
      %v1273 = vor.u32 %v1271, %v1272
      %v1274 = vsel %vm1239, %v1269, %v1273
      %v1275 = vrot.slane %v413, 1
      %v1276 = vrot.slane %v409, 2
      %v1277 = vor.u32 %v1275, %v1276
      %v1278 = vsel %vm1239, %v1273, %v1277
      %v1280 = vshrl.u32 %v1012, 16
      %v1282 = vrot.slane %v1280, 1
      %v1283 = vshll.u32 %v1012, 16
      %v1285 = vrot.slane %v1283, 2
      %v1286 = vor.u32 %v1282, %v1285
      %v1287 = vsel %vm1239, %v1277, %v1286
      %v1315 = vunpack.c.l.b16 %v1223
      %v1316 = vunpack.c.l.b16 %v1224
      %v1317 = vunpack.c.l.b16 %v1225
      %v1318 = vunpack.c.l.b16 %v1226
      %v1319 = vunpack.c.l.b16 %v1227
      %v1320 = vunpack.c.l.b16 %v1228
      %v1321 = vunpack.c.l.b16 %v1229
      %v1322 = vunpack.c.l.b16 %v1230
      %v1323 = vunpack.c.l.b16 %v1231
      %v1324 = vunpack.c.l.b16 %v1232
      %v1325 = vunpack.c.l.b16 %v1233
      %v1326 = vunpack.c.l.b16 %v1234
      %v1327 = vunpack.c.l.b16 %v1235
      %v1328 = vunpack.c.l.b16 %v1236
      %v1329 = vunpack.c.l.b16 %v1237
      %v1330 = vunpack.c.l.b16 %v1238
      %v1331 = vpack.c.b16 %v1316, %v1315
      %v1332 = vpack.c.b16 %v1318, %v1317
      %v1333 = vpack.c.b16 %v1320, %v1319
      %v1334 = vpack.c.b16 %v1322, %v1321
      %v1335 = vpack.c.b16 %v1324, %v1323
      %v1336 = vpack.c.b16 %v1326, %v1325
      %v1337 = vpack.c.b16 %v1328, %v1327
      %v1338 = vpack.c.b16 %v1330, %v1329
      %1347 = vmatprep.subr.bf16.mxu0 0
      %1348 = vmatpush1.bf16.msra.mxu0 %v1331
      %1349 = vmatprep.subr.bf16.mxu0 0
      %1350 = vmatpush1.bf16.msra.mxu0 %v1332
      %1351 = vmatprep.subr.bf16.mxu0 0
      %1352 = vmatpush1.bf16.msra.mxu0 %v1333
      %1353 = vmatprep.subr.bf16.mxu0 0
      %1354 = vmatpush1.bf16.msra.mxu0 %v1334
      %1355 = vmatprep.subr.bf16.mxu0 0
      %1356 = vmatpush1.bf16.msra.mxu0 %v1335
      %1357 = vmatprep.subr.bf16.mxu0 0
      %1358 = vmatpush1.bf16.msra.mxu0 %v1336
      %1359 = vmatprep.subr.bf16.mxu0 0
      %1360 = vmatpush1.bf16.msra.mxu0 %v1337
      %1361 = vmatprep.subr.bf16.mxu0 0
      %1362 = vmatpush1.bf16.msra.mxu0 %v1338
      %1363 = vmatprep.subr.bf16.mxu0 0
      %1364 = vmatpush1.bf16.msra.mxu0 0
      %1365 = vmatprep.subr.bf16.mxu0 0
      %1366 = vmatpush1.bf16.msra.mxu0 0
      %1367 = vmatprep.subr.bf16.mxu0 0
      %1368 = vmatpush1.bf16.msra.mxu0 0
      %1369 = vmatprep.subr.bf16.mxu0 0
      %1370 = vmatpush1.bf16.msra.mxu0 0
      %1371 = vmatprep.subr.bf16.mxu0 0
      %1372 = vmatpush1.bf16.msra.mxu0 0
      %1373 = vmatprep.subr.bf16.mxu0 0
      %1374 = vmatpush1.bf16.msra.mxu0 0
      %1375 = vmatprep.subr.bf16.mxu0 0
      %1376 = vmatpush1.bf16.msra.mxu0 0
      %1377 = vmatprep.subr.bf16.mxu0 0
      %1378 = vmatpush1.bf16.msra.mxu0 0
      %1379 = vmatprep.mubr.bf16.mxu0 0
      %1380 = vmatmul.mubr.bf16.gmra.mrb[0].mxu0 %v1246
      %v1381 = vpop.f32.mrb[0].mxu0
      %v1382 = vadd.f32 0.0, %v1381
      %v1383 = vpop.f32.mrb[0].mxu0
      %v1384 = vpop.f32.mrb[0].mxu0
      %v1385 = vadd.f32 0.0, %v1384
      %v1386 = vpop.f32.mrb[0].mxu0
      %1387 = vmatprep.mubr.bf16.mxu0 0
      %1388 = vmatmul.mubr.bf16.gmra.mrb[0].mxu0 %v1250
      %v1389 = vpop.f32.mrb[0].mxu0
      %v1390 = vadd.f32 0.0, %v1389
      %v1391 = vpop.f32.mrb[0].mxu0
      %v1392 = vpop.f32.mrb[0].mxu0
      %v1393 = vadd.f32 0.0, %v1392
      %v1394 = vpop.f32.mrb[0].mxu0
      %1395 = vmatprep.mubr.bf16.mxu0 0
      %1396 = vmatmul.mubr.bf16.gmra.mrb[0].mxu0 %v1254
      %v1397 = vpop.f32.mrb[0].mxu0
      %v1398 = vadd.f32 0.0, %v1397
      %v1399 = vpop.f32.mrb[0].mxu0
      %v1400 = vpop.f32.mrb[0].mxu0
      %v1401 = vadd.f32 0.0, %v1400
      %v1402 = vpop.f32.mrb[0].mxu0
      %1403 = vmatprep.mubr.bf16.mxu0 0
      %1404 = vmatmul.mubr.bf16.gmra.mrb[0].mxu0 %v1258
      %v1405 = vpop.f32.mrb[0].mxu0
      %v1406 = vadd.f32 0.0, %v1405
      %v1407 = vpop.f32.mrb[0].mxu0
      %v1408 = vpop.f32.mrb[0].mxu0
      %v1409 = vadd.f32 0.0, %v1408
      %v1410 = vpop.f32.mrb[0].mxu0
      %1411 = vmatprep.mubr.bf16.mxu0 0
      %1412 = vmatmul.mubr.bf16.gmra.mrb[0].mxu0 %v1262
      %v1413 = vpop.f32.mrb[0].mxu0
      %v1414 = vadd.f32 0.0, %v1413
      %v1415 = vpop.f32.mrb[0].mxu0
      %v1416 = vpop.f32.mrb[0].mxu0
      %v1417 = vadd.f32 0.0, %v1416
      %v1418 = vpop.f32.mrb[0].mxu0
      %1419 = vmatprep.mubr.bf16.mxu0 0
      %1420 = vmatmul.mubr.bf16.gmra.mrb[0].mxu0 %v1266
      %v1421 = vpop.f32.mrb[0].mxu0
      %v1422 = vadd.f32 0.0, %v1421
      %v1423 = vpop.f32.mrb[0].mxu0
      %v1424 = vpop.f32.mrb[0].mxu0
      %v1425 = vadd.f32 0.0, %v1424
      %v1426 = vpop.f32.mrb[0].mxu0
      %1427 = vmatprep.mubr.bf16.mxu0 0
      %1428 = vmatmul.mubr.bf16.gmra.mrb[0].mxu0 %v1270
      %v1429 = vpop.f32.mrb[0].mxu0
      %v1430 = vadd.f32 0.0, %v1429
      %v1431 = vpop.f32.mrb[0].mxu0
      %v1432 = vpop.f32.mrb[0].mxu0
      %v1433 = vadd.f32 0.0, %v1432
      %v1434 = vpop.f32.mrb[0].mxu0
      %1435 = vmatprep.mubr.bf16.mxu0 0
      %1436 = vmatmul.mubr.bf16.gmra.mrb[0].mxu0 %v1274
      %v1437 = vpop.f32.mrb[0].mxu0
      %v1438 = vadd.f32 0.0, %v1437
      %v1439 = vpop.f32.mrb[0].mxu0
      %v1440 = vpop.f32.mrb[0].mxu0
      %v1441 = vadd.f32 0.0, %v1440
      %v1442 = vpop.f32.mrb[0].mxu0
      %1443 = vmatprep.mubr.bf16.mxu0 0
      %1444 = vmatmul.mubr.bf16.gmra.mrb[0].mxu0 %v1278
      %v1445 = vpop.f32.mrb[0].mxu0
      %v1446 = vadd.f32 0.0, %v1445
      %v1447 = vpop.f32.mrb[0].mxu0
      %v1448 = vpop.f32.mrb[0].mxu0
      %v1449 = vadd.f32 0.0, %v1448
      %v1450 = vpop.f32.mrb[0].mxu0
      %1451 = vmatprep.mubr.bf16.mxu0 0
      %1452 = vmatmul.mubr.bf16.gmra.mrb[0].mxu0 %v1287
      %v1453 = vpop.f32.mrb[0].mxu0
      %v1454 = vadd.f32 0.0, %v1453
      %v1455 = vpop.f32.mrb[0].mxu0
      %v1456 = vpop.f32.mrb[0].mxu0
      %v1457 = vadd.f32 0.0, %v1456
      %v1458 = vpop.f32.mrb[0].mxu0
      %1459 = vmatprep.mubr.bf16.mxu0 0
      %1460 = vmatmul.mubr.bf16.gmra.mrb[0].mxu0 %v1286
      %v1461 = vpop.f32.mrb[0].mxu0
      %v1462 = vadd.f32 0.0, %v1461
      %v1463 = vpop.f32.mrb[0].mxu0
      %v1464 = vpop.f32.mrb[0].mxu0
      %v1465 = vpop.f32.mrb[0].mxu0
      %1466 = vdwg.mxu0
      %v1467 = vadd.f32 %v1202, %v1382
      %v1468 = vadd.f32 %v1203, %v1385
      %v1469 = vadd.f32 %v1204, %v1390
      %v1470 = vadd.f32 %v1205, %v1393
      %v1471 = vadd.f32 %v1206, %v1398
      %v1472 = vadd.f32 %v1207, %v1401
      %v1473 = vadd.f32 %v1208, %v1406
      %v1474 = vadd.f32 %v1209, %v1409
      %v1475 = vadd.f32 %v1210, %v1414
      %v1476 = vadd.f32 %v1211, %v1417
      %v1477 = vadd.f32 %v1212, %v1422
      %v1478 = vadd.f32 %v1213, %v1425
      %v1479 = vadd.f32 %v1214, %v1430
      %v1480 = vadd.f32 %v1215, %v1433
      %v1481 = vadd.f32 %v1216, %v1438
      %v1482 = vadd.f32 %v1217, %v1441
      %v1483 = vadd.f32 %v1218, %v1446
      %v1484 = vadd.f32 %v1219, %v1449
      %v1485 = vadd.f32 %v1220, %v1454
      %v1486 = vadd.f32 %v1221, %v1457
      %v1487 = vadd.f32 %v1222, %v1462
      %v1488 = vld [vmem:[%s1 + $0x140] sm:$0xf]
      %v1489 = vld [vmem:[%s1 + $0x144] sm:$0xf]
      %v1490 = vld [vmem:[%s1 + $0x148] sm:$0xf]
      %v1491 = vld [vmem:[%s1 + $0x14c] sm:$0xf]
      %v1492 = vld [vmem:[%s1 + $0x150] sm:$0xf]
      %v1493 = vld [vmem:[%s1 + $0x154] sm:$0xf]
      %v1494 = vld [vmem:[%s1 + $0x158] sm:$0xf]
      %v1495 = vld [vmem:[%s1 + $0x15c] sm:$0xf]
      %v1496 = vld [vmem:[%s1 + $0x160] sm:$0xf]
      %v1497 = vld [vmem:[%s1 + $0x164] sm:$0xf]
      %v1498 = vld [vmem:[%s1 + $0x168] sm:$0xf]
      %v1499 = vld [vmem:[%s1 + $0x16c] sm:$0xf]
      %v1500 = vld [vmem:[%s1 + $0x170] sm:$0xf]
      %v1501 = vld [vmem:[%s1 + $0x174] sm:$0xf]
      %v1502 = vld [vmem:[%s1 + $0x178] sm:$0xf]
      %v1503 = vld [vmem:[%s1 + $0x17c] sm:$0xf]
      %vm1504 = vcmask 1045504
      %v1505 = vrot.slane %v285, 2
      %v1506 = vrot.slane %v286, 2
      %v1507 = vsel %vm1504, %v1505, %v1506
      %v1508 = vrot.slane %v287, 2
      %v1509 = vsel %vm1504, %v1506, %v1508
      %v1510 = vrot.slane %v288, 2
      %v1511 = vsel %vm1504, %v1508, %v1510
      %v1512 = vrot.slane %v289, 2
      %v1513 = vsel %vm1504, %v1510, %v1512
      %v1514 = vrot.slane %v290, 2
      %v1515 = vsel %vm1504, %v1512, %v1514
      %v1516 = vrot.slane %v291, 2
      %v1517 = vsel %vm1504, %v1514, %v1516
      %v1518 = vrot.slane %v292, 2
      %v1519 = vsel %vm1504, %v1516, %v1518
      %v1520 = vrot.slane %v293, 2
      %v1521 = vsel %vm1504, %v1518, %v1520
      %v1522 = vrot.slane %v311, 2
      %v1523 = vsel %vm1504, %v1520, %v1522
      %v1524 = vrot.slane %v1012, 2
      %v1525 = vsel %vm1504, %v1522, %v1524
      %v1553 = vunpack.c.l.b16 %v1488
      %v1554 = vunpack.c.l.b16 %v1489
      %v1555 = vunpack.c.l.b16 %v1490
      %v1556 = vunpack.c.l.b16 %v1491
      %v1557 = vunpack.c.l.b16 %v1492
      %v1558 = vunpack.c.l.b16 %v1493
      %v1559 = vunpack.c.l.b16 %v1494
      %v1560 = vunpack.c.l.b16 %v1495
      %v1561 = vunpack.c.l.b16 %v1496
      %v1562 = vunpack.c.l.b16 %v1497
      %v1563 = vunpack.c.l.b16 %v1498
      %v1564 = vunpack.c.l.b16 %v1499
      %v1565 = vunpack.c.l.b16 %v1500
      %v1566 = vunpack.c.l.b16 %v1501
      %v1567 = vunpack.c.l.b16 %v1502
      %v1568 = vunpack.c.l.b16 %v1503
      %v1569 = vpack.c.b16 %v1554, %v1553
      %v1570 = vpack.c.b16 %v1556, %v1555
      %v1571 = vpack.c.b16 %v1558, %v1557
      %v1572 = vpack.c.b16 %v1560, %v1559
      %v1573 = vpack.c.b16 %v1562, %v1561
      %v1574 = vpack.c.b16 %v1564, %v1563
      %v1575 = vpack.c.b16 %v1566, %v1565
      %v1576 = vpack.c.b16 %v1568, %v1567
      %1585 = vmatprep.subr.bf16.mxu0 0
      %1586 = vmatpush1.bf16.msra.mxu0 %v1569
      %1587 = vmatprep.subr.bf16.mxu0 0
      %1588 = vmatpush1.bf16.msra.mxu0 %v1570
      %1589 = vmatprep.subr.bf16.mxu0 0
      %1590 = vmatpush1.bf16.msra.mxu0 %v1571
      %1591 = vmatprep.subr.bf16.mxu0 0
      %1592 = vmatpush1.bf16.msra.mxu0 %v1572
      %1593 = vmatprep.subr.bf16.mxu0 0
      %1594 = vmatpush1.bf16.msra.mxu0 %v1573
      %1595 = vmatprep.subr.bf16.mxu0 0
      %1596 = vmatpush1.bf16.msra.mxu0 %v1574
      %1597 = vmatprep.subr.bf16.mxu0 0
      %1598 = vmatpush1.bf16.msra.mxu0 %v1575
      %1599 = vmatprep.subr.bf16.mxu0 0
      %1600 = vmatpush1.bf16.msra.mxu0 %v1576
      %1601 = vmatprep.subr.bf16.mxu0 0
      %1602 = vmatpush1.bf16.msra.mxu0 0
      %1603 = vmatprep.subr.bf16.mxu0 0
      %1604 = vmatpush1.bf16.msra.mxu0 0
      %1605 = vmatprep.subr.bf16.mxu0 0
      %1606 = vmatpush1.bf16.msra.mxu0 0
      %1607 = vmatprep.subr.bf16.mxu0 0
      %1608 = vmatpush1.bf16.msra.mxu0 0
      %1609 = vmatprep.subr.bf16.mxu0 0
      %1610 = vmatpush1.bf16.msra.mxu0 0
      %1611 = vmatprep.subr.bf16.mxu0 0
      %1612 = vmatpush1.bf16.msra.mxu0 0
      %1613 = vmatprep.subr.bf16.mxu0 0
      %1614 = vmatpush1.bf16.msra.mxu0 0
      %1615 = vmatprep.subr.bf16.mxu0 0
      %1616 = vmatpush1.bf16.msra.mxu0 0
      %1617 = vmatprep.mubr.bf16.mxu0 0
      %1618 = vmatmul.mubr.bf16.gmra.mrb[0].mxu0 %v1507
      %v1619 = vpop.f32.mrb[0].mxu0
      %v1620 = vadd.f32 0.0, %v1619
      %v1621 = vpop.f32.mrb[0].mxu0
      %v1622 = vpop.f32.mrb[0].mxu0
      %v1623 = vadd.f32 0.0, %v1622
      %v1624 = vpop.f32.mrb[0].mxu0
      %1625 = vmatprep.mubr.bf16.mxu0 0
      %1626 = vmatmul.mubr.bf16.gmra.mrb[0].mxu0 %v1509
      %v1627 = vpop.f32.mrb[0].mxu0
      %v1628 = vadd.f32 0.0, %v1627
      %v1629 = vpop.f32.mrb[0].mxu0
      %v1630 = vpop.f32.mrb[0].mxu0
      %v1631 = vadd.f32 0.0, %v1630
      %v1632 = vpop.f32.mrb[0].mxu0
      %1633 = vmatprep.mubr.bf16.mxu0 0
      %1634 = vmatmul.mubr.bf16.gmra.mrb[0].mxu0 %v1511
      %v1635 = vpop.f32.mrb[0].mxu0
      %v1636 = vadd.f32 0.0, %v1635
      %v1637 = vpop.f32.mrb[0].mxu0
      %v1638 = vpop.f32.mrb[0].mxu0
      %v1639 = vadd.f32 0.0, %v1638
      %v1640 = vpop.f32.mrb[0].mxu0
      %1641 = vmatprep.mubr.bf16.mxu0 0
      %1642 = vmatmul.mubr.bf16.gmra.mrb[0].mxu0 %v1513
      %v1643 = vpop.f32.mrb[0].mxu0
      %v1644 = vadd.f32 0.0, %v1643
      %v1645 = vpop.f32.mrb[0].mxu0
      %v1646 = vpop.f32.mrb[0].mxu0
      %v1647 = vadd.f32 0.0, %v1646
      %v1648 = vpop.f32.mrb[0].mxu0
      %1649 = vmatprep.mubr.bf16.mxu0 0
      %1650 = vmatmul.mubr.bf16.gmra.mrb[0].mxu0 %v1515
      %v1651 = vpop.f32.mrb[0].mxu0
      %v1652 = vadd.f32 0.0, %v1651
      %v1653 = vpop.f32.mrb[0].mxu0
      %v1654 = vpop.f32.mrb[0].mxu0
      %v1655 = vadd.f32 0.0, %v1654
      %v1656 = vpop.f32.mrb[0].mxu0
      %1657 = vmatprep.mubr.bf16.mxu0 0
      %1658 = vmatmul.mubr.bf16.gmra.mrb[0].mxu0 %v1517
      %v1659 = vpop.f32.mrb[0].mxu0
      %v1660 = vadd.f32 0.0, %v1659
      %v1661 = vpop.f32.mrb[0].mxu0
      %v1662 = vpop.f32.mrb[0].mxu0
      %v1663 = vadd.f32 0.0, %v1662
      %v1664 = vpop.f32.mrb[0].mxu0
      %1665 = vmatprep.mubr.bf16.mxu0 0
      %1666 = vmatmul.mubr.bf16.gmra.mrb[0].mxu0 %v1519
      %v1667 = vpop.f32.mrb[0].mxu0
      %v1668 = vadd.f32 0.0, %v1667
      %v1669 = vpop.f32.mrb[0].mxu0
      %v1670 = vpop.f32.mrb[0].mxu0
      %v1671 = vadd.f32 0.0, %v1670
      %v1672 = vpop.f32.mrb[0].mxu0
      %1673 = vmatprep.mubr.bf16.mxu0 0
      %1674 = vmatmul.mubr.bf16.gmra.mrb[0].mxu0 %v1521
      %v1675 = vpop.f32.mrb[0].mxu0
      %v1676 = vadd.f32 0.0, %v1675
      %v1677 = vpop.f32.mrb[0].mxu0
      %v1678 = vpop.f32.mrb[0].mxu0
      %v1679 = vadd.f32 0.0, %v1678
      %v1680 = vpop.f32.mrb[0].mxu0
      %1681 = vmatprep.mubr.bf16.mxu0 0
      %1682 = vmatmul.mubr.bf16.gmra.mrb[0].mxu0 %v1523
      %v1683 = vpop.f32.mrb[0].mxu0
      %v1684 = vadd.f32 0.0, %v1683
      %v1685 = vpop.f32.mrb[0].mxu0
      %v1686 = vpop.f32.mrb[0].mxu0
      %v1687 = vadd.f32 0.0, %v1686
      %v1688 = vpop.f32.mrb[0].mxu0
      %1689 = vmatprep.mubr.bf16.mxu0 0
      %1690 = vmatmul.mubr.bf16.gmra.mrb[0].mxu0 %v1525
      %v1691 = vpop.f32.mrb[0].mxu0
      %v1692 = vadd.f32 0.0, %v1691
      %v1693 = vpop.f32.mrb[0].mxu0
      %v1694 = vpop.f32.mrb[0].mxu0
      %v1695 = vadd.f32 0.0, %v1694
      %v1696 = vpop.f32.mrb[0].mxu0
      %1697 = vmatprep.mubr.bf16.mxu0 0
      %1698 = vmatmul.mubr.bf16.gmra.mrb[0].mxu0 %v1524
      %v1699 = vpop.f32.mrb[0].mxu0
      %v1700 = vadd.f32 0.0, %v1699
      %v1701 = vpop.f32.mrb[0].mxu0
      %v1702 = vpop.f32.mrb[0].mxu0
      %v1703 = vpop.f32.mrb[0].mxu0
      %1704 = vdwg.mxu0
      %v1705 = vadd.f32 %v1467, %v1620
      %v1706 = vadd.f32 %v1468, %v1623
      %v1707 = vadd.f32 %v1469, %v1628
      %v1708 = vadd.f32 %v1470, %v1631
      %v1709 = vadd.f32 %v1471, %v1636
      %v1710 = vadd.f32 %v1472, %v1639
      %v1711 = vadd.f32 %v1473, %v1644
      %v1712 = vadd.f32 %v1474, %v1647
      %v1713 = vadd.f32 %v1475, %v1652
      %v1714 = vadd.f32 %v1476, %v1655
      %v1715 = vadd.f32 %v1477, %v1660
      %v1716 = vadd.f32 %v1478, %v1663
      %v1717 = vadd.f32 %v1479, %v1668
      %v1718 = vadd.f32 %v1480, %v1671
      %v1719 = vadd.f32 %v1481, %v1676
      %v1720 = vadd.f32 %v1482, %v1679
      %v1721 = vadd.f32 %v1483, %v1684
      %v1722 = vadd.f32 %v1484, %v1687
      %v1723 = vadd.f32 %v1485, %v1692
      %v1724 = vadd.f32 %v1486, %v1695
      %v1725 = vadd.f32 %v1487, %v1700
      %v1726 = vpack.c.bf16 %v283, %v282
      %v1727 = vld [vmem:[%s1 + $0x180] sm:$0xf]
      %v1728 = vld [vmem:[%s1 + $0x184] sm:$0xf]
      %v1729 = vld [vmem:[%s1 + $0x188] sm:$0xf]
      %v1730 = vld [vmem:[%s1 + $0x18c] sm:$0xf]
      %v1731 = vld [vmem:[%s1 + $0x190] sm:$0xf]
      %v1732 = vld [vmem:[%s1 + $0x194] sm:$0xf]
      %v1733 = vld [vmem:[%s1 + $0x198] sm:$0xf]
      %v1734 = vld [vmem:[%s1 + $0x19c] sm:$0xf]
      %v1735 = vld [vmem:[%s1 + $0x1a0] sm:$0xf]
      %v1736 = vld [vmem:[%s1 + $0x1a4] sm:$0xf]
      %v1737 = vld [vmem:[%s1 + $0x1a8] sm:$0xf]
      %v1738 = vld [vmem:[%s1 + $0x1ac] sm:$0xf]
      %v1739 = vld [vmem:[%s1 + $0x1b0] sm:$0xf]
      %v1740 = vld [vmem:[%s1 + $0x1b4] sm:$0xf]
      %v1741 = vld [vmem:[%s1 + $0x1b8] sm:$0xf]
      %v1742 = vld [vmem:[%s1 + $0x1bc] sm:$0xf]
      %v1744 = vrot.slane %v1726, 2
      %v1745 = vsel %vm1504, %v1524, %v1744
      %v1764 = vunpack.c.l.b16 %v1727
      %v1765 = vunpack.c.l.b16 %v1728
      %v1766 = vunpack.c.l.b16 %v1729
      %v1767 = vunpack.c.l.b16 %v1730
      %v1768 = vunpack.c.l.b16 %v1731
      %v1769 = vunpack.c.l.b16 %v1732
      %v1770 = vunpack.c.l.b16 %v1733
      %v1771 = vunpack.c.l.b16 %v1734
      %v1772 = vunpack.c.l.b16 %v1735
      %v1773 = vunpack.c.l.b16 %v1736
      %v1774 = vunpack.c.l.b16 %v1737
      %v1775 = vunpack.c.l.b16 %v1738
      %v1776 = vunpack.c.l.b16 %v1739
      %v1777 = vunpack.c.l.b16 %v1740
      %v1778 = vunpack.c.l.b16 %v1741
      %v1779 = vunpack.c.l.b16 %v1742
      %v1780 = vpack.c.b16 %v1765, %v1764
      %v1781 = vpack.c.b16 %v1767, %v1766
      %v1782 = vpack.c.b16 %v1769, %v1768
      %v1783 = vpack.c.b16 %v1771, %v1770
      %v1784 = vpack.c.b16 %v1773, %v1772
      %v1785 = vpack.c.b16 %v1775, %v1774
      %v1786 = vpack.c.b16 %v1777, %v1776
      %v1787 = vpack.c.b16 %v1779, %v1778
      %1796 = vmatprep.subr.bf16.mxu0 0
      %1797 = vmatpush1.bf16.msra.mxu0 %v1780
      %1798 = vmatprep.subr.bf16.mxu0 0
      %1799 = vmatpush1.bf16.msra.mxu0 %v1781
      %1800 = vmatprep.subr.bf16.mxu0 0
      %1801 = vmatpush1.bf16.msra.mxu0 %v1782
      %1802 = vmatprep.subr.bf16.mxu0 0
      %1803 = vmatpush1.bf16.msra.mxu0 %v1783
      %1804 = vmatprep.subr.bf16.mxu0 0
      %1805 = vmatpush1.bf16.msra.mxu0 %v1784
      %1806 = vmatprep.subr.bf16.mxu0 0
      %1807 = vmatpush1.bf16.msra.mxu0 %v1785
      %1808 = vmatprep.subr.bf16.mxu0 0
      %1809 = vmatpush1.bf16.msra.mxu0 %v1786
      %1810 = vmatprep.subr.bf16.mxu0 0
      %1811 = vmatpush1.bf16.msra.mxu0 %v1787
      %1812 = vmatprep.subr.bf16.mxu0 0
      %1813 = vmatpush1.bf16.msra.mxu0 0
      %1814 = vmatprep.subr.bf16.mxu0 0
      %1815 = vmatpush1.bf16.msra.mxu0 0
      %1816 = vmatprep.subr.bf16.mxu0 0
      %1817 = vmatpush1.bf16.msra.mxu0 0
      %1818 = vmatprep.subr.bf16.mxu0 0
      %1819 = vmatpush1.bf16.msra.mxu0 0
      %1820 = vmatprep.subr.bf16.mxu0 0
      %1821 = vmatpush1.bf16.msra.mxu0 0
      %1822 = vmatprep.subr.bf16.mxu0 0
      %1823 = vmatpush1.bf16.msra.mxu0 0
      %1824 = vmatprep.subr.bf16.mxu0 0
      %1825 = vmatpush1.bf16.msra.mxu0 0
      %1826 = vmatprep.subr.bf16.mxu0 0
      %1827 = vmatpush1.bf16.msra.mxu0 0
      %1828 = vmatprep.mubr.bf16.mxu0 0
      %1829 = vmatmul.mubr.bf16.gmra.mrb[0].mxu0 %v1509
      %v1830 = vpop.f32.mrb[0].mxu0
      %v1831 = vadd.f32 0.0, %v1830
      %v1832 = vpop.f32.mrb[0].mxu0
      %v1833 = vpop.f32.mrb[0].mxu0
      %v1834 = vadd.f32 0.0, %v1833
      %v1835 = vpop.f32.mrb[0].mxu0
      %1836 = vmatprep.mubr.bf16.mxu0 0
      %1837 = vmatmul.mubr.bf16.gmra.mrb[0].mxu0 %v1511
      %v1838 = vpop.f32.mrb[0].mxu0
      %v1839 = vadd.f32 0.0, %v1838
      %v1840 = vpop.f32.mrb[0].mxu0
      %v1841 = vpop.f32.mrb[0].mxu0
      %v1842 = vadd.f32 0.0, %v1841
      %v1843 = vpop.f32.mrb[0].mxu0
      %1844 = vmatprep.mubr.bf16.mxu0 0
      %1845 = vmatmul.mubr.bf16.gmra.mrb[0].mxu0 %v1513
      %v1846 = vpop.f32.mrb[0].mxu0
      %v1847 = vadd.f32 0.0, %v1846
      %v1848 = vpop.f32.mrb[0].mxu0
      %v1849 = vpop.f32.mrb[0].mxu0
      %v1850 = vadd.f32 0.0, %v1849
      %v1851 = vpop.f32.mrb[0].mxu0
      %1852 = vmatprep.mubr.bf16.mxu0 0
      %1853 = vmatmul.mubr.bf16.gmra.mrb[0].mxu0 %v1515
      %v1854 = vpop.f32.mrb[0].mxu0
      %v1855 = vadd.f32 0.0, %v1854
      %v1856 = vpop.f32.mrb[0].mxu0
      %v1857 = vpop.f32.mrb[0].mxu0
      %v1858 = vadd.f32 0.0, %v1857
      %v1859 = vpop.f32.mrb[0].mxu0
      %1860 = vmatprep.mubr.bf16.mxu0 0
      %1861 = vmatmul.mubr.bf16.gmra.mrb[0].mxu0 %v1517
      %v1862 = vpop.f32.mrb[0].mxu0
      %v1863 = vadd.f32 0.0, %v1862
      %v1864 = vpop.f32.mrb[0].mxu0
      %v1865 = vpop.f32.mrb[0].mxu0
      %v1866 = vadd.f32 0.0, %v1865
      %v1867 = vpop.f32.mrb[0].mxu0
      %1868 = vmatprep.mubr.bf16.mxu0 0
      %1869 = vmatmul.mubr.bf16.gmra.mrb[0].mxu0 %v1519
      %v1870 = vpop.f32.mrb[0].mxu0
      %v1871 = vadd.f32 0.0, %v1870
      %v1872 = vpop.f32.mrb[0].mxu0
      %v1873 = vpop.f32.mrb[0].mxu0
      %v1874 = vadd.f32 0.0, %v1873
      %v1875 = vpop.f32.mrb[0].mxu0
      %1876 = vmatprep.mubr.bf16.mxu0 0
      %1877 = vmatmul.mubr.bf16.gmra.mrb[0].mxu0 %v1521
      %v1878 = vpop.f32.mrb[0].mxu0
      %v1879 = vadd.f32 0.0, %v1878
      %v1880 = vpop.f32.mrb[0].mxu0
      %v1881 = vpop.f32.mrb[0].mxu0
      %v1882 = vadd.f32 0.0, %v1881
      %v1883 = vpop.f32.mrb[0].mxu0
      %1884 = vmatprep.mubr.bf16.mxu0 0
      %1885 = vmatmul.mubr.bf16.gmra.mrb[0].mxu0 %v1523
      %v1886 = vpop.f32.mrb[0].mxu0
      %v1887 = vadd.f32 0.0, %v1886
      %v1888 = vpop.f32.mrb[0].mxu0
      %v1889 = vpop.f32.mrb[0].mxu0
      %v1890 = vadd.f32 0.0, %v1889
      %v1891 = vpop.f32.mrb[0].mxu0
      %1892 = vmatprep.mubr.bf16.mxu0 0
      %1893 = vmatmul.mubr.bf16.gmra.mrb[0].mxu0 %v1525
      %v1894 = vpop.f32.mrb[0].mxu0
      %v1895 = vadd.f32 0.0, %v1894
      %v1896 = vpop.f32.mrb[0].mxu0
      %v1897 = vpop.f32.mrb[0].mxu0
      %v1898 = vadd.f32 0.0, %v1897
      %v1899 = vpop.f32.mrb[0].mxu0
      %1900 = vmatprep.mubr.bf16.mxu0 0
      %1901 = vmatmul.mubr.bf16.gmra.mrb[0].mxu0 %v1745
      %v1902 = vpop.f32.mrb[0].mxu0
      %v1903 = vadd.f32 0.0, %v1902
      %v1904 = vpop.f32.mrb[0].mxu0
      %v1905 = vpop.f32.mrb[0].mxu0
      %v1906 = vadd.f32 0.0, %v1905
      %v1907 = vpop.f32.mrb[0].mxu0
      %1908 = vmatprep.mubr.bf16.mxu0 0
      %1909 = vmatmul.mubr.bf16.gmra.mrb[0].mxu0 %v1744
      %v1910 = vpop.f32.mrb[0].mxu0
      %v1911 = vadd.f32 0.0, %v1910
      %v1912 = vpop.f32.mrb[0].mxu0
      %v1913 = vpop.f32.mrb[0].mxu0
      %v1914 = vpop.f32.mrb[0].mxu0
      %1915 = vdwg.mxu0
      %v1916 = vadd.f32 %v1705, %v1831
      %v1917 = vadd.f32 %v1706, %v1834
      %v1918 = vadd.f32 %v1707, %v1839
      %v1919 = vadd.f32 %v1708, %v1842
      %v1920 = vadd.f32 %v1709, %v1847
      %v1921 = vadd.f32 %v1710, %v1850
      %v1922 = vadd.f32 %v1711, %v1855
      %v1923 = vadd.f32 %v1712, %v1858
      %v1924 = vadd.f32 %v1713, %v1863
      %v1925 = vadd.f32 %v1714, %v1866
      %v1926 = vadd.f32 %v1715, %v1871
      %v1927 = vadd.f32 %v1716, %v1874
      %v1928 = vadd.f32 %v1717, %v1879
      %v1929 = vadd.f32 %v1718, %v1882
      %v1930 = vadd.f32 %v1719, %v1887
      %v1931 = vadd.f32 %v1720, %v1890
      %v1932 = vadd.f32 %v1721, %v1895
      %v1933 = vadd.f32 %v1722, %v1898
      %v1934 = vadd.f32 %v1723, %v1903
      %v1935 = vadd.f32 %v1724, %v1906
      %v1936 = vadd.f32 %v1725, %v1911
      %v1937 = vld [vmem:[%s1 + $0x1c0] sm:$0xf]
      %v1938 = vld [vmem:[%s1 + $0x1c4] sm:$0xf]
      %v1939 = vld [vmem:[%s1 + $0x1c8] sm:$0xf]
      %v1940 = vld [vmem:[%s1 + $0x1cc] sm:$0xf]
      %v1941 = vld [vmem:[%s1 + $0x1d0] sm:$0xf]
      %v1942 = vld [vmem:[%s1 + $0x1d4] sm:$0xf]
      %v1943 = vld [vmem:[%s1 + $0x1d8] sm:$0xf]
      %v1944 = vld [vmem:[%s1 + $0x1dc] sm:$0xf]
      %v1945 = vld [vmem:[%s1 + $0x1e0] sm:$0xf]
      %v1946 = vld [vmem:[%s1 + $0x1e4] sm:$0xf]
      %v1947 = vld [vmem:[%s1 + $0x1e8] sm:$0xf]
      %v1948 = vld [vmem:[%s1 + $0x1ec] sm:$0xf]
      %v1949 = vld [vmem:[%s1 + $0x1f0] sm:$0xf]
      %v1950 = vld [vmem:[%s1 + $0x1f4] sm:$0xf]
      %v1951 = vld [vmem:[%s1 + $0x1f8] sm:$0xf]
      %v1952 = vld [vmem:[%s1 + $0x1fc] sm:$0xf]
      %vm1953 = vsmask.f32 5376
      %v1954 = vrot.slane %v349, 2
      %v1955 = vrot.slane %v345, 3
      %v1956 = vor.u32 %v1954, %v1955
      %v1957 = vrot.slane %v357, 2
      %v1958 = vrot.slane %v353, 3
      %v1959 = vor.u32 %v1957, %v1958
      %v1960 = vsel %vm1953, %v1956, %v1959
      %v1961 = vrot.slane %v365, 2
      %v1962 = vrot.slane %v361, 3
      %v1963 = vor.u32 %v1961, %v1962
      %v1964 = vsel %vm1953, %v1959, %v1963
      %v1965 = vrot.slane %v373, 2
      %v1966 = vrot.slane %v369, 3
      %v1967 = vor.u32 %v1965, %v1966
      %v1968 = vsel %vm1953, %v1963, %v1967
      %v1969 = vrot.slane %v381, 2
      %v1970 = vrot.slane %v377, 3
      %v1971 = vor.u32 %v1969, %v1970
      %v1972 = vsel %vm1953, %v1967, %v1971
      %v1973 = vrot.slane %v389, 2
      %v1974 = vrot.slane %v385, 3
      %v1975 = vor.u32 %v1973, %v1974
      %v1976 = vsel %vm1953, %v1971, %v1975
      %v1977 = vrot.slane %v397, 2
      %v1978 = vrot.slane %v393, 3
      %v1979 = vor.u32 %v1977, %v1978
      %v1980 = vsel %vm1953, %v1975, %v1979
      %v1981 = vrot.slane %v405, 2
      %v1982 = vrot.slane %v401, 3
      %v1983 = vor.u32 %v1981, %v1982
      %v1984 = vsel %vm1953, %v1979, %v1983
      %v1985 = vrot.slane %v413, 2
      %v1986 = vrot.slane %v409, 3
      %v1987 = vor.u32 %v1985, %v1986
      %v1988 = vsel %vm1953, %v1983, %v1987
      %v1989 = vrot.slane %v1280, 2
      %v1990 = vrot.slane %v1283, 3
      %v1991 = vor.u32 %v1989, %v1990
      %v1992 = vsel %vm1953, %v1987, %v1991
      %v1994 = vshrl.u32 %v1726, 16
      %v1996 = vrot.slane %v1994, 2
      %v1997 = vshll.u32 %v1726, 16
      %v1999 = vrot.slane %v1997, 3
      %v2000 = vor.u32 %v1996, %v1999
      %v2001 = vsel %vm1953, %v1991, %v2000
      %v2029 = vunpack.c.l.b16 %v1937
      %v2030 = vunpack.c.l.b16 %v1938
      %v2031 = vunpack.c.l.b16 %v1939
      %v2032 = vunpack.c.l.b16 %v1940
      %v2033 = vunpack.c.l.b16 %v1941
      %v2034 = vunpack.c.l.b16 %v1942
      %v2035 = vunpack.c.l.b16 %v1943
      %v2036 = vunpack.c.l.b16 %v1944
      %v2037 = vunpack.c.l.b16 %v1945
      %v2038 = vunpack.c.l.b16 %v1946
      %v2039 = vunpack.c.l.b16 %v1947
      %v2040 = vunpack.c.l.b16 %v1948
      %v2041 = vunpack.c.l.b16 %v1949
      %v2042 = vunpack.c.l.b16 %v1950
      %v2043 = vunpack.c.l.b16 %v1951
      %v2044 = vunpack.c.l.b16 %v1952
      %v2045 = vpack.c.b16 %v2030, %v2029
      %v2046 = vpack.c.b16 %v2032, %v2031
      %v2047 = vpack.c.b16 %v2034, %v2033
      %v2048 = vpack.c.b16 %v2036, %v2035
      %v2049 = vpack.c.b16 %v2038, %v2037
      %v2050 = vpack.c.b16 %v2040, %v2039
      %v2051 = vpack.c.b16 %v2042, %v2041
      %v2052 = vpack.c.b16 %v2044, %v2043
      %2061 = vmatprep.subr.bf16.mxu0 0
      %2062 = vmatpush1.bf16.msra.mxu0 %v2045
      %2063 = vmatprep.subr.bf16.mxu0 0
      %2064 = vmatpush1.bf16.msra.mxu0 %v2046
      %2065 = vmatprep.subr.bf16.mxu0 0
      %2066 = vmatpush1.bf16.msra.mxu0 %v2047
      %2067 = vmatprep.subr.bf16.mxu0 0
      %2068 = vmatpush1.bf16.msra.mxu0 %v2048
      %2069 = vmatprep.subr.bf16.mxu0 0
      %2070 = vmatpush1.bf16.msra.mxu0 %v2049
      %2071 = vmatprep.subr.bf16.mxu0 0
      %2072 = vmatpush1.bf16.msra.mxu0 %v2050
      %2073 = vmatprep.subr.bf16.mxu0 0
      %2074 = vmatpush1.bf16.msra.mxu0 %v2051
      %2075 = vmatprep.subr.bf16.mxu0 0
      %2076 = vmatpush1.bf16.msra.mxu0 %v2052
      %2077 = vmatprep.subr.bf16.mxu0 0
      %2078 = vmatpush1.bf16.msra.mxu0 0
      %2079 = vmatprep.subr.bf16.mxu0 0
      %2080 = vmatpush1.bf16.msra.mxu0 0
      %2081 = vmatprep.subr.bf16.mxu0 0
      %2082 = vmatpush1.bf16.msra.mxu0 0
      %2083 = vmatprep.subr.bf16.mxu0 0
      %2084 = vmatpush1.bf16.msra.mxu0 0
      %2085 = vmatprep.subr.bf16.mxu0 0
      %2086 = vmatpush1.bf16.msra.mxu0 0
      %2087 = vmatprep.subr.bf16.mxu0 0
      %2088 = vmatpush1.bf16.msra.mxu0 0
      %2089 = vmatprep.subr.bf16.mxu0 0
      %2090 = vmatpush1.bf16.msra.mxu0 0
      %2091 = vmatprep.subr.bf16.mxu0 0
      %2092 = vmatpush1.bf16.msra.mxu0 0
      %2093 = vmatprep.mubr.bf16.mxu0 0
      %2094 = vmatmul.mubr.bf16.gmra.mrb[0].mxu0 %v1960
      %v2095 = vpop.f32.mrb[0].mxu0
      %v2096 = vadd.f32 0.0, %v2095
      %v2097 = vpop.f32.mrb[0].mxu0
      %v2098 = vpop.f32.mrb[0].mxu0
      %v2099 = vadd.f32 0.0, %v2098
      %v2100 = vpop.f32.mrb[0].mxu0
      %2101 = vmatprep.mubr.bf16.mxu0 0
      %2102 = vmatmul.mubr.bf16.gmra.mrb[0].mxu0 %v1964
      %v2103 = vpop.f32.mrb[0].mxu0
      %v2104 = vadd.f32 0.0, %v2103
      %v2105 = vpop.f32.mrb[0].mxu0
      %v2106 = vpop.f32.mrb[0].mxu0
      %v2107 = vadd.f32 0.0, %v2106
      %v2108 = vpop.f32.mrb[0].mxu0
      %2109 = vmatprep.mubr.bf16.mxu0 0
      %2110 = vmatmul.mubr.bf16.gmra.mrb[0].mxu0 %v1968
      %v2111 = vpop.f32.mrb[0].mxu0
      %v2112 = vadd.f32 0.0, %v2111
      %v2113 = vpop.f32.mrb[0].mxu0
      %v2114 = vpop.f32.mrb[0].mxu0
      %v2115 = vadd.f32 0.0, %v2114
      %v2116 = vpop.f32.mrb[0].mxu0
      %2117 = vmatprep.mubr.bf16.mxu0 0
      %2118 = vmatmul.mubr.bf16.gmra.mrb[0].mxu0 %v1972
      %v2119 = vpop.f32.mrb[0].mxu0
      %v2120 = vadd.f32 0.0, %v2119
      %v2121 = vpop.f32.mrb[0].mxu0
      %v2122 = vpop.f32.mrb[0].mxu0
      %v2123 = vadd.f32 0.0, %v2122
      %v2124 = vpop.f32.mrb[0].mxu0
      %2125 = vmatprep.mubr.bf16.mxu0 0
      %2126 = vmatmul.mubr.bf16.gmra.mrb[0].mxu0 %v1976
      %v2127 = vpop.f32.mrb[0].mxu0
      %v2128 = vadd.f32 0.0, %v2127
      %v2129 = vpop.f32.mrb[0].mxu0
      %v2130 = vpop.f32.mrb[0].mxu0
      %v2131 = vadd.f32 0.0, %v2130
      %v2132 = vpop.f32.mrb[0].mxu0
      %2133 = vmatprep.mubr.bf16.mxu0 0
      %2134 = vmatmul.mubr.bf16.gmra.mrb[0].mxu0 %v1980
      %v2135 = vpop.f32.mrb[0].mxu0
      %v2136 = vadd.f32 0.0, %v2135
      %v2137 = vpop.f32.mrb[0].mxu0
      %v2138 = vpop.f32.mrb[0].mxu0
      %v2139 = vadd.f32 0.0, %v2138
      %v2140 = vpop.f32.mrb[0].mxu0
      %2141 = vmatprep.mubr.bf16.mxu0 0
      %2142 = vmatmul.mubr.bf16.gmra.mrb[0].mxu0 %v1984
      %v2143 = vpop.f32.mrb[0].mxu0
      %v2144 = vadd.f32 0.0, %v2143
      %v2145 = vpop.f32.mrb[0].mxu0
      %v2146 = vpop.f32.mrb[0].mxu0
      %v2147 = vadd.f32 0.0, %v2146
      %v2148 = vpop.f32.mrb[0].mxu0
      %2149 = vmatprep.mubr.bf16.mxu0 0
      %2150 = vmatmul.mubr.bf16.gmra.mrb[0].mxu0 %v1988
      %v2151 = vpop.f32.mrb[0].mxu0
      %v2152 = vadd.f32 0.0, %v2151
      %v2153 = vpop.f32.mrb[0].mxu0
      %v2154 = vpop.f32.mrb[0].mxu0
      %v2155 = vadd.f32 0.0, %v2154
      %v2156 = vpop.f32.mrb[0].mxu0
      %2157 = vmatprep.mubr.bf16.mxu0 0
      %2158 = vmatmul.mubr.bf16.gmra.mrb[0].mxu0 %v1992
      %v2159 = vpop.f32.mrb[0].mxu0
      %v2160 = vadd.f32 0.0, %v2159
      %v2161 = vpop.f32.mrb[0].mxu0
      %v2162 = vpop.f32.mrb[0].mxu0
      %v2163 = vadd.f32 0.0, %v2162
      %v2164 = vpop.f32.mrb[0].mxu0
      %2165 = vmatprep.mubr.bf16.mxu0 0
      %2166 = vmatmul.mubr.bf16.gmra.mrb[0].mxu0 %v2001
      %v2167 = vpop.f32.mrb[0].mxu0
      %v2168 = vadd.f32 0.0, %v2167
      %v2169 = vpop.f32.mrb[0].mxu0
      %v2170 = vpop.f32.mrb[0].mxu0
      %v2171 = vadd.f32 0.0, %v2170
      %v2172 = vpop.f32.mrb[0].mxu0
      %2173 = vmatprep.mubr.bf16.mxu0 0
      %2174 = vmatmul.mubr.bf16.gmra.mrb[0].mxu0 %v2000
      %v2175 = vpop.f32.mrb[0].mxu0
      %v2176 = vadd.f32 0.0, %v2175
      %v2177 = vpop.f32.mrb[0].mxu0
      %v2178 = vpop.f32.mrb[0].mxu0
      %v2179 = vpop.f32.mrb[0].mxu0
      %2180 = vdwg.mxu0
      %v2181 = vadd.f32 %v1916, %v2096
      %v2182 = vadd.f32 %v1917, %v2099
      %v2183 = vadd.f32 %v1918, %v2104
      %v2184 = vadd.f32 %v1919, %v2107
      %v2185 = vadd.f32 %v1920, %v2112
      %v2186 = vadd.f32 %v1921, %v2115
      %v2187 = vadd.f32 %v1922, %v2120
      %v2188 = vadd.f32 %v1923, %v2123
      %v2189 = vadd.f32 %v1924, %v2128
      %v2190 = vadd.f32 %v1925, %v2131
      %v2191 = vadd.f32 %v1926, %v2136
      %v2192 = vadd.f32 %v1927, %v2139
      %v2193 = vadd.f32 %v1928, %v2144
      %v2194 = vadd.f32 %v1929, %v2147
      %v2195 = vadd.f32 %v1930, %v2152
      %v2196 = vadd.f32 %v1931, %v2155
      %v2197 = vadd.f32 %v1932, %v2160
      %v2198 = vadd.f32 %v1933, %v2163
      %v2199 = vadd.f32 %v1934, %v2168
      %v2200 = vadd.f32 %v1935, %v2171
      %v2201 = vadd.f32 %v1936, %v2176
      %v2202 = vld [vmem:[%s1 + $0x200] sm:$0xf]
      %v2203 = vld [vmem:[%s1 + $0x204] sm:$0xf]
      %v2204 = vld [vmem:[%s1 + $0x208] sm:$0xf]
      %v2205 = vld [vmem:[%s1 + $0x20c] sm:$0xf]
      %v2206 = vld [vmem:[%s1 + $0x210] sm:$0xf]
      %v2207 = vld [vmem:[%s1 + $0x214] sm:$0xf]
      %v2208 = vld [vmem:[%s1 + $0x218] sm:$0xf]
      %v2209 = vld [vmem:[%s1 + $0x21c] sm:$0xf]
      %v2210 = vld [vmem:[%s1 + $0x220] sm:$0xf]
      %v2211 = vld [vmem:[%s1 + $0x224] sm:$0xf]
      %v2212 = vld [vmem:[%s1 + $0x228] sm:$0xf]
      %v2213 = vld [vmem:[%s1 + $0x22c] sm:$0xf]
      %v2214 = vld [vmem:[%s1 + $0x230] sm:$0xf]
      %v2215 = vld [vmem:[%s1 + $0x234] sm:$0xf]
      %v2216 = vld [vmem:[%s1 + $0x238] sm:$0xf]
      %v2217 = vld [vmem:[%s1 + $0x23c] sm:$0xf]
      %vm2218 = vcmask 1044480
      %v2219 = vrot.slane %v286, 3
      %v2220 = vrot.slane %v287, 3
      %v2221 = vsel %vm2218, %v2219, %v2220
      %v2222 = vrot.slane %v288, 3
      %v2223 = vsel %vm2218, %v2220, %v2222
      %v2224 = vrot.slane %v289, 3
      %v2225 = vsel %vm2218, %v2222, %v2224
      %v2226 = vrot.slane %v290, 3
      %v2227 = vsel %vm2218, %v2224, %v2226
      %v2228 = vrot.slane %v291, 3
      %v2229 = vsel %vm2218, %v2226, %v2228
      %v2230 = vrot.slane %v292, 3
      %v2231 = vsel %vm2218, %v2228, %v2230
      %v2232 = vrot.slane %v293, 3
      %v2233 = vsel %vm2218, %v2230, %v2232
      %v2234 = vrot.slane %v311, 3
      %v2235 = vsel %vm2218, %v2232, %v2234
      %v2236 = vrot.slane %v1012, 3
      %v2237 = vsel %vm2218, %v2234, %v2236
      %v2238 = vrot.slane %v1726, 3
      %v2239 = vsel %vm2218, %v2236, %v2238
      %v2267 = vunpack.c.l.b16 %v2202
      %v2268 = vunpack.c.l.b16 %v2203
      %v2269 = vunpack.c.l.b16 %v2204
      %v2270 = vunpack.c.l.b16 %v2205
      %v2271 = vunpack.c.l.b16 %v2206
      %v2272 = vunpack.c.l.b16 %v2207
      %v2273 = vunpack.c.l.b16 %v2208
      %v2274 = vunpack.c.l.b16 %v2209
      %v2275 = vunpack.c.l.b16 %v2210
      %v2276 = vunpack.c.l.b16 %v2211
      %v2277 = vunpack.c.l.b16 %v2212
      %v2278 = vunpack.c.l.b16 %v2213
      %v2279 = vunpack.c.l.b16 %v2214
      %v2280 = vunpack.c.l.b16 %v2215
      %v2281 = vunpack.c.l.b16 %v2216
      %v2282 = vunpack.c.l.b16 %v2217
      %v2283 = vpack.c.b16 %v2268, %v2267
      %v2284 = vpack.c.b16 %v2270, %v2269
      %v2285 = vpack.c.b16 %v2272, %v2271
      %v2286 = vpack.c.b16 %v2274, %v2273
      %v2287 = vpack.c.b16 %v2276, %v2275
      %v2288 = vpack.c.b16 %v2278, %v2277
      %v2289 = vpack.c.b16 %v2280, %v2279
      %v2290 = vpack.c.b16 %v2282, %v2281
      %2299 = vmatprep.subr.bf16.mxu0 0
      %2300 = vmatpush1.bf16.msra.mxu0 %v2283
      %2301 = vmatprep.subr.bf16.mxu0 0
      %2302 = vmatpush1.bf16.msra.mxu0 %v2284
      %2303 = vmatprep.subr.bf16.mxu0 0
      %2304 = vmatpush1.bf16.msra.mxu0 %v2285
      %2305 = vmatprep.subr.bf16.mxu0 0
      %2306 = vmatpush1.bf16.msra.mxu0 %v2286
      %2307 = vmatprep.subr.bf16.mxu0 0
      %2308 = vmatpush1.bf16.msra.mxu0 %v2287
      %2309 = vmatprep.subr.bf16.mxu0 0
      %2310 = vmatpush1.bf16.msra.mxu0 %v2288
      %2311 = vmatprep.subr.bf16.mxu0 0
      %2312 = vmatpush1.bf16.msra.mxu0 %v2289
      %2313 = vmatprep.subr.bf16.mxu0 0
      %2314 = vmatpush1.bf16.msra.mxu0 %v2290
      %2315 = vmatprep.subr.bf16.mxu0 0
      %2316 = vmatpush1.bf16.msra.mxu0 0
      %2317 = vmatprep.subr.bf16.mxu0 0
      %2318 = vmatpush1.bf16.msra.mxu0 0
      %2319 = vmatprep.subr.bf16.mxu0 0
      %2320 = vmatpush1.bf16.msra.mxu0 0
      %2321 = vmatprep.subr.bf16.mxu0 0
      %2322 = vmatpush1.bf16.msra.mxu0 0
      %2323 = vmatprep.subr.bf16.mxu0 0
      %2324 = vmatpush1.bf16.msra.mxu0 0
      %2325 = vmatprep.subr.bf16.mxu0 0
      %2326 = vmatpush1.bf16.msra.mxu0 0
      %2327 = vmatprep.subr.bf16.mxu0 0
      %2328 = vmatpush1.bf16.msra.mxu0 0
      %2329 = vmatprep.subr.bf16.mxu0 0
      %2330 = vmatpush1.bf16.msra.mxu0 0
      %2331 = vmatprep.mubr.bf16.mxu0 0
      %2332 = vmatmul.mubr.bf16.gmra.mrb[0].mxu0 %v2221
      %v2333 = vpop.f32.mrb[0].mxu0
      %v2334 = vadd.f32 0.0, %v2333
      %v2335 = vpop.f32.mrb[0].mxu0
      %v2336 = vpop.f32.mrb[0].mxu0
      %v2337 = vadd.f32 0.0, %v2336
      %v2338 = vpop.f32.mrb[0].mxu0
      %2339 = vmatprep.mubr.bf16.mxu0 0
      %2340 = vmatmul.mubr.bf16.gmra.mrb[0].mxu0 %v2223
      %v2341 = vpop.f32.mrb[0].mxu0
      %v2342 = vadd.f32 0.0, %v2341
      %v2343 = vpop.f32.mrb[0].mxu0
      %v2344 = vpop.f32.mrb[0].mxu0
      %v2345 = vadd.f32 0.0, %v2344
      %v2346 = vpop.f32.mrb[0].mxu0
      %2347 = vmatprep.mubr.bf16.mxu0 0
      %2348 = vmatmul.mubr.bf16.gmra.mrb[0].mxu0 %v2225
      %v2349 = vpop.f32.mrb[0].mxu0
      %v2350 = vadd.f32 0.0, %v2349
      %v2351 = vpop.f32.mrb[0].mxu0
      %v2352 = vpop.f32.mrb[0].mxu0
      %v2353 = vadd.f32 0.0, %v2352
      %v2354 = vpop.f32.mrb[0].mxu0
      %2355 = vmatprep.mubr.bf16.mxu0 0
      %2356 = vmatmul.mubr.bf16.gmra.mrb[0].mxu0 %v2227
      %v2357 = vpop.f32.mrb[0].mxu0
      %v2358 = vadd.f32 0.0, %v2357
      %v2359 = vpop.f32.mrb[0].mxu0
      %v2360 = vpop.f32.mrb[0].mxu0
      %v2361 = vadd.f32 0.0, %v2360
      %v2362 = vpop.f32.mrb[0].mxu0
      %2363 = vmatprep.mubr.bf16.mxu0 0
      %2364 = vmatmul.mubr.bf16.gmra.mrb[0].mxu0 %v2229
      %v2365 = vpop.f32.mrb[0].mxu0
      %v2366 = vadd.f32 0.0, %v2365
      %v2367 = vpop.f32.mrb[0].mxu0
      %v2368 = vpop.f32.mrb[0].mxu0
      %v2369 = vadd.f32 0.0, %v2368
      %v2370 = vpop.f32.mrb[0].mxu0
      %2371 = vmatprep.mubr.bf16.mxu0 0
      %2372 = vmatmul.mubr.bf16.gmra.mrb[0].mxu0 %v2231
      %v2373 = vpop.f32.mrb[0].mxu0
      %v2374 = vadd.f32 0.0, %v2373
      %v2375 = vpop.f32.mrb[0].mxu0
      %v2376 = vpop.f32.mrb[0].mxu0
      %v2377 = vadd.f32 0.0, %v2376
      %v2378 = vpop.f32.mrb[0].mxu0
      %2379 = vmatprep.mubr.bf16.mxu0 0
      %2380 = vmatmul.mubr.bf16.gmra.mrb[0].mxu0 %v2233
      %v2381 = vpop.f32.mrb[0].mxu0
      %v2382 = vadd.f32 0.0, %v2381
      %v2383 = vpop.f32.mrb[0].mxu0
      %v2384 = vpop.f32.mrb[0].mxu0
      %v2385 = vadd.f32 0.0, %v2384
      %v2386 = vpop.f32.mrb[0].mxu0
      %2387 = vmatprep.mubr.bf16.mxu0 0
      %2388 = vmatmul.mubr.bf16.gmra.mrb[0].mxu0 %v2235
      %v2389 = vpop.f32.mrb[0].mxu0
      %v2390 = vadd.f32 0.0, %v2389
      %v2391 = vpop.f32.mrb[0].mxu0
      %v2392 = vpop.f32.mrb[0].mxu0
      %v2393 = vadd.f32 0.0, %v2392
      %v2394 = vpop.f32.mrb[0].mxu0
      %2395 = vmatprep.mubr.bf16.mxu0 0
      %2396 = vmatmul.mubr.bf16.gmra.mrb[0].mxu0 %v2237
      %v2397 = vpop.f32.mrb[0].mxu0
      %v2398 = vadd.f32 0.0, %v2397
      %v2399 = vpop.f32.mrb[0].mxu0
      %v2400 = vpop.f32.mrb[0].mxu0
      %v2401 = vadd.f32 0.0, %v2400
      %v2402 = vpop.f32.mrb[0].mxu0
      %2403 = vmatprep.mubr.bf16.mxu0 0
      %2404 = vmatmul.mubr.bf16.gmra.mrb[0].mxu0 %v2239
      %v2405 = vpop.f32.mrb[0].mxu0
      %v2406 = vadd.f32 0.0, %v2405
      %v2407 = vpop.f32.mrb[0].mxu0
      %v2408 = vpop.f32.mrb[0].mxu0
      %v2409 = vadd.f32 0.0, %v2408
      %v2410 = vpop.f32.mrb[0].mxu0
      %2411 = vmatprep.mubr.bf16.mxu0 0
      %2412 = vmatmul.mubr.bf16.gmra.mrb[0].mxu0 %v2238
      %v2413 = vpop.f32.mrb[0].mxu0
      %v2414 = vadd.f32 0.0, %v2413
      %v2415 = vpop.f32.mrb[0].mxu0
      %v2416 = vpop.f32.mrb[0].mxu0
      %v2417 = vpop.f32.mrb[0].mxu0
      %2418 = vdwg.mxu0
      %v2419 = vadd.f32 %v2181, %v2334
      %v2420 = vadd.f32 %v2182, %v2337
      %v2421 = vadd.f32 %v2183, %v2342
      %v2422 = vadd.f32 %v2184, %v2345
      %v2423 = vadd.f32 %v2185, %v2350
      %v2424 = vadd.f32 %v2186, %v2353
      %v2425 = vadd.f32 %v2187, %v2358
      %v2426 = vadd.f32 %v2188, %v2361
      %v2427 = vadd.f32 %v2189, %v2366
      %v2428 = vadd.f32 %v2190, %v2369
      %v2429 = vadd.f32 %v2191, %v2374
      %v2430 = vadd.f32 %v2192, %v2377
      %v2431 = vadd.f32 %v2193, %v2382
      %v2432 = vadd.f32 %v2194, %v2385
      %v2433 = vadd.f32 %v2195, %v2390
      %v2434 = vadd.f32 %v2196, %v2393
      %v2435 = vadd.f32 %v2197, %v2398
      %v2436 = vadd.f32 %v2198, %v2401
      %v2437 = vadd.f32 %v2199, %v2406
      %v2438 = vadd.f32 %v2200, %v2409
      %v2439 = vadd.f32 %v2201, %v2414
      %v2440 = vld [vmem:[%s2] sm:$0x1]
      %v2442 = vlaneseq
      %v2443 = vshrl.u32 %v2442, 7
      %v2444 = vsub.s32 0, %v2443
      %v2445 = vrot.slane %v2440, %v2444
      %v2447 = vadd.f32 %v2419, %v2445
      %v2448 = vadd.f32 %v2420, %v2445
      %v2449 = vadd.f32 %v2421, %v2445
      %v2450 = vadd.f32 %v2422, %v2445
      %v2451 = vadd.f32 %v2423, %v2445
      %v2452 = vadd.f32 %v2424, %v2445
      %v2453 = vadd.f32 %v2425, %v2445
      %v2454 = vadd.f32 %v2426, %v2445
      %v2455 = vadd.f32 %v2427, %v2445
      %v2456 = vadd.f32 %v2428, %v2445
      %v2457 = vadd.f32 %v2429, %v2445
      %v2458 = vadd.f32 %v2430, %v2445
      %v2459 = vadd.f32 %v2431, %v2445
      %v2460 = vadd.f32 %v2432, %v2445
      %v2461 = vadd.f32 %v2433, %v2445
      %v2462 = vadd.f32 %v2434, %v2445
      %v2463 = vadd.f32 %v2435, %v2445
      %v2464 = vadd.f32 %v2436, %v2445
      %v2465 = vadd.f32 %v2437, %v2445
      %v2466 = vadd.f32 %v2438, %v2445
      %v2467 = vadd.f32 %v2439, %v2445
      %v2468 = vmax.f32 %v2447, 0.0
      %v2469 = vmax.f32 %v2448, 0.0
      %v2470 = vmax.f32 %v2449, 0.0
      %v2471 = vmax.f32 %v2450, 0.0
      %v2472 = vmax.f32 %v2451, 0.0
      %v2473 = vmax.f32 %v2452, 0.0
      %v2474 = vmax.f32 %v2453, 0.0
      %v2475 = vmax.f32 %v2454, 0.0
      %v2476 = vmax.f32 %v2455, 0.0
      %v2477 = vmax.f32 %v2456, 0.0
      %v2478 = vmax.f32 %v2457, 0.0
      %v2479 = vmax.f32 %v2458, 0.0
      %v2480 = vmax.f32 %v2459, 0.0
      %v2481 = vmax.f32 %v2460, 0.0
      %v2482 = vmax.f32 %v2461, 0.0
      %v2483 = vmax.f32 %v2462, 0.0
      %v2484 = vmax.f32 %v2463, 0.0
      %v2485 = vmax.f32 %v2464, 0.0
      %v2486 = vmax.f32 %v2465, 0.0
      %v2487 = vmax.f32 %v2466, 0.0
      %v2488 = vmax.f32 %v2467, 0.0
      %v2489 = vpack.c.bf16 %v2469, %v2468
      %v2490 = vpack.c.bf16 %v2471, %v2470
      %v2491 = vpack.c.bf16 %v2473, %v2472
      %v2492 = vpack.c.bf16 %v2475, %v2474
      %v2493 = vpack.c.bf16 %v2477, %v2476
      %v2494 = vpack.c.bf16 %v2479, %v2478
      %v2495 = vpack.c.bf16 %v2481, %v2480
      %v2496 = vpack.c.bf16 %v2483, %v2482
      %v2497 = vpack.c.bf16 %v2485, %v2484
      %v2498 = vpack.c.bf16 %v2487, %v2486
      %v2499 = vpack.c.bf16 %v2488, %v2488
      %v2500 = vld [vmem:[%s3] sm:$0xf]
      %v2501 = vld [vmem:[%s3 + $0x4] sm:$0xf]
      %v2502 = vld [vmem:[%s3 + $0x8] sm:$0xf]
      %v2503 = vld [vmem:[%s3 + $0xc] sm:$0xf]
      %v2504 = vld [vmem:[%s4] sm:$0x1]
      %v2506 = vlaneseq
      %v2507 = vshrl.u32 %v2506, 7
      %v2508 = vsub.s32 0, %v2507
      %v2509 = vrot.slane %v2504, %v2508
      %v2515 = vunpack.c.l.b16 %v2500
      %v2516 = vunpack.c.l.b16 %v2501
      %v2517 = vunpack.c.l.b16 %v2502
      %v2518 = vunpack.c.l.b16 %v2503
      %v2519 = vpack.c.b16 %v2516, %v2515
      %v2520 = vpack.c.b16 %v2518, %v2517
      %vm2523 = vcmask 261120
      %v2525 = vsel %vm2523, %v2489, 0
      %v2528 = vsel %vm2523, %v2490, 0
      %v2531 = vsel %vm2523, %v2491, 0
      %v2534 = vsel %vm2523, %v2492, 0
      %v2537 = vsel %vm2523, %v2493, 0
      %v2540 = vsel %vm2523, %v2494, 0
      %v2543 = vsel %vm2523, %v2495, 0
      %v2546 = vsel %vm2523, %v2496, 0
      %v2549 = vsel %vm2523, %v2497, 0
      %v2552 = vsel %vm2523, %v2498, 0
      %v2555 = vsel %vm2523, %v2499, 0
      %2557 = vmatprep.subr.bf16.mxu0 0
      %2558 = vmatpush1.bf16.msra.mxu0 %v2519
      %2559 = vmatprep.subr.bf16.mxu0 0
      %2560 = vmatpush1.bf16.msra.mxu0 %v2520
      %2561 = vmatprep.subr.bf16.mxu0 0
      %2562 = vmatpush1.bf16.msra.mxu0 0
      %2563 = vmatprep.subr.bf16.mxu0 0
      %2564 = vmatpush1.bf16.msra.mxu0 0
      %2565 = vmatprep.subr.bf16.mxu0 0
      %2566 = vmatpush1.bf16.msra.mxu0 0
      %2567 = vmatprep.subr.bf16.mxu0 0
      %2568 = vmatpush1.bf16.msra.mxu0 0
      %2569 = vmatprep.subr.bf16.mxu0 0
      %2570 = vmatpush1.bf16.msra.mxu0 0
      %2571 = vmatprep.subr.bf16.mxu0 0
      %2572 = vmatpush1.bf16.msra.mxu0 0
      %2573 = vmatprep.subr.bf16.mxu0 0
      %2574 = vmatpush1.bf16.msra.mxu0 0
      %2575 = vmatprep.subr.bf16.mxu0 0
      %2576 = vmatpush1.bf16.msra.mxu0 0
      %2577 = vmatprep.subr.bf16.mxu0 0
      %2578 = vmatpush1.bf16.msra.mxu0 0
      %2579 = vmatprep.subr.bf16.mxu0 0
      %2580 = vmatpush1.bf16.msra.mxu0 0
      %2581 = vmatprep.subr.bf16.mxu0 0
      %2582 = vmatpush1.bf16.msra.mxu0 0
      %2583 = vmatprep.subr.bf16.mxu0 0
      %2584 = vmatpush1.bf16.msra.mxu0 0
      %2585 = vmatprep.subr.bf16.mxu0 0
      %2586 = vmatpush1.bf16.msra.mxu0 0
      %2587 = vmatprep.subr.bf16.mxu0 0
      %2588 = vmatpush1.bf16.msra.mxu0 0
      %2589 = vmatprep.mubr.bf16.mxu0 0
      %2590 = vmatmul.mubr.bf16.gmra.mrb[0].mxu0 %v2525
      %v2591 = vpop.f32.mrb[0].mxu0
      %v2592 = vadd.f32 %v2509, %v2591
      %v2593 = vpop.f32.mrb[0].mxu0
      %v2594 = vpop.f32.mrb[0].mxu0
      %v2595 = vadd.f32 %v2509, %v2594
      %v2596 = vpop.f32.mrb[0].mxu0
      %2597 = vmatprep.mubr.bf16.mxu0 0
      %2598 = vmatmul.mubr.bf16.gmra.mrb[0].mxu0 %v2528
      %v2599 = vpop.f32.mrb[0].mxu0
      %v2600 = vadd.f32 %v2509, %v2599
      %v2601 = vpop.f32.mrb[0].mxu0
      %v2602 = vpop.f32.mrb[0].mxu0
      %v2603 = vadd.f32 %v2509, %v2602
      %v2604 = vpop.f32.mrb[0].mxu0
      %2605 = vmatprep.mubr.bf16.mxu0 0
      %2606 = vmatmul.mubr.bf16.gmra.mrb[0].mxu0 %v2531
      %v2607 = vpop.f32.mrb[0].mxu0
      %v2608 = vadd.f32 %v2509, %v2607
      %v2609 = vpop.f32.mrb[0].mxu0
      %v2610 = vpop.f32.mrb[0].mxu0
      %v2611 = vadd.f32 %v2509, %v2610
      %v2612 = vpop.f32.mrb[0].mxu0
      %2613 = vmatprep.mubr.bf16.mxu0 0
      %2614 = vmatmul.mubr.bf16.gmra.mrb[0].mxu0 %v2534
      %v2615 = vpop.f32.mrb[0].mxu0
      %v2616 = vadd.f32 %v2509, %v2615
      %v2617 = vpop.f32.mrb[0].mxu0
      %v2618 = vpop.f32.mrb[0].mxu0
      %v2619 = vadd.f32 %v2509, %v2618
      %v2620 = vpop.f32.mrb[0].mxu0
      %2621 = vmatprep.mubr.bf16.mxu0 0
      %2622 = vmatmul.mubr.bf16.gmra.mrb[0].mxu0 %v2537
      %v2623 = vpop.f32.mrb[0].mxu0
      %v2624 = vadd.f32 %v2509, %v2623
      %v2625 = vpop.f32.mrb[0].mxu0
      %v2626 = vpop.f32.mrb[0].mxu0
      %v2627 = vadd.f32 %v2509, %v2626
      %v2628 = vpop.f32.mrb[0].mxu0
      %2629 = vmatprep.mubr.bf16.mxu0 0
      %2630 = vmatmul.mubr.bf16.gmra.mrb[0].mxu0 %v2540
      %v2631 = vpop.f32.mrb[0].mxu0
      %v2632 = vadd.f32 %v2509, %v2631
      %v2633 = vpop.f32.mrb[0].mxu0
      %v2634 = vpop.f32.mrb[0].mxu0
      %v2635 = vadd.f32 %v2509, %v2634
      %v2636 = vpop.f32.mrb[0].mxu0
      %2637 = vmatprep.mubr.bf16.mxu0 0
      %2638 = vmatmul.mubr.bf16.gmra.mrb[0].mxu0 %v2543
      %v2639 = vpop.f32.mrb[0].mxu0
      %v2640 = vadd.f32 %v2509, %v2639
      %v2641 = vpop.f32.mrb[0].mxu0
      %v2642 = vpop.f32.mrb[0].mxu0
      %v2643 = vadd.f32 %v2509, %v2642
      %v2644 = vpop.f32.mrb[0].mxu0
      %2645 = vmatprep.mubr.bf16.mxu0 0
      %2646 = vmatmul.mubr.bf16.gmra.mrb[0].mxu0 %v2546
      %v2647 = vpop.f32.mrb[0].mxu0
      %v2648 = vadd.f32 %v2509, %v2647
      %v2649 = vpop.f32.mrb[0].mxu0
      %v2650 = vpop.f32.mrb[0].mxu0
      %v2651 = vadd.f32 %v2509, %v2650
      %v2652 = vpop.f32.mrb[0].mxu0
      %2653 = vmatprep.mubr.bf16.mxu0 0
      %2654 = vmatmul.mubr.bf16.gmra.mrb[0].mxu0 %v2549
      %v2655 = vpop.f32.mrb[0].mxu0
      %v2656 = vadd.f32 %v2509, %v2655
      %v2657 = vpop.f32.mrb[0].mxu0
      %v2658 = vpop.f32.mrb[0].mxu0
      %v2659 = vadd.f32 %v2509, %v2658
      %v2660 = vpop.f32.mrb[0].mxu0
      %2661 = vmatprep.mubr.bf16.mxu0 0
      %2662 = vmatmul.mubr.bf16.gmra.mrb[0].mxu0 %v2552
      %v2663 = vpop.f32.mrb[0].mxu0
      %v2664 = vadd.f32 %v2509, %v2663
      %v2665 = vpop.f32.mrb[0].mxu0
      %v2666 = vpop.f32.mrb[0].mxu0
      %v2667 = vadd.f32 %v2509, %v2666
      %v2668 = vpop.f32.mrb[0].mxu0
      %2669 = vmatprep.mubr.bf16.mxu0 0
      %2670 = vmatmul.mubr.bf16.gmra.mrb[0].mxu0 %v2555
      %v2671 = vpop.f32.mrb[0].mxu0
      %v2672 = vadd.f32 %v2509, %v2671
      %v2673 = vpop.f32.mrb[0].mxu0
      %v2674 = vpop.f32.mrb[0].mxu0
      %v2675 = vpop.f32.mrb[0].mxu0
      %2676 = vdwg.mxu0
      %v2677 = vld [vmem:[%s247] sm:$0xff]
      %v2678 = vld [vmem:[%s247 + $0x8] sm:$0xff]
      %v2679 = vld [vmem:[%s247 + $0x10] sm:$0xff]
      %v2680 = vld [vmem:[%s247 + $0x18] sm:$0xff]
      %v2681 = vld [vmem:[%s247 + $0x20] sm:$0xff]
      %v2682 = vld [vmem:[%s247 + $0x28] sm:$0xff]
      %v2683 = vld [vmem:[%s247 + $0x30] sm:$0xff]
      %v2684 = vld [vmem:[%s247 + $0x38] sm:$0xff]
      %v2685 = vld [vmem:[%s247 + $0x40] sm:$0xff]
      %v2686 = vld [vmem:[%s247 + $0x48] sm:$0xff]
      %v2687 = vld [vmem:[%s247 + $0x50] sm:$0xff]
      %v2688 = vld [vmem:[%s247 + $0x58] sm:$0xff]
      %v2689 = vld [vmem:[%s247 + $0x60] sm:$0xff]
      %v2690 = vld [vmem:[%s247 + $0x68] sm:$0xff]
      %v2691 = vld [vmem:[%s247 + $0x70] sm:$0xff]
      %v2692 = vld [vmem:[%s247 + $0x78] sm:$0xff]
      %v2693 = vld [vmem:[%s247 + $0x80] sm:$0xff]
      %v2694 = vld [vmem:[%s247 + $0x88] sm:$0xff]
      %v2695 = vld [vmem:[%s247 + $0x90] sm:$0xff]
      %v2696 = vld [vmem:[%s247 + $0x98] sm:$0xff]
      %v2697 = vld [vmem:[%s247 + $0xa0] sm:$0xff]
      %2719 = vrot.lane.b32.xlu0 %v2677, 18
      %v2720 = vpop.permute.xlu0 %2719
      %2721 = vrot.lane.b32.xlu0 %v2678, 18
      %v2722 = vpop.permute.xlu0 %2721
      %2723 = vrot.lane.b32.xlu0 %v2679, 18
      %v2724 = vpop.permute.xlu0 %2723
      %2725 = vrot.lane.b32.xlu0 %v2680, 18
      %v2726 = vpop.permute.xlu0 %2725
      %2727 = vrot.lane.b32.xlu0 %v2681, 18
      %v2728 = vpop.permute.xlu0 %2727
      %2729 = vrot.lane.b32.xlu0 %v2682, 18
      %v2730 = vpop.permute.xlu0 %2729
      %2731 = vrot.lane.b32.xlu0 %v2683, 18
      %v2732 = vpop.permute.xlu0 %2731
      %2733 = vrot.lane.b32.xlu0 %v2684, 18
      %v2734 = vpop.permute.xlu0 %2733
      %2735 = vrot.lane.b32.xlu0 %v2685, 18
      %v2736 = vpop.permute.xlu0 %2735
      %2737 = vrot.lane.b32.xlu0 %v2686, 18
      %v2738 = vpop.permute.xlu0 %2737
      %2739 = vrot.lane.b32.xlu0 %v2687, 18
      %v2740 = vpop.permute.xlu0 %2739
      %2741 = vrot.lane.b32.xlu0 %v2688, 18
      %v2742 = vpop.permute.xlu0 %2741
      %2743 = vrot.lane.b32.xlu0 %v2689, 18
      %v2744 = vpop.permute.xlu0 %2743
      %2745 = vrot.lane.b32.xlu0 %v2690, 18
      %v2746 = vpop.permute.xlu0 %2745
      %2747 = vrot.lane.b32.xlu0 %v2691, 18
      %v2748 = vpop.permute.xlu0 %2747
      %2749 = vrot.lane.b32.xlu0 %v2692, 18
      %v2750 = vpop.permute.xlu0 %2749
      %2751 = vrot.lane.b32.xlu0 %v2693, 18
      %v2752 = vpop.permute.xlu0 %2751
      %2753 = vrot.lane.b32.xlu0 %v2694, 18
      %v2754 = vpop.permute.xlu0 %2753
      %2755 = vrot.lane.b32.xlu0 %v2695, 18
      %v2756 = vpop.permute.xlu0 %2755
      %2757 = vrot.lane.b32.xlu0 %v2696, 18
      %v2758 = vpop.permute.xlu0 %2757
      %2759 = vrot.lane.b32.xlu0 %v2697, 18
      %v2760 = vpop.permute.xlu0 %2759
      %v2782 = vsub.f32 %v2677, %v2720
      %v2783 = vsub.f32 %v2678, %v2722
      %v2784 = vsub.f32 %v2679, %v2724
      %v2785 = vsub.f32 %v2680, %v2726
      %v2786 = vsub.f32 %v2681, %v2728
      %v2787 = vsub.f32 %v2682, %v2730
      %v2788 = vsub.f32 %v2683, %v2732
      %v2789 = vsub.f32 %v2684, %v2734
      %v2790 = vsub.f32 %v2685, %v2736
      %v2791 = vsub.f32 %v2686, %v2738
      %v2792 = vsub.f32 %v2687, %v2740
      %v2793 = vsub.f32 %v2688, %v2742
      %v2794 = vsub.f32 %v2689, %v2744
      %v2795 = vsub.f32 %v2690, %v2746
      %v2796 = vsub.f32 %v2691, %v2748
      %v2797 = vsub.f32 %v2692, %v2750
      %v2798 = vsub.f32 %v2693, %v2752
      %v2799 = vsub.f32 %v2694, %v2754
      %v2800 = vsub.f32 %v2695, %v2756
      %v2801 = vsub.f32 %v2696, %v2758
      %v2802 = vsub.f32 %v2697, %v2760
      %v2803 = vmul.f32 %v2782, 0.5
      %v2804 = vmul.f32 %v2783, 0.5
      %v2805 = vmul.f32 %v2784, 0.5
      %v2806 = vmul.f32 %v2785, 0.5
      %v2807 = vmul.f32 %v2786, 0.5
      %v2808 = vmul.f32 %v2787, 0.5
      %v2809 = vmul.f32 %v2788, 0.5
      %v2810 = vmul.f32 %v2789, 0.5
      %v2811 = vmul.f32 %v2790, 0.5
      %v2812 = vmul.f32 %v2791, 0.5
      %v2813 = vmul.f32 %v2792, 0.5
      %v2814 = vmul.f32 %v2793, 0.5
      %v2815 = vmul.f32 %v2794, 0.5
      %v2816 = vmul.f32 %v2795, 0.5
      %v2817 = vmul.f32 %v2796, 0.5
      %v2818 = vmul.f32 %v2797, 0.5
      %v2819 = vmul.f32 %v2798, 0.5
      %v2820 = vmul.f32 %v2799, 0.5
      %v2821 = vmul.f32 %v2800, 0.5
      %v2822 = vmul.f32 %v2801, 0.5
      %v2823 = vmul.f32 %v2802, 0.5
      %2845 = vrot.lane.b32.xlu0 %v2803, 110
      %v2846 = vpop.permute.xlu0 %2845
      %2847 = vrot.lane.b32.xlu0 %v2804, 110
      %v2848 = vpop.permute.xlu0 %2847
      %2849 = vrot.lane.b32.xlu0 %v2805, 110
      %v2850 = vpop.permute.xlu0 %2849
      %2851 = vrot.lane.b32.xlu0 %v2806, 110
      %v2852 = vpop.permute.xlu0 %2851
      %2853 = vrot.lane.b32.xlu0 %v2807, 110
      %v2854 = vpop.permute.xlu0 %2853
      %2855 = vrot.lane.b32.xlu0 %v2808, 110
      %v2856 = vpop.permute.xlu0 %2855
      %2857 = vrot.lane.b32.xlu0 %v2809, 110
      %v2858 = vpop.permute.xlu0 %2857
      %2859 = vrot.lane.b32.xlu0 %v2810, 110
      %v2860 = vpop.permute.xlu0 %2859
      %2861 = vrot.lane.b32.xlu0 %v2811, 110
      %v2862 = vpop.permute.xlu0 %2861
      %2863 = vrot.lane.b32.xlu0 %v2812, 110
      %v2864 = vpop.permute.xlu0 %2863
      %2865 = vrot.lane.b32.xlu0 %v2813, 110
      %v2866 = vpop.permute.xlu0 %2865
      %2867 = vrot.lane.b32.xlu0 %v2814, 110
      %v2868 = vpop.permute.xlu0 %2867
      %2869 = vrot.lane.b32.xlu0 %v2815, 110
      %v2870 = vpop.permute.xlu0 %2869
      %2871 = vrot.lane.b32.xlu0 %v2816, 110
      %v2872 = vpop.permute.xlu0 %2871
      %2873 = vrot.lane.b32.xlu0 %v2817, 110
      %v2874 = vpop.permute.xlu0 %2873
      %2875 = vrot.lane.b32.xlu0 %v2818, 110
      %v2876 = vpop.permute.xlu0 %2875
      %2877 = vrot.lane.b32.xlu0 %v2819, 110
      %v2878 = vpop.permute.xlu0 %2877
      %2879 = vrot.lane.b32.xlu0 %v2820, 110
      %v2880 = vpop.permute.xlu0 %2879
      %2881 = vrot.lane.b32.xlu0 %v2821, 110
      %v2882 = vpop.permute.xlu0 %2881
      %2883 = vrot.lane.b32.xlu0 %v2822, 110
      %v2884 = vpop.permute.xlu0 %2883
      %2885 = vrot.lane.b32.xlu0 %v2823, 110
      %v2886 = vpop.permute.xlu0 %2885
      %v2908 = vadd.f32 %v2677, %v2846
      %v2909 = vadd.f32 %v2678, %v2848
      %v2910 = vadd.f32 %v2679, %v2850
      %v2911 = vadd.f32 %v2680, %v2852
      %v2912 = vadd.f32 %v2681, %v2854
      %v2913 = vadd.f32 %v2682, %v2856
      %v2914 = vadd.f32 %v2683, %v2858
      %v2915 = vadd.f32 %v2684, %v2860
      %v2916 = vadd.f32 %v2685, %v2862
      %v2917 = vadd.f32 %v2686, %v2864
      %v2918 = vadd.f32 %v2687, %v2866
      %v2919 = vadd.f32 %v2688, %v2868
      %v2920 = vadd.f32 %v2689, %v2870
      %v2921 = vadd.f32 %v2690, %v2872
      %v2922 = vadd.f32 %v2691, %v2874
      %v2923 = vadd.f32 %v2692, %v2876
      %v2924 = vadd.f32 %v2693, %v2878
      %v2925 = vadd.f32 %v2694, %v2880
      %v2926 = vadd.f32 %v2695, %v2882
      %v2927 = vadd.f32 %v2696, %v2884
      %v2928 = vadd.f32 %v2697, %v2886
      %2950 = vrot.lane.b32.xlu0 %v2782, 110
      %v2951 = vpop.permute.xlu0 %2950
      %2952 = vrot.lane.b32.xlu0 %v2783, 110
      %v2953 = vpop.permute.xlu0 %2952
      %2954 = vrot.lane.b32.xlu0 %v2784, 110
      %v2955 = vpop.permute.xlu0 %2954
      %2956 = vrot.lane.b32.xlu0 %v2785, 110
      %v2957 = vpop.permute.xlu0 %2956
      %2958 = vrot.lane.b32.xlu0 %v2786, 110
      %v2959 = vpop.permute.xlu0 %2958
      %2960 = vrot.lane.b32.xlu0 %v2787, 110
      %v2961 = vpop.permute.xlu0 %2960
      %2962 = vrot.lane.b32.xlu0 %v2788, 110
      %v2963 = vpop.permute.xlu0 %2962
      %2964 = vrot.lane.b32.xlu0 %v2789, 110
      %v2965 = vpop.permute.xlu0 %2964
      %2966 = vrot.lane.b32.xlu0 %v2790, 110
      %v2967 = vpop.permute.xlu0 %2966
      %2968 = vrot.lane.b32.xlu0 %v2791, 110
      %v2969 = vpop.permute.xlu0 %2968
      %2970 = vrot.lane.b32.xlu0 %v2792, 110
      %v2971 = vpop.permute.xlu0 %2970
      %2972 = vrot.lane.b32.xlu0 %v2793, 110
      %v2973 = vpop.permute.xlu0 %2972
      %2974 = vrot.lane.b32.xlu0 %v2794, 110
      %v2975 = vpop.permute.xlu0 %2974
      %2976 = vrot.lane.b32.xlu0 %v2795, 110
      %v2977 = vpop.permute.xlu0 %2976
      %2978 = vrot.lane.b32.xlu0 %v2796, 110
      %v2979 = vpop.permute.xlu0 %2978
      %2980 = vrot.lane.b32.xlu0 %v2797, 110
      %v2981 = vpop.permute.xlu0 %2980
      %2982 = vrot.lane.b32.xlu0 %v2798, 110
      %v2983 = vpop.permute.xlu0 %2982
      %2984 = vrot.lane.b32.xlu0 %v2799, 110
      %v2985 = vpop.permute.xlu0 %2984
      %2986 = vrot.lane.b32.xlu0 %v2800, 110
      %v2987 = vpop.permute.xlu0 %2986
      %2988 = vrot.lane.b32.xlu0 %v2801, 110
      %v2989 = vpop.permute.xlu0 %2988
      %2990 = vrot.lane.b32.xlu0 %v2802, 110
      %v2991 = vpop.permute.xlu0 %2990
      %v3013 = vmul.f32 %v2592, %v2951
      %v3014 = vmul.f32 %v2595, %v2953
      %v3015 = vmul.f32 %v2600, %v2955
      %v3016 = vmul.f32 %v2603, %v2957
      %v3017 = vmul.f32 %v2608, %v2959
      %v3018 = vmul.f32 %v2611, %v2961
      %v3019 = vmul.f32 %v2616, %v2963
      %v3020 = vmul.f32 %v2619, %v2965
      %v3021 = vmul.f32 %v2624, %v2967
      %v3022 = vmul.f32 %v2627, %v2969
      %v3023 = vmul.f32 %v2632, %v2971
      %v3024 = vmul.f32 %v2635, %v2973
      %v3025 = vmul.f32 %v2640, %v2975
      %v3026 = vmul.f32 %v2643, %v2977
      %v3027 = vmul.f32 %v2648, %v2979
      %v3028 = vmul.f32 %v2651, %v2981
      %v3029 = vmul.f32 %v2656, %v2983
      %v3030 = vmul.f32 %v2659, %v2985
      %v3031 = vmul.f32 %v2664, %v2987
      %v3032 = vmul.f32 %v2667, %v2989
      %v3033 = vmul.f32 %v2672, %v2991
      %v3034 = vadd.f32 %v3013, %v2908
      %v3035 = vadd.f32 %v3014, %v2909
      %v3036 = vadd.f32 %v3015, %v2910
      %v3037 = vadd.f32 %v3016, %v2911
      %v3038 = vadd.f32 %v3017, %v2912
      %v3039 = vadd.f32 %v3018, %v2913
      %v3040 = vadd.f32 %v3019, %v2914
      %v3041 = vadd.f32 %v3020, %v2915
      %v3042 = vadd.f32 %v3021, %v2916
      %v3043 = vadd.f32 %v3022, %v2917
      %v3044 = vadd.f32 %v3023, %v2918
      %v3045 = vadd.f32 %v3024, %v2919
      %v3046 = vadd.f32 %v3025, %v2920
      %v3047 = vadd.f32 %v3026, %v2921
      %v3048 = vadd.f32 %v3027, %v2922
      %v3049 = vadd.f32 %v3028, %v2923
      %v3050 = vadd.f32 %v3029, %v2924
      %v3051 = vadd.f32 %v3030, %v2925
      %v3052 = vadd.f32 %v3031, %v2926
      %v3053 = vadd.f32 %v3032, %v2927
      %v3054 = vadd.f32 %v3033, %v2928
      %v3055 = vmin.f32 %v2592, 4.1351666
      %v3056 = vmin.f32 %v2595, 4.1351666
      %v3057 = vmin.f32 %v2600, 4.1351666
      %v3058 = vmin.f32 %v2603, 4.1351666
      %v3059 = vmin.f32 %v2608, 4.1351666
      %v3060 = vmin.f32 %v2611, 4.1351666
      %v3061 = vmin.f32 %v2616, 4.1351666
      %v3062 = vmin.f32 %v2619, 4.1351666
      %v3063 = vmin.f32 %v2624, 4.1351666
      %v3064 = vmin.f32 %v2627, 4.1351666
      %v3065 = vmin.f32 %v2632, 4.1351666
      %v3066 = vmin.f32 %v2635, 4.1351666
      %v3067 = vmin.f32 %v2640, 4.1351666
      %v3068 = vmin.f32 %v2643, 4.1351666
      %v3069 = vmin.f32 %v2648, 4.1351666
      %v3070 = vmin.f32 %v2651, 4.1351666
      %v3071 = vmin.f32 %v2656, 4.1351666
      %v3072 = vmin.f32 %v2659, 4.1351666
      %v3073 = vmin.f32 %v2664, 4.1351666
      %v3074 = vmin.f32 %v2667, 4.1351666
      %v3075 = vmin.f32 %v2672, 4.1351666
      %v3076 = vmul.f32 %v3055, 1.442695
      %v3077 = vpow.pop %v3076
      %v3078 = vmul.f32 %v3056, 1.442695
      %v3079 = vpow.pop %v3078
      %v3080 = vmul.f32 %v3057, 1.442695
      %v3081 = vpow.pop %v3080
      %v3082 = vmul.f32 %v3058, 1.442695
      %v3083 = vpow.pop %v3082
      %v3084 = vmul.f32 %v3059, 1.442695
      %v3085 = vpow.pop %v3084
      %v3086 = vmul.f32 %v3060, 1.442695
      %v3087 = vpow.pop %v3086
      %v3088 = vmul.f32 %v3061, 1.442695
      %v3089 = vpow.pop %v3088
      %v3090 = vmul.f32 %v3062, 1.442695
      %v3091 = vpow.pop %v3090
      %v3092 = vmul.f32 %v3063, 1.442695
      %v3093 = vpow.pop %v3092
      %v3094 = vmul.f32 %v3064, 1.442695
      %v3095 = vpow.pop %v3094
      %v3096 = vmul.f32 %v3065, 1.442695
      %v3097 = vpow.pop %v3096
      %v3098 = vmul.f32 %v3066, 1.442695
      %v3099 = vpow.pop %v3098
      %v3100 = vmul.f32 %v3067, 1.442695
      %v3101 = vpow.pop %v3100
      %v3102 = vmul.f32 %v3068, 1.442695
      %v3103 = vpow.pop %v3102
      %v3104 = vmul.f32 %v3069, 1.442695
      %v3105 = vpow.pop %v3104
      %v3106 = vmul.f32 %v3070, 1.442695
      %v3107 = vpow.pop %v3106
      %v3108 = vmul.f32 %v3071, 1.442695
      %v3109 = vpow.pop %v3108
      %v3110 = vmul.f32 %v3072, 1.442695
      %v3111 = vpow.pop %v3110
      %v3112 = vmul.f32 %v3073, 1.442695
      %v3113 = vpow.pop %v3112
      %v3114 = vmul.f32 %v3074, 1.442695
      %v3115 = vpow.pop %v3114
      %v3116 = vmul.f32 %v3075, 1.442695
      %v3117 = vpow.pop %v3116
      %v3118 = vmul.f32 %v3077, %v2782
      %v3119 = vmul.f32 %v3079, %v2783
      %v3120 = vmul.f32 %v3081, %v2784
      %v3121 = vmul.f32 %v3083, %v2785
      %v3122 = vmul.f32 %v3085, %v2786
      %v3123 = vmul.f32 %v3087, %v2787
      %v3124 = vmul.f32 %v3089, %v2788
      %v3125 = vmul.f32 %v3091, %v2789
      %v3126 = vmul.f32 %v3093, %v2790
      %v3127 = vmul.f32 %v3095, %v2791
      %v3128 = vmul.f32 %v3097, %v2792
      %v3129 = vmul.f32 %v3099, %v2793
      %v3130 = vmul.f32 %v3101, %v2794
      %v3131 = vmul.f32 %v3103, %v2795
      %v3132 = vmul.f32 %v3105, %v2796
      %v3133 = vmul.f32 %v3107, %v2797
      %v3134 = vmul.f32 %v3109, %v2798
      %v3135 = vmul.f32 %v3111, %v2799
      %v3136 = vmul.f32 %v3113, %v2800
      %v3137 = vmul.f32 %v3115, %v2801
      %v3138 = vmul.f32 %v3117, %v2802
      %v3139 = vmul.f32 %v3118, 0.5
      %v3140 = vmul.f32 %v3119, 0.5
      %v3141 = vmul.f32 %v3120, 0.5
      %v3142 = vmul.f32 %v3121, 0.5
      %v3143 = vmul.f32 %v3122, 0.5
      %v3144 = vmul.f32 %v3123, 0.5
      %v3145 = vmul.f32 %v3124, 0.5
      %v3146 = vmul.f32 %v3125, 0.5
      %v3147 = vmul.f32 %v3126, 0.5
      %v3148 = vmul.f32 %v3127, 0.5
      %v3149 = vmul.f32 %v3128, 0.5
      %v3150 = vmul.f32 %v3129, 0.5
      %v3151 = vmul.f32 %v3130, 0.5
      %v3152 = vmul.f32 %v3131, 0.5
      %v3153 = vmul.f32 %v3132, 0.5
      %v3154 = vmul.f32 %v3133, 0.5
      %v3155 = vmul.f32 %v3134, 0.5
      %v3156 = vmul.f32 %v3135, 0.5
      %v3157 = vmul.f32 %v3136, 0.5
      %v3158 = vmul.f32 %v3137, 0.5
      %v3159 = vmul.f32 %v3138, 0.5
      %3181 = vrot.lane.b32.xlu0 %v3139, 110
      %v3182 = vpop.permute.xlu0 %3181
      %3183 = vrot.lane.b32.xlu0 %v3140, 110
      %v3184 = vpop.permute.xlu0 %3183
      %3185 = vrot.lane.b32.xlu0 %v3141, 110
      %v3186 = vpop.permute.xlu0 %3185
      %3187 = vrot.lane.b32.xlu0 %v3142, 110
      %v3188 = vpop.permute.xlu0 %3187
      %3189 = vrot.lane.b32.xlu0 %v3143, 110
      %v3190 = vpop.permute.xlu0 %3189
      %3191 = vrot.lane.b32.xlu0 %v3144, 110
      %v3192 = vpop.permute.xlu0 %3191
      %3193 = vrot.lane.b32.xlu0 %v3145, 110
      %v3194 = vpop.permute.xlu0 %3193
      %3195 = vrot.lane.b32.xlu0 %v3146, 110
      %v3196 = vpop.permute.xlu0 %3195
      %3197 = vrot.lane.b32.xlu0 %v3147, 110
      %v3198 = vpop.permute.xlu0 %3197
      %3199 = vrot.lane.b32.xlu0 %v3148, 110
      %v3200 = vpop.permute.xlu0 %3199
      %3201 = vrot.lane.b32.xlu0 %v3149, 110
      %v3202 = vpop.permute.xlu0 %3201
      %3203 = vrot.lane.b32.xlu0 %v3150, 110
      %v3204 = vpop.permute.xlu0 %3203
      %3205 = vrot.lane.b32.xlu0 %v3151, 110
      %v3206 = vpop.permute.xlu0 %3205
      %3207 = vrot.lane.b32.xlu0 %v3152, 110
      %v3208 = vpop.permute.xlu0 %3207
      %3209 = vrot.lane.b32.xlu0 %v3153, 110
      %v3210 = vpop.permute.xlu0 %3209
      %3211 = vrot.lane.b32.xlu0 %v3154, 110
      %v3212 = vpop.permute.xlu0 %3211
      %3213 = vrot.lane.b32.xlu0 %v3155, 110
      %v3214 = vpop.permute.xlu0 %3213
      %3215 = vrot.lane.b32.xlu0 %v3156, 110
      %v3216 = vpop.permute.xlu0 %3215
      %3217 = vrot.lane.b32.xlu0 %v3157, 110
      %v3218 = vpop.permute.xlu0 %3217
      %3219 = vrot.lane.b32.xlu0 %v3158, 110
      %v3220 = vpop.permute.xlu0 %3219
      %3221 = vrot.lane.b32.xlu0 %v3159, 110
      %v3222 = vpop.permute.xlu0 %3221
      %v3244 = vsub.f32 %v3034, %v3182
      %v3245 = vsub.f32 %v3035, %v3184
      %v3246 = vsub.f32 %v3036, %v3186
      %v3247 = vsub.f32 %v3037, %v3188
      %v3248 = vsub.f32 %v3038, %v3190
      %v3249 = vsub.f32 %v3039, %v3192
      %v3250 = vsub.f32 %v3040, %v3194
      %v3251 = vsub.f32 %v3041, %v3196
      %v3252 = vsub.f32 %v3042, %v3198
      %v3253 = vsub.f32 %v3043, %v3200
      %v3254 = vsub.f32 %v3044, %v3202
      %v3255 = vsub.f32 %v3045, %v3204
      %v3256 = vsub.f32 %v3046, %v3206
      %v3257 = vsub.f32 %v3047, %v3208
      %v3258 = vsub.f32 %v3048, %v3210
      %v3259 = vsub.f32 %v3049, %v3212
      %v3260 = vsub.f32 %v3050, %v3214
      %v3261 = vsub.f32 %v3051, %v3216
      %v3262 = vsub.f32 %v3052, %v3218
      %v3263 = vsub.f32 %v3053, %v3220
      %v3264 = vsub.f32 %v3054, %v3222
      %v3265 = vadd.f32 %v3034, %v3182
      %v3266 = vadd.f32 %v3035, %v3184
      %v3267 = vadd.f32 %v3036, %v3186
      %v3268 = vadd.f32 %v3037, %v3188
      %v3269 = vadd.f32 %v3038, %v3190
      %v3270 = vadd.f32 %v3039, %v3192
      %v3271 = vadd.f32 %v3040, %v3194
      %v3272 = vadd.f32 %v3041, %v3196
      %v3273 = vadd.f32 %v3042, %v3198
      %v3274 = vadd.f32 %v3043, %v3200
      %v3275 = vadd.f32 %v3044, %v3202
      %v3276 = vadd.f32 %v3045, %v3204
      %v3277 = vadd.f32 %v3046, %v3206
      %v3278 = vadd.f32 %v3047, %v3208
      %v3279 = vadd.f32 %v3048, %v3210
      %v3280 = vadd.f32 %v3049, %v3212
      %v3281 = vadd.f32 %v3050, %v3214
      %v3282 = vadd.f32 %v3051, %v3216
      %v3283 = vadd.f32 %v3052, %v3218
      %v3284 = vadd.f32 %v3053, %v3220
      %v3285 = vadd.f32 %v3054, %v3222
      %v3286 = vmax.f32 %v3244, 0.0
      %v3287 = vmax.f32 %v3245, 0.0
      %v3288 = vmax.f32 %v3246, 0.0
      %v3289 = vmax.f32 %v3247, 0.0
      %v3290 = vmax.f32 %v3248, 0.0
      %v3291 = vmax.f32 %v3249, 0.0
      %v3292 = vmax.f32 %v3250, 0.0
      %v3293 = vmax.f32 %v3251, 0.0
      %v3294 = vmax.f32 %v3252, 0.0
      %v3295 = vmax.f32 %v3253, 0.0
      %v3296 = vmax.f32 %v3254, 0.0
      %v3297 = vmax.f32 %v3255, 0.0
      %v3298 = vmax.f32 %v3256, 0.0
      %v3299 = vmax.f32 %v3257, 0.0
      %v3300 = vmax.f32 %v3258, 0.0
      %v3301 = vmax.f32 %v3259, 0.0
      %v3302 = vmax.f32 %v3260, 0.0
      %v3303 = vmax.f32 %v3261, 0.0
      %v3304 = vmax.f32 %v3262, 0.0
      %v3305 = vmax.f32 %v3263, 0.0
      %v3306 = vmax.f32 %v3264, 0.0
      %v3307 = vmin.f32 %v3286, 32.0
      %v3308 = vmin.f32 %v3287, 32.0
      %v3309 = vmin.f32 %v3288, 32.0
      %v3310 = vmin.f32 %v3289, 32.0
      %v3311 = vmin.f32 %v3290, 32.0
      %v3312 = vmin.f32 %v3291, 32.0
      %v3313 = vmin.f32 %v3292, 32.0
      %v3314 = vmin.f32 %v3293, 32.0
      %v3315 = vmin.f32 %v3294, 32.0
      %v3316 = vmin.f32 %v3295, 32.0
      %v3317 = vmin.f32 %v3296, 32.0
      %v3318 = vmin.f32 %v3297, 32.0
      %v3319 = vmin.f32 %v3298, 32.0
      %v3320 = vmin.f32 %v3299, 32.0
      %v3321 = vmin.f32 %v3300, 32.0
      %v3322 = vmin.f32 %v3301, 32.0
      %v3323 = vmin.f32 %v3302, 32.0
      %v3324 = vmin.f32 %v3303, 32.0
      %v3325 = vmin.f32 %v3304, 32.0
      %v3326 = vmin.f32 %v3305, 32.0
      %v3327 = vmin.f32 %v3306, 32.0
      %v3328 = vmax.f32 %v3265, 0.0
      %v3329 = vmax.f32 %v3266, 0.0
      %v3330 = vmax.f32 %v3267, 0.0
      %v3331 = vmax.f32 %v3268, 0.0
      %v3332 = vmax.f32 %v3269, 0.0
      %v3333 = vmax.f32 %v3270, 0.0
      %v3334 = vmax.f32 %v3271, 0.0
      %v3335 = vmax.f32 %v3272, 0.0
      %v3336 = vmax.f32 %v3273, 0.0
      %v3337 = vmax.f32 %v3274, 0.0
      %v3338 = vmax.f32 %v3275, 0.0
      %v3339 = vmax.f32 %v3276, 0.0
      %v3340 = vmax.f32 %v3277, 0.0
      %v3341 = vmax.f32 %v3278, 0.0
      %v3342 = vmax.f32 %v3279, 0.0
      %v3343 = vmax.f32 %v3280, 0.0
      %v3344 = vmax.f32 %v3281, 0.0
      %v3345 = vmax.f32 %v3282, 0.0
      %v3346 = vmax.f32 %v3283, 0.0
      %v3347 = vmax.f32 %v3284, 0.0
      %v3348 = vmax.f32 %v3285, 0.0
      %v3349 = vmin.f32 %v3328, 32.0
      %v3350 = vmin.f32 %v3329, 32.0
      %v3351 = vmin.f32 %v3330, 32.0
      %v3352 = vmin.f32 %v3331, 32.0
      %v3353 = vmin.f32 %v3332, 32.0
      %v3354 = vmin.f32 %v3333, 32.0
      %v3355 = vmin.f32 %v3334, 32.0
      %v3356 = vmin.f32 %v3335, 32.0
      %v3357 = vmin.f32 %v3336, 32.0
      %v3358 = vmin.f32 %v3337, 32.0
      %v3359 = vmin.f32 %v3338, 32.0
      %v3360 = vmin.f32 %v3339, 32.0
      %v3361 = vmin.f32 %v3340, 32.0
      %v3362 = vmin.f32 %v3341, 32.0
      %v3363 = vmin.f32 %v3342, 32.0
      %v3364 = vmin.f32 %v3343, 32.0
      %v3365 = vmin.f32 %v3344, 32.0
      %v3366 = vmin.f32 %v3345, 32.0
      %v3367 = vmin.f32 %v3346, 32.0
      %v3368 = vmin.f32 %v3347, 32.0
      %v3369 = vmin.f32 %v3348, 32.0
      %3391 = vrot.lane.b32.xlu0 %v2592, 119
      %v3392 = vpop.permute.xlu0 %3391
      %3393 = vrot.lane.b32.xlu0 %v2595, 119
      %v3394 = vpop.permute.xlu0 %3393
      %3395 = vrot.lane.b32.xlu0 %v2600, 119
      %v3396 = vpop.permute.xlu0 %3395
      %3397 = vrot.lane.b32.xlu0 %v2603, 119
      %v3398 = vpop.permute.xlu0 %3397
      %3399 = vrot.lane.b32.xlu0 %v2608, 119
      %v3400 = vpop.permute.xlu0 %3399
      %3401 = vrot.lane.b32.xlu0 %v2611, 119
      %v3402 = vpop.permute.xlu0 %3401
      %3403 = vrot.lane.b32.xlu0 %v2616, 119
      %v3404 = vpop.permute.xlu0 %3403
      %3405 = vrot.lane.b32.xlu0 %v2619, 119
      %v3406 = vpop.permute.xlu0 %3405
      %3407 = vrot.lane.b32.xlu0 %v2624, 119
      %v3408 = vpop.permute.xlu0 %3407
      %3409 = vrot.lane.b32.xlu0 %v2627, 119
      %v3410 = vpop.permute.xlu0 %3409
      %3411 = vrot.lane.b32.xlu0 %v2632, 119
      %v3412 = vpop.permute.xlu0 %3411
      %3413 = vrot.lane.b32.xlu0 %v2635, 119
      %v3414 = vpop.permute.xlu0 %3413
      %3415 = vrot.lane.b32.xlu0 %v2640, 119
      %v3416 = vpop.permute.xlu0 %3415
      %3417 = vrot.lane.b32.xlu0 %v2643, 119
      %v3418 = vpop.permute.xlu0 %3417
      %3419 = vrot.lane.b32.xlu0 %v2648, 119
      %v3420 = vpop.permute.xlu0 %3419
      %3421 = vrot.lane.b32.xlu0 %v2651, 119
      %v3422 = vpop.permute.xlu0 %3421
      %3423 = vrot.lane.b32.xlu0 %v2656, 119
      %v3424 = vpop.permute.xlu0 %3423
      %3425 = vrot.lane.b32.xlu0 %v2659, 119
      %v3426 = vpop.permute.xlu0 %3425
      %3427 = vrot.lane.b32.xlu0 %v2664, 119
      %v3428 = vpop.permute.xlu0 %3427
      %3429 = vrot.lane.b32.xlu0 %v2667, 119
      %v3430 = vpop.permute.xlu0 %3429
      %3431 = vrot.lane.b32.xlu0 %v2672, 119
      %v3432 = vpop.permute.xlu0 %3431
      %v3454 = vsub.f32 %v2592, %v3392
      %v3455 = vsub.f32 %v2595, %v3394
      %v3456 = vsub.f32 %v2600, %v3396
      %v3457 = vsub.f32 %v2603, %v3398
      %v3458 = vsub.f32 %v2608, %v3400
      %v3459 = vsub.f32 %v2611, %v3402
      %v3460 = vsub.f32 %v2616, %v3404
      %v3461 = vsub.f32 %v2619, %v3406
      %v3462 = vsub.f32 %v2624, %v3408
      %v3463 = vsub.f32 %v2627, %v3410
      %v3464 = vsub.f32 %v2632, %v3412
      %v3465 = vsub.f32 %v2635, %v3414
      %v3466 = vsub.f32 %v2640, %v3416
      %v3467 = vsub.f32 %v2643, %v3418
      %v3468 = vsub.f32 %v2648, %v3420
      %v3469 = vsub.f32 %v2651, %v3422
      %v3470 = vsub.f32 %v2656, %v3424
      %v3471 = vsub.f32 %v2659, %v3426
      %v3472 = vsub.f32 %v2664, %v3428
      %v3473 = vsub.f32 %v2667, %v3430
      %v3474 = vsub.f32 %v2672, %v3432
      %v3475 = vmul.f32 %v3454, 1.442695
      %v3476 = vpow.pop %v3475
      %v3477 = vmul.f32 %v3455, 1.442695
      %v3478 = vpow.pop %v3477
      %v3479 = vmul.f32 %v3456, 1.442695
      %v3480 = vpow.pop %v3479
      %v3481 = vmul.f32 %v3457, 1.442695
      %v3482 = vpow.pop %v3481
      %v3483 = vmul.f32 %v3458, 1.442695
      %v3484 = vpow.pop %v3483
      %v3485 = vmul.f32 %v3459, 1.442695
      %v3486 = vpow.pop %v3485
      %v3487 = vmul.f32 %v3460, 1.442695
      %v3488 = vpow.pop %v3487
      %v3489 = vmul.f32 %v3461, 1.442695
      %v3490 = vpow.pop %v3489
      %v3491 = vmul.f32 %v3462, 1.442695
      %v3492 = vpow.pop %v3491
      %v3493 = vmul.f32 %v3463, 1.442695
      %v3494 = vpow.pop %v3493
      %v3495 = vmul.f32 %v3464, 1.442695
      %v3496 = vpow.pop %v3495
      %v3497 = vmul.f32 %v3465, 1.442695
      %v3498 = vpow.pop %v3497
      %v3499 = vmul.f32 %v3466, 1.442695
      %v3500 = vpow.pop %v3499
      %v3501 = vmul.f32 %v3467, 1.442695
      %v3502 = vpow.pop %v3501
      %v3503 = vmul.f32 %v3468, 1.442695
      %v3504 = vpow.pop %v3503
      %v3505 = vmul.f32 %v3469, 1.442695
      %v3506 = vpow.pop %v3505
      %v3507 = vmul.f32 %v3470, 1.442695
      %v3508 = vpow.pop %v3507
      %v3509 = vmul.f32 %v3471, 1.442695
      %v3510 = vpow.pop %v3509
      %v3511 = vmul.f32 %v3472, 1.442695
      %v3512 = vpow.pop %v3511
      %v3513 = vmul.f32 %v3473, 1.442695
      %v3514 = vpow.pop %v3513
      %v3515 = vmul.f32 %v3474, 1.442695
      %v3516 = vpow.pop %v3515
      %v3517 = vadd.f32 %v3476, 1.0
      %v3518 = vadd.f32 %v3478, 1.0
      %v3519 = vadd.f32 %v3480, 1.0
      %v3520 = vadd.f32 %v3482, 1.0
      %v3521 = vadd.f32 %v3484, 1.0
      %v3522 = vadd.f32 %v3486, 1.0
      %v3523 = vadd.f32 %v3488, 1.0
      %v3524 = vadd.f32 %v3490, 1.0
      %v3525 = vadd.f32 %v3492, 1.0
      %v3526 = vadd.f32 %v3494, 1.0
      %v3527 = vadd.f32 %v3496, 1.0
      %v3528 = vadd.f32 %v3498, 1.0
      %v3529 = vadd.f32 %v3500, 1.0
      %v3530 = vadd.f32 %v3502, 1.0
      %v3531 = vadd.f32 %v3504, 1.0
      %v3532 = vadd.f32 %v3506, 1.0
      %v3533 = vadd.f32 %v3508, 1.0
      %v3534 = vadd.f32 %v3510, 1.0
      %v3535 = vadd.f32 %v3512, 1.0
      %v3536 = vadd.f32 %v3514, 1.0
      %v3537 = vadd.f32 %v3516, 1.0
      %v3538 = vrcp.pop %v3517
      %v3539 = vrcp.pop %v3518
      %v3540 = vrcp.pop %v3519
      %v3541 = vrcp.pop %v3520
      %v3542 = vrcp.pop %v3521
      %v3543 = vrcp.pop %v3522
      %v3544 = vrcp.pop %v3523
      %v3545 = vrcp.pop %v3524
      %v3546 = vrcp.pop %v3525
      %v3547 = vrcp.pop %v3526
      %v3548 = vrcp.pop %v3527
      %v3549 = vrcp.pop %v3528
      %v3550 = vrcp.pop %v3529
      %v3551 = vrcp.pop %v3530
      %v3552 = vrcp.pop %v3531
      %v3553 = vrcp.pop %v3532
      %v3554 = vrcp.pop %v3533
      %v3555 = vrcp.pop %v3534
      %v3556 = vrcp.pop %v3535
      %v3557 = vrcp.pop %v3536
      %v3558 = vrcp.pop %v3537
      %3580 = vrot.lane.b32.xlu0 %v3349, 18
      %v3581 = vpop.permute.xlu0 %3580
      %3582 = vrot.lane.b32.xlu0 %v3350, 18
      %v3583 = vpop.permute.xlu0 %3582
      %3584 = vrot.lane.b32.xlu0 %v3351, 18
      %v3585 = vpop.permute.xlu0 %3584
      %3586 = vrot.lane.b32.xlu0 %v3352, 18
      %v3587 = vpop.permute.xlu0 %3586
      %3588 = vrot.lane.b32.xlu0 %v3353, 18
      %v3589 = vpop.permute.xlu0 %3588
      %3590 = vrot.lane.b32.xlu0 %v3354, 18
      %v3591 = vpop.permute.xlu0 %3590
      %3592 = vrot.lane.b32.xlu0 %v3355, 18
      %v3593 = vpop.permute.xlu0 %3592
      %3594 = vrot.lane.b32.xlu0 %v3356, 18
      %v3595 = vpop.permute.xlu0 %3594
      %3596 = vrot.lane.b32.xlu0 %v3357, 18
      %v3597 = vpop.permute.xlu0 %3596
      %3598 = vrot.lane.b32.xlu0 %v3358, 18
      %v3599 = vpop.permute.xlu0 %3598
      %3600 = vrot.lane.b32.xlu0 %v3359, 18
      %v3601 = vpop.permute.xlu0 %3600
      %3602 = vrot.lane.b32.xlu0 %v3360, 18
      %v3603 = vpop.permute.xlu0 %3602
      %3604 = vrot.lane.b32.xlu0 %v3361, 18
      %v3605 = vpop.permute.xlu0 %3604
      %3606 = vrot.lane.b32.xlu0 %v3362, 18
      %v3607 = vpop.permute.xlu0 %3606
      %3608 = vrot.lane.b32.xlu0 %v3363, 18
      %v3609 = vpop.permute.xlu0 %3608
      %3610 = vrot.lane.b32.xlu0 %v3364, 18
      %v3611 = vpop.permute.xlu0 %3610
      %3612 = vrot.lane.b32.xlu0 %v3365, 18
      %v3613 = vpop.permute.xlu0 %3612
      %3614 = vrot.lane.b32.xlu0 %v3366, 18
      %v3615 = vpop.permute.xlu0 %3614
      %3616 = vrot.lane.b32.xlu0 %v3367, 18
      %v3617 = vpop.permute.xlu0 %3616
      %3618 = vrot.lane.b32.xlu0 %v3368, 18
      %v3619 = vpop.permute.xlu0 %3618
      %3620 = vrot.lane.b32.xlu0 %v3369, 18
      %v3621 = vpop.permute.xlu0 %3620
      %vm3643 = vcmask 146432
      %v3644 = vsel %vm3643, %v3307, %v3581
      %v3645 = vsel %vm3643, %v3308, %v3583
      %v3646 = vsel %vm3643, %v3309, %v3585
      %v3647 = vsel %vm3643, %v3310, %v3587
      %v3648 = vsel %vm3643, %v3311, %v3589
      %v3649 = vsel %vm3643, %v3312, %v3591
      %v3650 = vsel %vm3643, %v3313, %v3593
      %v3651 = vsel %vm3643, %v3314, %v3595
      %v3652 = vsel %vm3643, %v3315, %v3597
      %v3653 = vsel %vm3643, %v3316, %v3599
      %v3654 = vsel %vm3643, %v3317, %v3601
      %v3655 = vsel %vm3643, %v3318, %v3603
      %v3656 = vsel %vm3643, %v3319, %v3605
      %v3657 = vsel %vm3643, %v3320, %v3607
      %v3658 = vsel %vm3643, %v3321, %v3609
      %v3659 = vsel %vm3643, %v3322, %v3611
      %v3660 = vsel %vm3643, %v3323, %v3613
      %v3661 = vsel %vm3643, %v3324, %v3615
      %v3662 = vsel %vm3643, %v3325, %v3617
      %v3663 = vsel %vm3643, %v3326, %v3619
      %v3664 = vsel %vm3643, %v3327, %v3621
      %vm3665 = vcmask 293888
      %v3666 = vsel %vm3665, %v3644, %v3538
      %v3667 = vsel %vm3665, %v3645, %v3539
      %v3668 = vsel %vm3665, %v3646, %v3540
      %v3669 = vsel %vm3665, %v3647, %v3541
      %v3670 = vsel %vm3665, %v3648, %v3542
      %v3671 = vsel %vm3665, %v3649, %v3543
      %v3672 = vsel %vm3665, %v3650, %v3544
      %v3673 = vsel %vm3665, %v3651, %v3545
      %v3674 = vsel %vm3665, %v3652, %v3546
      %v3675 = vsel %vm3665, %v3653, %v3547
      %v3676 = vsel %vm3665, %v3654, %v3548
      %v3677 = vsel %vm3665, %v3655, %v3549
      %v3678 = vsel %vm3665, %v3656, %v3550
      %v3679 = vsel %vm3665, %v3657, %v3551
      %v3680 = vsel %vm3665, %v3658, %v3552
      %v3681 = vsel %vm3665, %v3659, %v3553
      %v3682 = vsel %vm3665, %v3660, %v3554
      %v3683 = vsel %vm3665, %v3661, %v3555
      %v3684 = vsel %vm3665, %v3662, %v3556
      %v3685 = vsel %vm3665, %v3663, %v3557
      %v3686 = vsel %vm3665, %v3664, %v3558
      %vm3687 = vcmask 367616
      %v3688 = vsel %vm3687, %v3666, 0.0
      %v3689 = vsel %vm3687, %v3667, 0.0
      %v3690 = vsel %vm3687, %v3668, 0.0
      %v3691 = vsel %vm3687, %v3669, 0.0
      %v3692 = vsel %vm3687, %v3670, 0.0
      %v3693 = vsel %vm3687, %v3671, 0.0
      %v3694 = vsel %vm3687, %v3672, 0.0
      %v3695 = vsel %vm3687, %v3673, 0.0
      %v3696 = vsel %vm3687, %v3674, 0.0
      %v3697 = vsel %vm3687, %v3675, 0.0
      %v3698 = vsel %vm3687, %v3676, 0.0
      %v3699 = vsel %vm3687, %v3677, 0.0
      %v3700 = vsel %vm3687, %v3678, 0.0
      %v3701 = vsel %vm3687, %v3679, 0.0
      %v3702 = vsel %vm3687, %v3680, 0.0
      %v3703 = vsel %vm3687, %v3681, 0.0
      %v3704 = vsel %vm3687, %v3682, 0.0
      %v3705 = vsel %vm3687, %v3683, 0.0
      %v3706 = vsel %vm3687, %v3684, 0.0
      %v3707 = vsel %vm3687, %v3685, 0.0
      %v3708 = vsel %vm3687, %v3686, 0.0
      %3709 = vst [vmem:[%s253] sm:$0xff] %v3688
      %3710 = vst [vmem:[%s253 + $0x8] sm:$0xff] %v3689
      %3711 = vst [vmem:[%s253 + $0x10] sm:$0xff] %v3690
      %3712 = vst [vmem:[%s253 + $0x18] sm:$0xff] %v3691
      %3713 = vst [vmem:[%s253 + $0x20] sm:$0xff] %v3692
      %3714 = vst [vmem:[%s253 + $0x28] sm:$0xff] %v3693
      %3715 = vst [vmem:[%s253 + $0x30] sm:$0xff] %v3694
      %3716 = vst [vmem:[%s253 + $0x38] sm:$0xff] %v3695
      %3717 = vst [vmem:[%s253 + $0x40] sm:$0xff] %v3696
      %3718 = vst [vmem:[%s253 + $0x48] sm:$0xff] %v3697
      %3719 = vst [vmem:[%s253 + $0x50] sm:$0xff] %v3698
      %3720 = vst [vmem:[%s253 + $0x58] sm:$0xff] %v3699
      %3721 = vst [vmem:[%s253 + $0x60] sm:$0xff] %v3700
      %3722 = vst [vmem:[%s253 + $0x68] sm:$0xff] %v3701
      %3723 = vst [vmem:[%s253 + $0x70] sm:$0xff] %v3702
      %3724 = vst [vmem:[%s253 + $0x78] sm:$0xff] %v3703
      %3725 = vst [vmem:[%s253 + $0x80] sm:$0xff] %v3704
      %3726 = vst [vmem:[%s253 + $0x88] sm:$0xff] %v3705
      %3727 = vst [vmem:[%s253 + $0x90] sm:$0xff] %v3706
      %3728 = vst [vmem:[%s253 + $0x98] sm:$0xff] %v3707
      %3729 = vst [vmem:[%s253 + $0xa0] sm:$0xff] %v3708
      %s3730 = smul.u32 21, %s17
      %p3731 = scmp.lt.s32.totalorder %s3730, 41
      %s3732 = scalar_select %p3731, %s3730, 41
      %s3733 = smul.addr %s3732, 8
      %s3734 = scalar_lea.vmem %s6, %s3733
      // Predicated region
      $region45: #{faster_rcnn_forward.4} parent=43 // pred_check
        %p3735 = pneg %p166
      $region46: #{faster_rcnn_forward.4} parent=43 // pred_check_branch
        %3737 = sbr.rel (%p3735) target = $region48
      $region47: #{faster_rcnn_forward.4} parent=43 // pred_region
        %s3738 = smul.u32 21, %s17
      $region48: #{faster_rcnn_forward.4} parent=43 // pred_fallthru
        _
    $region44: #{faster_rcnn_forward.4} parent=5 // pred_fallthru
      _
    %p3739 = scmp.le.s32.totalorder 2, %s12
    // Predicated region
    $region49: #{faster_rcnn_forward.4} parent=5 // pred_check
      %p3740 = pneg %p3739
    $region50: #{faster_rcnn_forward.4} parent=5 // pred_check_branch
      %3742 = sbr.rel (%p3740) target = $region52
    $region51: #{faster_rcnn_forward.4} parent=5 // pred_region
      %s3743 = ssub.s32 %s12, 2
      // Predicated region
      $region53: #{faster_rcnn_forward.4} parent=51 // pred_check
        %p3744 = pneg %p172
      $region54: #{faster_rcnn_forward.4} parent=51 // pred_check_branch
        %3746 = sbr.rel (%p3744) target = $region56
      $region55: #{faster_rcnn_forward.4} parent=51 // pred_region
        %s3747 = smul.u32 21, %s18
        %p3748 = scmp.lt.s32.totalorder %s3747, 41
        %s3749 = scalar_select %p3748, %s3747, 41
        %s3750 = smul.addr %s3749, 8
        %s3751 = scalar_lea.vmem %s6, %s3750
      $region56: #{faster_rcnn_forward.4} parent=51 // pred_fallthru
        _
    $region52: #{faster_rcnn_forward.4} parent=5 // pred_fallthru
      _
  $region6: #{faster_rcnn_forward.4} parent=0 // loop_footer
    %s16 = sadd.s32 1, %s12
  $region7: #{faster_rcnn_forward.4} parent=0 // loop_footer_branch
    %11 = sbr.rel target = $region3
  $region8: #{faster_rcnn_forward.4} parent=0 // loop_exit
    _

// kernel: faster_rcnn_forward.5
$region0: #{faster_rcnn_forward.5}
  #allocation0 [shape = 'u32[]', space=smem, size = 0x4, offset = 0x4, fixed_abs, tag = 'smem constant byte address 0x4 - core index']
  #allocation1 [shape = 'u32[144,128]{1,0:T(1,128)}', space=vmem, size = 0x12000, scoped, tag = 'internal scratch']
  %s0 = inlined_call_operand.vmem [shape: bf16[32,6272], index: 0, kind: input, shape index: {}]
  %s1 = inlined_call_operand.vmem [shape: bf16[6272,64], index: 1, kind: input, shape index: {}]
  %s2 = inlined_call_operand.vmem [shape: f32[1,64], index: 2, kind: input, shape index: {}]
  %s3 = inlined_call_operand.vmem [shape: bf16[64,64], index: 3, kind: input, shape index: {}]
  %s4 = inlined_call_operand.vmem [shape: f32[1,64], index: 4, kind: input, shape index: {}]
  %s5 = inlined_call_operand.vmem [shape: bf16[64,128], index: 5, kind: input, shape index: {}]
  %s6 = inlined_call_operand.vmem [shape: f32[1,128], index: 6, kind: input, shape index: {}]
  %s7 = inlined_call_operand.vmem [shape: f32[32,128], index: 7, kind: output, shape index: {}]
  %s8 = sld [smem:[#allocation0]]
  $region61: #{faster_rcnn_forward.5} parent=0
    _
  %s10 = ssub.s32 1, %s8
  %s11 = scalar_select 0, %s10, %s8
  loop: start=0, step=1, limit=4
  $region2: #{faster_rcnn_forward.5} parent=0 // loop_pre_header
    _
  $region3: #{faster_rcnn_forward.5} parent=0 // loop_header
    %s13 = sphi 0, %s17
    %p14 = scmp.ge.s32.totalorder %s13, 4
    %s23 = sphi 0, %s25
    %s26 = sphi 0, %s23
    %s27 = sphi 0, %s26
    %s43 = sphi 0, %s27
    %s47 = sphi 0, %s47
    %s49 = sphi 0, %s47
    %s50 = sphi 0, %s49
    %s64 = sphi 0, %s50
    %s68 = sphi 0, %s68
    %s70 = sphi 0, %s68
    %s71 = sphi 0, %s70
    %s85 = sphi 0, %s71
    %s89 = sphi 0, %s89
    %s91 = sphi 0, %s89
    %s92 = sphi 0, %s91
    %s106 = sphi 0, %s92
    %s110 = sphi 0, %s110
    %s112 = sphi 0, %s110
    %s113 = sphi 0, %s112
    %s127 = sphi 0, %s113
    %s131 = sphi 0, %s131
    %s133 = sphi 0, %s131
    %s134 = sphi 0, %s133
    %s148 = sphi 0, %s134
    %s152 = sphi 0, %s152
    %s154 = sphi 0, %s152
    %s155 = sphi 0, %s154
    %s169 = sphi 0, %s155
    %s175 = sphi 0, %s177
    %s178 = sphi 0, %s175
    %s179 = sphi 0, %s178
    %s195 = sphi 0, %s179
  $region4: #{faster_rcnn_forward.5} parent=0 // loop_header_branch
    %16 = sbr.rel (%p14) target = $region8
  $region5: #{faster_rcnn_forward.5} parent=0 // loop_body
    %s18 = ssub.s32 %s13, 1
    %s19 = ssub.s32 %s13, 2
    %s20 = sadd.s32 %s13, 1
    %s21 = ssub.s32 %s13, %s20
    %p22 = scmp.eq.s32.totalorder %s21, 0
    %s24 = sadd.s32 %s23, 1
    %s25 = scalar_select %p22, %s23, %s24
    %p28 = pneg %p22
    %p29 = scmp.eq.s32.totalorder %s13, 1
    %p30 = por %p28, %p29
    %p31 = scmp.ne.s32.totalorder %s23, %s26
    %p32 = scmp.eq.s32.totalorder %s13, 0
    %p33 = por %p31, %p32
    %p34 = scmp.ne.s32.totalorder %s23, %s26
    %p35 = scmp.eq.s32.totalorder %s18, 1
    %p36 = por %p34, %p35
    %p37 = scmp.ne.s32.totalorder %s26, %s27
    %p38 = scmp.eq.s32.totalorder %s18, 0
    %p39 = por %p37, %p38
    %p40 = scmp.ne.s32.totalorder %s26, %s27
    %p41 = scmp.eq.s32.totalorder %s19, 1
    %p42 = por %p40, %p41
    %p44 = scmp.ne.s32.totalorder %s27, %s43
    %p45 = scmp.eq.s32.totalorder %s19, 0
    %p46 = por %p44, %p45
    %s48 = sadd.s32 %s47, 1
    %p51 = scmp.eq.s32.totalorder %s13, 1
    %p52 = scmp.ne.s32.totalorder %s47, %s49
    %p53 = scmp.eq.s32.totalorder %s13, 0
    %p54 = por %p52, %p53
    %p55 = scmp.ne.s32.totalorder %s47, %s49
    %p56 = scmp.eq.s32.totalorder %s18, 1
    %p57 = por %p55, %p56
    %p58 = scmp.ne.s32.totalorder %s49, %s50
    %p59 = scmp.eq.s32.totalorder %s18, 0
    %p60 = por %p58, %p59
    %p61 = scmp.ne.s32.totalorder %s49, %s50
    %p62 = scmp.eq.s32.totalorder %s19, 1
    %p63 = por %p61, %p62
    %p65 = scmp.ne.s32.totalorder %s50, %s64
    %p66 = scmp.eq.s32.totalorder %s19, 0
    %p67 = por %p65, %p66
    %s69 = sadd.s32 %s68, 1
    %p72 = scmp.eq.s32.totalorder %s13, 1
    %p73 = scmp.ne.s32.totalorder %s68, %s70
    %p74 = scmp.eq.s32.totalorder %s13, 0
    %p75 = por %p73, %p74
    %p76 = scmp.ne.s32.totalorder %s68, %s70
    %p77 = scmp.eq.s32.totalorder %s18, 1
    %p78 = por %p76, %p77
    %p79 = scmp.ne.s32.totalorder %s70, %s71
    %p80 = scmp.eq.s32.totalorder %s18, 0
    %p81 = por %p79, %p80
    %p82 = scmp.ne.s32.totalorder %s70, %s71
    %p83 = scmp.eq.s32.totalorder %s19, 1
    %p84 = por %p82, %p83
    %p86 = scmp.ne.s32.totalorder %s71, %s85
    %p87 = scmp.eq.s32.totalorder %s19, 0
    %p88 = por %p86, %p87
    %s90 = sadd.s32 %s89, 1
    %p93 = scmp.eq.s32.totalorder %s13, 1
    %p94 = scmp.ne.s32.totalorder %s89, %s91
    %p95 = scmp.eq.s32.totalorder %s13, 0
    %p96 = por %p94, %p95
    %p97 = scmp.ne.s32.totalorder %s89, %s91
    %p98 = scmp.eq.s32.totalorder %s18, 1
    %p99 = por %p97, %p98
    %p100 = scmp.ne.s32.totalorder %s91, %s92
    %p101 = scmp.eq.s32.totalorder %s18, 0
    %p102 = por %p100, %p101
    %p103 = scmp.ne.s32.totalorder %s91, %s92
    %p104 = scmp.eq.s32.totalorder %s19, 1
    %p105 = por %p103, %p104
    %p107 = scmp.ne.s32.totalorder %s92, %s106
    %p108 = scmp.eq.s32.totalorder %s19, 0
    %p109 = por %p107, %p108
    %s111 = sadd.s32 %s110, 1
    %p114 = scmp.eq.s32.totalorder %s13, 1
    %p115 = scmp.ne.s32.totalorder %s110, %s112
    %p116 = scmp.eq.s32.totalorder %s13, 0
    %p117 = por %p115, %p116
    %p118 = scmp.ne.s32.totalorder %s110, %s112
    %p119 = scmp.eq.s32.totalorder %s18, 1
    %p120 = por %p118, %p119
    %p121 = scmp.ne.s32.totalorder %s112, %s113
    %p122 = scmp.eq.s32.totalorder %s18, 0
    %p123 = por %p121, %p122
    %p124 = scmp.ne.s32.totalorder %s112, %s113
    %p125 = scmp.eq.s32.totalorder %s19, 1
    %p126 = por %p124, %p125
    %p128 = scmp.ne.s32.totalorder %s113, %s127
    %p129 = scmp.eq.s32.totalorder %s19, 0
    %p130 = por %p128, %p129
    %s132 = sadd.s32 %s131, 1
    %p135 = scmp.eq.s32.totalorder %s13, 1
    %p136 = scmp.ne.s32.totalorder %s131, %s133
    %p137 = scmp.eq.s32.totalorder %s13, 0
    %p138 = por %p136, %p137
    %p139 = scmp.ne.s32.totalorder %s131, %s133
    %p140 = scmp.eq.s32.totalorder %s18, 1
    %p141 = por %p139, %p140
    %p142 = scmp.ne.s32.totalorder %s133, %s134
    %p143 = scmp.eq.s32.totalorder %s18, 0
    %p144 = por %p142, %p143
    %p145 = scmp.ne.s32.totalorder %s133, %s134
    %p146 = scmp.eq.s32.totalorder %s19, 1
    %p147 = por %p145, %p146
    %p149 = scmp.ne.s32.totalorder %s134, %s148
    %p150 = scmp.eq.s32.totalorder %s19, 0
    %p151 = por %p149, %p150
    %s153 = sadd.s32 %s152, 1
    %p156 = scmp.eq.s32.totalorder %s13, 1
    %p157 = scmp.ne.s32.totalorder %s152, %s154
    %p158 = scmp.eq.s32.totalorder %s13, 0
    %p159 = por %p157, %p158
    %p160 = scmp.ne.s32.totalorder %s152, %s154
    %p161 = scmp.eq.s32.totalorder %s18, 1
    %p162 = por %p160, %p161
    %p163 = scmp.ne.s32.totalorder %s154, %s155
    %p164 = scmp.eq.s32.totalorder %s18, 0
    %p165 = por %p163, %p164
    %p166 = scmp.ne.s32.totalorder %s154, %s155
    %p167 = scmp.eq.s32.totalorder %s19, 1
    %p168 = por %p166, %p167
    %p170 = scmp.ne.s32.totalorder %s155, %s169
    %p171 = scmp.eq.s32.totalorder %s19, 0
    %p172 = por %p170, %p171
    %s173 = ssub.s32 %s13, %s20
    %p174 = scmp.eq.s32.totalorder %s173, 0
    %s176 = sadd.s32 %s175, 1
    %s177 = scalar_select %p174, %s175, %s176
    %p180 = pneg %p174
    %p181 = scmp.eq.s32.totalorder %s13, 1
    %p182 = por %p180, %p181
    %p183 = scmp.ne.s32.totalorder %s175, %s178
    %p184 = scmp.eq.s32.totalorder %s13, 0
    %p185 = por %p183, %p184
    %p186 = scmp.ne.s32.totalorder %s175, %s178
    %p187 = scmp.eq.s32.totalorder %s18, 1
    %p188 = por %p186, %p187
    %p189 = scmp.ne.s32.totalorder %s178, %s179
    %p190 = scmp.eq.s32.totalorder %s18, 0
    %p191 = por %p189, %p190
    %p192 = scmp.ne.s32.totalorder %s178, %s179
    %p193 = scmp.eq.s32.totalorder %s19, 1
    %p194 = por %p192, %p193
    %p196 = scmp.ne.s32.totalorder %s179, %s195
    %p197 = scmp.eq.s32.totalorder %s19, 0
    %p198 = por %p196, %p197
    %p199 = scmp.le.s32.totalorder 1, %s13
    %p200 = scmp.lt.s32.totalorder %s13, 3
    %p201 = pnand %p199, %p200
    %p202 = pneg %p201
    // Predicated region
    $region9: #{faster_rcnn_forward.5} parent=5 // pred_check
      _
    $region10: #{faster_rcnn_forward.5} parent=5 // pred_check_branch
      %204 = sbr.rel (%p201) target = $region12
    $region11: #{faster_rcnn_forward.5} parent=5 // pred_region
      %s205 = ssub.s32 %s13, 1
      // Predicated region
      $region13: #{faster_rcnn_forward.5} parent=11 // pred_check
        %p206 = pneg %p60
      $region14: #{faster_rcnn_forward.5} parent=11 // pred_check_branch
        %208 = sbr.rel (%p206) target = $region16
      $region15: #{faster_rcnn_forward.5} parent=11 // pred_region
        _
      $region16: #{faster_rcnn_forward.5} parent=11 // pred_fallthru
        _
      // Predicated region
      $region17: #{faster_rcnn_forward.5} parent=11 // pred_check
        %p209 = pneg %p81
      $region18: #{faster_rcnn_forward.5} parent=11 // pred_check_branch
        %211 = sbr.rel (%p209) target = $region20
      $region19: #{faster_rcnn_forward.5} parent=11 // pred_region
        _
      $region20: #{faster_rcnn_forward.5} parent=11 // pred_fallthru
        _
      // Predicated region
      $region21: #{faster_rcnn_forward.5} parent=11 // pred_check
        %p212 = pneg %p102
      $region22: #{faster_rcnn_forward.5} parent=11 // pred_check_branch
        %214 = sbr.rel (%p212) target = $region24
      $region23: #{faster_rcnn_forward.5} parent=11 // pred_region
        _
      $region24: #{faster_rcnn_forward.5} parent=11 // pred_fallthru
        _
      // Predicated region
      $region25: #{faster_rcnn_forward.5} parent=11 // pred_check
        %p215 = pneg %p123
      $region26: #{faster_rcnn_forward.5} parent=11 // pred_check_branch
        %217 = sbr.rel (%p215) target = $region28
      $region27: #{faster_rcnn_forward.5} parent=11 // pred_region
        _
      $region28: #{faster_rcnn_forward.5} parent=11 // pred_fallthru
        _
      // Predicated region
      $region29: #{faster_rcnn_forward.5} parent=11 // pred_check
        %p218 = pneg %p144
      $region30: #{faster_rcnn_forward.5} parent=11 // pred_check_branch
        %220 = sbr.rel (%p218) target = $region32
      $region31: #{faster_rcnn_forward.5} parent=11 // pred_region
        _
      $region32: #{faster_rcnn_forward.5} parent=11 // pred_fallthru
        _
      // Predicated region
      $region33: #{faster_rcnn_forward.5} parent=11 // pred_check
        %p221 = pneg %p165
      $region34: #{faster_rcnn_forward.5} parent=11 // pred_check_branch
        %223 = sbr.rel (%p221) target = $region36
      $region35: #{faster_rcnn_forward.5} parent=11 // pred_region
        _
      $region36: #{faster_rcnn_forward.5} parent=11 // pred_fallthru
        _
    $region12: #{faster_rcnn_forward.5} parent=5 // pred_fallthru
      _
    %p224 = scmp.lt.s32.totalorder %s13, 2
    // Predicated region
    $region37: #{faster_rcnn_forward.5} parent=5 // pred_check
      %p225 = pneg %p224
    $region38: #{faster_rcnn_forward.5} parent=5 // pred_check_branch
      %227 = sbr.rel (%p225) target = $region40
    $region39: #{faster_rcnn_forward.5} parent=5 // pred_region
      // Predicated region
      $region41: #{faster_rcnn_forward.5} parent=39 // pred_check
        %p228 = pneg %p33
      $region42: #{faster_rcnn_forward.5} parent=39 // pred_check_branch
        %230 = sbr.rel (%p228) target = $region44
      $region43: #{faster_rcnn_forward.5} parent=39 // pred_region
        %s231 = smul.u32 2, %s13
        %p232 = scmp.lt.s32.totalorder %s231, 3
        %s233 = scalar_select %p232, %s231, 3
        %s234 = smul.addr %s233, 49
        %s235 = smul.addr %s234, 4
        %s236 = scalar_lea.vmem %s0, %s235
        %s237 = smul.u32 2, %s13
      $region44: #{faster_rcnn_forward.5} parent=39 // pred_fallthru
        _
    $region40: #{faster_rcnn_forward.5} parent=5 // pred_fallthru
      _
    %p238 = scmp.le.s32.totalorder 1, %s13
    %p239 = scmp.lt.s32.totalorder %s13, 3
    %p240 = pnand %p238, %p239
    %p241 = pneg %p240
    // Predicated region
    $region45: #{faster_rcnn_forward.5} parent=5 // pred_check
      _
    $region46: #{faster_rcnn_forward.5} parent=5 // pred_check_branch
      %243 = sbr.rel (%p240) target = $region48
    $region47: #{faster_rcnn_forward.5} parent=5 // pred_region
      %s244 = ssub.s32 %s13, 1
      %s245 = smul.u32 2, %s18
      %p246 = scmp.lt.s32.totalorder %s245, 3
      %s247 = scalar_select %p246, %s245, 3
      %s248 = smul.addr %s247, 49
      %s249 = smul.addr %s248, 4
      %s250 = scalar_lea.vmem %s0, %s249
      %p251 = pneg %p39
      %p252 = pneg %p36
      %p253 = pneg %p60
      %p254 = pneg %p57
      %p255 = pneg %p81
      %p256 = pneg %p78
      %p257 = pneg %p102
      %p258 = pneg %p99
      %p259 = pneg %p123
      %p260 = pneg %p120
      %p261 = pneg %p144
      %p262 = pneg %p141
      %p263 = pneg %p165
      %p264 = pneg %p162
      %p265 = pneg %p191
      %p266 = pneg %p188
      %s267 = smul.u32 2, %s18
      %p268 = scmp.lt.s32.totalorder %s267, 3
      %s269 = scalar_select %p268, %s267, 3
      %s270 = smul.addr %s269, 8
      %s271 = scalar_lea.vmem %s7, %s270
      %s272 = smul.u32 2, %s18
      %p273 = scmp.lt.s32.totalorder %s272, 3
      %s274 = scalar_select %p273, %s272, 3
      %s275 = smul.addr %s274, 49
      %s276 = smul.addr %s275, 4
      %s277 = scalar_lea.vmem %s0, %s276
      %s278 = smul.u32 2, %s18
      %s279 = smul.u32 2, %s18
      %p280 = scmp.lt.s32.totalorder %s279, 3
      %s281 = scalar_select %p280, %s279, 3
      %s282 = smul.addr %s281, 8
      %s283 = scalar_lea.vmem %s7, %s282
      %s284 = smul.u32 2, %s18
      %v286 = vld [vmem:[%s277] sm:$0xff]
      %v287 = vld [vmem:[%s277 + $0x8] sm:$0xff]
      %v288 = vld [vmem:[%s277 + $0x10] sm:$0xff]
      %v289 = vld [vmem:[%s277 + $0x18] sm:$0xff]
      %v290 = vld [vmem:[%s277 + $0x20] sm:$0xff]
      %v291 = vld [vmem:[%s277 + $0x28] sm:$0xff]
      %v292 = vld [vmem:[%s277 + $0x30] sm:$0xff]
      %v293 = vld [vmem:[%s277 + $0x38] sm:$0xff]
      %v294 = vld [vmem:[%s277 + $0x40] sm:$0xff]
      %v295 = vld [vmem:[%s277 + $0x48] sm:$0xff]
      %v296 = vld [vmem:[%s277 + $0x50] sm:$0xff]
      %v297 = vld [vmem:[%s277 + $0x58] sm:$0xff]
      %v298 = vld [vmem:[%s277 + $0x60] sm:$0xff]
      %v299 = vld [vmem:[%s277 + $0x68] sm:$0xff]
      %v300 = vld [vmem:[%s277 + $0x70] sm:$0xff]
      %v301 = vld [vmem:[%s277 + $0x78] sm:$0xff]
      %v302 = vld [vmem:[%s277 + $0x80] sm:$0xff]
      %v303 = vld [vmem:[%s277 + $0x88] sm:$0xff]
      %v304 = vld [vmem:[%s277 + $0x90] sm:$0xff]
      %v305 = vld [vmem:[%s277 + $0x98] sm:$0xff]
      %v306 = vld [vmem:[%s277 + $0xa0] sm:$0xff]
      %v307 = vld [vmem:[%s277 + $0xa8] sm:$0xff]
      %v308 = vld [vmem:[%s277 + $0xb0] sm:$0xff]
      %v309 = vld [vmem:[%s277 + $0xb8] sm:$0xff]
      %v310 = vld [vmem:[%s277 + $0xc0] sm:$0xf]
      %v311 = vld [vmem:[%s277 + $0xc4] sm:$0xff]
      %v312 = vld [vmem:[%s277 + $0xcc] sm:$0xff]
      %v313 = vld [vmem:[%s277 + $0xd4] sm:$0xff]
      %v314 = vld [vmem:[%s277 + $0xdc] sm:$0xff]
      %v315 = vld [vmem:[%s277 + $0xe4] sm:$0xff]
      %v316 = vld [vmem:[%s277 + $0xec] sm:$0xff]
      %v317 = vld [vmem:[%s277 + $0xf4] sm:$0xff]
      %v318 = vld [vmem:[%s277 + $0xfc] sm:$0xff]
      %v319 = vld [vmem:[%s277 + $0x104] sm:$0xff]
      %v320 = vld [vmem:[%s277 + $0x10c] sm:$0xff]
      %v321 = vld [vmem:[%s277 + $0x114] sm:$0xff]
      %v322 = vld [vmem:[%s277 + $0x11c] sm:$0xff]
      %v323 = vld [vmem:[%s277 + $0x124] sm:$0xff]
      %v324 = vld [vmem:[%s277 + $0x12c] sm:$0xff]
      %v325 = vld [vmem:[%s277 + $0x134] sm:$0xff]
      %v326 = vld [vmem:[%s277 + $0x13c] sm:$0xff]
      %v327 = vld [vmem:[%s277 + $0x144] sm:$0xff]
      %v328 = vld [vmem:[%s277 + $0x14c] sm:$0xff]
      %v329 = vld [vmem:[%s277 + $0x154] sm:$0xff]
      %v330 = vld [vmem:[%s277 + $0x15c] sm:$0xff]
      %v331 = vld [vmem:[%s277 + $0x164] sm:$0xff]
      %v332 = vld [vmem:[%s277 + $0x16c] sm:$0xff]
      %v333 = vld [vmem:[%s277 + $0x174] sm:$0xff]
      %v334 = vld [vmem:[%s277 + $0x17c] sm:$0xff]
      %v335 = vld [vmem:[%s277 + $0x184] sm:$0xf]
      %v336 = vld [vmem:[%s1] sm:$0xf]
      %v337 = vld [vmem:[%s1 + $0x4] sm:$0xf]
      %v338 = vld [vmem:[%s1 + $0x8] sm:$0xf]
      %v339 = vld [vmem:[%s1 + $0xc] sm:$0xf]
      %v340 = vld [vmem:[%s1 + $0x10] sm:$0xf]
      %v341 = vld [vmem:[%s1 + $0x14] sm:$0xf]
      %v342 = vld [vmem:[%s1 + $0x18] sm:$0xf]
      %v343 = vld [vmem:[%s1 + $0x1c] sm:$0xf]
      %v344 = vld [vmem:[%s1 + $0x20] sm:$0xf]
      %v345 = vld [vmem:[%s1 + $0x24] sm:$0xf]
      %v346 = vld [vmem:[%s1 + $0x28] sm:$0xf]
      %v347 = vld [vmem:[%s1 + $0x2c] sm:$0xf]
      %v348 = vld [vmem:[%s1 + $0x30] sm:$0xf]
      %v349 = vld [vmem:[%s1 + $0x34] sm:$0xf]
      %v350 = vld [vmem:[%s1 + $0x38] sm:$0xf]
      %v351 = vld [vmem:[%s1 + $0x3c] sm:$0xf]
      %v352 = vld [vmem:[%s1 + $0x40] sm:$0xf]
      %v353 = vld [vmem:[%s1 + $0x44] sm:$0xf]
      %v354 = vld [vmem:[%s1 + $0x48] sm:$0xf]
      %v355 = vld [vmem:[%s1 + $0x4c] sm:$0xf]
      %v356 = vld [vmem:[%s1 + $0x50] sm:$0xf]
      %v357 = vld [vmem:[%s1 + $0x54] sm:$0xf]
      %v358 = vld [vmem:[%s1 + $0x58] sm:$0xf]
      %v359 = vld [vmem:[%s1 + $0x5c] sm:$0xf]
      %v360 = vld [vmem:[%s1 + $0x60] sm:$0xf]
      %v361 = vld [vmem:[%s1 + $0x64] sm:$0xf]
      %v362 = vld [vmem:[%s1 + $0x68] sm:$0xf]
      %v363 = vld [vmem:[%s1 + $0x6c] sm:$0xf]
      %v364 = vld [vmem:[%s1 + $0x70] sm:$0xf]
      %v365 = vld [vmem:[%s1 + $0x74] sm:$0xf]
      %v366 = vld [vmem:[%s1 + $0x78] sm:$0xf]
      %v367 = vld [vmem:[%s1 + $0x7c] sm:$0xf]
      %v368 = vld [vmem:[%s1 + $0x80] sm:$0xf]
      %v369 = vld [vmem:[%s1 + $0x84] sm:$0xf]
      %v370 = vld [vmem:[%s1 + $0x88] sm:$0xf]
      %v371 = vld [vmem:[%s1 + $0x8c] sm:$0xf]
      %v372 = vld [vmem:[%s1 + $0x90] sm:$0xf]
      %v373 = vld [vmem:[%s1 + $0x94] sm:$0xf]
      %v374 = vld [vmem:[%s1 + $0x98] sm:$0xf]
      %v375 = vld [vmem:[%s1 + $0x9c] sm:$0xf]
      %v376 = vld [vmem:[%s1 + $0xa0] sm:$0xf]
      %v377 = vld [vmem:[%s1 + $0xa4] sm:$0xf]
      %v378 = vld [vmem:[%s1 + $0xa8] sm:$0xf]
      %v379 = vld [vmem:[%s1 + $0xac] sm:$0xf]
      %v380 = vld [vmem:[%s1 + $0xb0] sm:$0xf]
      %v381 = vld [vmem:[%s1 + $0xb4] sm:$0xf]
      %v382 = vld [vmem:[%s1 + $0xb8] sm:$0xf]
      %v383 = vld [vmem:[%s1 + $0xbc] sm:$0xf]
      %v384 = vld [vmem:[%s1 + $0xc0] sm:$0xf]
      %v385 = vld [vmem:[%s1 + $0xc4] sm:$0xf]
      %v386 = vld [vmem:[%s1 + $0xc8] sm:$0xf]
      %v387 = vld [vmem:[%s1 + $0xcc] sm:$0xf]
      %v388 = vld [vmem:[%s1 + $0xd0] sm:$0xf]
      %v389 = vld [vmem:[%s1 + $0xd4] sm:$0xf]
      %v390 = vld [vmem:[%s1 + $0xd8] sm:$0xf]
      %v391 = vld [vmem:[%s1 + $0xdc] sm:$0xf]
      %v392 = vld [vmem:[%s1 + $0xe0] sm:$0xf]
      %v393 = vld [vmem:[%s1 + $0xe4] sm:$0xf]
      %v394 = vld [vmem:[%s1 + $0xe8] sm:$0xf]
      %v395 = vld [vmem:[%s1 + $0xec] sm:$0xf]
      %v396 = vld [vmem:[%s1 + $0xf0] sm:$0xf]
      %v397 = vld [vmem:[%s1 + $0xf4] sm:$0xf]
      %v398 = vld [vmem:[%s1 + $0xf8] sm:$0xf]
      %v399 = vld [vmem:[%s1 + $0xfc] sm:$0xf]
      %v400 = vld [vmem:[%s1 + $0x100] sm:$0xf]
      %v401 = vld [vmem:[%s1 + $0x104] sm:$0xf]
      %v402 = vld [vmem:[%s1 + $0x108] sm:$0xf]
      %v403 = vld [vmem:[%s1 + $0x10c] sm:$0xf]
      %v404 = vld [vmem:[%s1 + $0x110] sm:$0xf]
      %v405 = vld [vmem:[%s1 + $0x114] sm:$0xf]
      %v406 = vld [vmem:[%s1 + $0x118] sm:$0xf]
      %v407 = vld [vmem:[%s1 + $0x11c] sm:$0xf]
      %v408 = vld [vmem:[%s1 + $0x120] sm:$0xf]
      %v409 = vld [vmem:[%s1 + $0x124] sm:$0xf]
      %v410 = vld [vmem:[%s1 + $0x128] sm:$0xf]
      %v411 = vld [vmem:[%s1 + $0x12c] sm:$0xf]
      %v412 = vld [vmem:[%s1 + $0x130] sm:$0xf]
      %v413 = vld [vmem:[%s1 + $0x134] sm:$0xf]
      %v414 = vld [vmem:[%s1 + $0x138] sm:$0xf]
      %v415 = vld [vmem:[%s1 + $0x13c] sm:$0xf]
      %v416 = vld [vmem:[%s1 + $0x140] sm:$0xf]
      %v417 = vld [vmem:[%s1 + $0x144] sm:$0xf]
      %v418 = vld [vmem:[%s1 + $0x148] sm:$0xf]
      %v419 = vld [vmem:[%s1 + $0x14c] sm:$0xf]
      %v420 = vld [vmem:[%s1 + $0x150] sm:$0xf]
      %v421 = vld [vmem:[%s1 + $0x154] sm:$0xf]
      %v422 = vld [vmem:[%s1 + $0x158] sm:$0xf]
      %v423 = vld [vmem:[%s1 + $0x15c] sm:$0xf]
      %v424 = vld [vmem:[%s1 + $0x160] sm:$0xf]
      %v425 = vld [vmem:[%s1 + $0x164] sm:$0xf]
      %v426 = vld [vmem:[%s1 + $0x168] sm:$0xf]
      %v427 = vld [vmem:[%s1 + $0x16c] sm:$0xf]
      %v428 = vld [vmem:[%s1 + $0x170] sm:$0xf]
      %v429 = vld [vmem:[%s1 + $0x174] sm:$0xf]
      %v430 = vld [vmem:[%s1 + $0x178] sm:$0xf]
      %v431 = vld [vmem:[%s1 + $0x17c] sm:$0xf]
      %v432 = vld [vmem:[%s1 + $0x180] sm:$0xf]
      %v433 = vld [vmem:[%s1 + $0x184] sm:$0xf]
      %v434 = vld [vmem:[%s1 + $0x188] sm:$0xf]
      %v435 = vld [vmem:[%s1 + $0x18c] sm:$0xf]
      %v436 = vld [vmem:[%s1 + $0x190] sm:$0xf]
      %v437 = vld [vmem:[%s1 + $0x194] sm:$0xf]
      %v438 = vld [vmem:[%s1 + $0x198] sm:$0xf]
      %v439 = vld [vmem:[%s1 + $0x19c] sm:$0xf]
      %v440 = vld [vmem:[%s1 + $0x1a0] sm:$0xf]
      %v441 = vld [vmem:[%s1 + $0x1a4] sm:$0xf]
      %v442 = vld [vmem:[%s1 + $0x1a8] sm:$0xf]
      %v443 = vld [vmem:[%s1 + $0x1ac] sm:$0xf]
      %v444 = vld [vmem:[%s1 + $0x1b0] sm:$0xf]
      %v445 = vld [vmem:[%s1 + $0x1b4] sm:$0xf]
      %v446 = vld [vmem:[%s1 + $0x1b8] sm:$0xf]
      %v447 = vld [vmem:[%s1 + $0x1bc] sm:$0xf]
      %v448 = vld [vmem:[%s1 + $0x1c0] sm:$0xf]
      %v449 = vld [vmem:[%s1 + $0x1c4] sm:$0xf]
      %v450 = vld [vmem:[%s1 + $0x1c8] sm:$0xf]
      %v451 = vld [vmem:[%s1 + $0x1cc] sm:$0xf]
      %v452 = vld [vmem:[%s1 + $0x1d0] sm:$0xf]
      %v453 = vld [vmem:[%s1 + $0x1d4] sm:$0xf]
      %v454 = vld [vmem:[%s1 + $0x1d8] sm:$0xf]
      %v455 = vld [vmem:[%s1 + $0x1dc] sm:$0xf]
      %v456 = vld [vmem:[%s1 + $0x1e0] sm:$0xf]
      %v457 = vld [vmem:[%s1 + $0x1e4] sm:$0xf]
      %v458 = vld [vmem:[%s1 + $0x1e8] sm:$0xf]
      %v459 = vld [vmem:[%s1 + $0x1ec] sm:$0xf]
      %v460 = vld [vmem:[%s1 + $0x1f0] sm:$0xf]
      %v461 = vld [vmem:[%s1 + $0x1f4] sm:$0xf]
      %v462 = vld [vmem:[%s1 + $0x1f8] sm:$0xf]
      %v463 = vld [vmem:[%s1 + $0x1fc] sm:$0xf]
      %v464 = vld [vmem:[%s1 + $0x200] sm:$0xf]
      %v465 = vld [vmem:[%s1 + $0x204] sm:$0xf]
      %v466 = vld [vmem:[%s1 + $0x208] sm:$0xf]
      %v467 = vld [vmem:[%s1 + $0x20c] sm:$0xf]
      %v468 = vld [vmem:[%s1 + $0x210] sm:$0xf]
      %v469 = vld [vmem:[%s1 + $0x214] sm:$0xf]
      %v470 = vld [vmem:[%s1 + $0x218] sm:$0xf]
      %v471 = vld [vmem:[%s1 + $0x21c] sm:$0xf]
      %v472 = vld [vmem:[%s1 + $0x220] sm:$0xf]
      %v473 = vld [vmem:[%s1 + $0x224] sm:$0xf]
      %v474 = vld [vmem:[%s1 + $0x228] sm:$0xf]
      %v475 = vld [vmem:[%s1 + $0x22c] sm:$0xf]
      %v476 = vld [vmem:[%s1 + $0x230] sm:$0xf]
      %v477 = vld [vmem:[%s1 + $0x234] sm:$0xf]
      %v478 = vld [vmem:[%s1 + $0x238] sm:$0xf]
      %v479 = vld [vmem:[%s1 + $0x23c] sm:$0xf]
      %v480 = vld [vmem:[%s1 + $0x240] sm:$0xf]
      %v481 = vld [vmem:[%s1 + $0x244] sm:$0xf]
      %v482 = vld [vmem:[%s1 + $0x248] sm:$0xf]
      %v483 = vld [vmem:[%s1 + $0x24c] sm:$0xf]
      %v484 = vld [vmem:[%s1 + $0x250] sm:$0xf]
      %v485 = vld [vmem:[%s1 + $0x254] sm:$0xf]
      %v486 = vld [vmem:[%s1 + $0x258] sm:$0xf]
      %v487 = vld [vmem:[%s1 + $0x25c] sm:$0xf]
      %v488 = vld [vmem:[%s1 + $0x260] sm:$0xf]
      %v489 = vld [vmem:[%s1 + $0x264] sm:$0xf]
      %v490 = vld [vmem:[%s1 + $0x268] sm:$0xf]
      %v491 = vld [vmem:[%s1 + $0x26c] sm:$0xf]
      %v492 = vld [vmem:[%s1 + $0x270] sm:$0xf]
      %v493 = vld [vmem:[%s1 + $0x274] sm:$0xf]
      %v494 = vld [vmem:[%s1 + $0x278] sm:$0xf]
      %v495 = vld [vmem:[%s1 + $0x27c] sm:$0xf]
      %v496 = vld [vmem:[%s1 + $0x280] sm:$0xf]
      %v497 = vld [vmem:[%s1 + $0x284] sm:$0xf]
      %v498 = vld [vmem:[%s1 + $0x288] sm:$0xf]
      %v499 = vld [vmem:[%s1 + $0x28c] sm:$0xf]
      %v500 = vld [vmem:[%s1 + $0x290] sm:$0xf]
      %v501 = vld [vmem:[%s1 + $0x294] sm:$0xf]
      %v502 = vld [vmem:[%s1 + $0x298] sm:$0xf]
      %v503 = vld [vmem:[%s1 + $0x29c] sm:$0xf]
      %v504 = vld [vmem:[%s1 + $0x2a0] sm:$0xf]
      %v505 = vld [vmem:[%s1 + $0x2a4] sm:$0xf]
      %v506 = vld [vmem:[%s1 + $0x2a8] sm:$0xf]
      %v507 = vld [vmem:[%s1 + $0x2ac] sm:$0xf]
      %v508 = vld [vmem:[%s1 + $0x2b0] sm:$0xf]
      %v509 = vld [vmem:[%s1 + $0x2b4] sm:$0xf]
      %v510 = vld [vmem:[%s1 + $0x2b8] sm:$0xf]
      %v511 = vld [vmem:[%s1 + $0x2bc] sm:$0xf]
      %v512 = vld [vmem:[%s1 + $0x2c0] sm:$0xf]
      %v513 = vld [vmem:[%s1 + $0x2c4] sm:$0xf]
      %v514 = vld [vmem:[%s1 + $0x2c8] sm:$0xf]
      %v515 = vld [vmem:[%s1 + $0x2cc] sm:$0xf]
      %v516 = vld [vmem:[%s1 + $0x2d0] sm:$0xf]
      %v517 = vld [vmem:[%s1 + $0x2d4] sm:$0xf]
      %v518 = vld [vmem:[%s1 + $0x2d8] sm:$0xf]
      %v519 = vld [vmem:[%s1 + $0x2dc] sm:$0xf]
      %v520 = vld [vmem:[%s1 + $0x2e0] sm:$0xf]
      %v521 = vld [vmem:[%s1 + $0x2e4] sm:$0xf]
      %v522 = vld [vmem:[%s1 + $0x2e8] sm:$0xf]
      %v523 = vld [vmem:[%s1 + $0x2ec] sm:$0xf]
      %v524 = vld [vmem:[%s1 + $0x2f0] sm:$0xf]
      %v525 = vld [vmem:[%s1 + $0x2f4] sm:$0xf]
      %v526 = vld [vmem:[%s1 + $0x2f8] sm:$0xf]
      %v527 = vld [vmem:[%s1 + $0x2fc] sm:$0xf]
      %v528 = vld [vmem:[%s1 + $0x300] sm:$0xf]
      %v529 = vld [vmem:[%s1 + $0x304] sm:$0xf]
      %v530 = vld [vmem:[%s1 + $0x308] sm:$0xf]
      %v531 = vld [vmem:[%s1 + $0x30c] sm:$0xf]
      %v532 = vld [vmem:[%s1 + $0x310] sm:$0xf]
      %v533 = vld [vmem:[%s1 + $0x314] sm:$0xf]
      %v534 = vld [vmem:[%s1 + $0x318] sm:$0xf]
      %v535 = vld [vmem:[%s1 + $0x31c] sm:$0xf]
      %v536 = vld [vmem:[%s1 + $0x320] sm:$0xf]
      %v537 = vld [vmem:[%s1 + $0x324] sm:$0xf]
      %v538 = vld [vmem:[%s1 + $0x328] sm:$0xf]
      %v539 = vld [vmem:[%s1 + $0x32c] sm:$0xf]
      %v540 = vld [vmem:[%s1 + $0x330] sm:$0xf]
      %v541 = vld [vmem:[%s1 + $0x334] sm:$0xf]
      %v542 = vld [vmem:[%s1 + $0x338] sm:$0xf]
      %v543 = vld [vmem:[%s1 + $0x33c] sm:$0xf]
      %v544 = vld [vmem:[%s1 + $0x340] sm:$0xf]
      %v545 = vld [vmem:[%s1 + $0x344] sm:$0xf]
      %v546 = vld [vmem:[%s1 + $0x348] sm:$0xf]
      %v547 = vld [vmem:[%s1 + $0x34c] sm:$0xf]
      %v548 = vld [vmem:[%s1 + $0x350] sm:$0xf]
      %v549 = vld [vmem:[%s1 + $0x354] sm:$0xf]
      %v550 = vld [vmem:[%s1 + $0x358] sm:$0xf]
      %v551 = vld [vmem:[%s1 + $0x35c] sm:$0xf]
      %v552 = vld [vmem:[%s1 + $0x360] sm:$0xf]
      %v553 = vld [vmem:[%s1 + $0x364] sm:$0xf]
      %v554 = vld [vmem:[%s1 + $0x368] sm:$0xf]
      %v555 = vld [vmem:[%s1 + $0x36c] sm:$0xf]
      %v556 = vld [vmem:[%s1 + $0x370] sm:$0xf]
      %v557 = vld [vmem:[%s1 + $0x374] sm:$0xf]
      %v558 = vld [vmem:[%s1 + $0x378] sm:$0xf]
      %v559 = vld [vmem:[%s1 + $0x37c] sm:$0xf]
      %v560 = vld [vmem:[%s1 + $0x380] sm:$0xf]
      %v561 = vld [vmem:[%s1 + $0x384] sm:$0xf]
      %v562 = vld [vmem:[%s1 + $0x388] sm:$0xf]
      %v563 = vld [vmem:[%s1 + $0x38c] sm:$0xf]
      %v564 = vld [vmem:[%s1 + $0x390] sm:$0xf]
      %v565 = vld [vmem:[%s1 + $0x394] sm:$0xf]
      %v566 = vld [vmem:[%s1 + $0x398] sm:$0xf]
      %v567 = vld [vmem:[%s1 + $0x39c] sm:$0xf]
      %v568 = vld [vmem:[%s1 + $0x3a0] sm:$0xf]
      %v569 = vld [vmem:[%s1 + $0x3a4] sm:$0xf]
      %v570 = vld [vmem:[%s1 + $0x3a8] sm:$0xf]
      %v571 = vld [vmem:[%s1 + $0x3ac] sm:$0xf]
      %v572 = vld [vmem:[%s1 + $0x3b0] sm:$0xf]
      %v573 = vld [vmem:[%s1 + $0x3b4] sm:$0xf]
      %v574 = vld [vmem:[%s1 + $0x3b8] sm:$0xf]
      %v575 = vld [vmem:[%s1 + $0x3bc] sm:$0xf]
      %v576 = vld [vmem:[%s1 + $0x3c0] sm:$0xf]
      %v577 = vld [vmem:[%s1 + $0x3c4] sm:$0xf]
      %v578 = vld [vmem:[%s1 + $0x3c8] sm:$0xf]
      %v579 = vld [vmem:[%s1 + $0x3cc] sm:$0xf]
      %v580 = vld [vmem:[%s1 + $0x3d0] sm:$0xf]
      %v581 = vld [vmem:[%s1 + $0x3d4] sm:$0xf]
      %v582 = vld [vmem:[%s1 + $0x3d8] sm:$0xf]
      %v583 = vld [vmem:[%s1 + $0x3dc] sm:$0xf]
      %v584 = vld [vmem:[%s1 + $0x3e0] sm:$0xf]
      %v585 = vld [vmem:[%s1 + $0x3e4] sm:$0xf]
      %v586 = vld [vmem:[%s1 + $0x3e8] sm:$0xf]
      %v587 = vld [vmem:[%s1 + $0x3ec] sm:$0xf]
      %v588 = vld [vmem:[%s1 + $0x3f0] sm:$0xf]
      %v589 = vld [vmem:[%s1 + $0x3f4] sm:$0xf]
      %v590 = vld [vmem:[%s1 + $0x3f8] sm:$0xf]
      %v591 = vld [vmem:[%s1 + $0x3fc] sm:$0xf]
      %v592 = vld [vmem:[%s1 + $0x400] sm:$0xf]
      %v593 = vld [vmem:[%s1 + $0x404] sm:$0xf]
      %v594 = vld [vmem:[%s1 + $0x408] sm:$0xf]
      %v595 = vld [vmem:[%s1 + $0x40c] sm:$0xf]
      %v596 = vld [vmem:[%s1 + $0x410] sm:$0xf]
      %v597 = vld [vmem:[%s1 + $0x414] sm:$0xf]
      %v598 = vld [vmem:[%s1 + $0x418] sm:$0xf]
      %v599 = vld [vmem:[%s1 + $0x41c] sm:$0xf]
      %v600 = vld [vmem:[%s1 + $0x420] sm:$0xf]
      %v601 = vld [vmem:[%s1 + $0x424] sm:$0xf]
      %v602 = vld [vmem:[%s1 + $0x428] sm:$0xf]
      %v603 = vld [vmem:[%s1 + $0x42c] sm:$0xf]
      %v604 = vld [vmem:[%s1 + $0x430] sm:$0xf]
      %v605 = vld [vmem:[%s1 + $0x434] sm:$0xf]
      %v606 = vld [vmem:[%s1 + $0x438] sm:$0xf]
      %v607 = vld [vmem:[%s1 + $0x43c] sm:$0xf]
      %v608 = vld [vmem:[%s1 + $0x440] sm:$0xf]
      %v609 = vld [vmem:[%s1 + $0x444] sm:$0xf]
      %v610 = vld [vmem:[%s1 + $0x448] sm:$0xf]
      %v611 = vld [vmem:[%s1 + $0x44c] sm:$0xf]
      %v612 = vld [vmem:[%s1 + $0x450] sm:$0xf]
      %v613 = vld [vmem:[%s1 + $0x454] sm:$0xf]
      %v614 = vld [vmem:[%s1 + $0x458] sm:$0xf]
      %v615 = vld [vmem:[%s1 + $0x45c] sm:$0xf]
      %v616 = vld [vmem:[%s1 + $0x460] sm:$0xf]
      %v617 = vld [vmem:[%s1 + $0x464] sm:$0xf]
      %v618 = vld [vmem:[%s1 + $0x468] sm:$0xf]
      %v619 = vld [vmem:[%s1 + $0x46c] sm:$0xf]
      %v620 = vld [vmem:[%s1 + $0x470] sm:$0xf]
      %v621 = vld [vmem:[%s1 + $0x474] sm:$0xf]
      %v622 = vld [vmem:[%s1 + $0x478] sm:$0xf]
      %v623 = vld [vmem:[%s1 + $0x47c] sm:$0xf]
      %v624 = vld [vmem:[%s1 + $0x480] sm:$0xf]
      %v625 = vld [vmem:[%s1 + $0x484] sm:$0xf]
      %v626 = vld [vmem:[%s1 + $0x488] sm:$0xf]
      %v627 = vld [vmem:[%s1 + $0x48c] sm:$0xf]
      %v628 = vld [vmem:[%s1 + $0x490] sm:$0xf]
      %v629 = vld [vmem:[%s1 + $0x494] sm:$0xf]
      %v630 = vld [vmem:[%s1 + $0x498] sm:$0xf]
      %v631 = vld [vmem:[%s1 + $0x49c] sm:$0xf]
      %v632 = vld [vmem:[%s1 + $0x4a0] sm:$0xf]
      %v633 = vld [vmem:[%s1 + $0x4a4] sm:$0xf]
      %v634 = vld [vmem:[%s1 + $0x4a8] sm:$0xf]
      %v635 = vld [vmem:[%s1 + $0x4ac] sm:$0xf]
      %v636 = vld [vmem:[%s1 + $0x4b0] sm:$0xf]
      %v637 = vld [vmem:[%s1 + $0x4b4] sm:$0xf]
      %v638 = vld [vmem:[%s1 + $0x4b8] sm:$0xf]
      %v639 = vld [vmem:[%s1 + $0x4bc] sm:$0xf]
      %v640 = vld [vmem:[%s1 + $0x4c0] sm:$0xf]
      %v641 = vld [vmem:[%s1 + $0x4c4] sm:$0xf]
      %v642 = vld [vmem:[%s1 + $0x4c8] sm:$0xf]
      %v643 = vld [vmem:[%s1 + $0x4cc] sm:$0xf]
      %v644 = vld [vmem:[%s1 + $0x4d0] sm:$0xf]
      %v645 = vld [vmem:[%s1 + $0x4d4] sm:$0xf]
      %v646 = vld [vmem:[%s1 + $0x4d8] sm:$0xf]
      %v647 = vld [vmem:[%s1 + $0x4dc] sm:$0xf]
      %v648 = vld [vmem:[%s1 + $0x4e0] sm:$0xf]
      %v649 = vld [vmem:[%s1 + $0x4e4] sm:$0xf]
      %v650 = vld [vmem:[%s1 + $0x4e8] sm:$0xf]
      %v651 = vld [vmem:[%s1 + $0x4ec] sm:$0xf]
      %v652 = vld [vmem:[%s1 + $0x4f0] sm:$0xf]
      %v653 = vld [vmem:[%s1 + $0x4f4] sm:$0xf]
      %v654 = vld [vmem:[%s1 + $0x4f8] sm:$0xf]
      %v655 = vld [vmem:[%s1 + $0x4fc] sm:$0xf]
      %v656 = vld [vmem:[%s1 + $0x500] sm:$0xf]
      %v657 = vld [vmem:[%s1 + $0x504] sm:$0xf]
      %v658 = vld [vmem:[%s1 + $0x508] sm:$0xf]
      %v659 = vld [vmem:[%s1 + $0x50c] sm:$0xf]
      %v660 = vld [vmem:[%s1 + $0x510] sm:$0xf]
      %v661 = vld [vmem:[%s1 + $0x514] sm:$0xf]
      %v662 = vld [vmem:[%s1 + $0x518] sm:$0xf]
      %v663 = vld [vmem:[%s1 + $0x51c] sm:$0xf]
      %v664 = vld [vmem:[%s1 + $0x520] sm:$0xf]
      %v665 = vld [vmem:[%s1 + $0x524] sm:$0xf]
      %v666 = vld [vmem:[%s1 + $0x528] sm:$0xf]
      %v667 = vld [vmem:[%s1 + $0x52c] sm:$0xf]
      %v668 = vld [vmem:[%s1 + $0x530] sm:$0xf]
      %v669 = vld [vmem:[%s1 + $0x534] sm:$0xf]
      %v670 = vld [vmem:[%s1 + $0x538] sm:$0xf]
      %v671 = vld [vmem:[%s1 + $0x53c] sm:$0xf]
      %v672 = vld [vmem:[%s1 + $0x540] sm:$0xf]
      %v673 = vld [vmem:[%s1 + $0x544] sm:$0xf]
      %v674 = vld [vmem:[%s1 + $0x548] sm:$0xf]
      %v675 = vld [vmem:[%s1 + $0x54c] sm:$0xf]
      %v676 = vld [vmem:[%s1 + $0x550] sm:$0xf]
      %v677 = vld [vmem:[%s1 + $0x554] sm:$0xf]
      %v678 = vld [vmem:[%s1 + $0x558] sm:$0xf]
      %v679 = vld [vmem:[%s1 + $0x55c] sm:$0xf]
      %v680 = vld [vmem:[%s1 + $0x560] sm:$0xf]
      %v681 = vld [vmem:[%s1 + $0x564] sm:$0xf]
      %v682 = vld [vmem:[%s1 + $0x568] sm:$0xf]
      %v683 = vld [vmem:[%s1 + $0x56c] sm:$0xf]
      %v684 = vld [vmem:[%s1 + $0x570] sm:$0xf]
      %v685 = vld [vmem:[%s1 + $0x574] sm:$0xf]
      %v686 = vld [vmem:[%s1 + $0x578] sm:$0xf]
      %v687 = vld [vmem:[%s1 + $0x57c] sm:$0xf]
      %v688 = vld [vmem:[%s1 + $0x580] sm:$0xf]
      %v689 = vld [vmem:[%s1 + $0x584] sm:$0xf]
      %v690 = vld [vmem:[%s1 + $0x588] sm:$0xf]
      %v691 = vld [vmem:[%s1 + $0x58c] sm:$0xf]
      %v692 = vld [vmem:[%s1 + $0x590] sm:$0xf]
      %v693 = vld [vmem:[%s1 + $0x594] sm:$0xf]
      %v694 = vld [vmem:[%s1 + $0x598] sm:$0xf]
      %v695 = vld [vmem:[%s1 + $0x59c] sm:$0xf]
      %v696 = vld [vmem:[%s1 + $0x5a0] sm:$0xf]
      %v697 = vld [vmem:[%s1 + $0x5a4] sm:$0xf]
      %v698 = vld [vmem:[%s1 + $0x5a8] sm:$0xf]
      %v699 = vld [vmem:[%s1 + $0x5ac] sm:$0xf]
      %v700 = vld [vmem:[%s1 + $0x5b0] sm:$0xf]
      %v701 = vld [vmem:[%s1 + $0x5b4] sm:$0xf]
      %v702 = vld [vmem:[%s1 + $0x5b8] sm:$0xf]
      %v703 = vld [vmem:[%s1 + $0x5bc] sm:$0xf]
      %v704 = vld [vmem:[%s1 + $0x5c0] sm:$0xf]
      %v705 = vld [vmem:[%s1 + $0x5c4] sm:$0xf]
      %v706 = vld [vmem:[%s1 + $0x5c8] sm:$0xf]
      %v707 = vld [vmem:[%s1 + $0x5cc] sm:$0xf]
      %v708 = vld [vmem:[%s1 + $0x5d0] sm:$0xf]
      %v709 = vld [vmem:[%s1 + $0x5d4] sm:$0xf]
      %v710 = vld [vmem:[%s1 + $0x5d8] sm:$0xf]
      %v711 = vld [vmem:[%s1 + $0x5dc] sm:$0xf]
      %v712 = vld [vmem:[%s1 + $0x5e0] sm:$0xf]
      %v713 = vld [vmem:[%s1 + $0x5e4] sm:$0xf]
      %v714 = vld [vmem:[%s1 + $0x5e8] sm:$0xf]
      %v715 = vld [vmem:[%s1 + $0x5ec] sm:$0xf]
      %v716 = vld [vmem:[%s1 + $0x5f0] sm:$0xf]
      %v717 = vld [vmem:[%s1 + $0x5f4] sm:$0xf]
      %v718 = vld [vmem:[%s1 + $0x5f8] sm:$0xf]
      %v719 = vld [vmem:[%s1 + $0x5fc] sm:$0xf]
      %v720 = vld [vmem:[%s1 + $0x600] sm:$0xf]
      %v721 = vld [vmem:[%s1 + $0x604] sm:$0xf]
      %v722 = vld [vmem:[%s1 + $0x608] sm:$0xf]
      %v723 = vld [vmem:[%s1 + $0x60c] sm:$0xf]
      %v724 = vld [vmem:[%s1 + $0x610] sm:$0xf]
      %v725 = vld [vmem:[%s1 + $0x614] sm:$0xf]
      %v726 = vld [vmem:[%s1 + $0x618] sm:$0xf]
      %v727 = vld [vmem:[%s1 + $0x61c] sm:$0xf]
      %v728 = vld [vmem:[%s1 + $0x620] sm:$0xf]
      %v729 = vld [vmem:[%s1 + $0x624] sm:$0xf]
      %v730 = vld [vmem:[%s1 + $0x628] sm:$0xf]
      %v731 = vld [vmem:[%s1 + $0x62c] sm:$0xf]
      %v732 = vld [vmem:[%s1 + $0x630] sm:$0xf]
      %v733 = vld [vmem:[%s1 + $0x634] sm:$0xf]
      %v734 = vld [vmem:[%s1 + $0x638] sm:$0xf]
      %v735 = vld [vmem:[%s1 + $0x63c] sm:$0xf]
      %v736 = vld [vmem:[%s1 + $0x640] sm:$0xf]
      %v737 = vld [vmem:[%s1 + $0x644] sm:$0xf]
      %v738 = vld [vmem:[%s1 + $0x648] sm:$0xf]
      %v739 = vld [vmem:[%s1 + $0x64c] sm:$0xf]
      %v740 = vld [vmem:[%s1 + $0x650] sm:$0xf]
      %v741 = vld [vmem:[%s1 + $0x654] sm:$0xf]
      %v742 = vld [vmem:[%s1 + $0x658] sm:$0xf]
      %v743 = vld [vmem:[%s1 + $0x65c] sm:$0xf]
      %v744 = vld [vmem:[%s1 + $0x660] sm:$0xf]
      %v745 = vld [vmem:[%s1 + $0x664] sm:$0xf]
      %v746 = vld [vmem:[%s1 + $0x668] sm:$0xf]
      %v747 = vld [vmem:[%s1 + $0x66c] sm:$0xf]
      %v748 = vld [vmem:[%s1 + $0x670] sm:$0xf]
      %v749 = vld [vmem:[%s1 + $0x674] sm:$0xf]
      %v750 = vld [vmem:[%s1 + $0x678] sm:$0xf]
      %v751 = vld [vmem:[%s1 + $0x67c] sm:$0xf]
      %v752 = vld [vmem:[%s1 + $0x680] sm:$0xf]
      %v753 = vld [vmem:[%s1 + $0x684] sm:$0xf]
      %v754 = vld [vmem:[%s1 + $0x688] sm:$0xf]
      %v755 = vld [vmem:[%s1 + $0x68c] sm:$0xf]
      %v756 = vld [vmem:[%s1 + $0x690] sm:$0xf]
      %v757 = vld [vmem:[%s1 + $0x694] sm:$0xf]
      %v758 = vld [vmem:[%s1 + $0x698] sm:$0xf]
      %v759 = vld [vmem:[%s1 + $0x69c] sm:$0xf]
      %v760 = vld [vmem:[%s1 + $0x6a0] sm:$0xf]
      %v761 = vld [vmem:[%s1 + $0x6a4] sm:$0xf]
      %v762 = vld [vmem:[%s1 + $0x6a8] sm:$0xf]
      %v763 = vld [vmem:[%s1 + $0x6ac] sm:$0xf]
      %v764 = vld [vmem:[%s1 + $0x6b0] sm:$0xf]
      %v765 = vld [vmem:[%s1 + $0x6b4] sm:$0xf]
      %v766 = vld [vmem:[%s1 + $0x6b8] sm:$0xf]
      %v767 = vld [vmem:[%s1 + $0x6bc] sm:$0xf]
      %v768 = vld [vmem:[%s1 + $0x6c0] sm:$0xf]
      %v769 = vld [vmem:[%s1 + $0x6c4] sm:$0xf]
      %v770 = vld [vmem:[%s1 + $0x6c8] sm:$0xf]
      %v771 = vld [vmem:[%s1 + $0x6cc] sm:$0xf]
      %v772 = vld [vmem:[%s1 + $0x6d0] sm:$0xf]
      %v773 = vld [vmem:[%s1 + $0x6d4] sm:$0xf]
      %v774 = vld [vmem:[%s1 + $0x6d8] sm:$0xf]
      %v775 = vld [vmem:[%s1 + $0x6dc] sm:$0xf]
      %v776 = vld [vmem:[%s1 + $0x6e0] sm:$0xf]
      %v777 = vld [vmem:[%s1 + $0x6e4] sm:$0xf]
      %v778 = vld [vmem:[%s1 + $0x6e8] sm:$0xf]
      %v779 = vld [vmem:[%s1 + $0x6ec] sm:$0xf]
      %v780 = vld [vmem:[%s1 + $0x6f0] sm:$0xf]
      %v781 = vld [vmem:[%s1 + $0x6f4] sm:$0xf]
      %v782 = vld [vmem:[%s1 + $0x6f8] sm:$0xf]
      %v783 = vld [vmem:[%s1 + $0x6fc] sm:$0xf]
      %v784 = vld [vmem:[%s1 + $0x700] sm:$0xf]
      %v785 = vld [vmem:[%s1 + $0x704] sm:$0xf]
      %v786 = vld [vmem:[%s1 + $0x708] sm:$0xf]
      %v787 = vld [vmem:[%s1 + $0x70c] sm:$0xf]
      %v788 = vld [vmem:[%s1 + $0x710] sm:$0xf]
      %v789 = vld [vmem:[%s1 + $0x714] sm:$0xf]
      %v790 = vld [vmem:[%s1 + $0x718] sm:$0xf]
      %v791 = vld [vmem:[%s1 + $0x71c] sm:$0xf]
      %v792 = vld [vmem:[%s1 + $0x720] sm:$0xf]
      %v793 = vld [vmem:[%s1 + $0x724] sm:$0xf]
      %v794 = vld [vmem:[%s1 + $0x728] sm:$0xf]
      %v795 = vld [vmem:[%s1 + $0x72c] sm:$0xf]
      %v796 = vld [vmem:[%s1 + $0x730] sm:$0xf]
      %v797 = vld [vmem:[%s1 + $0x734] sm:$0xf]
      %v798 = vld [vmem:[%s1 + $0x738] sm:$0xf]
      %v799 = vld [vmem:[%s1 + $0x73c] sm:$0xf]
      %v800 = vld [vmem:[%s1 + $0x740] sm:$0xf]
      %v801 = vld [vmem:[%s1 + $0x744] sm:$0xf]
      %v802 = vld [vmem:[%s1 + $0x748] sm:$0xf]
      %v803 = vld [vmem:[%s1 + $0x74c] sm:$0xf]
      %v804 = vld [vmem:[%s1 + $0x750] sm:$0xf]
      %v805 = vld [vmem:[%s1 + $0x754] sm:$0xf]
      %v806 = vld [vmem:[%s1 + $0x758] sm:$0xf]
      %v807 = vld [vmem:[%s1 + $0x75c] sm:$0xf]
      %v808 = vld [vmem:[%s1 + $0x760] sm:$0xf]
      %v809 = vld [vmem:[%s1 + $0x764] sm:$0xf]
      %v810 = vld [vmem:[%s1 + $0x768] sm:$0xf]
      %v811 = vld [vmem:[%s1 + $0x76c] sm:$0xf]
      %v812 = vld [vmem:[%s1 + $0x770] sm:$0xf]
      %v813 = vld [vmem:[%s1 + $0x774] sm:$0xf]
      %v814 = vld [vmem:[%s1 + $0x778] sm:$0xf]
      %v815 = vld [vmem:[%s1 + $0x77c] sm:$0xf]
      %v816 = vld [vmem:[%s1 + $0x780] sm:$0xf]
      %v817 = vld [vmem:[%s1 + $0x784] sm:$0xf]
      %v818 = vld [vmem:[%s1 + $0x788] sm:$0xf]
      %v819 = vld [vmem:[%s1 + $0x78c] sm:$0xf]
      %v820 = vld [vmem:[%s1 + $0x790] sm:$0xf]
      %v821 = vld [vmem:[%s1 + $0x794] sm:$0xf]
      %v822 = vld [vmem:[%s1 + $0x798] sm:$0xf]
      %v823 = vld [vmem:[%s1 + $0x79c] sm:$0xf]
      %v824 = vld [vmem:[%s1 + $0x7a0] sm:$0xf]
      %v825 = vld [vmem:[%s1 + $0x7a4] sm:$0xf]
      %v826 = vld [vmem:[%s1 + $0x7a8] sm:$0xf]
      %v827 = vld [vmem:[%s1 + $0x7ac] sm:$0xf]
      %v828 = vld [vmem:[%s1 + $0x7b0] sm:$0xf]
      %v829 = vld [vmem:[%s1 + $0x7b4] sm:$0xf]
      %v830 = vld [vmem:[%s1 + $0x7b8] sm:$0xf]
      %v831 = vld [vmem:[%s1 + $0x7bc] sm:$0xf]
      %v832 = vld [vmem:[%s1 + $0x7c0] sm:$0xf]
      %v833 = vld [vmem:[%s1 + $0x7c4] sm:$0xf]
      %v834 = vld [vmem:[%s1 + $0x7c8] sm:$0xf]
      %v835 = vld [vmem:[%s1 + $0x7cc] sm:$0xf]
      %v836 = vld [vmem:[%s1 + $0x7d0] sm:$0xf]
      %v837 = vld [vmem:[%s1 + $0x7d4] sm:$0xf]
      %v838 = vld [vmem:[%s1 + $0x7d8] sm:$0xf]
      %v839 = vld [vmem:[%s1 + $0x7dc] sm:$0xf]
      %v840 = vld [vmem:[%s1 + $0x7e0] sm:$0xf]
      %v841 = vld [vmem:[%s1 + $0x7e4] sm:$0xf]
      %v842 = vld [vmem:[%s1 + $0x7e8] sm:$0xf]
      %v843 = vld [vmem:[%s1 + $0x7ec] sm:$0xf]
      %v844 = vld [vmem:[%s1 + $0x7f0] sm:$0xf]
      %v845 = vld [vmem:[%s1 + $0x7f4] sm:$0xf]
      %v846 = vld [vmem:[%s1 + $0x7f8] sm:$0xf]
      %v847 = vld [vmem:[%s1 + $0x7fc] sm:$0xf]
      %v848 = vld [vmem:[%s1 + $0x800] sm:$0xf]
      %v849 = vld [vmem:[%s1 + $0x804] sm:$0xf]
      %v850 = vld [vmem:[%s1 + $0x808] sm:$0xf]
      %v851 = vld [vmem:[%s1 + $0x80c] sm:$0xf]
      %v852 = vld [vmem:[%s1 + $0x810] sm:$0xf]
      %v853 = vld [vmem:[%s1 + $0x814] sm:$0xf]
      %v854 = vld [vmem:[%s1 + $0x818] sm:$0xf]
      %v855 = vld [vmem:[%s1 + $0x81c] sm:$0xf]
      %v856 = vld [vmem:[%s1 + $0x820] sm:$0xf]
      %v857 = vld [vmem:[%s1 + $0x824] sm:$0xf]
      %v858 = vld [vmem:[%s1 + $0x828] sm:$0xf]
      %v859 = vld [vmem:[%s1 + $0x82c] sm:$0xf]
      %v860 = vld [vmem:[%s1 + $0x830] sm:$0xf]
      %v861 = vld [vmem:[%s1 + $0x834] sm:$0xf]
      %v862 = vld [vmem:[%s1 + $0x838] sm:$0xf]
      %v863 = vld [vmem:[%s1 + $0x83c] sm:$0xf]
      %v864 = vld [vmem:[%s1 + $0x840] sm:$0xf]
      %v865 = vld [vmem:[%s1 + $0x844] sm:$0xf]
      %v866 = vld [vmem:[%s1 + $0x848] sm:$0xf]
      %v867 = vld [vmem:[%s1 + $0x84c] sm:$0xf]
      %v868 = vld [vmem:[%s1 + $0x850] sm:$0xf]
      %v869 = vld [vmem:[%s1 + $0x854] sm:$0xf]
      %v870 = vld [vmem:[%s1 + $0x858] sm:$0xf]
      %v871 = vld [vmem:[%s1 + $0x85c] sm:$0xf]
      %v872 = vld [vmem:[%s1 + $0x860] sm:$0xf]
      %v873 = vld [vmem:[%s1 + $0x864] sm:$0xf]
      %v874 = vld [vmem:[%s1 + $0x868] sm:$0xf]
      %v875 = vld [vmem:[%s1 + $0x86c] sm:$0xf]
      %v876 = vld [vmem:[%s1 + $0x870] sm:$0xf]
      %v877 = vld [vmem:[%s1 + $0x874] sm:$0xf]
      %v878 = vld [vmem:[%s1 + $0x878] sm:$0xf]
      %v879 = vld [vmem:[%s1 + $0x87c] sm:$0xf]
      %v880 = vld [vmem:[%s1 + $0x880] sm:$0xf]
      %v881 = vld [vmem:[%s1 + $0x884] sm:$0xf]
      %v882 = vld [vmem:[%s1 + $0x888] sm:$0xf]
      %v883 = vld [vmem:[%s1 + $0x88c] sm:$0xf]
      %v884 = vld [vmem:[%s1 + $0x890] sm:$0xf]
      %v885 = vld [vmem:[%s1 + $0x894] sm:$0xf]
      %v886 = vld [vmem:[%s1 + $0x898] sm:$0xf]
      %v887 = vld [vmem:[%s1 + $0x89c] sm:$0xf]
      %v888 = vld [vmem:[%s1 + $0x8a0] sm:$0xf]
      %v889 = vld [vmem:[%s1 + $0x8a4] sm:$0xf]
      %v890 = vld [vmem:[%s1 + $0x8a8] sm:$0xf]
      %v891 = vld [vmem:[%s1 + $0x8ac] sm:$0xf]
      %v892 = vld [vmem:[%s1 + $0x8b0] sm:$0xf]
      %v893 = vld [vmem:[%s1 + $0x8b4] sm:$0xf]
      %v894 = vld [vmem:[%s1 + $0x8b8] sm:$0xf]
      %v895 = vld [vmem:[%s1 + $0x8bc] sm:$0xf]
      %v896 = vld [vmem:[%s1 + $0x8c0] sm:$0xf]
      %v897 = vld [vmem:[%s1 + $0x8c4] sm:$0xf]
      %v898 = vld [vmem:[%s1 + $0x8c8] sm:$0xf]
      %v899 = vld [vmem:[%s1 + $0x8cc] sm:$0xf]
      %v900 = vld [vmem:[%s1 + $0x8d0] sm:$0xf]
      %v901 = vld [vmem:[%s1 + $0x8d4] sm:$0xf]
      %v902 = vld [vmem:[%s1 + $0x8d8] sm:$0xf]
      %v903 = vld [vmem:[%s1 + $0x8dc] sm:$0xf]
      %v904 = vld [vmem:[%s1 + $0x8e0] sm:$0xf]
      %v905 = vld [vmem:[%s1 + $0x8e4] sm:$0xf]
      %v906 = vld [vmem:[%s1 + $0x8e8] sm:$0xf]
      %v907 = vld [vmem:[%s1 + $0x8ec] sm:$0xf]
      %v908 = vld [vmem:[%s1 + $0x8f0] sm:$0xf]
      %v909 = vld [vmem:[%s1 + $0x8f4] sm:$0xf]
      %v910 = vld [vmem:[%s1 + $0x8f8] sm:$0xf]
      %v911 = vld [vmem:[%s1 + $0x8fc] sm:$0xf]
      %v912 = vld [vmem:[%s1 + $0x900] sm:$0xf]
      %v913 = vld [vmem:[%s1 + $0x904] sm:$0xf]
      %v914 = vld [vmem:[%s1 + $0x908] sm:$0xf]
      %v915 = vld [vmem:[%s1 + $0x90c] sm:$0xf]
      %v916 = vld [vmem:[%s1 + $0x910] sm:$0xf]
      %v917 = vld [vmem:[%s1 + $0x914] sm:$0xf]
      %v918 = vld [vmem:[%s1 + $0x918] sm:$0xf]
      %v919 = vld [vmem:[%s1 + $0x91c] sm:$0xf]
      %v920 = vld [vmem:[%s1 + $0x920] sm:$0xf]
      %v921 = vld [vmem:[%s1 + $0x924] sm:$0xf]
      %v922 = vld [vmem:[%s1 + $0x928] sm:$0xf]
      %v923 = vld [vmem:[%s1 + $0x92c] sm:$0xf]
      %v924 = vld [vmem:[%s1 + $0x930] sm:$0xf]
      %v925 = vld [vmem:[%s1 + $0x934] sm:$0xf]
      %v926 = vld [vmem:[%s1 + $0x938] sm:$0xf]
      %v927 = vld [vmem:[%s1 + $0x93c] sm:$0xf]
      %v928 = vld [vmem:[%s1 + $0x940] sm:$0xf]
      %v929 = vld [vmem:[%s1 + $0x944] sm:$0xf]
      %v930 = vld [vmem:[%s1 + $0x948] sm:$0xf]
      %v931 = vld [vmem:[%s1 + $0x94c] sm:$0xf]
      %v932 = vld [vmem:[%s1 + $0x950] sm:$0xf]
      %v933 = vld [vmem:[%s1 + $0x954] sm:$0xf]
      %v934 = vld [vmem:[%s1 + $0x958] sm:$0xf]
      %v935 = vld [vmem:[%s1 + $0x95c] sm:$0xf]
      %v936 = vld [vmem:[%s1 + $0x960] sm:$0xf]
      %v937 = vld [vmem:[%s1 + $0x964] sm:$0xf]
      %v938 = vld [vmem:[%s1 + $0x968] sm:$0xf]
      %v939 = vld [vmem:[%s1 + $0x96c] sm:$0xf]
      %v940 = vld [vmem:[%s1 + $0x970] sm:$0xf]
      %v941 = vld [vmem:[%s1 + $0x974] sm:$0xf]
      %v942 = vld [vmem:[%s1 + $0x978] sm:$0xf]
      %v943 = vld [vmem:[%s1 + $0x97c] sm:$0xf]
      %v944 = vld [vmem:[%s1 + $0x980] sm:$0xf]
      %v945 = vld [vmem:[%s1 + $0x984] sm:$0xf]
      %v946 = vld [vmem:[%s1 + $0x988] sm:$0xf]
      %v947 = vld [vmem:[%s1 + $0x98c] sm:$0xf]
      %v948 = vld [vmem:[%s1 + $0x990] sm:$0xf]
      %v949 = vld [vmem:[%s1 + $0x994] sm:$0xf]
      %v950 = vld [vmem:[%s1 + $0x998] sm:$0xf]
      %v951 = vld [vmem:[%s1 + $0x99c] sm:$0xf]
      %v952 = vld [vmem:[%s1 + $0x9a0] sm:$0xf]
      %v953 = vld [vmem:[%s1 + $0x9a4] sm:$0xf]
      %v954 = vld [vmem:[%s1 + $0x9a8] sm:$0xf]
      %v955 = vld [vmem:[%s1 + $0x9ac] sm:$0xf]
      %v956 = vld [vmem:[%s1 + $0x9b0] sm:$0xf]
      %v957 = vld [vmem:[%s1 + $0x9b4] sm:$0xf]
      %v958 = vld [vmem:[%s1 + $0x9b8] sm:$0xf]
      %v959 = vld [vmem:[%s1 + $0x9bc] sm:$0xf]
      %v960 = vld [vmem:[%s1 + $0x9c0] sm:$0xf]
      %v961 = vld [vmem:[%s1 + $0x9c4] sm:$0xf]
      %v962 = vld [vmem:[%s1 + $0x9c8] sm:$0xf]
      %v963 = vld [vmem:[%s1 + $0x9cc] sm:$0xf]
      %v964 = vld [vmem:[%s1 + $0x9d0] sm:$0xf]
      %v965 = vld [vmem:[%s1 + $0x9d4] sm:$0xf]
      %v966 = vld [vmem:[%s1 + $0x9d8] sm:$0xf]
      %v967 = vld [vmem:[%s1 + $0x9dc] sm:$0xf]
      %v968 = vld [vmem:[%s1 + $0x9e0] sm:$0xf]
      %v969 = vld [vmem:[%s1 + $0x9e4] sm:$0xf]
      %v970 = vld [vmem:[%s1 + $0x9e8] sm:$0xf]
      %v971 = vld [vmem:[%s1 + $0x9ec] sm:$0xf]
      %v972 = vld [vmem:[%s1 + $0x9f0] sm:$0xf]
      %v973 = vld [vmem:[%s1 + $0x9f4] sm:$0xf]
      %v974 = vld [vmem:[%s1 + $0x9f8] sm:$0xf]
      %v975 = vld [vmem:[%s1 + $0x9fc] sm:$0xf]
      %v976 = vld [vmem:[%s1 + $0xa00] sm:$0xf]
      %v977 = vld [vmem:[%s1 + $0xa04] sm:$0xf]
      %v978 = vld [vmem:[%s1 + $0xa08] sm:$0xf]
      %v979 = vld [vmem:[%s1 + $0xa0c] sm:$0xf]
      %v980 = vld [vmem:[%s1 + $0xa10] sm:$0xf]
      %v981 = vld [vmem:[%s1 + $0xa14] sm:$0xf]
      %v982 = vld [vmem:[%s1 + $0xa18] sm:$0xf]
      %v983 = vld [vmem:[%s1 + $0xa1c] sm:$0xf]
      %v984 = vld [vmem:[%s1 + $0xa20] sm:$0xf]
      %v985 = vld [vmem:[%s1 + $0xa24] sm:$0xf]
      %v986 = vld [vmem:[%s1 + $0xa28] sm:$0xf]
      %v987 = vld [vmem:[%s1 + $0xa2c] sm:$0xf]
      %v988 = vld [vmem:[%s1 + $0xa30] sm:$0xf]
      %v989 = vld [vmem:[%s1 + $0xa34] sm:$0xf]
      %v990 = vld [vmem:[%s1 + $0xa38] sm:$0xf]
      %v991 = vld [vmem:[%s1 + $0xa3c] sm:$0xf]
      %v992 = vld [vmem:[%s1 + $0xa40] sm:$0xf]
      %v993 = vld [vmem:[%s1 + $0xa44] sm:$0xf]
      %v994 = vld [vmem:[%s1 + $0xa48] sm:$0xf]
      %v995 = vld [vmem:[%s1 + $0xa4c] sm:$0xf]
      %v996 = vld [vmem:[%s1 + $0xa50] sm:$0xf]
      %v997 = vld [vmem:[%s1 + $0xa54] sm:$0xf]
      %v998 = vld [vmem:[%s1 + $0xa58] sm:$0xf]
      %v999 = vld [vmem:[%s1 + $0xa5c] sm:$0xf]
      %v1000 = vld [vmem:[%s1 + $0xa60] sm:$0xf]
      %v1001 = vld [vmem:[%s1 + $0xa64] sm:$0xf]
      %v1002 = vld [vmem:[%s1 + $0xa68] sm:$0xf]
      %v1003 = vld [vmem:[%s1 + $0xa6c] sm:$0xf]
      %v1004 = vld [vmem:[%s1 + $0xa70] sm:$0xf]
      %v1005 = vld [vmem:[%s1 + $0xa74] sm:$0xf]
      %v1006 = vld [vmem:[%s1 + $0xa78] sm:$0xf]
      %v1007 = vld [vmem:[%s1 + $0xa7c] sm:$0xf]
      %v1008 = vld [vmem:[%s1 + $0xa80] sm:$0xf]
      %v1009 = vld [vmem:[%s1 + $0xa84] sm:$0xf]
      %v1010 = vld [vmem:[%s1 + $0xa88] sm:$0xf]
      %v1011 = vld [vmem:[%s1 + $0xa8c] sm:$0xf]
      %v1012 = vld [vmem:[%s1 + $0xa90] sm:$0xf]
      %v1013 = vld [vmem:[%s1 + $0xa94] sm:$0xf]
      %v1014 = vld [vmem:[%s1 + $0xa98] sm:$0xf]
      %v1015 = vld [vmem:[%s1 + $0xa9c] sm:$0xf]
      %v1016 = vld [vmem:[%s1 + $0xaa0] sm:$0xf]
      %v1017 = vld [vmem:[%s1 + $0xaa4] sm:$0xf]
      %v1018 = vld [vmem:[%s1 + $0xaa8] sm:$0xf]
      %v1019 = vld [vmem:[%s1 + $0xaac] sm:$0xf]
      %v1020 = vld [vmem:[%s1 + $0xab0] sm:$0xf]
      %v1021 = vld [vmem:[%s1 + $0xab4] sm:$0xf]
      %v1022 = vld [vmem:[%s1 + $0xab8] sm:$0xf]
      %v1023 = vld [vmem:[%s1 + $0xabc] sm:$0xf]
      %v1024 = vld [vmem:[%s1 + $0xac0] sm:$0xf]
      %v1025 = vld [vmem:[%s1 + $0xac4] sm:$0xf]
      %v1026 = vld [vmem:[%s1 + $0xac8] sm:$0xf]
      %v1027 = vld [vmem:[%s1 + $0xacc] sm:$0xf]
      %v1028 = vld [vmem:[%s1 + $0xad0] sm:$0xf]
      %v1029 = vld [vmem:[%s1 + $0xad4] sm:$0xf]
      %v1030 = vld [vmem:[%s1 + $0xad8] sm:$0xf]
      %v1031 = vld [vmem:[%s1 + $0xadc] sm:$0xf]
      %v1032 = vld [vmem:[%s1 + $0xae0] sm:$0xf]
      %v1033 = vld [vmem:[%s1 + $0xae4] sm:$0xf]
      %v1034 = vld [vmem:[%s1 + $0xae8] sm:$0xf]
      %v1035 = vld [vmem:[%s1 + $0xaec] sm:$0xf]
      %v1036 = vld [vmem:[%s1 + $0xaf0] sm:$0xf]
      %v1037 = vld [vmem:[%s1 + $0xaf4] sm:$0xf]
      %v1038 = vld [vmem:[%s1 + $0xaf8] sm:$0xf]
      %v1039 = vld [vmem:[%s1 + $0xafc] sm:$0xf]
      %v1040 = vld [vmem:[%s1 + $0xb00] sm:$0xf]
      %v1041 = vld [vmem:[%s1 + $0xb04] sm:$0xf]
      %v1042 = vld [vmem:[%s1 + $0xb08] sm:$0xf]
      %v1043 = vld [vmem:[%s1 + $0xb0c] sm:$0xf]
      %v1044 = vld [vmem:[%s1 + $0xb10] sm:$0xf]
      %v1045 = vld [vmem:[%s1 + $0xb14] sm:$0xf]
      %v1046 = vld [vmem:[%s1 + $0xb18] sm:$0xf]
      %v1047 = vld [vmem:[%s1 + $0xb1c] sm:$0xf]
      %v1048 = vld [vmem:[%s1 + $0xb20] sm:$0xf]
      %v1049 = vld [vmem:[%s1 + $0xb24] sm:$0xf]
      %v1050 = vld [vmem:[%s1 + $0xb28] sm:$0xf]
      %v1051 = vld [vmem:[%s1 + $0xb2c] sm:$0xf]
      %v1052 = vld [vmem:[%s1 + $0xb30] sm:$0xf]
      %v1053 = vld [vmem:[%s1 + $0xb34] sm:$0xf]
      %v1054 = vld [vmem:[%s1 + $0xb38] sm:$0xf]
      %v1055 = vld [vmem:[%s1 + $0xb3c] sm:$0xf]
      %v1056 = vld [vmem:[%s1 + $0xb40] sm:$0xf]
      %v1057 = vld [vmem:[%s1 + $0xb44] sm:$0xf]
      %v1058 = vld [vmem:[%s1 + $0xb48] sm:$0xf]
      %v1059 = vld [vmem:[%s1 + $0xb4c] sm:$0xf]
      %v1060 = vld [vmem:[%s1 + $0xb50] sm:$0xf]
      %v1061 = vld [vmem:[%s1 + $0xb54] sm:$0xf]
      %v1062 = vld [vmem:[%s1 + $0xb58] sm:$0xf]
      %v1063 = vld [vmem:[%s1 + $0xb5c] sm:$0xf]
      %v1064 = vld [vmem:[%s1 + $0xb60] sm:$0xf]
      %v1065 = vld [vmem:[%s1 + $0xb64] sm:$0xf]
      %v1066 = vld [vmem:[%s1 + $0xb68] sm:$0xf]
      %v1067 = vld [vmem:[%s1 + $0xb6c] sm:$0xf]
      %v1068 = vld [vmem:[%s1 + $0xb70] sm:$0xf]
      %v1069 = vld [vmem:[%s1 + $0xb74] sm:$0xf]
      %v1070 = vld [vmem:[%s1 + $0xb78] sm:$0xf]
      %v1071 = vld [vmem:[%s1 + $0xb7c] sm:$0xf]
      %v1072 = vld [vmem:[%s1 + $0xb80] sm:$0xf]
      %v1073 = vld [vmem:[%s1 + $0xb84] sm:$0xf]
      %v1074 = vld [vmem:[%s1 + $0xb88] sm:$0xf]
      %v1075 = vld [vmem:[%s1 + $0xb8c] sm:$0xf]
      %v1076 = vld [vmem:[%s1 + $0xb90] sm:$0xf]
      %v1077 = vld [vmem:[%s1 + $0xb94] sm:$0xf]
      %v1078 = vld [vmem:[%s1 + $0xb98] sm:$0xf]
      %v1079 = vld [vmem:[%s1 + $0xb9c] sm:$0xf]
      %v1080 = vld [vmem:[%s1 + $0xba0] sm:$0xf]
      %v1081 = vld [vmem:[%s1 + $0xba4] sm:$0xf]
      %v1082 = vld [vmem:[%s1 + $0xba8] sm:$0xf]
      %v1083 = vld [vmem:[%s1 + $0xbac] sm:$0xf]
      %v1084 = vld [vmem:[%s1 + $0xbb0] sm:$0xf]
      %v1085 = vld [vmem:[%s1 + $0xbb4] sm:$0xf]
      %v1086 = vld [vmem:[%s1 + $0xbb8] sm:$0xf]
      %v1087 = vld [vmem:[%s1 + $0xbbc] sm:$0xf]
      %v1088 = vld [vmem:[%s1 + $0xbc0] sm:$0xf]
      %v1089 = vld [vmem:[%s1 + $0xbc4] sm:$0xf]
      %v1090 = vld [vmem:[%s1 + $0xbc8] sm:$0xf]
      %v1091 = vld [vmem:[%s1 + $0xbcc] sm:$0xf]
      %v1092 = vld [vmem:[%s1 + $0xbd0] sm:$0xf]
      %v1093 = vld [vmem:[%s1 + $0xbd4] sm:$0xf]
      %v1094 = vld [vmem:[%s1 + $0xbd8] sm:$0xf]
      %v1095 = vld [vmem:[%s1 + $0xbdc] sm:$0xf]
      %v1096 = vld [vmem:[%s1 + $0xbe0] sm:$0xf]
      %v1097 = vld [vmem:[%s1 + $0xbe4] sm:$0xf]
      %v1098 = vld [vmem:[%s1 + $0xbe8] sm:$0xf]
      %v1099 = vld [vmem:[%s1 + $0xbec] sm:$0xf]
      %v1100 = vld [vmem:[%s1 + $0xbf0] sm:$0xf]
      %v1101 = vld [vmem:[%s1 + $0xbf4] sm:$0xf]
      %v1102 = vld [vmem:[%s1 + $0xbf8] sm:$0xf]
      %v1103 = vld [vmem:[%s1 + $0xbfc] sm:$0xf]
      %v1104 = vld [vmem:[%s1 + $0xc00] sm:$0xf]
      %v1105 = vld [vmem:[%s1 + $0xc04] sm:$0xf]
      %v1106 = vld [vmem:[%s1 + $0xc08] sm:$0xf]
      %v1107 = vld [vmem:[%s1 + $0xc0c] sm:$0xf]
      %v1108 = vld [vmem:[%s1 + $0xc10] sm:$0xf]
      %v1109 = vld [vmem:[%s1 + $0xc14] sm:$0xf]
      %v1110 = vld [vmem:[%s1 + $0xc18] sm:$0xf]
      %v1111 = vld [vmem:[%s1 + $0xc1c] sm:$0xf]
      %v1112 = vld [vmem:[%s1 + $0xc20] sm:$0xf]
      %v1113 = vld [vmem:[%s1 + $0xc24] sm:$0xf]
      %v1114 = vld [vmem:[%s1 + $0xc28] sm:$0xf]
      %v1115 = vld [vmem:[%s1 + $0xc2c] sm:$0xf]
      %v1116 = vld [vmem:[%s1 + $0xc30] sm:$0xf]
      %v1117 = vld [vmem:[%s1 + $0xc34] sm:$0xf]
      %v1118 = vld [vmem:[%s1 + $0xc38] sm:$0xf]
      %v1119 = vld [vmem:[%s1 + $0xc3c] sm:$0xf]
      %v1120 = vld [vmem:[%s2] sm:$0x1]
      %v1122 = vlaneseq
      %v1123 = vshrl.u32 %v1122, 7
      %v1124 = vsub.s32 0, %v1123
      %v1125 = vrot.slane %v1120, %v1124
      %v1177 = vunpack.c.l.b16 %v286
      %v1178 = vunpack.c.h.b16 %v286
      %v1179 = vunpack.c.l.b16 %v287
      %v1180 = vunpack.c.h.b16 %v287
      %v1181 = vunpack.c.l.b16 %v288
      %v1182 = vunpack.c.h.b16 %v288
      %v1183 = vunpack.c.l.b16 %v289
      %v1184 = vunpack.c.h.b16 %v289
      %v1185 = vunpack.c.l.b16 %v290
      %v1186 = vunpack.c.h.b16 %v290
      %v1187 = vunpack.c.l.b16 %v291
      %v1188 = vunpack.c.h.b16 %v291
      %v1189 = vunpack.c.l.b16 %v292
      %v1190 = vunpack.c.h.b16 %v292
      %v1191 = vunpack.c.l.b16 %v293
      %v1192 = vunpack.c.h.b16 %v293
      %v1193 = vunpack.c.l.b16 %v294
      %v1194 = vunpack.c.h.b16 %v294
      %v1195 = vunpack.c.l.b16 %v295
      %v1196 = vunpack.c.h.b16 %v295
      %v1197 = vunpack.c.l.b16 %v296
      %v1198 = vunpack.c.h.b16 %v296
      %v1199 = vunpack.c.l.b16 %v297
      %v1200 = vunpack.c.h.b16 %v297
      %v1201 = vunpack.c.l.b16 %v298
      %v1202 = vunpack.c.h.b16 %v298
      %v1203 = vunpack.c.l.b16 %v299
      %v1204 = vunpack.c.h.b16 %v299
      %v1205 = vunpack.c.l.b16 %v300
      %v1206 = vunpack.c.h.b16 %v300
      %v1207 = vunpack.c.l.b16 %v301
      %v1208 = vunpack.c.h.b16 %v301
      %v1209 = vunpack.c.l.b16 %v302
      %v1210 = vunpack.c.h.b16 %v302
      %v1211 = vunpack.c.l.b16 %v303
      %v1212 = vunpack.c.h.b16 %v303
      %v1213 = vunpack.c.l.b16 %v304
      %v1214 = vunpack.c.h.b16 %v304
      %v1215 = vunpack.c.l.b16 %v305
      %v1216 = vunpack.c.h.b16 %v305
      %v1217 = vunpack.c.l.b16 %v306
      %v1218 = vunpack.c.h.b16 %v306
      %v1219 = vunpack.c.l.b16 %v307
      %v1220 = vunpack.c.h.b16 %v307
      %v1221 = vunpack.c.l.b16 %v308
      %v1222 = vunpack.c.h.b16 %v308
      %v1223 = vunpack.c.l.b16 %v309
      %v1224 = vunpack.c.h.b16 %v309
      %v1225 = vunpack.c.l.b16 %v310
      %v1226 = vunpack.c.l.b16 %v311
      %v1227 = vunpack.c.h.b16 %v311
      %v1228 = vunpack.c.l.b16 %v312
      %v1229 = vunpack.c.h.b16 %v312
      %v1230 = vunpack.c.l.b16 %v313
      %v1231 = vunpack.c.h.b16 %v313
      %v1232 = vunpack.c.l.b16 %v314
      %v1233 = vunpack.c.h.b16 %v314
      %v1234 = vunpack.c.l.b16 %v315
      %v1235 = vunpack.c.h.b16 %v315
      %v1236 = vunpack.c.l.b16 %v316
      %v1237 = vunpack.c.h.b16 %v316
      %v1238 = vunpack.c.l.b16 %v317
      %v1239 = vunpack.c.h.b16 %v317
      %v1240 = vunpack.c.l.b16 %v318
      %v1241 = vunpack.c.h.b16 %v318
      %v1242 = vunpack.c.l.b16 %v319
      %v1243 = vunpack.c.h.b16 %v319
      %v1244 = vunpack.c.l.b16 %v320
      %v1245 = vunpack.c.h.b16 %v320
      %v1246 = vunpack.c.l.b16 %v321
      %v1247 = vunpack.c.h.b16 %v321
      %v1248 = vunpack.c.l.b16 %v322
      %v1249 = vunpack.c.h.b16 %v322
      %v1250 = vunpack.c.l.b16 %v323
      %v1251 = vunpack.c.h.b16 %v323
      %v1252 = vunpack.c.l.b16 %v324
      %v1253 = vunpack.c.h.b16 %v324
      %v1254 = vunpack.c.l.b16 %v325
      %v1255 = vunpack.c.h.b16 %v325
      %v1256 = vunpack.c.l.b16 %v326
      %v1257 = vunpack.c.h.b16 %v326
      %v1258 = vunpack.c.l.b16 %v327
      %v1259 = vunpack.c.h.b16 %v327
      %v1260 = vunpack.c.l.b16 %v328
      %v1261 = vunpack.c.h.b16 %v328
      %v1262 = vunpack.c.l.b16 %v329
      %v1263 = vunpack.c.h.b16 %v329
      %v1264 = vunpack.c.l.b16 %v330
      %v1265 = vunpack.c.h.b16 %v330
      %v1266 = vunpack.c.l.b16 %v331
      %v1267 = vunpack.c.h.b16 %v331
      %v1268 = vunpack.c.l.b16 %v332
      %v1269 = vunpack.c.h.b16 %v332
      %v1270 = vunpack.c.l.b16 %v333
      %v1271 = vunpack.c.h.b16 %v333
      %v1272 = vunpack.c.l.b16 %v334
      %v1273 = vunpack.c.h.b16 %v334
      %v1274 = vunpack.c.l.b16 %v335
      %v1275 = vpack.c.b16 %v1226, %v1177
      %v1276 = vpack.c.b16 %v1227, %v1178
      %v1277 = vpack.c.b16 %v1228, %v1179
      %v1278 = vpack.c.b16 %v1229, %v1180
      %v1279 = vpack.c.b16 %v1230, %v1181
      %v1280 = vpack.c.b16 %v1231, %v1182
      %v1281 = vpack.c.b16 %v1232, %v1183
      %v1282 = vpack.c.b16 %v1233, %v1184
      %v1283 = vpack.c.b16 %v1234, %v1185
      %v1284 = vpack.c.b16 %v1235, %v1186
      %v1285 = vpack.c.b16 %v1236, %v1187
      %v1286 = vpack.c.b16 %v1237, %v1188
      %v1287 = vpack.c.b16 %v1238, %v1189
      %v1288 = vpack.c.b16 %v1239, %v1190
      %v1289 = vpack.c.b16 %v1240, %v1191
      %v1290 = vpack.c.b16 %v1241, %v1192
      %v1291 = vpack.c.b16 %v1242, %v1193
      %v1292 = vpack.c.b16 %v1243, %v1194
      %v1293 = vpack.c.b16 %v1244, %v1195
      %v1294 = vpack.c.b16 %v1245, %v1196
      %v1295 = vpack.c.b16 %v1246, %v1197
      %v1296 = vpack.c.b16 %v1247, %v1198
      %v1297 = vpack.c.b16 %v1248, %v1199
      %v1298 = vpack.c.b16 %v1249, %v1200
      %v1299 = vpack.c.b16 %v1250, %v1201
      %v1300 = vpack.c.b16 %v1251, %v1202
      %v1301 = vpack.c.b16 %v1252, %v1203
      %v1302 = vpack.c.b16 %v1253, %v1204
      %v1303 = vpack.c.b16 %v1254, %v1205
      %v1304 = vpack.c.b16 %v1255, %v1206
      %v1305 = vpack.c.b16 %v1256, %v1207
      %v1306 = vpack.c.b16 %v1257, %v1208
      %v1307 = vpack.c.b16 %v1258, %v1209
      %v1308 = vpack.c.b16 %v1259, %v1210
      %v1309 = vpack.c.b16 %v1260, %v1211
      %v1310 = vpack.c.b16 %v1261, %v1212
      %v1311 = vpack.c.b16 %v1262, %v1213
      %v1312 = vpack.c.b16 %v1263, %v1214
      %v1313 = vpack.c.b16 %v1264, %v1215
      %v1314 = vpack.c.b16 %v1265, %v1216
      %v1315 = vpack.c.b16 %v1266, %v1217
      %v1316 = vpack.c.b16 %v1267, %v1218
      %v1317 = vpack.c.b16 %v1268, %v1219
      %v1318 = vpack.c.b16 %v1269, %v1220
      %v1319 = vpack.c.b16 %v1270, %v1221
      %v1320 = vpack.c.b16 %v1271, %v1222
      %v1321 = vpack.c.b16 %v1272, %v1223
      %v1322 = vpack.c.b16 %v1273, %v1224
      %v1323 = vpack.c.b16 %v1274, %v1225
      %v2157 = vunpack.c.l.b16 %v336
      %v2158 = vunpack.c.l.b16 %v337
      %v2159 = vunpack.c.l.b16 %v338
      %v2160 = vunpack.c.l.b16 %v339
      %v2161 = vunpack.c.l.b16 %v340
      %v2162 = vunpack.c.l.b16 %v341
      %v2163 = vunpack.c.l.b16 %v342
      %v2164 = vunpack.c.l.b16 %v343
      %v2165 = vunpack.c.l.b16 %v344
      %v2166 = vunpack.c.l.b16 %v345
      %v2167 = vunpack.c.l.b16 %v346
      %v2168 = vunpack.c.l.b16 %v347
      %v2169 = vunpack.c.l.b16 %v348
      %v2170 = vunpack.c.l.b16 %v349
      %v2171 = vunpack.c.l.b16 %v350
      %v2172 = vunpack.c.l.b16 %v351
      %v2173 = vunpack.c.l.b16 %v352
      %v2174 = vunpack.c.l.b16 %v353
      %v2175 = vunpack.c.l.b16 %v354
      %v2176 = vunpack.c.l.b16 %v355
      %v2177 = vunpack.c.l.b16 %v356
      %v2178 = vunpack.c.l.b16 %v357
      %v2179 = vunpack.c.l.b16 %v358
      %v2180 = vunpack.c.l.b16 %v359
      %v2181 = vunpack.c.l.b16 %v360
      %v2182 = vunpack.c.l.b16 %v361
      %v2183 = vunpack.c.l.b16 %v362
      %v2184 = vunpack.c.l.b16 %v363
      %v2185 = vunpack.c.l.b16 %v364
      %v2186 = vunpack.c.l.b16 %v365
      %v2187 = vunpack.c.l.b16 %v366
      %v2188 = vunpack.c.l.b16 %v367
      %v2189 = vunpack.c.l.b16 %v368
      %v2190 = vunpack.c.l.b16 %v369
      %v2191 = vunpack.c.l.b16 %v370
      %v2192 = vunpack.c.l.b16 %v371
      %v2193 = vunpack.c.l.b16 %v372
      %v2194 = vunpack.c.l.b16 %v373
      %v2195 = vunpack.c.l.b16 %v374
      %v2196 = vunpack.c.l.b16 %v375
      %v2197 = vunpack.c.l.b16 %v376
      %v2198 = vunpack.c.l.b16 %v377
      %v2199 = vunpack.c.l.b16 %v378
      %v2200 = vunpack.c.l.b16 %v379
      %v2201 = vunpack.c.l.b16 %v380
      %v2202 = vunpack.c.l.b16 %v381
      %v2203 = vunpack.c.l.b16 %v382
      %v2204 = vunpack.c.l.b16 %v383
      %v2205 = vunpack.c.l.b16 %v384
      %v2206 = vunpack.c.l.b16 %v385
      %v2207 = vunpack.c.l.b16 %v386
      %v2208 = vunpack.c.l.b16 %v387
      %v2209 = vunpack.c.l.b16 %v388
      %v2210 = vunpack.c.l.b16 %v389
      %v2211 = vunpack.c.l.b16 %v390
      %v2212 = vunpack.c.l.b16 %v391
      %v2213 = vunpack.c.l.b16 %v392
      %v2214 = vunpack.c.l.b16 %v393
      %v2215 = vunpack.c.l.b16 %v394
      %v2216 = vunpack.c.l.b16 %v395
      %v2217 = vunpack.c.l.b16 %v396
      %v2218 = vunpack.c.l.b16 %v397
      %v2219 = vunpack.c.l.b16 %v398
      %v2220 = vunpack.c.l.b16 %v399
      %v2221 = vunpack.c.l.b16 %v400
      %v2222 = vunpack.c.l.b16 %v401
      %v2223 = vunpack.c.l.b16 %v402
      %v2224 = vunpack.c.l.b16 %v403
      %v2225 = vunpack.c.l.b16 %v404
      %v2226 = vunpack.c.l.b16 %v405
      %v2227 = vunpack.c.l.b16 %v406
      %v2228 = vunpack.c.l.b16 %v407
      %v2229 = vunpack.c.l.b16 %v408
      %v2230 = vunpack.c.l.b16 %v409
      %v2231 = vunpack.c.l.b16 %v410
      %v2232 = vunpack.c.l.b16 %v411
      %v2233 = vunpack.c.l.b16 %v412
      %v2234 = vunpack.c.l.b16 %v413
      %v2235 = vunpack.c.l.b16 %v414
      %v2236 = vunpack.c.l.b16 %v415
      %v2237 = vunpack.c.l.b16 %v416
      %v2238 = vunpack.c.l.b16 %v417
      %v2239 = vunpack.c.l.b16 %v418
      %v2240 = vunpack.c.l.b16 %v419
      %v2241 = vunpack.c.l.b16 %v420
      %v2242 = vunpack.c.l.b16 %v421
      %v2243 = vunpack.c.l.b16 %v422
      %v2244 = vunpack.c.l.b16 %v423
      %v2245 = vunpack.c.l.b16 %v424
      %v2246 = vunpack.c.l.b16 %v425
      %v2247 = vunpack.c.l.b16 %v426
      %v2248 = vunpack.c.l.b16 %v427
      %v2249 = vunpack.c.l.b16 %v428
      %v2250 = vunpack.c.l.b16 %v429
      %v2251 = vunpack.c.l.b16 %v430
      %v2252 = vunpack.c.l.b16 %v431
      %v2253 = vunpack.c.l.b16 %v432
      %v2254 = vunpack.c.l.b16 %v433
      %v2255 = vunpack.c.l.b16 %v434
      %v2256 = vunpack.c.l.b16 %v435
      %v2257 = vunpack.c.l.b16 %v436
      %v2258 = vunpack.c.l.b16 %v437
      %v2259 = vunpack.c.l.b16 %v438
      %v2260 = vunpack.c.l.b16 %v439
      %v2261 = vunpack.c.l.b16 %v440
      %v2262 = vunpack.c.l.b16 %v441
      %v2263 = vunpack.c.l.b16 %v442
      %v2264 = vunpack.c.l.b16 %v443
      %v2265 = vunpack.c.l.b16 %v444
      %v2266 = vunpack.c.l.b16 %v445
      %v2267 = vunpack.c.l.b16 %v446
      %v2268 = vunpack.c.l.b16 %v447
      %v2269 = vunpack.c.l.b16 %v448
      %v2270 = vunpack.c.l.b16 %v449
      %v2271 = vunpack.c.l.b16 %v450
      %v2272 = vunpack.c.l.b16 %v451
      %v2273 = vunpack.c.l.b16 %v452
      %v2274 = vunpack.c.l.b16 %v453
      %v2275 = vunpack.c.l.b16 %v454
      %v2276 = vunpack.c.l.b16 %v455
      %v2277 = vunpack.c.l.b16 %v456
      %v2278 = vunpack.c.l.b16 %v457
      %v2279 = vunpack.c.l.b16 %v458
      %v2280 = vunpack.c.l.b16 %v459
      %v2281 = vunpack.c.l.b16 %v460
      %v2282 = vunpack.c.l.b16 %v461
      %v2283 = vunpack.c.l.b16 %v462
      %v2284 = vunpack.c.l.b16 %v463
      %v2285 = vunpack.c.l.b16 %v464
      %v2286 = vunpack.c.l.b16 %v465
      %v2287 = vunpack.c.l.b16 %v466
      %v2288 = vunpack.c.l.b16 %v467
      %v2289 = vunpack.c.l.b16 %v468
      %v2290 = vunpack.c.l.b16 %v469
      %v2291 = vunpack.c.l.b16 %v470
      %v2292 = vunpack.c.l.b16 %v471
      %v2293 = vunpack.c.l.b16 %v472
      %v2294 = vunpack.c.l.b16 %v473
      %v2295 = vunpack.c.l.b16 %v474
      %v2296 = vunpack.c.l.b16 %v475
      %v2297 = vunpack.c.l.b16 %v476
      %v2298 = vunpack.c.l.b16 %v477
      %v2299 = vunpack.c.l.b16 %v478
      %v2300 = vunpack.c.l.b16 %v479
      %v2301 = vunpack.c.l.b16 %v480
      %v2302 = vunpack.c.l.b16 %v481
      %v2303 = vunpack.c.l.b16 %v482
      %v2304 = vunpack.c.l.b16 %v483
      %v2305 = vunpack.c.l.b16 %v484
      %v2306 = vunpack.c.l.b16 %v485
      %v2307 = vunpack.c.l.b16 %v486
      %v2308 = vunpack.c.l.b16 %v487
      %v2309 = vunpack.c.l.b16 %v488
      %v2310 = vunpack.c.l.b16 %v489
      %v2311 = vunpack.c.l.b16 %v490
      %v2312 = vunpack.c.l.b16 %v491
      %v2313 = vunpack.c.l.b16 %v492
      %v2314 = vunpack.c.l.b16 %v493
      %v2315 = vunpack.c.l.b16 %v494
      %v2316 = vunpack.c.l.b16 %v495
      %v2317 = vunpack.c.l.b16 %v496
      %v2318 = vunpack.c.l.b16 %v497
      %v2319 = vunpack.c.l.b16 %v498
      %v2320 = vunpack.c.l.b16 %v499
      %v2321 = vunpack.c.l.b16 %v500
      %v2322 = vunpack.c.l.b16 %v501
      %v2323 = vunpack.c.l.b16 %v502
      %v2324 = vunpack.c.l.b16 %v503
      %v2325 = vunpack.c.l.b16 %v504
      %v2326 = vunpack.c.l.b16 %v505
      %v2327 = vunpack.c.l.b16 %v506
      %v2328 = vunpack.c.l.b16 %v507
      %v2329 = vunpack.c.l.b16 %v508
      %v2330 = vunpack.c.l.b16 %v509
      %v2331 = vunpack.c.l.b16 %v510
      %v2332 = vunpack.c.l.b16 %v511
      %v2333 = vunpack.c.l.b16 %v512
      %v2334 = vunpack.c.l.b16 %v513
      %v2335 = vunpack.c.l.b16 %v514
      %v2336 = vunpack.c.l.b16 %v515
      %v2337 = vunpack.c.l.b16 %v516
      %v2338 = vunpack.c.l.b16 %v517
      %v2339 = vunpack.c.l.b16 %v518
      %v2340 = vunpack.c.l.b16 %v519
      %v2341 = vunpack.c.l.b16 %v520
      %v2342 = vunpack.c.l.b16 %v521
      %v2343 = vunpack.c.l.b16 %v522
      %v2344 = vunpack.c.l.b16 %v523
      %v2345 = vunpack.c.l.b16 %v524
      %v2346 = vunpack.c.l.b16 %v525
      %v2347 = vunpack.c.l.b16 %v526
      %v2348 = vunpack.c.l.b16 %v527
      %v2349 = vunpack.c.l.b16 %v528
      %v2350 = vunpack.c.l.b16 %v529
      %v2351 = vunpack.c.l.b16 %v530
      %v2352 = vunpack.c.l.b16 %v531
      %v2353 = vunpack.c.l.b16 %v532
      %v2354 = vunpack.c.l.b16 %v533
      %v2355 = vunpack.c.l.b16 %v534
      %v2356 = vunpack.c.l.b16 %v535
      %v2357 = vunpack.c.l.b16 %v536
      %v2358 = vunpack.c.l.b16 %v537
      %v2359 = vunpack.c.l.b16 %v538
      %v2360 = vunpack.c.l.b16 %v539
      %v2361 = vunpack.c.l.b16 %v540
      %v2362 = vunpack.c.l.b16 %v541
      %v2363 = vunpack.c.l.b16 %v542
      %v2364 = vunpack.c.l.b16 %v543
      %v2365 = vunpack.c.l.b16 %v544
      %v2366 = vunpack.c.l.b16 %v545
      %v2367 = vunpack.c.l.b16 %v546
      %v2368 = vunpack.c.l.b16 %v547
      %v2369 = vunpack.c.l.b16 %v548
      %v2370 = vunpack.c.l.b16 %v549
      %v2371 = vunpack.c.l.b16 %v550
      %v2372 = vunpack.c.l.b16 %v551
      %v2373 = vunpack.c.l.b16 %v552
      %v2374 = vunpack.c.l.b16 %v553
      %v2375 = vunpack.c.l.b16 %v554
      %v2376 = vunpack.c.l.b16 %v555
      %v2377 = vunpack.c.l.b16 %v556
      %v2378 = vunpack.c.l.b16 %v557
      %v2379 = vunpack.c.l.b16 %v558
      %v2380 = vunpack.c.l.b16 %v559
      %v2381 = vunpack.c.l.b16 %v560
      %v2382 = vunpack.c.l.b16 %v561
      %v2383 = vunpack.c.l.b16 %v562
      %v2384 = vunpack.c.l.b16 %v563
      %v2385 = vunpack.c.l.b16 %v564
      %v2386 = vunpack.c.l.b16 %v565
      %v2387 = vunpack.c.l.b16 %v566
      %v2388 = vunpack.c.l.b16 %v567
      %v2389 = vunpack.c.l.b16 %v568
      %v2390 = vunpack.c.l.b16 %v569
      %v2391 = vunpack.c.l.b16 %v570
      %v2392 = vunpack.c.l.b16 %v571
      %v2393 = vunpack.c.l.b16 %v572
      %v2394 = vunpack.c.l.b16 %v573
      %v2395 = vunpack.c.l.b16 %v574
      %v2396 = vunpack.c.l.b16 %v575
      %v2397 = vunpack.c.l.b16 %v576
      %v2398 = vunpack.c.l.b16 %v577
      %v2399 = vunpack.c.l.b16 %v578
      %v2400 = vunpack.c.l.b16 %v579
      %v2401 = vunpack.c.l.b16 %v580
      %v2402 = vunpack.c.l.b16 %v581
      %v2403 = vunpack.c.l.b16 %v582
      %v2404 = vunpack.c.l.b16 %v583
      %v2405 = vunpack.c.l.b16 %v584
      %v2406 = vunpack.c.l.b16 %v585
      %v2407 = vunpack.c.l.b16 %v586
      %v2408 = vunpack.c.l.b16 %v587
      %v2409 = vunpack.c.l.b16 %v588
      %v2410 = vunpack.c.l.b16 %v589
      %v2411 = vunpack.c.l.b16 %v590
      %v2412 = vunpack.c.l.b16 %v591
      %v2413 = vunpack.c.l.b16 %v592
      %v2414 = vunpack.c.l.b16 %v593
      %v2415 = vunpack.c.l.b16 %v594
      %v2416 = vunpack.c.l.b16 %v595
      %v2417 = vunpack.c.l.b16 %v596
      %v2418 = vunpack.c.l.b16 %v597
      %v2419 = vunpack.c.l.b16 %v598
      %v2420 = vunpack.c.l.b16 %v599
      %v2421 = vunpack.c.l.b16 %v600
      %v2422 = vunpack.c.l.b16 %v601
      %v2423 = vunpack.c.l.b16 %v602
      %v2424 = vunpack.c.l.b16 %v603
      %v2425 = vunpack.c.l.b16 %v604
      %v2426 = vunpack.c.l.b16 %v605
      %v2427 = vunpack.c.l.b16 %v606
      %v2428 = vunpack.c.l.b16 %v607
      %v2429 = vunpack.c.l.b16 %v608
      %v2430 = vunpack.c.l.b16 %v609
      %v2431 = vunpack.c.l.b16 %v610
      %v2432 = vunpack.c.l.b16 %v611
      %v2433 = vunpack.c.l.b16 %v612
      %v2434 = vunpack.c.l.b16 %v613
      %v2435 = vunpack.c.l.b16 %v614
      %v2436 = vunpack.c.l.b16 %v615
      %v2437 = vunpack.c.l.b16 %v616
      %v2438 = vunpack.c.l.b16 %v617
      %v2439 = vunpack.c.l.b16 %v618
      %v2440 = vunpack.c.l.b16 %v619
      %v2441 = vunpack.c.l.b16 %v620
      %v2442 = vunpack.c.l.b16 %v621
      %v2443 = vunpack.c.l.b16 %v622
      %v2444 = vunpack.c.l.b16 %v623
      %v2445 = vunpack.c.l.b16 %v624
      %v2446 = vunpack.c.l.b16 %v625
      %v2447 = vunpack.c.l.b16 %v626
      %v2448 = vunpack.c.l.b16 %v627
      %v2449 = vunpack.c.l.b16 %v628
      %v2450 = vunpack.c.l.b16 %v629
      %v2451 = vunpack.c.l.b16 %v630
      %v2452 = vunpack.c.l.b16 %v631
      %v2453 = vunpack.c.l.b16 %v632
      %v2454 = vunpack.c.l.b16 %v633
      %v2455 = vunpack.c.l.b16 %v634
      %v2456 = vunpack.c.l.b16 %v635
      %v2457 = vunpack.c.l.b16 %v636
      %v2458 = vunpack.c.l.b16 %v637
      %v2459 = vunpack.c.l.b16 %v638
      %v2460 = vunpack.c.l.b16 %v639
      %v2461 = vunpack.c.l.b16 %v640
      %v2462 = vunpack.c.l.b16 %v641
      %v2463 = vunpack.c.l.b16 %v642
      %v2464 = vunpack.c.l.b16 %v643
      %v2465 = vunpack.c.l.b16 %v644
      %v2466 = vunpack.c.l.b16 %v645
      %v2467 = vunpack.c.l.b16 %v646
      %v2468 = vunpack.c.l.b16 %v647
      %v2469 = vunpack.c.l.b16 %v648
      %v2470 = vunpack.c.l.b16 %v649
      %v2471 = vunpack.c.l.b16 %v650
      %v2472 = vunpack.c.l.b16 %v651
      %v2473 = vunpack.c.l.b16 %v652
      %v2474 = vunpack.c.l.b16 %v653
      %v2475 = vunpack.c.l.b16 %v654
      %v2476 = vunpack.c.l.b16 %v655
      %v2477 = vunpack.c.l.b16 %v656
      %v2478 = vunpack.c.l.b16 %v657
      %v2479 = vunpack.c.l.b16 %v658
      %v2480 = vunpack.c.l.b16 %v659
      %v2481 = vunpack.c.l.b16 %v660
      %v2482 = vunpack.c.l.b16 %v661
      %v2483 = vunpack.c.l.b16 %v662
      %v2484 = vunpack.c.l.b16 %v663
      %v2485 = vunpack.c.l.b16 %v664
      %v2486 = vunpack.c.l.b16 %v665
      %v2487 = vunpack.c.l.b16 %v666
      %v2488 = vunpack.c.l.b16 %v667
      %v2489 = vunpack.c.l.b16 %v668
      %v2490 = vunpack.c.l.b16 %v669
      %v2491 = vunpack.c.l.b16 %v670
      %v2492 = vunpack.c.l.b16 %v671
      %v2493 = vunpack.c.l.b16 %v672
      %v2494 = vunpack.c.l.b16 %v673
      %v2495 = vunpack.c.l.b16 %v674
      %v2496 = vunpack.c.l.b16 %v675
      %v2497 = vunpack.c.l.b16 %v676
      %v2498 = vunpack.c.l.b16 %v677
      %v2499 = vunpack.c.l.b16 %v678
      %v2500 = vunpack.c.l.b16 %v679
      %v2501 = vunpack.c.l.b16 %v680
      %v2502 = vunpack.c.l.b16 %v681
      %v2503 = vunpack.c.l.b16 %v682
      %v2504 = vunpack.c.l.b16 %v683
      %v2505 = vunpack.c.l.b16 %v684
      %v2506 = vunpack.c.l.b16 %v685
      %v2507 = vunpack.c.l.b16 %v686
      %v2508 = vunpack.c.l.b16 %v687
      %v2509 = vunpack.c.l.b16 %v688
      %v2510 = vunpack.c.l.b16 %v689
      %v2511 = vunpack.c.l.b16 %v690
      %v2512 = vunpack.c.l.b16 %v691
      %v2513 = vunpack.c.l.b16 %v692
      %v2514 = vunpack.c.l.b16 %v693
      %v2515 = vunpack.c.l.b16 %v694
      %v2516 = vunpack.c.l.b16 %v695
      %v2517 = vunpack.c.l.b16 %v696
      %v2518 = vunpack.c.l.b16 %v697
      %v2519 = vunpack.c.l.b16 %v698
      %v2520 = vunpack.c.l.b16 %v699
      %v2521 = vunpack.c.l.b16 %v700
      %v2522 = vunpack.c.l.b16 %v701
      %v2523 = vunpack.c.l.b16 %v702
      %v2524 = vunpack.c.l.b16 %v703
      %v2525 = vunpack.c.l.b16 %v704
      %v2526 = vunpack.c.l.b16 %v705
      %v2527 = vunpack.c.l.b16 %v706
      %v2528 = vunpack.c.l.b16 %v707
      %v2529 = vunpack.c.l.b16 %v708
      %v2530 = vunpack.c.l.b16 %v709
      %v2531 = vunpack.c.l.b16 %v710
      %v2532 = vunpack.c.l.b16 %v711
      %v2533 = vunpack.c.l.b16 %v712
      %v2534 = vunpack.c.l.b16 %v713
      %v2535 = vunpack.c.l.b16 %v714
      %v2536 = vunpack.c.l.b16 %v715
      %v2537 = vunpack.c.l.b16 %v716
      %v2538 = vunpack.c.l.b16 %v717
      %v2539 = vunpack.c.l.b16 %v718
      %v2540 = vunpack.c.l.b16 %v719
      %v2541 = vunpack.c.l.b16 %v720
      %v2542 = vunpack.c.l.b16 %v721
      %v2543 = vunpack.c.l.b16 %v722
      %v2544 = vunpack.c.l.b16 %v723
      %v2545 = vunpack.c.l.b16 %v724
      %v2546 = vunpack.c.l.b16 %v725
      %v2547 = vunpack.c.l.b16 %v726
      %v2548 = vunpack.c.l.b16 %v727
      %v2549 = vunpack.c.l.b16 %v728
      %v2550 = vunpack.c.l.b16 %v729
      %v2551 = vunpack.c.l.b16 %v730
      %v2552 = vunpack.c.l.b16 %v731
      %v2553 = vunpack.c.l.b16 %v732
      %v2554 = vunpack.c.l.b16 %v733
      %v2555 = vunpack.c.l.b16 %v734
      %v2556 = vunpack.c.l.b16 %v735
      %v2557 = vunpack.c.l.b16 %v736
      %v2558 = vunpack.c.l.b16 %v737
      %v2559 = vunpack.c.l.b16 %v738
      %v2560 = vunpack.c.l.b16 %v739
      %v2561 = vunpack.c.l.b16 %v740
      %v2562 = vunpack.c.l.b16 %v741
      %v2563 = vunpack.c.l.b16 %v742
      %v2564 = vunpack.c.l.b16 %v743
      %v2565 = vunpack.c.l.b16 %v744
      %v2566 = vunpack.c.l.b16 %v745
      %v2567 = vunpack.c.l.b16 %v746
      %v2568 = vunpack.c.l.b16 %v747
      %v2569 = vunpack.c.l.b16 %v748
      %v2570 = vunpack.c.l.b16 %v749
      %v2571 = vunpack.c.l.b16 %v750
      %v2572 = vunpack.c.l.b16 %v751
      %v2573 = vunpack.c.l.b16 %v752
      %v2574 = vunpack.c.l.b16 %v753
      %v2575 = vunpack.c.l.b16 %v754
      %v2576 = vunpack.c.l.b16 %v755
      %v2577 = vunpack.c.l.b16 %v756
      %v2578 = vunpack.c.l.b16 %v757
      %v2579 = vunpack.c.l.b16 %v758
      %v2580 = vunpack.c.l.b16 %v759
      %v2581 = vunpack.c.l.b16 %v760
      %v2582 = vunpack.c.l.b16 %v761
      %v2583 = vunpack.c.l.b16 %v762
      %v2584 = vunpack.c.l.b16 %v763
      %v2585 = vunpack.c.l.b16 %v764
      %v2586 = vunpack.c.l.b16 %v765
      %v2587 = vunpack.c.l.b16 %v766
      %v2588 = vunpack.c.l.b16 %v767
      %v2589 = vunpack.c.l.b16 %v768
      %v2590 = vunpack.c.l.b16 %v769
      %v2591 = vunpack.c.l.b16 %v770
      %v2592 = vunpack.c.l.b16 %v771
      %v2593 = vunpack.c.l.b16 %v772
      %v2594 = vunpack.c.l.b16 %v773
      %v2595 = vunpack.c.l.b16 %v774
      %v2596 = vunpack.c.l.b16 %v775
      %v2597 = vunpack.c.l.b16 %v776
      %v2598 = vunpack.c.l.b16 %v777
      %v2599 = vunpack.c.l.b16 %v778
      %v2600 = vunpack.c.l.b16 %v779
      %v2601 = vunpack.c.l.b16 %v780
      %v2602 = vunpack.c.l.b16 %v781
      %v2603 = vunpack.c.l.b16 %v782
      %v2604 = vunpack.c.l.b16 %v783
      %v2605 = vunpack.c.l.b16 %v784
      %v2606 = vunpack.c.l.b16 %v785
      %v2607 = vunpack.c.l.b16 %v786
      %v2608 = vunpack.c.l.b16 %v787
      %v2609 = vunpack.c.l.b16 %v788
      %v2610 = vunpack.c.l.b16 %v789
      %v2611 = vunpack.c.l.b16 %v790
      %v2612 = vunpack.c.l.b16 %v791
      %v2613 = vunpack.c.l.b16 %v792
      %v2614 = vunpack.c.l.b16 %v793
      %v2615 = vunpack.c.l.b16 %v794
      %v2616 = vunpack.c.l.b16 %v795
      %v2617 = vunpack.c.l.b16 %v796
      %v2618 = vunpack.c.l.b16 %v797
      %v2619 = vunpack.c.l.b16 %v798
      %v2620 = vunpack.c.l.b16 %v799
      %v2621 = vunpack.c.l.b16 %v800
      %v2622 = vunpack.c.l.b16 %v801
      %v2623 = vunpack.c.l.b16 %v802
      %v2624 = vunpack.c.l.b16 %v803
      %v2625 = vunpack.c.l.b16 %v804
      %v2626 = vunpack.c.l.b16 %v805
      %v2627 = vunpack.c.l.b16 %v806
      %v2628 = vunpack.c.l.b16 %v807
      %v2629 = vunpack.c.l.b16 %v808
      %v2630 = vunpack.c.l.b16 %v809
      %v2631 = vunpack.c.l.b16 %v810
      %v2632 = vunpack.c.l.b16 %v811
      %v2633 = vunpack.c.l.b16 %v812
      %v2634 = vunpack.c.l.b16 %v813
      %v2635 = vunpack.c.l.b16 %v814
      %v2636 = vunpack.c.l.b16 %v815
      %v2637 = vunpack.c.l.b16 %v816
      %v2638 = vunpack.c.l.b16 %v817
      %v2639 = vunpack.c.l.b16 %v818
      %v2640 = vunpack.c.l.b16 %v819
      %v2641 = vunpack.c.l.b16 %v820
      %v2642 = vunpack.c.l.b16 %v821
      %v2643 = vunpack.c.l.b16 %v822
      %v2644 = vunpack.c.l.b16 %v823
      %v2645 = vunpack.c.l.b16 %v824
      %v2646 = vunpack.c.l.b16 %v825
      %v2647 = vunpack.c.l.b16 %v826
      %v2648 = vunpack.c.l.b16 %v827
      %v2649 = vunpack.c.l.b16 %v828
      %v2650 = vunpack.c.l.b16 %v829
      %v2651 = vunpack.c.l.b16 %v830
      %v2652 = vunpack.c.l.b16 %v831
      %v2653 = vunpack.c.l.b16 %v832
      %v2654 = vunpack.c.l.b16 %v833
      %v2655 = vunpack.c.l.b16 %v834
      %v2656 = vunpack.c.l.b16 %v835
      %v2657 = vunpack.c.l.b16 %v836
      %v2658 = vunpack.c.l.b16 %v837
      %v2659 = vunpack.c.l.b16 %v838
      %v2660 = vunpack.c.l.b16 %v839
      %v2661 = vunpack.c.l.b16 %v840
      %v2662 = vunpack.c.l.b16 %v841
      %v2663 = vunpack.c.l.b16 %v842
      %v2664 = vunpack.c.l.b16 %v843
      %v2665 = vunpack.c.l.b16 %v844
      %v2666 = vunpack.c.l.b16 %v845
      %v2667 = vunpack.c.l.b16 %v846
      %v2668 = vunpack.c.l.b16 %v847
      %v2669 = vunpack.c.l.b16 %v848
      %v2670 = vunpack.c.l.b16 %v849
      %v2671 = vunpack.c.l.b16 %v850
      %v2672 = vunpack.c.l.b16 %v851
      %v2673 = vunpack.c.l.b16 %v852
      %v2674 = vunpack.c.l.b16 %v853
      %v2675 = vunpack.c.l.b16 %v854
      %v2676 = vunpack.c.l.b16 %v855
      %v2677 = vunpack.c.l.b16 %v856
      %v2678 = vunpack.c.l.b16 %v857
      %v2679 = vunpack.c.l.b16 %v858
      %v2680 = vunpack.c.l.b16 %v859
      %v2681 = vunpack.c.l.b16 %v860
      %v2682 = vunpack.c.l.b16 %v861
      %v2683 = vunpack.c.l.b16 %v862
      %v2684 = vunpack.c.l.b16 %v863
      %v2685 = vunpack.c.l.b16 %v864
      %v2686 = vunpack.c.l.b16 %v865
      %v2687 = vunpack.c.l.b16 %v866
      %v2688 = vunpack.c.l.b16 %v867
      %v2689 = vunpack.c.l.b16 %v868
      %v2690 = vunpack.c.l.b16 %v869
      %v2691 = vunpack.c.l.b16 %v870
      %v2692 = vunpack.c.l.b16 %v871
      %v2693 = vunpack.c.l.b16 %v872
      %v2694 = vunpack.c.l.b16 %v873
      %v2695 = vunpack.c.l.b16 %v874
      %v2696 = vunpack.c.l.b16 %v875
      %v2697 = vunpack.c.l.b16 %v876
      %v2698 = vunpack.c.l.b16 %v877
      %v2699 = vunpack.c.l.b16 %v878
      %v2700 = vunpack.c.l.b16 %v879
      %v2701 = vunpack.c.l.b16 %v880
      %v2702 = vunpack.c.l.b16 %v881
      %v2703 = vunpack.c.l.b16 %v882
      %v2704 = vunpack.c.l.b16 %v883
      %v2705 = vunpack.c.l.b16 %v884
      %v2706 = vunpack.c.l.b16 %v885
      %v2707 = vunpack.c.l.b16 %v886
      %v2708 = vunpack.c.l.b16 %v887
      %v2709 = vunpack.c.l.b16 %v888
      %v2710 = vunpack.c.l.b16 %v889
      %v2711 = vunpack.c.l.b16 %v890
      %v2712 = vunpack.c.l.b16 %v891
      %v2713 = vunpack.c.l.b16 %v892
      %v2714 = vunpack.c.l.b16 %v893
      %v2715 = vunpack.c.l.b16 %v894
      %v2716 = vunpack.c.l.b16 %v895
      %v2717 = vunpack.c.l.b16 %v896
      %v2718 = vunpack.c.l.b16 %v897
      %v2719 = vunpack.c.l.b16 %v898
      %v2720 = vunpack.c.l.b16 %v899
      %v2721 = vunpack.c.l.b16 %v900
      %v2722 = vunpack.c.l.b16 %v901
      %v2723 = vunpack.c.l.b16 %v902
      %v2724 = vunpack.c.l.b16 %v903
      %v2725 = vunpack.c.l.b16 %v904
      %v2726 = vunpack.c.l.b16 %v905
      %v2727 = vunpack.c.l.b16 %v906
      %v2728 = vunpack.c.l.b16 %v907
      %v2729 = vunpack.c.l.b16 %v908
      %v2730 = vunpack.c.l.b16 %v909
      %v2731 = vunpack.c.l.b16 %v910
      %v2732 = vunpack.c.l.b16 %v911
      %v2733 = vunpack.c.l.b16 %v912
      %v2734 = vunpack.c.l.b16 %v913
      %v2735 = vunpack.c.l.b16 %v914
      %v2736 = vunpack.c.l.b16 %v915
      %v2737 = vunpack.c.l.b16 %v916
      %v2738 = vunpack.c.l.b16 %v917
      %v2739 = vunpack.c.l.b16 %v918
      %v2740 = vunpack.c.l.b16 %v919
      %v2741 = vunpack.c.l.b16 %v920
      %v2742 = vunpack.c.l.b16 %v921
      %v2743 = vunpack.c.l.b16 %v922
      %v2744 = vunpack.c.l.b16 %v923
      %v2745 = vunpack.c.l.b16 %v924
      %v2746 = vunpack.c.l.b16 %v925
      %v2747 = vunpack.c.l.b16 %v926
      %v2748 = vunpack.c.l.b16 %v927
      %v2749 = vunpack.c.l.b16 %v928
      %v2750 = vunpack.c.l.b16 %v929
      %v2751 = vunpack.c.l.b16 %v930
      %v2752 = vunpack.c.l.b16 %v931
      %v2753 = vunpack.c.l.b16 %v932
      %v2754 = vunpack.c.l.b16 %v933
      %v2755 = vunpack.c.l.b16 %v934
      %v2756 = vunpack.c.l.b16 %v935
      %v2757 = vunpack.c.l.b16 %v936
      %v2758 = vunpack.c.l.b16 %v937
      %v2759 = vunpack.c.l.b16 %v938
      %v2760 = vunpack.c.l.b16 %v939
      %v2761 = vunpack.c.l.b16 %v940
      %v2762 = vunpack.c.l.b16 %v941
      %v2763 = vunpack.c.l.b16 %v942
      %v2764 = vunpack.c.l.b16 %v943
      %v2765 = vunpack.c.l.b16 %v944
      %v2766 = vunpack.c.l.b16 %v945
      %v2767 = vunpack.c.l.b16 %v946
      %v2768 = vunpack.c.l.b16 %v947
      %v2769 = vunpack.c.l.b16 %v948
      %v2770 = vunpack.c.l.b16 %v949
      %v2771 = vunpack.c.l.b16 %v950
      %v2772 = vunpack.c.l.b16 %v951
      %v2773 = vunpack.c.l.b16 %v952
      %v2774 = vunpack.c.l.b16 %v953
      %v2775 = vunpack.c.l.b16 %v954
      %v2776 = vunpack.c.l.b16 %v955
      %v2777 = vunpack.c.l.b16 %v956
      %v2778 = vunpack.c.l.b16 %v957
      %v2779 = vunpack.c.l.b16 %v958
      %v2780 = vunpack.c.l.b16 %v959
      %v2781 = vunpack.c.l.b16 %v960
      %v2782 = vunpack.c.l.b16 %v961
      %v2783 = vunpack.c.l.b16 %v962
      %v2784 = vunpack.c.l.b16 %v963
      %v2785 = vunpack.c.l.b16 %v964
      %v2786 = vunpack.c.l.b16 %v965
      %v2787 = vunpack.c.l.b16 %v966
      %v2788 = vunpack.c.l.b16 %v967
      %v2789 = vunpack.c.l.b16 %v968
      %v2790 = vunpack.c.l.b16 %v969
      %v2791 = vunpack.c.l.b16 %v970
      %v2792 = vunpack.c.l.b16 %v971
      %v2793 = vunpack.c.l.b16 %v972
      %v2794 = vunpack.c.l.b16 %v973
      %v2795 = vunpack.c.l.b16 %v974
      %v2796 = vunpack.c.l.b16 %v975
      %v2797 = vunpack.c.l.b16 %v976
      %v2798 = vunpack.c.l.b16 %v977
      %v2799 = vunpack.c.l.b16 %v978
      %v2800 = vunpack.c.l.b16 %v979
      %v2801 = vunpack.c.l.b16 %v980
      %v2802 = vunpack.c.l.b16 %v981
      %v2803 = vunpack.c.l.b16 %v982
      %v2804 = vunpack.c.l.b16 %v983
      %v2805 = vunpack.c.l.b16 %v984
      %v2806 = vunpack.c.l.b16 %v985
      %v2807 = vunpack.c.l.b16 %v986
      %v2808 = vunpack.c.l.b16 %v987
      %v2809 = vunpack.c.l.b16 %v988
      %v2810 = vunpack.c.l.b16 %v989
      %v2811 = vunpack.c.l.b16 %v990
      %v2812 = vunpack.c.l.b16 %v991
      %v2813 = vunpack.c.l.b16 %v992
      %v2814 = vunpack.c.l.b16 %v993
      %v2815 = vunpack.c.l.b16 %v994
      %v2816 = vunpack.c.l.b16 %v995
      %v2817 = vunpack.c.l.b16 %v996
      %v2818 = vunpack.c.l.b16 %v997
      %v2819 = vunpack.c.l.b16 %v998
      %v2820 = vunpack.c.l.b16 %v999
      %v2821 = vunpack.c.l.b16 %v1000
      %v2822 = vunpack.c.l.b16 %v1001
      %v2823 = vunpack.c.l.b16 %v1002
      %v2824 = vunpack.c.l.b16 %v1003
      %v2825 = vunpack.c.l.b16 %v1004
      %v2826 = vunpack.c.l.b16 %v1005
      %v2827 = vunpack.c.l.b16 %v1006
      %v2828 = vunpack.c.l.b16 %v1007
      %v2829 = vunpack.c.l.b16 %v1008
      %v2830 = vunpack.c.l.b16 %v1009
      %v2831 = vunpack.c.l.b16 %v1010
      %v2832 = vunpack.c.l.b16 %v1011
      %v2833 = vunpack.c.l.b16 %v1012
      %v2834 = vunpack.c.l.b16 %v1013
      %v2835 = vunpack.c.l.b16 %v1014
      %v2836 = vunpack.c.l.b16 %v1015
      %v2837 = vunpack.c.l.b16 %v1016
      %v2838 = vunpack.c.l.b16 %v1017
      %v2839 = vunpack.c.l.b16 %v1018
      %v2840 = vunpack.c.l.b16 %v1019
      %v2841 = vunpack.c.l.b16 %v1020
      %v2842 = vunpack.c.l.b16 %v1021
      %v2843 = vunpack.c.l.b16 %v1022
      %v2844 = vunpack.c.l.b16 %v1023
      %v2845 = vunpack.c.l.b16 %v1024
      %v2846 = vunpack.c.l.b16 %v1025
      %v2847 = vunpack.c.l.b16 %v1026
      %v2848 = vunpack.c.l.b16 %v1027
      %v2849 = vunpack.c.l.b16 %v1028
      %v2850 = vunpack.c.l.b16 %v1029
      %v2851 = vunpack.c.l.b16 %v1030
      %v2852 = vunpack.c.l.b16 %v1031
      %v2853 = vunpack.c.l.b16 %v1032
      %v2854 = vunpack.c.l.b16 %v1033
      %v2855 = vunpack.c.l.b16 %v1034
      %v2856 = vunpack.c.l.b16 %v1035
      %v2857 = vunpack.c.l.b16 %v1036
      %v2858 = vunpack.c.l.b16 %v1037
      %v2859 = vunpack.c.l.b16 %v1038
      %v2860 = vunpack.c.l.b16 %v1039
      %v2861 = vunpack.c.l.b16 %v1040
      %v2862 = vunpack.c.l.b16 %v1041
      %v2863 = vunpack.c.l.b16 %v1042
      %v2864 = vunpack.c.l.b16 %v1043
      %v2865 = vunpack.c.l.b16 %v1044
      %v2866 = vunpack.c.l.b16 %v1045
      %v2867 = vunpack.c.l.b16 %v1046
      %v2868 = vunpack.c.l.b16 %v1047
      %v2869 = vunpack.c.l.b16 %v1048
      %v2870 = vunpack.c.l.b16 %v1049
      %v2871 = vunpack.c.l.b16 %v1050
      %v2872 = vunpack.c.l.b16 %v1051
      %v2873 = vunpack.c.l.b16 %v1052
      %v2874 = vunpack.c.l.b16 %v1053
      %v2875 = vunpack.c.l.b16 %v1054
      %v2876 = vunpack.c.l.b16 %v1055
      %v2877 = vunpack.c.l.b16 %v1056
      %v2878 = vunpack.c.l.b16 %v1057
      %v2879 = vunpack.c.l.b16 %v1058
      %v2880 = vunpack.c.l.b16 %v1059
      %v2881 = vunpack.c.l.b16 %v1060
      %v2882 = vunpack.c.l.b16 %v1061
      %v2883 = vunpack.c.l.b16 %v1062
      %v2884 = vunpack.c.l.b16 %v1063
      %v2885 = vunpack.c.l.b16 %v1064
      %v2886 = vunpack.c.l.b16 %v1065
      %v2887 = vunpack.c.l.b16 %v1066
      %v2888 = vunpack.c.l.b16 %v1067
      %v2889 = vunpack.c.l.b16 %v1068
      %v2890 = vunpack.c.l.b16 %v1069
      %v2891 = vunpack.c.l.b16 %v1070
      %v2892 = vunpack.c.l.b16 %v1071
      %v2893 = vunpack.c.l.b16 %v1072
      %v2894 = vunpack.c.l.b16 %v1073
      %v2895 = vunpack.c.l.b16 %v1074
      %v2896 = vunpack.c.l.b16 %v1075
      %v2897 = vunpack.c.l.b16 %v1076
      %v2898 = vunpack.c.l.b16 %v1077
      %v2899 = vunpack.c.l.b16 %v1078
      %v2900 = vunpack.c.l.b16 %v1079
      %v2901 = vunpack.c.l.b16 %v1080
      %v2902 = vunpack.c.l.b16 %v1081
      %v2903 = vunpack.c.l.b16 %v1082
      %v2904 = vunpack.c.l.b16 %v1083
      %v2905 = vunpack.c.l.b16 %v1084
      %v2906 = vunpack.c.l.b16 %v1085
      %v2907 = vunpack.c.l.b16 %v1086
      %v2908 = vunpack.c.l.b16 %v1087
      %v2909 = vunpack.c.l.b16 %v1088
      %v2910 = vunpack.c.l.b16 %v1089
      %v2911 = vunpack.c.l.b16 %v1090
      %v2912 = vunpack.c.l.b16 %v1091
      %v2913 = vunpack.c.l.b16 %v1092
      %v2914 = vunpack.c.l.b16 %v1093
      %v2915 = vunpack.c.l.b16 %v1094
      %v2916 = vunpack.c.l.b16 %v1095
      %v2917 = vunpack.c.l.b16 %v1096
      %v2918 = vunpack.c.l.b16 %v1097
      %v2919 = vunpack.c.l.b16 %v1098
      %v2920 = vunpack.c.l.b16 %v1099
      %v2921 = vunpack.c.l.b16 %v1100
      %v2922 = vunpack.c.l.b16 %v1101
      %v2923 = vunpack.c.l.b16 %v1102
      %v2924 = vunpack.c.l.b16 %v1103
      %v2925 = vunpack.c.l.b16 %v1104
      %v2926 = vunpack.c.l.b16 %v1105
      %v2927 = vunpack.c.l.b16 %v1106
      %v2928 = vunpack.c.l.b16 %v1107
      %v2929 = vunpack.c.l.b16 %v1108
      %v2930 = vunpack.c.l.b16 %v1109
      %v2931 = vunpack.c.l.b16 %v1110
      %v2932 = vunpack.c.l.b16 %v1111
      %v2933 = vunpack.c.l.b16 %v1112
      %v2934 = vunpack.c.l.b16 %v1113
      %v2935 = vunpack.c.l.b16 %v1114
      %v2936 = vunpack.c.l.b16 %v1115
      %v2937 = vunpack.c.l.b16 %v1116
      %v2938 = vunpack.c.l.b16 %v1117
      %v2939 = vunpack.c.l.b16 %v1118
      %v2940 = vunpack.c.l.b16 %v1119
      %v2941 = vpack.c.b16 %v2158, %v2157
      %v2942 = vpack.c.b16 %v2160, %v2159
      %v2943 = vpack.c.b16 %v2162, %v2161
      %v2944 = vpack.c.b16 %v2164, %v2163
      %v2945 = vpack.c.b16 %v2166, %v2165
      %v2946 = vpack.c.b16 %v2168, %v2167
      %v2947 = vpack.c.b16 %v2170, %v2169
      %v2948 = vpack.c.b16 %v2172, %v2171
      %v2949 = vpack.c.b16 %v2174, %v2173
      %v2950 = vpack.c.b16 %v2176, %v2175
      %v2951 = vpack.c.b16 %v2178, %v2177
      %v2952 = vpack.c.b16 %v2180, %v2179
      %v2953 = vpack.c.b16 %v2182, %v2181
      %v2954 = vpack.c.b16 %v2184, %v2183
      %v2955 = vpack.c.b16 %v2186, %v2185
      %v2956 = vpack.c.b16 %v2188, %v2187
      %v2957 = vpack.c.b16 %v2190, %v2189
      %v2958 = vpack.c.b16 %v2192, %v2191
      %v2959 = vpack.c.b16 %v2194, %v2193
      %v2960 = vpack.c.b16 %v2196, %v2195
      %v2961 = vpack.c.b16 %v2198, %v2197
      %v2962 = vpack.c.b16 %v2200, %v2199
      %v2963 = vpack.c.b16 %v2202, %v2201
      %v2964 = vpack.c.b16 %v2204, %v2203
      %v2965 = vpack.c.b16 %v2206, %v2205
      %v2966 = vpack.c.b16 %v2208, %v2207
      %v2967 = vpack.c.b16 %v2210, %v2209
      %v2968 = vpack.c.b16 %v2212, %v2211
      %v2969 = vpack.c.b16 %v2214, %v2213
      %v2970 = vpack.c.b16 %v2216, %v2215
      %v2971 = vpack.c.b16 %v2218, %v2217
      %v2972 = vpack.c.b16 %v2220, %v2219
      %v2973 = vpack.c.b16 %v2222, %v2221
      %v2974 = vpack.c.b16 %v2224, %v2223
      %v2975 = vpack.c.b16 %v2226, %v2225
      %v2976 = vpack.c.b16 %v2228, %v2227
      %v2977 = vpack.c.b16 %v2230, %v2229
      %v2978 = vpack.c.b16 %v2232, %v2231
      %v2979 = vpack.c.b16 %v2234, %v2233
      %v2980 = vpack.c.b16 %v2236, %v2235
      %v2981 = vpack.c.b16 %v2238, %v2237
      %v2982 = vpack.c.b16 %v2240, %v2239
      %v2983 = vpack.c.b16 %v2242, %v2241
      %v2984 = vpack.c.b16 %v2244, %v2243
      %v2985 = vpack.c.b16 %v2246, %v2245
      %v2986 = vpack.c.b16 %v2248, %v2247
      %v2987 = vpack.c.b16 %v2250, %v2249
      %v2988 = vpack.c.b16 %v2252, %v2251
      %v2989 = vpack.c.b16 %v2254, %v2253
      %v2990 = vpack.c.b16 %v2256, %v2255
      %v2991 = vpack.c.b16 %v2258, %v2257
      %v2992 = vpack.c.b16 %v2260, %v2259
      %v2993 = vpack.c.b16 %v2262, %v2261
      %v2994 = vpack.c.b16 %v2264, %v2263
      %v2995 = vpack.c.b16 %v2266, %v2265
      %v2996 = vpack.c.b16 %v2268, %v2267
      %v2997 = vpack.c.b16 %v2270, %v2269
      %v2998 = vpack.c.b16 %v2272, %v2271
      %v2999 = vpack.c.b16 %v2274, %v2273
      %v3000 = vpack.c.b16 %v2276, %v2275
      %v3001 = vpack.c.b16 %v2278, %v2277
      %v3002 = vpack.c.b16 %v2280, %v2279
      %v3003 = vpack.c.b16 %v2282, %v2281
      %v3004 = vpack.c.b16 %v2284, %v2283
      %v3005 = vpack.c.b16 %v2286, %v2285
      %v3006 = vpack.c.b16 %v2288, %v2287
      %v3007 = vpack.c.b16 %v2290, %v2289
      %v3008 = vpack.c.b16 %v2292, %v2291
      %v3009 = vpack.c.b16 %v2294, %v2293
      %v3010 = vpack.c.b16 %v2296, %v2295
      %v3011 = vpack.c.b16 %v2298, %v2297
      %v3012 = vpack.c.b16 %v2300, %v2299
      %v3013 = vpack.c.b16 %v2302, %v2301
      %v3014 = vpack.c.b16 %v2304, %v2303
      %v3015 = vpack.c.b16 %v2306, %v2305
      %v3016 = vpack.c.b16 %v2308, %v2307
      %v3017 = vpack.c.b16 %v2310, %v2309
      %v3018 = vpack.c.b16 %v2312, %v2311
      %v3019 = vpack.c.b16 %v2314, %v2313
      %v3020 = vpack.c.b16 %v2316, %v2315
      %v3021 = vpack.c.b16 %v2318, %v2317
      %v3022 = vpack.c.b16 %v2320, %v2319
      %v3023 = vpack.c.b16 %v2322, %v2321
      %v3024 = vpack.c.b16 %v2324, %v2323
      %v3025 = vpack.c.b16 %v2326, %v2325
      %v3026 = vpack.c.b16 %v2328, %v2327
      %v3027 = vpack.c.b16 %v2330, %v2329
      %v3028 = vpack.c.b16 %v2332, %v2331
      %v3029 = vpack.c.b16 %v2334, %v2333
      %v3030 = vpack.c.b16 %v2336, %v2335
      %v3031 = vpack.c.b16 %v2338, %v2337
      %v3032 = vpack.c.b16 %v2340, %v2339
      %v3033 = vpack.c.b16 %v2342, %v2341
      %v3034 = vpack.c.b16 %v2344, %v2343
      %v3035 = vpack.c.b16 %v2346, %v2345
      %v3036 = vpack.c.b16 %v2348, %v2347
      %v3037 = vpack.c.b16 %v2350, %v2349
      %v3038 = vpack.c.b16 %v2352, %v2351
      %v3039 = vpack.c.b16 %v2354, %v2353
      %v3040 = vpack.c.b16 %v2356, %v2355
      %v3041 = vpack.c.b16 %v2358, %v2357
      %v3042 = vpack.c.b16 %v2360, %v2359
      %v3043 = vpack.c.b16 %v2362, %v2361
      %v3044 = vpack.c.b16 %v2364, %v2363
      %v3045 = vpack.c.b16 %v2366, %v2365
      %v3046 = vpack.c.b16 %v2368, %v2367
      %v3047 = vpack.c.b16 %v2370, %v2369
      %v3048 = vpack.c.b16 %v2372, %v2371
      %v3049 = vpack.c.b16 %v2374, %v2373
      %v3050 = vpack.c.b16 %v2376, %v2375
      %v3051 = vpack.c.b16 %v2378, %v2377
      %v3052 = vpack.c.b16 %v2380, %v2379
      %v3053 = vpack.c.b16 %v2382, %v2381
      %v3054 = vpack.c.b16 %v2384, %v2383
      %v3055 = vpack.c.b16 %v2386, %v2385
      %v3056 = vpack.c.b16 %v2388, %v2387
      %v3057 = vpack.c.b16 %v2390, %v2389
      %v3058 = vpack.c.b16 %v2392, %v2391
      %v3059 = vpack.c.b16 %v2394, %v2393
      %v3060 = vpack.c.b16 %v2396, %v2395
      %v3061 = vpack.c.b16 %v2398, %v2397
      %v3062 = vpack.c.b16 %v2400, %v2399
      %v3063 = vpack.c.b16 %v2402, %v2401
      %v3064 = vpack.c.b16 %v2404, %v2403
      %v3065 = vpack.c.b16 %v2406, %v2405
      %v3066 = vpack.c.b16 %v2408, %v2407
      %v3067 = vpack.c.b16 %v2410, %v2409
      %v3068 = vpack.c.b16 %v2412, %v2411
      %v3069 = vpack.c.b16 %v2414, %v2413
      %v3070 = vpack.c.b16 %v2416, %v2415
      %v3071 = vpack.c.b16 %v2418, %v2417
      %v3072 = vpack.c.b16 %v2420, %v2419
      %v3073 = vpack.c.b16 %v2422, %v2421
      %v3074 = vpack.c.b16 %v2424, %v2423
      %v3075 = vpack.c.b16 %v2426, %v2425
      %v3076 = vpack.c.b16 %v2428, %v2427
      %v3077 = vpack.c.b16 %v2430, %v2429
      %v3078 = vpack.c.b16 %v2432, %v2431
      %v3079 = vpack.c.b16 %v2434, %v2433
      %v3080 = vpack.c.b16 %v2436, %v2435
      %v3081 = vpack.c.b16 %v2438, %v2437
      %v3082 = vpack.c.b16 %v2440, %v2439
      %v3083 = vpack.c.b16 %v2442, %v2441
      %v3084 = vpack.c.b16 %v2444, %v2443
      %v3085 = vpack.c.b16 %v2446, %v2445
      %v3086 = vpack.c.b16 %v2448, %v2447
      %v3087 = vpack.c.b16 %v2450, %v2449
      %v3088 = vpack.c.b16 %v2452, %v2451
      %v3089 = vpack.c.b16 %v2454, %v2453
      %v3090 = vpack.c.b16 %v2456, %v2455
      %v3091 = vpack.c.b16 %v2458, %v2457
      %v3092 = vpack.c.b16 %v2460, %v2459
      %v3093 = vpack.c.b16 %v2462, %v2461
      %v3094 = vpack.c.b16 %v2464, %v2463
      %v3095 = vpack.c.b16 %v2466, %v2465
      %v3096 = vpack.c.b16 %v2468, %v2467
      %v3097 = vpack.c.b16 %v2470, %v2469
      %v3098 = vpack.c.b16 %v2472, %v2471
      %v3099 = vpack.c.b16 %v2474, %v2473
      %v3100 = vpack.c.b16 %v2476, %v2475
      %v3101 = vpack.c.b16 %v2478, %v2477
      %v3102 = vpack.c.b16 %v2480, %v2479
      %v3103 = vpack.c.b16 %v2482, %v2481
      %v3104 = vpack.c.b16 %v2484, %v2483
      %v3105 = vpack.c.b16 %v2486, %v2485
      %v3106 = vpack.c.b16 %v2488, %v2487
      %v3107 = vpack.c.b16 %v2490, %v2489
      %v3108 = vpack.c.b16 %v2492, %v2491
      %v3109 = vpack.c.b16 %v2494, %v2493
      %v3110 = vpack.c.b16 %v2496, %v2495
      %v3111 = vpack.c.b16 %v2498, %v2497
      %v3112 = vpack.c.b16 %v2500, %v2499
      %v3113 = vpack.c.b16 %v2502, %v2501
      %v3114 = vpack.c.b16 %v2504, %v2503
      %v3115 = vpack.c.b16 %v2506, %v2505
      %v3116 = vpack.c.b16 %v2508, %v2507
      %v3117 = vpack.c.b16 %v2510, %v2509
      %v3118 = vpack.c.b16 %v2512, %v2511
      %v3119 = vpack.c.b16 %v2514, %v2513
      %v3120 = vpack.c.b16 %v2516, %v2515
      %v3121 = vpack.c.b16 %v2518, %v2517
      %v3122 = vpack.c.b16 %v2520, %v2519
      %v3123 = vpack.c.b16 %v2522, %v2521
      %v3124 = vpack.c.b16 %v2524, %v2523
      %v3125 = vpack.c.b16 %v2526, %v2525
      %v3126 = vpack.c.b16 %v2528, %v2527
      %v3127 = vpack.c.b16 %v2530, %v2529
      %v3128 = vpack.c.b16 %v2532, %v2531
      %v3129 = vpack.c.b16 %v2534, %v2533
      %v3130 = vpack.c.b16 %v2536, %v2535
      %v3131 = vpack.c.b16 %v2538, %v2537
      %v3132 = vpack.c.b16 %v2540, %v2539
      %v3133 = vpack.c.b16 %v2542, %v2541
      %v3134 = vpack.c.b16 %v2544, %v2543
      %v3135 = vpack.c.b16 %v2546, %v2545
      %v3136 = vpack.c.b16 %v2548, %v2547
      %v3137 = vpack.c.b16 %v2550, %v2549
      %v3138 = vpack.c.b16 %v2552, %v2551
      %v3139 = vpack.c.b16 %v2554, %v2553
      %v3140 = vpack.c.b16 %v2556, %v2555
      %v3141 = vpack.c.b16 %v2558, %v2557
      %v3142 = vpack.c.b16 %v2560, %v2559
      %v3143 = vpack.c.b16 %v2562, %v2561
      %v3144 = vpack.c.b16 %v2564, %v2563
      %v3145 = vpack.c.b16 %v2566, %v2565
      %v3146 = vpack.c.b16 %v2568, %v2567
      %v3147 = vpack.c.b16 %v2570, %v2569
      %v3148 = vpack.c.b16 %v2572, %v2571
      %v3149 = vpack.c.b16 %v2574, %v2573
      %v3150 = vpack.c.b16 %v2576, %v2575
      %v3151 = vpack.c.b16 %v2578, %v2577
      %v3152 = vpack.c.b16 %v2580, %v2579
      %v3153 = vpack.c.b16 %v2582, %v2581
      %v3154 = vpack.c.b16 %v2584, %v2583
      %v3155 = vpack.c.b16 %v2586, %v2585
      %v3156 = vpack.c.b16 %v2588, %v2587
      %v3157 = vpack.c.b16 %v2590, %v2589
      %v3158 = vpack.c.b16 %v2592, %v2591
      %v3159 = vpack.c.b16 %v2594, %v2593
      %v3160 = vpack.c.b16 %v2596, %v2595
      %v3161 = vpack.c.b16 %v2598, %v2597
      %v3162 = vpack.c.b16 %v2600, %v2599
      %v3163 = vpack.c.b16 %v2602, %v2601
      %v3164 = vpack.c.b16 %v2604, %v2603
      %v3165 = vpack.c.b16 %v2606, %v2605
      %v3166 = vpack.c.b16 %v2608, %v2607
      %v3167 = vpack.c.b16 %v2610, %v2609
      %v3168 = vpack.c.b16 %v2612, %v2611
      %v3169 = vpack.c.b16 %v2614, %v2613
      %v3170 = vpack.c.b16 %v2616, %v2615
      %v3171 = vpack.c.b16 %v2618, %v2617
      %v3172 = vpack.c.b16 %v2620, %v2619
      %v3173 = vpack.c.b16 %v2622, %v2621
      %v3174 = vpack.c.b16 %v2624, %v2623
      %v3175 = vpack.c.b16 %v2626, %v2625
      %v3176 = vpack.c.b16 %v2628, %v2627
      %v3177 = vpack.c.b16 %v2630, %v2629
      %v3178 = vpack.c.b16 %v2632, %v2631
      %v3179 = vpack.c.b16 %v2634, %v2633
      %v3180 = vpack.c.b16 %v2636, %v2635
      %v3181 = vpack.c.b16 %v2638, %v2637
      %v3182 = vpack.c.b16 %v2640, %v2639
      %v3183 = vpack.c.b16 %v2642, %v2641
      %v3184 = vpack.c.b16 %v2644, %v2643
      %v3185 = vpack.c.b16 %v2646, %v2645
      %v3186 = vpack.c.b16 %v2648, %v2647
      %v3187 = vpack.c.b16 %v2650, %v2649
      %v3188 = vpack.c.b16 %v2652, %v2651
      %v3189 = vpack.c.b16 %v2654, %v2653
      %v3190 = vpack.c.b16 %v2656, %v2655
      %v3191 = vpack.c.b16 %v2658, %v2657
      %v3192 = vpack.c.b16 %v2660, %v2659
      %v3193 = vpack.c.b16 %v2662, %v2661
      %v3194 = vpack.c.b16 %v2664, %v2663
      %v3195 = vpack.c.b16 %v2666, %v2665
      %v3196 = vpack.c.b16 %v2668, %v2667
      %v3197 = vpack.c.b16 %v2670, %v2669
      %v3198 = vpack.c.b16 %v2672, %v2671
      %v3199 = vpack.c.b16 %v2674, %v2673
      %v3200 = vpack.c.b16 %v2676, %v2675
      %v3201 = vpack.c.b16 %v2678, %v2677
      %v3202 = vpack.c.b16 %v2680, %v2679
      %v3203 = vpack.c.b16 %v2682, %v2681
      %v3204 = vpack.c.b16 %v2684, %v2683
      %v3205 = vpack.c.b16 %v2686, %v2685
      %v3206 = vpack.c.b16 %v2688, %v2687
      %v3207 = vpack.c.b16 %v2690, %v2689
      %v3208 = vpack.c.b16 %v2692, %v2691
      %v3209 = vpack.c.b16 %v2694, %v2693
      %v3210 = vpack.c.b16 %v2696, %v2695
      %v3211 = vpack.c.b16 %v2698, %v2697
      %v3212 = vpack.c.b16 %v2700, %v2699
      %v3213 = vpack.c.b16 %v2702, %v2701
      %v3214 = vpack.c.b16 %v2704, %v2703
      %v3215 = vpack.c.b16 %v2706, %v2705
      %v3216 = vpack.c.b16 %v2708, %v2707
      %v3217 = vpack.c.b16 %v2710, %v2709
      %v3218 = vpack.c.b16 %v2712, %v2711
      %v3219 = vpack.c.b16 %v2714, %v2713
      %v3220 = vpack.c.b16 %v2716, %v2715
      %v3221 = vpack.c.b16 %v2718, %v2717
      %v3222 = vpack.c.b16 %v2720, %v2719
      %v3223 = vpack.c.b16 %v2722, %v2721
      %v3224 = vpack.c.b16 %v2724, %v2723
      %v3225 = vpack.c.b16 %v2726, %v2725
      %v3226 = vpack.c.b16 %v2728, %v2727
      %v3227 = vpack.c.b16 %v2730, %v2729
      %v3228 = vpack.c.b16 %v2732, %v2731
      %v3229 = vpack.c.b16 %v2734, %v2733
      %v3230 = vpack.c.b16 %v2736, %v2735
      %v3231 = vpack.c.b16 %v2738, %v2737
      %v3232 = vpack.c.b16 %v2740, %v2739
      %v3233 = vpack.c.b16 %v2742, %v2741
      %v3234 = vpack.c.b16 %v2744, %v2743
      %v3235 = vpack.c.b16 %v2746, %v2745
      %v3236 = vpack.c.b16 %v2748, %v2747
      %v3237 = vpack.c.b16 %v2750, %v2749
      %v3238 = vpack.c.b16 %v2752, %v2751
      %v3239 = vpack.c.b16 %v2754, %v2753
      %v3240 = vpack.c.b16 %v2756, %v2755
      %v3241 = vpack.c.b16 %v2758, %v2757
      %v3242 = vpack.c.b16 %v2760, %v2759
      %v3243 = vpack.c.b16 %v2762, %v2761
      %v3244 = vpack.c.b16 %v2764, %v2763
      %v3245 = vpack.c.b16 %v2766, %v2765
      %v3246 = vpack.c.b16 %v2768, %v2767
      %v3247 = vpack.c.b16 %v2770, %v2769
      %v3248 = vpack.c.b16 %v2772, %v2771
      %v3249 = vpack.c.b16 %v2774, %v2773
      %v3250 = vpack.c.b16 %v2776, %v2775
      %v3251 = vpack.c.b16 %v2778, %v2777
      %v3252 = vpack.c.b16 %v2780, %v2779
      %v3253 = vpack.c.b16 %v2782, %v2781
      %v3254 = vpack.c.b16 %v2784, %v2783
      %v3255 = vpack.c.b16 %v2786, %v2785
      %v3256 = vpack.c.b16 %v2788, %v2787
      %v3257 = vpack.c.b16 %v2790, %v2789
      %v3258 = vpack.c.b16 %v2792, %v2791
      %v3259 = vpack.c.b16 %v2794, %v2793
      %v3260 = vpack.c.b16 %v2796, %v2795
      %v3261 = vpack.c.b16 %v2798, %v2797
      %v3262 = vpack.c.b16 %v2800, %v2799
      %v3263 = vpack.c.b16 %v2802, %v2801
      %v3264 = vpack.c.b16 %v2804, %v2803
      %v3265 = vpack.c.b16 %v2806, %v2805
      %v3266 = vpack.c.b16 %v2808, %v2807
      %v3267 = vpack.c.b16 %v2810, %v2809
      %v3268 = vpack.c.b16 %v2812, %v2811
      %v3269 = vpack.c.b16 %v2814, %v2813
      %v3270 = vpack.c.b16 %v2816, %v2815
      %v3271 = vpack.c.b16 %v2818, %v2817
      %v3272 = vpack.c.b16 %v2820, %v2819
      %v3273 = vpack.c.b16 %v2822, %v2821
      %v3274 = vpack.c.b16 %v2824, %v2823
      %v3275 = vpack.c.b16 %v2826, %v2825
      %v3276 = vpack.c.b16 %v2828, %v2827
      %v3277 = vpack.c.b16 %v2830, %v2829
      %v3278 = vpack.c.b16 %v2832, %v2831
      %v3279 = vpack.c.b16 %v2834, %v2833
      %v3280 = vpack.c.b16 %v2836, %v2835
      %v3281 = vpack.c.b16 %v2838, %v2837
      %v3282 = vpack.c.b16 %v2840, %v2839
      %v3283 = vpack.c.b16 %v2842, %v2841
      %v3284 = vpack.c.b16 %v2844, %v2843
      %v3285 = vpack.c.b16 %v2846, %v2845
      %v3286 = vpack.c.b16 %v2848, %v2847
      %v3287 = vpack.c.b16 %v2850, %v2849
      %v3288 = vpack.c.b16 %v2852, %v2851
      %v3289 = vpack.c.b16 %v2854, %v2853
      %v3290 = vpack.c.b16 %v2856, %v2855
      %v3291 = vpack.c.b16 %v2858, %v2857
      %v3292 = vpack.c.b16 %v2860, %v2859
      %v3293 = vpack.c.b16 %v2862, %v2861
      %v3294 = vpack.c.b16 %v2864, %v2863
      %v3295 = vpack.c.b16 %v2866, %v2865
      %v3296 = vpack.c.b16 %v2868, %v2867
      %v3297 = vpack.c.b16 %v2870, %v2869
      %v3298 = vpack.c.b16 %v2872, %v2871
      %v3299 = vpack.c.b16 %v2874, %v2873
      %v3300 = vpack.c.b16 %v2876, %v2875
      %v3301 = vpack.c.b16 %v2878, %v2877
      %v3302 = vpack.c.b16 %v2880, %v2879
      %v3303 = vpack.c.b16 %v2882, %v2881
      %v3304 = vpack.c.b16 %v2884, %v2883
      %v3305 = vpack.c.b16 %v2886, %v2885
      %v3306 = vpack.c.b16 %v2888, %v2887
      %v3307 = vpack.c.b16 %v2890, %v2889
      %v3308 = vpack.c.b16 %v2892, %v2891
      %v3309 = vpack.c.b16 %v2894, %v2893
      %v3310 = vpack.c.b16 %v2896, %v2895
      %v3311 = vpack.c.b16 %v2898, %v2897
      %v3312 = vpack.c.b16 %v2900, %v2899
      %v3313 = vpack.c.b16 %v2902, %v2901
      %v3314 = vpack.c.b16 %v2904, %v2903
      %v3315 = vpack.c.b16 %v2906, %v2905
      %v3316 = vpack.c.b16 %v2908, %v2907
      %v3317 = vpack.c.b16 %v2910, %v2909
      %v3318 = vpack.c.b16 %v2912, %v2911
      %v3319 = vpack.c.b16 %v2914, %v2913
      %v3320 = vpack.c.b16 %v2916, %v2915
      %v3321 = vpack.c.b16 %v2918, %v2917
      %v3322 = vpack.c.b16 %v2920, %v2919
      %v3323 = vpack.c.b16 %v2922, %v2921
      %v3324 = vpack.c.b16 %v2924, %v2923
      %v3325 = vpack.c.b16 %v2926, %v2925
      %v3326 = vpack.c.b16 %v2928, %v2927
      %v3327 = vpack.c.b16 %v2930, %v2929
      %v3328 = vpack.c.b16 %v2932, %v2931
      %v3329 = vpack.c.b16 %v2934, %v2933
      %v3330 = vpack.c.b16 %v2936, %v2935
      %v3331 = vpack.c.b16 %v2938, %v2937
      %v3332 = vpack.c.b16 %v2940, %v2939
      %3725 = vmatprep.subr.bf16.mxu0 0
      %3726 = vmatpush1.bf16.msra.mxu0 %v2941
      %3727 = vmatprep.subr.bf16.mxu0 0
      %3728 = vmatpush1.bf16.msra.mxu0 %v2942
      %3729 = vmatprep.subr.bf16.mxu0 0
      %3730 = vmatpush1.bf16.msra.mxu0 %v2943
      %3731 = vmatprep.subr.bf16.mxu0 0
      %3732 = vmatpush1.bf16.msra.mxu0 %v2944
      %3733 = vmatprep.subr.bf16.mxu0 0
      %3734 = vmatpush1.bf16.msra.mxu0 %v2945
      %3735 = vmatprep.subr.bf16.mxu0 0
      %3736 = vmatpush1.bf16.msra.mxu0 %v2946
      %3737 = vmatprep.subr.bf16.mxu0 0
      %3738 = vmatpush1.bf16.msra.mxu0 %v2947
      %3739 = vmatprep.subr.bf16.mxu0 0
      %3740 = vmatpush1.bf16.msra.mxu0 %v2948
      %3741 = vmatprep.subr.bf16.mxu0 0
      %3742 = vmatpush1.bf16.msra.mxu0 %v2949
      %3743 = vmatprep.subr.bf16.mxu0 0
      %3744 = vmatpush1.bf16.msra.mxu0 %v2950
      %3745 = vmatprep.subr.bf16.mxu0 0
      %3746 = vmatpush1.bf16.msra.mxu0 %v2951
      %3747 = vmatprep.subr.bf16.mxu0 0
      %3748 = vmatpush1.bf16.msra.mxu0 %v2952
      %3749 = vmatprep.subr.bf16.mxu0 0
      %3750 = vmatpush1.bf16.msra.mxu0 %v2953
      %3751 = vmatprep.subr.bf16.mxu0 0
      %3752 = vmatpush1.bf16.msra.mxu0 %v2954
      %3753 = vmatprep.subr.bf16.mxu0 0
      %3754 = vmatpush1.bf16.msra.mxu0 %v2955
      %3755 = vmatprep.subr.bf16.mxu0 0
      %3756 = vmatpush1.bf16.msra.mxu0 %v2956
      %3757 = vmatprep.mubr.bf16.mxu0 %v1276
      %3758 = vmatmul.mubr.bf16.gmra.mrb[0].mxu0 %v1275
      %v3759 = vpop.f32.mrb[0].mxu0
      %v3760 = vadd.f32 %v1125, %v3759
      %v3761 = vpop.f32.mrb[0].mxu0
      %v3762 = vpop.f32.mrb[0].mxu0
      %v3763 = vadd.f32 %v1125, %v3762
      %v3764 = vpop.f32.mrb[0].mxu0
      %3765 = vdwg.mxu0
      %3766 = vmatprep.subr.bf16.mxu0 0
      %3767 = vmatpush1.bf16.msra.mxu0 %v2957
      %3768 = vmatprep.subr.bf16.mxu0 0
      %3769 = vmatpush1.bf16.msra.mxu0 %v2958
      %3770 = vmatprep.subr.bf16.mxu0 0
      %3771 = vmatpush1.bf16.msra.mxu0 %v2959
      %3772 = vmatprep.subr.bf16.mxu0 0
      %3773 = vmatpush1.bf16.msra.mxu0 %v2960
      %3774 = vmatprep.subr.bf16.mxu0 0
      %3775 = vmatpush1.bf16.msra.mxu0 %v2961
      %3776 = vmatprep.subr.bf16.mxu0 0
      %3777 = vmatpush1.bf16.msra.mxu0 %v2962
      %3778 = vmatprep.subr.bf16.mxu0 0
      %3779 = vmatpush1.bf16.msra.mxu0 %v2963
      %3780 = vmatprep.subr.bf16.mxu0 0
      %3781 = vmatpush1.bf16.msra.mxu0 %v2964
      %3782 = vmatprep.subr.bf16.mxu0 0
      %3783 = vmatpush1.bf16.msra.mxu0 %v2965
      %3784 = vmatprep.subr.bf16.mxu0 0
      %3785 = vmatpush1.bf16.msra.mxu0 %v2966
      %3786 = vmatprep.subr.bf16.mxu0 0
      %3787 = vmatpush1.bf16.msra.mxu0 %v2967
      %3788 = vmatprep.subr.bf16.mxu0 0
      %3789 = vmatpush1.bf16.msra.mxu0 %v2968
      %3790 = vmatprep.subr.bf16.mxu0 0
      %3791 = vmatpush1.bf16.msra.mxu0 %v2969
      %3792 = vmatprep.subr.bf16.mxu0 0
      %3793 = vmatpush1.bf16.msra.mxu0 %v2970
      %3794 = vmatprep.subr.bf16.mxu0 0
      %3795 = vmatpush1.bf16.msra.mxu0 %v2971
      %3796 = vmatprep.subr.bf16.mxu0 0
      %3797 = vmatpush1.bf16.msra.mxu0 %v2972
      %3798 = vmatprep.mubr.bf16.mxu0 %v1278
      %3799 = vmatmul.mubr.bf16.gmra.mrb[0].mxu0 %v1277
      %v3800 = vpop.f32.mrb[0].mxu0
      %v3801 = vadd.f32 %v3760, %v3800
      %v3802 = vpop.f32.mrb[0].mxu0
      %v3803 = vpop.f32.mrb[0].mxu0
      %v3804 = vadd.f32 %v3763, %v3803
      %v3805 = vpop.f32.mrb[0].mxu0
      %3806 = vdwg.mxu0
      %3807 = vmatprep.subr.bf16.mxu0 0
      %3808 = vmatpush1.bf16.msra.mxu0 %v2973
      %3809 = vmatprep.subr.bf16.mxu0 0
      %3810 = vmatpush1.bf16.msra.mxu0 %v2974
      %3811 = vmatprep.subr.bf16.mxu0 0
      %3812 = vmatpush1.bf16.msra.mxu0 %v2975
      %3813 = vmatprep.subr.bf16.mxu0 0
      %3814 = vmatpush1.bf16.msra.mxu0 %v2976
      %3815 = vmatprep.subr.bf16.mxu0 0
      %3816 = vmatpush1.bf16.msra.mxu0 %v2977
      %3817 = vmatprep.subr.bf16.mxu0 0
      %3818 = vmatpush1.bf16.msra.mxu0 %v2978
      %3819 = vmatprep.subr.bf16.mxu0 0
      %3820 = vmatpush1.bf16.msra.mxu0 %v2979
      %3821 = vmatprep.subr.bf16.mxu0 0
      %3822 = vmatpush1.bf16.msra.mxu0 %v2980
      %3823 = vmatprep.subr.bf16.mxu0 0
      %3824 = vmatpush1.bf16.msra.mxu0 %v2981
      %3825 = vmatprep.subr.bf16.mxu0 0
      %3826 = vmatpush1.bf16.msra.mxu0 %v2982
      %3827 = vmatprep.subr.bf16.mxu0 0
      %3828 = vmatpush1.bf16.msra.mxu0 %v2983
      %3829 = vmatprep.subr.bf16.mxu0 0
      %3830 = vmatpush1.bf16.msra.mxu0 %v2984
      %3831 = vmatprep.subr.bf16.mxu0 0
      %3832 = vmatpush1.bf16.msra.mxu0 %v2985
      %3833 = vmatprep.subr.bf16.mxu0 0
      %3834 = vmatpush1.bf16.msra.mxu0 %v2986
      %3835 = vmatprep.subr.bf16.mxu0 0
      %3836 = vmatpush1.bf16.msra.mxu0 %v2987
      %3837 = vmatprep.subr.bf16.mxu0 0
      %3838 = vmatpush1.bf16.msra.mxu0 %v2988
      %3839 = vmatprep.mubr.bf16.mxu0 %v1280
      %3840 = vmatmul.mubr.bf16.gmra.mrb[0].mxu0 %v1279
      %v3841 = vpop.f32.mrb[0].mxu0
      %v3842 = vadd.f32 %v3801, %v3841
      %v3843 = vpop.f32.mrb[0].mxu0
      %v3844 = vpop.f32.mrb[0].mxu0
      %v3845 = vadd.f32 %v3804, %v3844
      %v3846 = vpop.f32.mrb[0].mxu0
      %3847 = vdwg.mxu0
      %3848 = vmatprep.subr.bf16.mxu0 0
      %3849 = vmatpush1.bf16.msra.mxu0 %v2989
      %3850 = vmatprep.subr.bf16.mxu0 0
      %3851 = vmatpush1.bf16.msra.mxu0 %v2990
      %3852 = vmatprep.subr.bf16.mxu0 0
      %3853 = vmatpush1.bf16.msra.mxu0 %v2991
      %3854 = vmatprep.subr.bf16.mxu0 0
      %3855 = vmatpush1.bf16.msra.mxu0 %v2992
      %3856 = vmatprep.subr.bf16.mxu0 0
      %3857 = vmatpush1.bf16.msra.mxu0 %v2993
      %3858 = vmatprep.subr.bf16.mxu0 0
      %3859 = vmatpush1.bf16.msra.mxu0 %v2994
      %3860 = vmatprep.subr.bf16.mxu0 0
      %3861 = vmatpush1.bf16.msra.mxu0 %v2995
      %3862 = vmatprep.subr.bf16.mxu0 0
      %3863 = vmatpush1.bf16.msra.mxu0 %v2996
      %3864 = vmatprep.subr.bf16.mxu0 0
      %3865 = vmatpush1.bf16.msra.mxu0 %v2997
      %3866 = vmatprep.subr.bf16.mxu0 0
      %3867 = vmatpush1.bf16.msra.mxu0 %v2998
      %3868 = vmatprep.subr.bf16.mxu0 0
      %3869 = vmatpush1.bf16.msra.mxu0 %v2999
      %3870 = vmatprep.subr.bf16.mxu0 0
      %3871 = vmatpush1.bf16.msra.mxu0 %v3000
      %3872 = vmatprep.subr.bf16.mxu0 0
      %3873 = vmatpush1.bf16.msra.mxu0 %v3001
      %3874 = vmatprep.subr.bf16.mxu0 0
      %3875 = vmatpush1.bf16.msra.mxu0 %v3002
      %3876 = vmatprep.subr.bf16.mxu0 0
      %3877 = vmatpush1.bf16.msra.mxu0 %v3003
      %3878 = vmatprep.subr.bf16.mxu0 0
      %3879 = vmatpush1.bf16.msra.mxu0 %v3004
      %3880 = vmatprep.mubr.bf16.mxu0 %v1282
      %3881 = vmatmul.mubr.bf16.gmra.mrb[0].mxu0 %v1281
      %v3882 = vpop.f32.mrb[0].mxu0
      %v3883 = vadd.f32 %v3842, %v3882
      %v3884 = vpop.f32.mrb[0].mxu0
      %v3885 = vpop.f32.mrb[0].mxu0
      %v3886 = vadd.f32 %v3845, %v3885
      %v3887 = vpop.f32.mrb[0].mxu0
      %3888 = vdwg.mxu0
      %3889 = vmatprep.subr.bf16.mxu0 0
      %3890 = vmatpush1.bf16.msra.mxu0 %v3005
      %3891 = vmatprep.subr.bf16.mxu0 0
      %3892 = vmatpush1.bf16.msra.mxu0 %v3006
      %3893 = vmatprep.subr.bf16.mxu0 0
      %3894 = vmatpush1.bf16.msra.mxu0 %v3007
      %3895 = vmatprep.subr.bf16.mxu0 0
      %3896 = vmatpush1.bf16.msra.mxu0 %v3008
      %3897 = vmatprep.subr.bf16.mxu0 0
      %3898 = vmatpush1.bf16.msra.mxu0 %v3009
      %3899 = vmatprep.subr.bf16.mxu0 0
      %3900 = vmatpush1.bf16.msra.mxu0 %v3010
      %3901 = vmatprep.subr.bf16.mxu0 0
      %3902 = vmatpush1.bf16.msra.mxu0 %v3011
      %3903 = vmatprep.subr.bf16.mxu0 0
      %3904 = vmatpush1.bf16.msra.mxu0 %v3012
      %3905 = vmatprep.subr.bf16.mxu0 0
      %3906 = vmatpush1.bf16.msra.mxu0 %v3013
      %3907 = vmatprep.subr.bf16.mxu0 0
      %3908 = vmatpush1.bf16.msra.mxu0 %v3014
      %3909 = vmatprep.subr.bf16.mxu0 0
      %3910 = vmatpush1.bf16.msra.mxu0 %v3015
      %3911 = vmatprep.subr.bf16.mxu0 0
      %3912 = vmatpush1.bf16.msra.mxu0 %v3016
      %3913 = vmatprep.subr.bf16.mxu0 0
      %3914 = vmatpush1.bf16.msra.mxu0 %v3017
      %3915 = vmatprep.subr.bf16.mxu0 0
      %3916 = vmatpush1.bf16.msra.mxu0 %v3018
      %3917 = vmatprep.subr.bf16.mxu0 0
      %3918 = vmatpush1.bf16.msra.mxu0 %v3019
      %3919 = vmatprep.subr.bf16.mxu0 0
      %3920 = vmatpush1.bf16.msra.mxu0 %v3020
      %3921 = vmatprep.mubr.bf16.mxu0 %v1284
      %3922 = vmatmul.mubr.bf16.gmra.mrb[0].mxu0 %v1283
      %v3923 = vpop.f32.mrb[0].mxu0
      %v3924 = vadd.f32 %v3883, %v3923
      %v3925 = vpop.f32.mrb[0].mxu0
      %v3926 = vpop.f32.mrb[0].mxu0
      %v3927 = vadd.f32 %v3886, %v3926
      %v3928 = vpop.f32.mrb[0].mxu0
      %3929 = vdwg.mxu0
      %3930 = vmatprep.subr.bf16.mxu0 0
      %3931 = vmatpush1.bf16.msra.mxu0 %v3021
      %3932 = vmatprep.subr.bf16.mxu0 0
      %3933 = vmatpush1.bf16.msra.mxu0 %v3022
      %3934 = vmatprep.subr.bf16.mxu0 0
      %3935 = vmatpush1.bf16.msra.mxu0 %v3023
      %3936 = vmatprep.subr.bf16.mxu0 0
      %3937 = vmatpush1.bf16.msra.mxu0 %v3024
      %3938 = vmatprep.subr.bf16.mxu0 0
      %3939 = vmatpush1.bf16.msra.mxu0 %v3025
      %3940 = vmatprep.subr.bf16.mxu0 0
      %3941 = vmatpush1.bf16.msra.mxu0 %v3026
      %3942 = vmatprep.subr.bf16.mxu0 0
      %3943 = vmatpush1.bf16.msra.mxu0 %v3027
      %3944 = vmatprep.subr.bf16.mxu0 0
      %3945 = vmatpush1.bf16.msra.mxu0 %v3028
      %3946 = vmatprep.subr.bf16.mxu0 0
      %3947 = vmatpush1.bf16.msra.mxu0 %v3029
      %3948 = vmatprep.subr.bf16.mxu0 0
      %3949 = vmatpush1.bf16.msra.mxu0 %v3030
      %3950 = vmatprep.subr.bf16.mxu0 0
      %3951 = vmatpush1.bf16.msra.mxu0 %v3031
      %3952 = vmatprep.subr.bf16.mxu0 0
      %3953 = vmatpush1.bf16.msra.mxu0 %v3032
      %3954 = vmatprep.subr.bf16.mxu0 0
      %3955 = vmatpush1.bf16.msra.mxu0 %v3033
      %3956 = vmatprep.subr.bf16.mxu0 0
      %3957 = vmatpush1.bf16.msra.mxu0 %v3034
      %3958 = vmatprep.subr.bf16.mxu0 0
      %3959 = vmatpush1.bf16.msra.mxu0 %v3035
      %3960 = vmatprep.subr.bf16.mxu0 0
      %3961 = vmatpush1.bf16.msra.mxu0 %v3036
      %3962 = vmatprep.mubr.bf16.mxu0 %v1286
      %3963 = vmatmul.mubr.bf16.gmra.mrb[0].mxu0 %v1285
      %v3964 = vpop.f32.mrb[0].mxu0
      %v3965 = vadd.f32 %v3924, %v3964
      %v3966 = vpop.f32.mrb[0].mxu0
      %v3967 = vpop.f32.mrb[0].mxu0
      %v3968 = vadd.f32 %v3927, %v3967
      %v3969 = vpop.f32.mrb[0].mxu0
      %3970 = vdwg.mxu0
      %3971 = vmatprep.subr.bf16.mxu0 0
      %3972 = vmatpush1.bf16.msra.mxu0 %v3037
      %3973 = vmatprep.subr.bf16.mxu0 0
      %3974 = vmatpush1.bf16.msra.mxu0 %v3038
      %3975 = vmatprep.subr.bf16.mxu0 0
      %3976 = vmatpush1.bf16.msra.mxu0 %v3039
      %3977 = vmatprep.subr.bf16.mxu0 0
      %3978 = vmatpush1.bf16.msra.mxu0 %v3040
      %3979 = vmatprep.subr.bf16.mxu0 0
      %3980 = vmatpush1.bf16.msra.mxu0 %v3041
      %3981 = vmatprep.subr.bf16.mxu0 0
      %3982 = vmatpush1.bf16.msra.mxu0 %v3042
      %3983 = vmatprep.subr.bf16.mxu0 0
      %3984 = vmatpush1.bf16.msra.mxu0 %v3043
      %3985 = vmatprep.subr.bf16.mxu0 0
      %3986 = vmatpush1.bf16.msra.mxu0 %v3044
      %3987 = vmatprep.subr.bf16.mxu0 0
      %3988 = vmatpush1.bf16.msra.mxu0 %v3045
      %3989 = vmatprep.subr.bf16.mxu0 0
      %3990 = vmatpush1.bf16.msra.mxu0 %v3046
      %3991 = vmatprep.subr.bf16.mxu0 0
      %3992 = vmatpush1.bf16.msra.mxu0 %v3047
      %3993 = vmatprep.subr.bf16.mxu0 0
      %3994 = vmatpush1.bf16.msra.mxu0 %v3048
      %3995 = vmatprep.subr.bf16.mxu0 0
      %3996 = vmatpush1.bf16.msra.mxu0 %v3049
      %3997 = vmatprep.subr.bf16.mxu0 0
      %3998 = vmatpush1.bf16.msra.mxu0 %v3050
      %3999 = vmatprep.subr.bf16.mxu0 0
      %4000 = vmatpush1.bf16.msra.mxu0 %v3051
      %4001 = vmatprep.subr.bf16.mxu0 0
      %4002 = vmatpush1.bf16.msra.mxu0 %v3052
      %4003 = vmatprep.mubr.bf16.mxu0 %v1288
      %4004 = vmatmul.mubr.bf16.gmra.mrb[0].mxu0 %v1287
      %v4005 = vpop.f32.mrb[0].mxu0
      %v4006 = vadd.f32 %v3965, %v4005
      %v4007 = vpop.f32.mrb[0].mxu0
      %v4008 = vpop.f32.mrb[0].mxu0
      %v4009 = vadd.f32 %v3968, %v4008
      %v4010 = vpop.f32.mrb[0].mxu0
      %4011 = vdwg.mxu0
      %4012 = vmatprep.subr.bf16.mxu0 0
      %4013 = vmatpush1.bf16.msra.mxu0 %v3053
      %4014 = vmatprep.subr.bf16.mxu0 0
      %4015 = vmatpush1.bf16.msra.mxu0 %v3054
      %4016 = vmatprep.subr.bf16.mxu0 0
      %4017 = vmatpush1.bf16.msra.mxu0 %v3055
      %4018 = vmatprep.subr.bf16.mxu0 0
      %4019 = vmatpush1.bf16.msra.mxu0 %v3056
      %4020 = vmatprep.subr.bf16.mxu0 0
      %4021 = vmatpush1.bf16.msra.mxu0 %v3057
      %4022 = vmatprep.subr.bf16.mxu0 0
      %4023 = vmatpush1.bf16.msra.mxu0 %v3058
      %4024 = vmatprep.subr.bf16.mxu0 0
      %4025 = vmatpush1.bf16.msra.mxu0 %v3059
      %4026 = vmatprep.subr.bf16.mxu0 0
      %4027 = vmatpush1.bf16.msra.mxu0 %v3060
      %4028 = vmatprep.subr.bf16.mxu0 0
      %4029 = vmatpush1.bf16.msra.mxu0 %v3061
      %4030 = vmatprep.subr.bf16.mxu0 0
      %4031 = vmatpush1.bf16.msra.mxu0 %v3062
      %4032 = vmatprep.subr.bf16.mxu0 0
      %4033 = vmatpush1.bf16.msra.mxu0 %v3063
      %4034 = vmatprep.subr.bf16.mxu0 0
      %4035 = vmatpush1.bf16.msra.mxu0 %v3064
      %4036 = vmatprep.subr.bf16.mxu0 0
      %4037 = vmatpush1.bf16.msra.mxu0 %v3065
      %4038 = vmatprep.subr.bf16.mxu0 0
      %4039 = vmatpush1.bf16.msra.mxu0 %v3066
      %4040 = vmatprep.subr.bf16.mxu0 0
      %4041 = vmatpush1.bf16.msra.mxu0 %v3067
      %4042 = vmatprep.subr.bf16.mxu0 0
      %4043 = vmatpush1.bf16.msra.mxu0 %v3068
      %4044 = vmatprep.mubr.bf16.mxu0 %v1290
      %4045 = vmatmul.mubr.bf16.gmra.mrb[0].mxu0 %v1289
      %v4046 = vpop.f32.mrb[0].mxu0
      %v4047 = vadd.f32 %v4006, %v4046
      %v4048 = vpop.f32.mrb[0].mxu0
      %v4049 = vpop.f32.mrb[0].mxu0
      %v4050 = vadd.f32 %v4009, %v4049
      %v4051 = vpop.f32.mrb[0].mxu0
      %4052 = vdwg.mxu0
      %4053 = vmatprep.subr.bf16.mxu0 0
      %4054 = vmatpush1.bf16.msra.mxu0 %v3069
      %4055 = vmatprep.subr.bf16.mxu0 0
      %4056 = vmatpush1.bf16.msra.mxu0 %v3070
      %4057 = vmatprep.subr.bf16.mxu0 0
      %4058 = vmatpush1.bf16.msra.mxu0 %v3071
      %4059 = vmatprep.subr.bf16.mxu0 0
      %4060 = vmatpush1.bf16.msra.mxu0 %v3072
      %4061 = vmatprep.subr.bf16.mxu0 0
      %4062 = vmatpush1.bf16.msra.mxu0 %v3073
      %4063 = vmatprep.subr.bf16.mxu0 0
      %4064 = vmatpush1.bf16.msra.mxu0 %v3074
      %4065 = vmatprep.subr.bf16.mxu0 0
      %4066 = vmatpush1.bf16.msra.mxu0 %v3075
      %4067 = vmatprep.subr.bf16.mxu0 0
      %4068 = vmatpush1.bf16.msra.mxu0 %v3076
      %4069 = vmatprep.subr.bf16.mxu0 0
      %4070 = vmatpush1.bf16.msra.mxu0 %v3077
      %4071 = vmatprep.subr.bf16.mxu0 0
      %4072 = vmatpush1.bf16.msra.mxu0 %v3078
      %4073 = vmatprep.subr.bf16.mxu0 0
      %4074 = vmatpush1.bf16.msra.mxu0 %v3079
      %4075 = vmatprep.subr.bf16.mxu0 0
      %4076 = vmatpush1.bf16.msra.mxu0 %v3080
      %4077 = vmatprep.subr.bf16.mxu0 0
      %4078 = vmatpush1.bf16.msra.mxu0 %v3081
      %4079 = vmatprep.subr.bf16.mxu0 0
      %4080 = vmatpush1.bf16.msra.mxu0 %v3082
      %4081 = vmatprep.subr.bf16.mxu0 0
      %4082 = vmatpush1.bf16.msra.mxu0 %v3083
      %4083 = vmatprep.subr.bf16.mxu0 0
      %4084 = vmatpush1.bf16.msra.mxu0 %v3084
      %4085 = vmatprep.mubr.bf16.mxu0 %v1292
      %4086 = vmatmul.mubr.bf16.gmra.mrb[0].mxu0 %v1291
      %v4087 = vpop.f32.mrb[0].mxu0
      %v4088 = vadd.f32 %v4047, %v4087
      %v4089 = vpop.f32.mrb[0].mxu0
      %v4090 = vpop.f32.mrb[0].mxu0
      %v4091 = vadd.f32 %v4050, %v4090
      %v4092 = vpop.f32.mrb[0].mxu0
      %4093 = vdwg.mxu0
      %4094 = vmatprep.subr.bf16.mxu0 0
      %4095 = vmatpush1.bf16.msra.mxu0 %v3085
      %4096 = vmatprep.subr.bf16.mxu0 0
      %4097 = vmatpush1.bf16.msra.mxu0 %v3086
      %4098 = vmatprep.subr.bf16.mxu0 0
      %4099 = vmatpush1.bf16.msra.mxu0 %v3087
      %4100 = vmatprep.subr.bf16.mxu0 0
      %4101 = vmatpush1.bf16.msra.mxu0 %v3088
      %4102 = vmatprep.subr.bf16.mxu0 0
      %4103 = vmatpush1.bf16.msra.mxu0 %v3089
      %4104 = vmatprep.subr.bf16.mxu0 0
      %4105 = vmatpush1.bf16.msra.mxu0 %v3090
      %4106 = vmatprep.subr.bf16.mxu0 0
      %4107 = vmatpush1.bf16.msra.mxu0 %v3091
      %4108 = vmatprep.subr.bf16.mxu0 0
      %4109 = vmatpush1.bf16.msra.mxu0 %v3092
      %4110 = vmatprep.subr.bf16.mxu0 0
      %4111 = vmatpush1.bf16.msra.mxu0 %v3093
      %4112 = vmatprep.subr.bf16.mxu0 0
      %4113 = vmatpush1.bf16.msra.mxu0 %v3094
      %4114 = vmatprep.subr.bf16.mxu0 0
      %4115 = vmatpush1.bf16.msra.mxu0 %v3095
      %4116 = vmatprep.subr.bf16.mxu0 0
      %4117 = vmatpush1.bf16.msra.mxu0 %v3096
      %4118 = vmatprep.subr.bf16.mxu0 0
      %4119 = vmatpush1.bf16.msra.mxu0 %v3097
      %4120 = vmatprep.subr.bf16.mxu0 0
      %4121 = vmatpush1.bf16.msra.mxu0 %v3098
      %4122 = vmatprep.subr.bf16.mxu0 0
      %4123 = vmatpush1.bf16.msra.mxu0 %v3099
      %4124 = vmatprep.subr.bf16.mxu0 0
      %4125 = vmatpush1.bf16.msra.mxu0 %v3100
      %4126 = vmatprep.mubr.bf16.mxu0 %v1294
      %4127 = vmatmul.mubr.bf16.gmra.mrb[0].mxu0 %v1293
      %v4128 = vpop.f32.mrb[0].mxu0
      %v4129 = vadd.f32 %v4088, %v4128
      %v4130 = vpop.f32.mrb[0].mxu0
      %v4131 = vpop.f32.mrb[0].mxu0
      %v4132 = vadd.f32 %v4091, %v4131
      %v4133 = vpop.f32.mrb[0].mxu0
      %4134 = vdwg.mxu0
      %4135 = vmatprep.subr.bf16.mxu0 0
      %4136 = vmatpush1.bf16.msra.mxu0 %v3101
      %4137 = vmatprep.subr.bf16.mxu0 0
      %4138 = vmatpush1.bf16.msra.mxu0 %v3102
      %4139 = vmatprep.subr.bf16.mxu0 0
      %4140 = vmatpush1.bf16.msra.mxu0 %v3103
      %4141 = vmatprep.subr.bf16.mxu0 0
      %4142 = vmatpush1.bf16.msra.mxu0 %v3104
      %4143 = vmatprep.subr.bf16.mxu0 0
      %4144 = vmatpush1.bf16.msra.mxu0 %v3105
      %4145 = vmatprep.subr.bf16.mxu0 0
      %4146 = vmatpush1.bf16.msra.mxu0 %v3106
      %4147 = vmatprep.subr.bf16.mxu0 0
      %4148 = vmatpush1.bf16.msra.mxu0 %v3107
      %4149 = vmatprep.subr.bf16.mxu0 0
      %4150 = vmatpush1.bf16.msra.mxu0 %v3108
      %4151 = vmatprep.subr.bf16.mxu0 0
      %4152 = vmatpush1.bf16.msra.mxu0 %v3109
      %4153 = vmatprep.subr.bf16.mxu0 0
      %4154 = vmatpush1.bf16.msra.mxu0 %v3110
      %4155 = vmatprep.subr.bf16.mxu0 0
      %4156 = vmatpush1.bf16.msra.mxu0 %v3111
      %4157 = vmatprep.subr.bf16.mxu0 0
      %4158 = vmatpush1.bf16.msra.mxu0 %v3112
      %4159 = vmatprep.subr.bf16.mxu0 0
      %4160 = vmatpush1.bf16.msra.mxu0 %v3113
      %4161 = vmatprep.subr.bf16.mxu0 0
      %4162 = vmatpush1.bf16.msra.mxu0 %v3114
      %4163 = vmatprep.subr.bf16.mxu0 0
      %4164 = vmatpush1.bf16.msra.mxu0 %v3115
      %4165 = vmatprep.subr.bf16.mxu0 0
      %4166 = vmatpush1.bf16.msra.mxu0 %v3116
      %4167 = vmatprep.mubr.bf16.mxu0 %v1296
      %4168 = vmatmul.mubr.bf16.gmra.mrb[0].mxu0 %v1295
      %v4169 = vpop.f32.mrb[0].mxu0
      %v4170 = vadd.f32 %v4129, %v4169
      %v4171 = vpop.f32.mrb[0].mxu0
      %v4172 = vpop.f32.mrb[0].mxu0
      %v4173 = vadd.f32 %v4132, %v4172
      %v4174 = vpop.f32.mrb[0].mxu0
      %4175 = vdwg.mxu0
      %4176 = vmatprep.subr.bf16.mxu0 0
      %4177 = vmatpush1.bf16.msra.mxu0 %v3117
      %4178 = vmatprep.subr.bf16.mxu0 0
      %4179 = vmatpush1.bf16.msra.mxu0 %v3118
      %4180 = vmatprep.subr.bf16.mxu0 0
      %4181 = vmatpush1.bf16.msra.mxu0 %v3119
      %4182 = vmatprep.subr.bf16.mxu0 0
      %4183 = vmatpush1.bf16.msra.mxu0 %v3120
      %4184 = vmatprep.subr.bf16.mxu0 0
      %4185 = vmatpush1.bf16.msra.mxu0 %v3121
      %4186 = vmatprep.subr.bf16.mxu0 0
      %4187 = vmatpush1.bf16.msra.mxu0 %v3122
      %4188 = vmatprep.subr.bf16.mxu0 0
      %4189 = vmatpush1.bf16.msra.mxu0 %v3123
      %4190 = vmatprep.subr.bf16.mxu0 0
      %4191 = vmatpush1.bf16.msra.mxu0 %v3124
      %4192 = vmatprep.subr.bf16.mxu0 0
      %4193 = vmatpush1.bf16.msra.mxu0 %v3125
      %4194 = vmatprep.subr.bf16.mxu0 0
      %4195 = vmatpush1.bf16.msra.mxu0 %v3126
      %4196 = vmatprep.subr.bf16.mxu0 0
      %4197 = vmatpush1.bf16.msra.mxu0 %v3127
      %4198 = vmatprep.subr.bf16.mxu0 0
      %4199 = vmatpush1.bf16.msra.mxu0 %v3128
      %4200 = vmatprep.subr.bf16.mxu0 0
      %4201 = vmatpush1.bf16.msra.mxu0 %v3129
      %4202 = vmatprep.subr.bf16.mxu0 0
      %4203 = vmatpush1.bf16.msra.mxu0 %v3130
      %4204 = vmatprep.subr.bf16.mxu0 0
      %4205 = vmatpush1.bf16.msra.mxu0 %v3131
      %4206 = vmatprep.subr.bf16.mxu0 0
      %4207 = vmatpush1.bf16.msra.mxu0 %v3132
      %4208 = vmatprep.mubr.bf16.mxu0 %v1298
      %4209 = vmatmul.mubr.bf16.gmra.mrb[0].mxu0 %v1297
      %v4210 = vpop.f32.mrb[0].mxu0
      %v4211 = vadd.f32 %v4170, %v4210
      %v4212 = vpop.f32.mrb[0].mxu0
      %v4213 = vpop.f32.mrb[0].mxu0
      %v4214 = vadd.f32 %v4173, %v4213
      %v4215 = vpop.f32.mrb[0].mxu0
      %4216 = vdwg.mxu0
      %4217 = vmatprep.subr.bf16.mxu0 0
      %4218 = vmatpush1.bf16.msra.mxu0 %v3133
      %4219 = vmatprep.subr.bf16.mxu0 0
      %4220 = vmatpush1.bf16.msra.mxu0 %v3134
      %4221 = vmatprep.subr.bf16.mxu0 0
      %4222 = vmatpush1.bf16.msra.mxu0 %v3135
      %4223 = vmatprep.subr.bf16.mxu0 0
      %4224 = vmatpush1.bf16.msra.mxu0 %v3136
      %4225 = vmatprep.subr.bf16.mxu0 0
      %4226 = vmatpush1.bf16.msra.mxu0 %v3137
      %4227 = vmatprep.subr.bf16.mxu0 0
      %4228 = vmatpush1.bf16.msra.mxu0 %v3138
      %4229 = vmatprep.subr.bf16.mxu0 0
      %4230 = vmatpush1.bf16.msra.mxu0 %v3139
      %4231 = vmatprep.subr.bf16.mxu0 0
      %4232 = vmatpush1.bf16.msra.mxu0 %v3140
      %4233 = vmatprep.subr.bf16.mxu0 0
      %4234 = vmatpush1.bf16.msra.mxu0 %v3141
      %4235 = vmatprep.subr.bf16.mxu0 0
      %4236 = vmatpush1.bf16.msra.mxu0 %v3142
      %4237 = vmatprep.subr.bf16.mxu0 0
      %4238 = vmatpush1.bf16.msra.mxu0 %v3143
      %4239 = vmatprep.subr.bf16.mxu0 0
      %4240 = vmatpush1.bf16.msra.mxu0 %v3144
      %4241 = vmatprep.subr.bf16.mxu0 0
      %4242 = vmatpush1.bf16.msra.mxu0 %v3145
      %4243 = vmatprep.subr.bf16.mxu0 0
      %4244 = vmatpush1.bf16.msra.mxu0 %v3146
      %4245 = vmatprep.subr.bf16.mxu0 0
      %4246 = vmatpush1.bf16.msra.mxu0 %v3147
      %4247 = vmatprep.subr.bf16.mxu0 0
      %4248 = vmatpush1.bf16.msra.mxu0 %v3148
      %4249 = vmatprep.mubr.bf16.mxu0 %v1300
      %4250 = vmatmul.mubr.bf16.gmra.mrb[0].mxu0 %v1299
      %v4251 = vpop.f32.mrb[0].mxu0
      %v4252 = vadd.f32 %v4211, %v4251
      %v4253 = vpop.f32.mrb[0].mxu0
      %v4254 = vpop.f32.mrb[0].mxu0
      %v4255 = vadd.f32 %v4214, %v4254
      %v4256 = vpop.f32.mrb[0].mxu0
      %4257 = vdwg.mxu0
      %4258 = vmatprep.subr.bf16.mxu0 0
      %4259 = vmatpush1.bf16.msra.mxu0 %v3149
      %4260 = vmatprep.subr.bf16.mxu0 0
      %4261 = vmatpush1.bf16.msra.mxu0 %v3150
      %4262 = vmatprep.subr.bf16.mxu0 0
      %4263 = vmatpush1.bf16.msra.mxu0 %v3151
      %4264 = vmatprep.subr.bf16.mxu0 0
      %4265 = vmatpush1.bf16.msra.mxu0 %v3152
      %4266 = vmatprep.subr.bf16.mxu0 0
      %4267 = vmatpush1.bf16.msra.mxu0 %v3153
      %4268 = vmatprep.subr.bf16.mxu0 0
      %4269 = vmatpush1.bf16.msra.mxu0 %v3154
      %4270 = vmatprep.subr.bf16.mxu0 0
      %4271 = vmatpush1.bf16.msra.mxu0 %v3155
      %4272 = vmatprep.subr.bf16.mxu0 0
      %4273 = vmatpush1.bf16.msra.mxu0 %v3156
      %4274 = vmatprep.subr.bf16.mxu0 0
      %4275 = vmatpush1.bf16.msra.mxu0 %v3157
      %4276 = vmatprep.subr.bf16.mxu0 0
      %4277 = vmatpush1.bf16.msra.mxu0 %v3158
      %4278 = vmatprep.subr.bf16.mxu0 0
      %4279 = vmatpush1.bf16.msra.mxu0 %v3159
      %4280 = vmatprep.subr.bf16.mxu0 0
      %4281 = vmatpush1.bf16.msra.mxu0 %v3160
      %4282 = vmatprep.subr.bf16.mxu0 0
      %4283 = vmatpush1.bf16.msra.mxu0 %v3161
      %4284 = vmatprep.subr.bf16.mxu0 0
      %4285 = vmatpush1.bf16.msra.mxu0 %v3162
      %4286 = vmatprep.subr.bf16.mxu0 0
      %4287 = vmatpush1.bf16.msra.mxu0 %v3163
      %4288 = vmatprep.subr.bf16.mxu0 0
      %4289 = vmatpush1.bf16.msra.mxu0 %v3164
      %4290 = vmatprep.mubr.bf16.mxu0 %v1302
      %4291 = vmatmul.mubr.bf16.gmra.mrb[0].mxu0 %v1301
      %v4292 = vpop.f32.mrb[0].mxu0
      %v4293 = vadd.f32 %v4252, %v4292
      %v4294 = vpop.f32.mrb[0].mxu0
      %v4295 = vpop.f32.mrb[0].mxu0
      %v4296 = vadd.f32 %v4255, %v4295
      %v4297 = vpop.f32.mrb[0].mxu0
      %4298 = vdwg.mxu0
      %4299 = vmatprep.subr.bf16.mxu0 0
      %4300 = vmatpush1.bf16.msra.mxu0 %v3165
      %4301 = vmatprep.subr.bf16.mxu0 0
      %4302 = vmatpush1.bf16.msra.mxu0 %v3166
      %4303 = vmatprep.subr.bf16.mxu0 0
      %4304 = vmatpush1.bf16.msra.mxu0 %v3167
      %4305 = vmatprep.subr.bf16.mxu0 0
      %4306 = vmatpush1.bf16.msra.mxu0 %v3168
      %4307 = vmatprep.subr.bf16.mxu0 0
      %4308 = vmatpush1.bf16.msra.mxu0 %v3169
      %4309 = vmatprep.subr.bf16.mxu0 0
      %4310 = vmatpush1.bf16.msra.mxu0 %v3170
      %4311 = vmatprep.subr.bf16.mxu0 0
      %4312 = vmatpush1.bf16.msra.mxu0 %v3171
      %4313 = vmatprep.subr.bf16.mxu0 0
      %4314 = vmatpush1.bf16.msra.mxu0 %v3172
      %4315 = vmatprep.subr.bf16.mxu0 0
      %4316 = vmatpush1.bf16.msra.mxu0 %v3173
      %4317 = vmatprep.subr.bf16.mxu0 0
      %4318 = vmatpush1.bf16.msra.mxu0 %v3174
      %4319 = vmatprep.subr.bf16.mxu0 0
      %4320 = vmatpush1.bf16.msra.mxu0 %v3175
      %4321 = vmatprep.subr.bf16.mxu0 0
      %4322 = vmatpush1.bf16.msra.mxu0 %v3176
      %4323 = vmatprep.subr.bf16.mxu0 0
      %4324 = vmatpush1.bf16.msra.mxu0 %v3177
      %4325 = vmatprep.subr.bf16.mxu0 0
      %4326 = vmatpush1.bf16.msra.mxu0 %v3178
      %4327 = vmatprep.subr.bf16.mxu0 0
      %4328 = vmatpush1.bf16.msra.mxu0 %v3179
      %4329 = vmatprep.subr.bf16.mxu0 0
      %4330 = vmatpush1.bf16.msra.mxu0 %v3180
      %4331 = vmatprep.mubr.bf16.mxu0 %v1304
      %4332 = vmatmul.mubr.bf16.gmra.mrb[0].mxu0 %v1303
      %v4333 = vpop.f32.mrb[0].mxu0
      %v4334 = vadd.f32 %v4293, %v4333
      %v4335 = vpop.f32.mrb[0].mxu0
      %v4336 = vpop.f32.mrb[0].mxu0
      %v4337 = vadd.f32 %v4296, %v4336
      %v4338 = vpop.f32.mrb[0].mxu0
      %4339 = vdwg.mxu0
      %4340 = vmatprep.subr.bf16.mxu0 0
      %4341 = vmatpush1.bf16.msra.mxu0 %v3181
      %4342 = vmatprep.subr.bf16.mxu0 0
      %4343 = vmatpush1.bf16.msra.mxu0 %v3182
      %4344 = vmatprep.subr.bf16.mxu0 0
      %4345 = vmatpush1.bf16.msra.mxu0 %v3183
      %4346 = vmatprep.subr.bf16.mxu0 0
      %4347 = vmatpush1.bf16.msra.mxu0 %v3184
      %4348 = vmatprep.subr.bf16.mxu0 0
      %4349 = vmatpush1.bf16.msra.mxu0 %v3185
      %4350 = vmatprep.subr.bf16.mxu0 0
      %4351 = vmatpush1.bf16.msra.mxu0 %v3186
      %4352 = vmatprep.subr.bf16.mxu0 0
      %4353 = vmatpush1.bf16.msra.mxu0 %v3187
      %4354 = vmatprep.subr.bf16.mxu0 0
      %4355 = vmatpush1.bf16.msra.mxu0 %v3188
      %4356 = vmatprep.subr.bf16.mxu0 0
      %4357 = vmatpush1.bf16.msra.mxu0 %v3189
      %4358 = vmatprep.subr.bf16.mxu0 0
      %4359 = vmatpush1.bf16.msra.mxu0 %v3190
      %4360 = vmatprep.subr.bf16.mxu0 0
      %4361 = vmatpush1.bf16.msra.mxu0 %v3191
      %4362 = vmatprep.subr.bf16.mxu0 0
      %4363 = vmatpush1.bf16.msra.mxu0 %v3192
      %4364 = vmatprep.subr.bf16.mxu0 0
      %4365 = vmatpush1.bf16.msra.mxu0 %v3193
      %4366 = vmatprep.subr.bf16.mxu0 0
      %4367 = vmatpush1.bf16.msra.mxu0 %v3194
      %4368 = vmatprep.subr.bf16.mxu0 0
      %4369 = vmatpush1.bf16.msra.mxu0 %v3195
      %4370 = vmatprep.subr.bf16.mxu0 0
      %4371 = vmatpush1.bf16.msra.mxu0 %v3196
      %4372 = vmatprep.mubr.bf16.mxu0 %v1306
      %4373 = vmatmul.mubr.bf16.gmra.mrb[0].mxu0 %v1305
      %v4374 = vpop.f32.mrb[0].mxu0
      %v4375 = vadd.f32 %v4334, %v4374
      %v4376 = vpop.f32.mrb[0].mxu0
      %v4377 = vpop.f32.mrb[0].mxu0
      %v4378 = vadd.f32 %v4337, %v4377
      %v4379 = vpop.f32.mrb[0].mxu0
      %4380 = vdwg.mxu0
      %4381 = vmatprep.subr.bf16.mxu0 0
      %4382 = vmatpush1.bf16.msra.mxu0 %v3197
      %4383 = vmatprep.subr.bf16.mxu0 0
      %4384 = vmatpush1.bf16.msra.mxu0 %v3198
      %4385 = vmatprep.subr.bf16.mxu0 0
      %4386 = vmatpush1.bf16.msra.mxu0 %v3199
      %4387 = vmatprep.subr.bf16.mxu0 0
      %4388 = vmatpush1.bf16.msra.mxu0 %v3200
      %4389 = vmatprep.subr.bf16.mxu0 0
      %4390 = vmatpush1.bf16.msra.mxu0 %v3201
      %4391 = vmatprep.subr.bf16.mxu0 0
      %4392 = vmatpush1.bf16.msra.mxu0 %v3202
      %4393 = vmatprep.subr.bf16.mxu0 0
      %4394 = vmatpush1.bf16.msra.mxu0 %v3203
      %4395 = vmatprep.subr.bf16.mxu0 0
      %4396 = vmatpush1.bf16.msra.mxu0 %v3204
      %4397 = vmatprep.subr.bf16.mxu0 0
      %4398 = vmatpush1.bf16.msra.mxu0 %v3205
      %4399 = vmatprep.subr.bf16.mxu0 0
      %4400 = vmatpush1.bf16.msra.mxu0 %v3206
      %4401 = vmatprep.subr.bf16.mxu0 0
      %4402 = vmatpush1.bf16.msra.mxu0 %v3207
      %4403 = vmatprep.subr.bf16.mxu0 0
      %4404 = vmatpush1.bf16.msra.mxu0 %v3208
      %4405 = vmatprep.subr.bf16.mxu0 0
      %4406 = vmatpush1.bf16.msra.mxu0 %v3209
      %4407 = vmatprep.subr.bf16.mxu0 0
      %4408 = vmatpush1.bf16.msra.mxu0 %v3210
      %4409 = vmatprep.subr.bf16.mxu0 0
      %4410 = vmatpush1.bf16.msra.mxu0 %v3211
      %4411 = vmatprep.subr.bf16.mxu0 0
      %4412 = vmatpush1.bf16.msra.mxu0 %v3212
      %4413 = vmatprep.mubr.bf16.mxu0 %v1308
      %4414 = vmatmul.mubr.bf16.gmra.mrb[0].mxu0 %v1307
      %v4415 = vpop.f32.mrb[0].mxu0
      %v4416 = vadd.f32 %v4375, %v4415
      %v4417 = vpop.f32.mrb[0].mxu0
      %v4418 = vpop.f32.mrb[0].mxu0
      %v4419 = vadd.f32 %v4378, %v4418
      %v4420 = vpop.f32.mrb[0].mxu0
      %4421 = vdwg.mxu0
      %4422 = vmatprep.subr.bf16.mxu0 0
      %4423 = vmatpush1.bf16.msra.mxu0 %v3213
      %4424 = vmatprep.subr.bf16.mxu0 0
      %4425 = vmatpush1.bf16.msra.mxu0 %v3214
      %4426 = vmatprep.subr.bf16.mxu0 0
      %4427 = vmatpush1.bf16.msra.mxu0 %v3215
      %4428 = vmatprep.subr.bf16.mxu0 0
      %4429 = vmatpush1.bf16.msra.mxu0 %v3216
      %4430 = vmatprep.subr.bf16.mxu0 0
      %4431 = vmatpush1.bf16.msra.mxu0 %v3217
      %4432 = vmatprep.subr.bf16.mxu0 0
      %4433 = vmatpush1.bf16.msra.mxu0 %v3218
      %4434 = vmatprep.subr.bf16.mxu0 0
      %4435 = vmatpush1.bf16.msra.mxu0 %v3219
      %4436 = vmatprep.subr.bf16.mxu0 0
      %4437 = vmatpush1.bf16.msra.mxu0 %v3220
      %4438 = vmatprep.subr.bf16.mxu0 0
      %4439 = vmatpush1.bf16.msra.mxu0 %v3221
      %4440 = vmatprep.subr.bf16.mxu0 0
      %4441 = vmatpush1.bf16.msra.mxu0 %v3222
      %4442 = vmatprep.subr.bf16.mxu0 0
      %4443 = vmatpush1.bf16.msra.mxu0 %v3223
      %4444 = vmatprep.subr.bf16.mxu0 0
      %4445 = vmatpush1.bf16.msra.mxu0 %v3224
      %4446 = vmatprep.subr.bf16.mxu0 0
      %4447 = vmatpush1.bf16.msra.mxu0 %v3225
      %4448 = vmatprep.subr.bf16.mxu0 0
      %4449 = vmatpush1.bf16.msra.mxu0 %v3226
      %4450 = vmatprep.subr.bf16.mxu0 0
      %4451 = vmatpush1.bf16.msra.mxu0 %v3227
      %4452 = vmatprep.subr.bf16.mxu0 0
      %4453 = vmatpush1.bf16.msra.mxu0 %v3228
      %4454 = vmatprep.mubr.bf16.mxu0 %v1310
      %4455 = vmatmul.mubr.bf16.gmra.mrb[0].mxu0 %v1309
      %v4456 = vpop.f32.mrb[0].mxu0
      %v4457 = vadd.f32 %v4416, %v4456
      %v4458 = vpop.f32.mrb[0].mxu0
      %v4459 = vpop.f32.mrb[0].mxu0
      %v4460 = vadd.f32 %v4419, %v4459
      %v4461 = vpop.f32.mrb[0].mxu0
      %4462 = vdwg.mxu0
      %4463 = vmatprep.subr.bf16.mxu0 0
      %4464 = vmatpush1.bf16.msra.mxu0 %v3229
      %4465 = vmatprep.subr.bf16.mxu0 0
      %4466 = vmatpush1.bf16.msra.mxu0 %v3230
      %4467 = vmatprep.subr.bf16.mxu0 0
      %4468 = vmatpush1.bf16.msra.mxu0 %v3231
      %4469 = vmatprep.subr.bf16.mxu0 0
      %4470 = vmatpush1.bf16.msra.mxu0 %v3232
      %4471 = vmatprep.subr.bf16.mxu0 0
      %4472 = vmatpush1.bf16.msra.mxu0 %v3233
      %4473 = vmatprep.subr.bf16.mxu0 0
      %4474 = vmatpush1.bf16.msra.mxu0 %v3234
      %4475 = vmatprep.subr.bf16.mxu0 0
      %4476 = vmatpush1.bf16.msra.mxu0 %v3235
      %4477 = vmatprep.subr.bf16.mxu0 0
      %4478 = vmatpush1.bf16.msra.mxu0 %v3236
      %4479 = vmatprep.subr.bf16.mxu0 0
      %4480 = vmatpush1.bf16.msra.mxu0 %v3237
      %4481 = vmatprep.subr.bf16.mxu0 0
      %4482 = vmatpush1.bf16.msra.mxu0 %v3238
      %4483 = vmatprep.subr.bf16.mxu0 0
      %4484 = vmatpush1.bf16.msra.mxu0 %v3239
      %4485 = vmatprep.subr.bf16.mxu0 0
      %4486 = vmatpush1.bf16.msra.mxu0 %v3240
      %4487 = vmatprep.subr.bf16.mxu0 0
      %4488 = vmatpush1.bf16.msra.mxu0 %v3241
      %4489 = vmatprep.subr.bf16.mxu0 0
      %4490 = vmatpush1.bf16.msra.mxu0 %v3242
      %4491 = vmatprep.subr.bf16.mxu0 0
      %4492 = vmatpush1.bf16.msra.mxu0 %v3243
      %4493 = vmatprep.subr.bf16.mxu0 0
      %4494 = vmatpush1.bf16.msra.mxu0 %v3244
      %4495 = vmatprep.mubr.bf16.mxu0 %v1312
      %4496 = vmatmul.mubr.bf16.gmra.mrb[0].mxu0 %v1311
      %v4497 = vpop.f32.mrb[0].mxu0
      %v4498 = vadd.f32 %v4457, %v4497
      %v4499 = vpop.f32.mrb[0].mxu0
      %v4500 = vpop.f32.mrb[0].mxu0
      %v4501 = vadd.f32 %v4460, %v4500
      %v4502 = vpop.f32.mrb[0].mxu0
      %4503 = vdwg.mxu0
      %4504 = vmatprep.subr.bf16.mxu0 0
      %4505 = vmatpush1.bf16.msra.mxu0 %v3245
      %4506 = vmatprep.subr.bf16.mxu0 0
      %4507 = vmatpush1.bf16.msra.mxu0 %v3246
      %4508 = vmatprep.subr.bf16.mxu0 0
      %4509 = vmatpush1.bf16.msra.mxu0 %v3247
      %4510 = vmatprep.subr.bf16.mxu0 0
      %4511 = vmatpush1.bf16.msra.mxu0 %v3248
      %4512 = vmatprep.subr.bf16.mxu0 0
      %4513 = vmatpush1.bf16.msra.mxu0 %v3249
      %4514 = vmatprep.subr.bf16.mxu0 0
      %4515 = vmatpush1.bf16.msra.mxu0 %v3250
      %4516 = vmatprep.subr.bf16.mxu0 0
      %4517 = vmatpush1.bf16.msra.mxu0 %v3251
      %4518 = vmatprep.subr.bf16.mxu0 0
      %4519 = vmatpush1.bf16.msra.mxu0 %v3252
      %4520 = vmatprep.subr.bf16.mxu0 0
      %4521 = vmatpush1.bf16.msra.mxu0 %v3253
      %4522 = vmatprep.subr.bf16.mxu0 0
      %4523 = vmatpush1.bf16.msra.mxu0 %v3254
      %4524 = vmatprep.subr.bf16.mxu0 0
      %4525 = vmatpush1.bf16.msra.mxu0 %v3255
      %4526 = vmatprep.subr.bf16.mxu0 0
      %4527 = vmatpush1.bf16.msra.mxu0 %v3256
      %4528 = vmatprep.subr.bf16.mxu0 0
      %4529 = vmatpush1.bf16.msra.mxu0 %v3257
      %4530 = vmatprep.subr.bf16.mxu0 0
      %4531 = vmatpush1.bf16.msra.mxu0 %v3258
      %4532 = vmatprep.subr.bf16.mxu0 0
      %4533 = vmatpush1.bf16.msra.mxu0 %v3259
      %4534 = vmatprep.subr.bf16.mxu0 0
      %4535 = vmatpush1.bf16.msra.mxu0 %v3260
      %4536 = vmatprep.mubr.bf16.mxu0 %v1314
      %4537 = vmatmul.mubr.bf16.gmra.mrb[0].mxu0 %v1313
      %v4538 = vpop.f32.mrb[0].mxu0
      %v4539 = vadd.f32 %v4498, %v4538
      %v4540 = vpop.f32.mrb[0].mxu0
      %v4541 = vpop.f32.mrb[0].mxu0
      %v4542 = vadd.f32 %v4501, %v4541
      %v4543 = vpop.f32.mrb[0].mxu0
      %4544 = vdwg.mxu0
      %4545 = vmatprep.subr.bf16.mxu0 0
      %4546 = vmatpush1.bf16.msra.mxu0 %v3261
      %4547 = vmatprep.subr.bf16.mxu0 0
      %4548 = vmatpush1.bf16.msra.mxu0 %v3262
      %4549 = vmatprep.subr.bf16.mxu0 0
      %4550 = vmatpush1.bf16.msra.mxu0 %v3263
      %4551 = vmatprep.subr.bf16.mxu0 0
      %4552 = vmatpush1.bf16.msra.mxu0 %v3264
      %4553 = vmatprep.subr.bf16.mxu0 0
      %4554 = vmatpush1.bf16.msra.mxu0 %v3265
      %4555 = vmatprep.subr.bf16.mxu0 0
      %4556 = vmatpush1.bf16.msra.mxu0 %v3266
      %4557 = vmatprep.subr.bf16.mxu0 0
      %4558 = vmatpush1.bf16.msra.mxu0 %v3267
      %4559 = vmatprep.subr.bf16.mxu0 0
      %4560 = vmatpush1.bf16.msra.mxu0 %v3268
      %4561 = vmatprep.subr.bf16.mxu0 0
      %4562 = vmatpush1.bf16.msra.mxu0 %v3269
      %4563 = vmatprep.subr.bf16.mxu0 0
      %4564 = vmatpush1.bf16.msra.mxu0 %v3270
      %4565 = vmatprep.subr.bf16.mxu0 0
      %4566 = vmatpush1.bf16.msra.mxu0 %v3271
      %4567 = vmatprep.subr.bf16.mxu0 0
      %4568 = vmatpush1.bf16.msra.mxu0 %v3272
      %4569 = vmatprep.subr.bf16.mxu0 0
      %4570 = vmatpush1.bf16.msra.mxu0 %v3273
      %4571 = vmatprep.subr.bf16.mxu0 0
      %4572 = vmatpush1.bf16.msra.mxu0 %v3274
      %4573 = vmatprep.subr.bf16.mxu0 0
      %4574 = vmatpush1.bf16.msra.mxu0 %v3275
      %4575 = vmatprep.subr.bf16.mxu0 0
      %4576 = vmatpush1.bf16.msra.mxu0 %v3276
      %4577 = vmatprep.mubr.bf16.mxu0 %v1316
      %4578 = vmatmul.mubr.bf16.gmra.mrb[0].mxu0 %v1315
      %v4579 = vpop.f32.mrb[0].mxu0
      %v4580 = vadd.f32 %v4539, %v4579
      %v4581 = vpop.f32.mrb[0].mxu0
      %v4582 = vpop.f32.mrb[0].mxu0
      %v4583 = vadd.f32 %v4542, %v4582
      %v4584 = vpop.f32.mrb[0].mxu0
      %4585 = vdwg.mxu0
      %4586 = vmatprep.subr.bf16.mxu0 0
      %4587 = vmatpush1.bf16.msra.mxu0 %v3277
      %4588 = vmatprep.subr.bf16.mxu0 0
      %4589 = vmatpush1.bf16.msra.mxu0 %v3278
      %4590 = vmatprep.subr.bf16.mxu0 0
      %4591 = vmatpush1.bf16.msra.mxu0 %v3279
      %4592 = vmatprep.subr.bf16.mxu0 0
      %4593 = vmatpush1.bf16.msra.mxu0 %v3280
      %4594 = vmatprep.subr.bf16.mxu0 0
      %4595 = vmatpush1.bf16.msra.mxu0 %v3281
      %4596 = vmatprep.subr.bf16.mxu0 0
      %4597 = vmatpush1.bf16.msra.mxu0 %v3282
      %4598 = vmatprep.subr.bf16.mxu0 0
      %4599 = vmatpush1.bf16.msra.mxu0 %v3283
      %4600 = vmatprep.subr.bf16.mxu0 0
      %4601 = vmatpush1.bf16.msra.mxu0 %v3284
      %4602 = vmatprep.subr.bf16.mxu0 0
      %4603 = vmatpush1.bf16.msra.mxu0 %v3285
      %4604 = vmatprep.subr.bf16.mxu0 0
      %4605 = vmatpush1.bf16.msra.mxu0 %v3286
      %4606 = vmatprep.subr.bf16.mxu0 0
      %4607 = vmatpush1.bf16.msra.mxu0 %v3287
      %4608 = vmatprep.subr.bf16.mxu0 0
      %4609 = vmatpush1.bf16.msra.mxu0 %v3288
      %4610 = vmatprep.subr.bf16.mxu0 0
      %4611 = vmatpush1.bf16.msra.mxu0 %v3289
      %4612 = vmatprep.subr.bf16.mxu0 0
      %4613 = vmatpush1.bf16.msra.mxu0 %v3290
      %4614 = vmatprep.subr.bf16.mxu0 0
      %4615 = vmatpush1.bf16.msra.mxu0 %v3291
      %4616 = vmatprep.subr.bf16.mxu0 0
      %4617 = vmatpush1.bf16.msra.mxu0 %v3292
      %4618 = vmatprep.mubr.bf16.mxu0 %v1318
      %4619 = vmatmul.mubr.bf16.gmra.mrb[0].mxu0 %v1317
      %v4620 = vpop.f32.mrb[0].mxu0
      %v4621 = vadd.f32 %v4580, %v4620
      %v4622 = vpop.f32.mrb[0].mxu0
      %v4623 = vpop.f32.mrb[0].mxu0
      %v4624 = vadd.f32 %v4583, %v4623
      %v4625 = vpop.f32.mrb[0].mxu0
      %4626 = vdwg.mxu0
      %4627 = vmatprep.subr.bf16.mxu0 0
      %4628 = vmatpush1.bf16.msra.mxu0 %v3293
      %4629 = vmatprep.subr.bf16.mxu0 0
      %4630 = vmatpush1.bf16.msra.mxu0 %v3294
      %4631 = vmatprep.subr.bf16.mxu0 0
      %4632 = vmatpush1.bf16.msra.mxu0 %v3295
      %4633 = vmatprep.subr.bf16.mxu0 0
      %4634 = vmatpush1.bf16.msra.mxu0 %v3296
      %4635 = vmatprep.subr.bf16.mxu0 0
      %4636 = vmatpush1.bf16.msra.mxu0 %v3297
      %4637 = vmatprep.subr.bf16.mxu0 0
      %4638 = vmatpush1.bf16.msra.mxu0 %v3298
      %4639 = vmatprep.subr.bf16.mxu0 0
      %4640 = vmatpush1.bf16.msra.mxu0 %v3299
      %4641 = vmatprep.subr.bf16.mxu0 0
      %4642 = vmatpush1.bf16.msra.mxu0 %v3300
      %4643 = vmatprep.subr.bf16.mxu0 0
      %4644 = vmatpush1.bf16.msra.mxu0 %v3301
      %4645 = vmatprep.subr.bf16.mxu0 0
      %4646 = vmatpush1.bf16.msra.mxu0 %v3302
      %4647 = vmatprep.subr.bf16.mxu0 0
      %4648 = vmatpush1.bf16.msra.mxu0 %v3303
      %4649 = vmatprep.subr.bf16.mxu0 0
      %4650 = vmatpush1.bf16.msra.mxu0 %v3304
      %4651 = vmatprep.subr.bf16.mxu0 0
      %4652 = vmatpush1.bf16.msra.mxu0 %v3305
      %4653 = vmatprep.subr.bf16.mxu0 0
      %4654 = vmatpush1.bf16.msra.mxu0 %v3306
      %4655 = vmatprep.subr.bf16.mxu0 0
      %4656 = vmatpush1.bf16.msra.mxu0 %v3307
      %4657 = vmatprep.subr.bf16.mxu0 0
      %4658 = vmatpush1.bf16.msra.mxu0 %v3308
      %4659 = vmatprep.mubr.bf16.mxu0 %v1320
      %4660 = vmatmul.mubr.bf16.gmra.mrb[0].mxu0 %v1319
      %v4661 = vpop.f32.mrb[0].mxu0
      %v4662 = vadd.f32 %v4621, %v4661
      %v4663 = vpop.f32.mrb[0].mxu0
      %v4664 = vpop.f32.mrb[0].mxu0
      %v4665 = vadd.f32 %v4624, %v4664
      %v4666 = vpop.f32.mrb[0].mxu0
      %4667 = vdwg.mxu0
      %4668 = vmatprep.subr.bf16.mxu0 0
      %4669 = vmatpush1.bf16.msra.mxu0 %v3309
      %4670 = vmatprep.subr.bf16.mxu0 0
      %4671 = vmatpush1.bf16.msra.mxu0 %v3310
      %4672 = vmatprep.subr.bf16.mxu0 0
      %4673 = vmatpush1.bf16.msra.mxu0 %v3311
      %4674 = vmatprep.subr.bf16.mxu0 0
      %4675 = vmatpush1.bf16.msra.mxu0 %v3312
      %4676 = vmatprep.subr.bf16.mxu0 0
      %4677 = vmatpush1.bf16.msra.mxu0 %v3313
      %4678 = vmatprep.subr.bf16.mxu0 0
      %4679 = vmatpush1.bf16.msra.mxu0 %v3314
      %4680 = vmatprep.subr.bf16.mxu0 0
      %4681 = vmatpush1.bf16.msra.mxu0 %v3315
      %4682 = vmatprep.subr.bf16.mxu0 0
      %4683 = vmatpush1.bf16.msra.mxu0 %v3316
      %4684 = vmatprep.subr.bf16.mxu0 0
      %4685 = vmatpush1.bf16.msra.mxu0 %v3317
      %4686 = vmatprep.subr.bf16.mxu0 0
      %4687 = vmatpush1.bf16.msra.mxu0 %v3318
      %4688 = vmatprep.subr.bf16.mxu0 0
      %4689 = vmatpush1.bf16.msra.mxu0 %v3319
      %4690 = vmatprep.subr.bf16.mxu0 0
      %4691 = vmatpush1.bf16.msra.mxu0 %v3320
      %4692 = vmatprep.subr.bf16.mxu0 0
      %4693 = vmatpush1.bf16.msra.mxu0 %v3321
      %4694 = vmatprep.subr.bf16.mxu0 0
      %4695 = vmatpush1.bf16.msra.mxu0 %v3322
      %4696 = vmatprep.subr.bf16.mxu0 0
      %4697 = vmatpush1.bf16.msra.mxu0 %v3323
      %4698 = vmatprep.subr.bf16.mxu0 0
      %4699 = vmatpush1.bf16.msra.mxu0 %v3324
      %4700 = vmatprep.mubr.bf16.mxu0 %v1322
      %4701 = vmatmul.mubr.bf16.gmra.mrb[0].mxu0 %v1321
      %v4702 = vpop.f32.mrb[0].mxu0
      %v4703 = vadd.f32 %v4662, %v4702
      %v4704 = vpop.f32.mrb[0].mxu0
      %v4705 = vpop.f32.mrb[0].mxu0
      %v4706 = vadd.f32 %v4665, %v4705
      %v4707 = vpop.f32.mrb[0].mxu0
      %4708 = vdwg.mxu0
      %4709 = vmatprep.subr.bf16.mxu0 0
      %4710 = vmatpush1.bf16.msra.mxu0 %v3325
      %4711 = vmatprep.subr.bf16.mxu0 0
      %4712 = vmatpush1.bf16.msra.mxu0 %v3326
      %4713 = vmatprep.subr.bf16.mxu0 0
      %4714 = vmatpush1.bf16.msra.mxu0 %v3327
      %4715 = vmatprep.subr.bf16.mxu0 0
      %4716 = vmatpush1.bf16.msra.mxu0 %v3328
      %4717 = vmatprep.subr.bf16.mxu0 0
      %4718 = vmatpush1.bf16.msra.mxu0 %v3329
      %4719 = vmatprep.subr.bf16.mxu0 0
      %4720 = vmatpush1.bf16.msra.mxu0 %v3330
      %4721 = vmatprep.subr.bf16.mxu0 0
      %4722 = vmatpush1.bf16.msra.mxu0 %v3331
      %4723 = vmatprep.subr.bf16.mxu0 0
      %4724 = vmatpush1.bf16.msra.mxu0 %v3332
      %4725 = vmatprep.subr.bf16.mxu0 0
      %4726 = vmatpush1.bf16.msra.mxu0 0
      %4727 = vmatprep.subr.bf16.mxu0 0
      %4728 = vmatpush1.bf16.msra.mxu0 0
      %4729 = vmatprep.subr.bf16.mxu0 0
      %4730 = vmatpush1.bf16.msra.mxu0 0
      %4731 = vmatprep.subr.bf16.mxu0 0
      %4732 = vmatpush1.bf16.msra.mxu0 0
      %4733 = vmatprep.subr.bf16.mxu0 0
      %4734 = vmatpush1.bf16.msra.mxu0 0
      %4735 = vmatprep.subr.bf16.mxu0 0
      %4736 = vmatpush1.bf16.msra.mxu0 0
      %4737 = vmatprep.subr.bf16.mxu0 0
      %4738 = vmatpush1.bf16.msra.mxu0 0
      %4739 = vmatprep.subr.bf16.mxu0 0
      %4740 = vmatpush1.bf16.msra.mxu0 0
      %4741 = vmatprep.mubr.bf16.mxu0 0
      %4742 = vmatmul.mubr.bf16.gmra.mrb[0].mxu0 %v1323
      %v4743 = vpop.f32.mrb[0].mxu0
      %v4744 = vadd.f32 %v4703, %v4743
      %v4745 = vpop.f32.mrb[0].mxu0
      %v4746 = vpop.f32.mrb[0].mxu0
      %v4747 = vadd.f32 %v4706, %v4746
      %v4748 = vpop.f32.mrb[0].mxu0
      %4749 = vdwg.mxu0
      %v4750 = vmax.f32 %v4744, 0.0
      %v4751 = vmax.f32 %v4747, 0.0
      %v4752 = vpack.c.bf16 %v4751, %v4750
      %v4753 = vld [vmem:[%s3] sm:$0xf]
      %v4754 = vld [vmem:[%s3 + $0x4] sm:$0xf]
      %v4755 = vld [vmem:[%s3 + $0x8] sm:$0xf]
      %v4756 = vld [vmem:[%s3 + $0xc] sm:$0xf]
      %v4757 = vld [vmem:[%s3 + $0x10] sm:$0xf]
      %v4758 = vld [vmem:[%s3 + $0x14] sm:$0xf]
      %v4759 = vld [vmem:[%s3 + $0x18] sm:$0xf]
      %v4760 = vld [vmem:[%s3 + $0x1c] sm:$0xf]
      %v4761 = vld [vmem:[%s4] sm:$0x1]
      %v4763 = vlaneseq
      %v4764 = vshrl.u32 %v4763, 7
      %v4765 = vsub.s32 0, %v4764
      %v4766 = vrot.slane %v4761, %v4765
      %v4776 = vunpack.c.l.b16 %v4753
      %v4777 = vunpack.c.l.b16 %v4754
      %v4778 = vunpack.c.l.b16 %v4755
      %v4779 = vunpack.c.l.b16 %v4756
      %v4780 = vunpack.c.l.b16 %v4757
      %v4781 = vunpack.c.l.b16 %v4758
      %v4782 = vunpack.c.l.b16 %v4759
      %v4783 = vunpack.c.l.b16 %v4760
      %v4784 = vpack.c.b16 %v4777, %v4776
      %v4785 = vpack.c.b16 %v4779, %v4778
      %v4786 = vpack.c.b16 %v4781, %v4780
      %v4787 = vpack.c.b16 %v4783, %v4782
      %vm4792 = vcmask 523264
      %v4794 = vsel %vm4792, %v4752, 0
      %4796 = vmatprep.subr.bf16.mxu0 0
      %4797 = vmatpush1.bf16.msra.mxu0 %v4784
      %4798 = vmatprep.subr.bf16.mxu0 0
      %4799 = vmatpush1.bf16.msra.mxu0 %v4785
      %4800 = vmatprep.subr.bf16.mxu0 0
      %4801 = vmatpush1.bf16.msra.mxu0 %v4786
      %4802 = vmatprep.subr.bf16.mxu0 0
      %4803 = vmatpush1.bf16.msra.mxu0 %v4787
      %4804 = vmatprep.subr.bf16.mxu0 0
      %4805 = vmatpush1.bf16.msra.mxu0 0
      %4806 = vmatprep.subr.bf16.mxu0 0
      %4807 = vmatpush1.bf16.msra.mxu0 0
      %4808 = vmatprep.subr.bf16.mxu0 0
      %4809 = vmatpush1.bf16.msra.mxu0 0
      %4810 = vmatprep.subr.bf16.mxu0 0
      %4811 = vmatpush1.bf16.msra.mxu0 0
      %4812 = vmatprep.subr.bf16.mxu0 0
      %4813 = vmatpush1.bf16.msra.mxu0 0
      %4814 = vmatprep.subr.bf16.mxu0 0
      %4815 = vmatpush1.bf16.msra.mxu0 0
      %4816 = vmatprep.subr.bf16.mxu0 0
      %4817 = vmatpush1.bf16.msra.mxu0 0
      %4818 = vmatprep.subr.bf16.mxu0 0
      %4819 = vmatpush1.bf16.msra.mxu0 0
      %4820 = vmatprep.subr.bf16.mxu0 0
      %4821 = vmatpush1.bf16.msra.mxu0 0
      %4822 = vmatprep.subr.bf16.mxu0 0
      %4823 = vmatpush1.bf16.msra.mxu0 0
      %4824 = vmatprep.subr.bf16.mxu0 0
      %4825 = vmatpush1.bf16.msra.mxu0 0
      %4826 = vmatprep.subr.bf16.mxu0 0
      %4827 = vmatpush1.bf16.msra.mxu0 0
      %4828 = vmatprep.mubr.bf16.mxu0 0
      %4829 = vmatmul.mubr.bf16.gmra.mrb[0].mxu0 %v4794
      %v4830 = vpop.f32.mrb[0].mxu0
      %v4831 = vadd.f32 %v4766, %v4830
      %v4832 = vpop.f32.mrb[0].mxu0
      %v4833 = vpop.f32.mrb[0].mxu0
      %v4834 = vadd.f32 %v4766, %v4833
      %v4835 = vpop.f32.mrb[0].mxu0
      %4836 = vdwg.mxu0
      %v4837 = vmax.f32 %v4831, 0.0
      %v4838 = vmax.f32 %v4834, 0.0
      %v4839 = vpack.c.bf16 %v4838, %v4837
      %v4840 = vld [vmem:[%s5] sm:$0xf]
      %v4841 = vld [vmem:[%s5 + $0x4] sm:$0xf]
      %v4842 = vld [vmem:[%s5 + $0x8] sm:$0xf]
      %v4843 = vld [vmem:[%s5 + $0xc] sm:$0xf]
      %v4844 = vld [vmem:[%s5 + $0x10] sm:$0xf]
      %v4845 = vld [vmem:[%s5 + $0x14] sm:$0xf]
      %v4846 = vld [vmem:[%s5 + $0x18] sm:$0xf]
      %v4847 = vld [vmem:[%s5 + $0x1c] sm:$0xf]
      %v4848 = vld [vmem:[%s6] sm:$0x1]
      %v4850 = vlaneseq
      %v4851 = vshrl.u32 %v4850, 7
      %v4852 = vsub.s32 0, %v4851
      %v4853 = vrot.slane %v4848, %v4852
      %v4863 = vunpack.c.l.b16 %v4840
      %v4864 = vunpack.c.l.b16 %v4841
      %v4865 = vunpack.c.l.b16 %v4842
      %v4866 = vunpack.c.l.b16 %v4843
      %v4867 = vunpack.c.l.b16 %v4844
      %v4868 = vunpack.c.l.b16 %v4845
      %v4869 = vunpack.c.l.b16 %v4846
      %v4870 = vunpack.c.l.b16 %v4847
      %v4871 = vpack.c.b16 %v4864, %v4863
      %v4872 = vpack.c.b16 %v4866, %v4865
      %v4873 = vpack.c.b16 %v4868, %v4867
      %v4874 = vpack.c.b16 %v4870, %v4869
      %v4880 = vsel %vm4792, %v4839, 0
      %4882 = vmatprep.subr.bf16.mxu0 0
      %4883 = vmatpush1.bf16.msra.mxu0 %v4871
      %4884 = vmatprep.subr.bf16.mxu0 0
      %4885 = vmatpush1.bf16.msra.mxu0 %v4872
      %4886 = vmatprep.subr.bf16.mxu0 0
      %4887 = vmatpush1.bf16.msra.mxu0 %v4873
      %4888 = vmatprep.subr.bf16.mxu0 0
      %4889 = vmatpush1.bf16.msra.mxu0 %v4874
      %4890 = vmatprep.subr.bf16.mxu0 0
      %4891 = vmatpush1.bf16.msra.mxu0 0
      %4892 = vmatprep.subr.bf16.mxu0 0
      %4893 = vmatpush1.bf16.msra.mxu0 0
      %4894 = vmatprep.subr.bf16.mxu0 0
      %4895 = vmatpush1.bf16.msra.mxu0 0
      %4896 = vmatprep.subr.bf16.mxu0 0
      %4897 = vmatpush1.bf16.msra.mxu0 0
      %4898 = vmatprep.subr.bf16.mxu0 0
      %4899 = vmatpush1.bf16.msra.mxu0 0
      %4900 = vmatprep.subr.bf16.mxu0 0
      %4901 = vmatpush1.bf16.msra.mxu0 0
      %4902 = vmatprep.subr.bf16.mxu0 0
      %4903 = vmatpush1.bf16.msra.mxu0 0
      %4904 = vmatprep.subr.bf16.mxu0 0
      %4905 = vmatpush1.bf16.msra.mxu0 0
      %4906 = vmatprep.subr.bf16.mxu0 0
      %4907 = vmatpush1.bf16.msra.mxu0 0
      %4908 = vmatprep.subr.bf16.mxu0 0
      %4909 = vmatpush1.bf16.msra.mxu0 0
      %4910 = vmatprep.subr.bf16.mxu0 0
      %4911 = vmatpush1.bf16.msra.mxu0 0
      %4912 = vmatprep.subr.bf16.mxu0 0
      %4913 = vmatpush1.bf16.msra.mxu0 0
      %4914 = vmatprep.mubr.bf16.mxu0 0
      %4915 = vmatmul.mubr.bf16.gmra.mrb[0].mxu0 %v4880
      %v4916 = vpop.f32.mrb[0].mxu0
      %v4917 = vadd.f32 %v4853, %v4916
      %v4918 = vpop.f32.mrb[0].mxu0
      %v4919 = vpop.f32.mrb[0].mxu0
      %v4920 = vadd.f32 %v4853, %v4919
      %v4921 = vpop.f32.mrb[0].mxu0
      %4922 = vdwg.mxu0
      %4923 = vst [vmem:[%s283] sm:$0xff] %v4917
      %4924 = vst [vmem:[%s283 + $0x8] sm:$0xff] %v4920
      %s4925 = smul.u32 2, %s18
      %p4926 = scmp.lt.s32.totalorder %s4925, 3
      %s4927 = scalar_select %p4926, %s4925, 3
      %s4928 = smul.addr %s4927, 8
      %s4929 = scalar_lea.vmem %s7, %s4928
      // Predicated region
      $region49: #{faster_rcnn_forward.5} parent=47 // pred_check
        %p4930 = pneg %p188
      $region50: #{faster_rcnn_forward.5} parent=47 // pred_check_branch
        %4932 = sbr.rel (%p4930) target = $region52
      $region51: #{faster_rcnn_forward.5} parent=47 // pred_region
        %s4933 = smul.u32 2, %s18
      $region52: #{faster_rcnn_forward.5} parent=47 // pred_fallthru
        _
    $region48: #{faster_rcnn_forward.5} parent=5 // pred_fallthru
      _
    %p4934 = scmp.le.s32.totalorder 2, %s13
    // Predicated region
    $region53: #{faster_rcnn_forward.5} parent=5 // pred_check
      %p4935 = pneg %p4934
    $region54: #{faster_rcnn_forward.5} parent=5 // pred_check_branch
      %4937 = sbr.rel (%p4935) target = $region56
    $region55: #{faster_rcnn_forward.5} parent=5 // pred_region
      %s4938 = ssub.s32 %s13, 2
      // Predicated region
      $region57: #{faster_rcnn_forward.5} parent=55 // pred_check
        %p4939 = pneg %p194
      $region58: #{faster_rcnn_forward.5} parent=55 // pred_check_branch
        %4941 = sbr.rel (%p4939) target = $region60
      $region59: #{faster_rcnn_forward.5} parent=55 // pred_region
        %s4942 = smul.u32 2, %s19
        %p4943 = scmp.lt.s32.totalorder %s4942, 3
        %s4944 = scalar_select %p4943, %s4942, 3
        %s4945 = smul.addr %s4944, 8
        %s4946 = scalar_lea.vmem %s7, %s4945
      $region60: #{faster_rcnn_forward.5} parent=55 // pred_fallthru
        _
    $region56: #{faster_rcnn_forward.5} parent=5 // pred_fallthru
      _
  $region6: #{faster_rcnn_forward.5} parent=0 // loop_footer
    %s17 = sadd.s32 1, %s13
  $region7: #{faster_rcnn_forward.5} parent=0 // loop_footer_branch
    %12 = sbr.rel target = $region3
  $region8: #{faster_rcnn_forward.5} parent=0 // loop_exit
    _

</llo_original>
